<compile_context>
chip_gen: v7x
topology: tpu7x:2x2x1
jax: 0.10.0
libtpu: 0.0.40
codegen_flags: <defaults>
</compile_context>

<pallas_src>
import functools

import jax
import jax.numpy as jnp
from jax.experimental import pallas as pl
from jax.experimental.pallas import tpu as pltpu


# ----------------------------------------------------------------------------
# Fused kernel: conv1 -> conv2 -> conv3 -> policy / value heads.
# ----------------------------------------------------------------------------
def _othello_fused_kernel(x_ref, w1_ref, b1_ref, w2_ref, b2_ref, w3_ref, b3_ref,
                          wh_ref, bh_ref, wv2_ref, bv2_ref,
                          pol_ref, val_ref,
                          xpad_ref, patch_ref, xflat_ref):
    # x_ref    : (B, H, W, 1)  f32 board
    # w1_ref   : (9, C)        bf16 ; w2_ref/w3_ref: (9*C, C) bf16
    # b*_ref   : (1, C)        f32
    # wh_ref   : (H*W*C, NPOL + CV) bf16  fused [policy | value-hidden] weights
    # bh_ref   : (1, NPOL + CV) f32
    # wv2_ref  : (1, CV) f32 ; bv2_ref: (1, 1) f32
    # pol_ref  : (B, NPOL) f32 (lane-dense, sliced to action_size outside)
    # val_ref  : (B, 1)  f32
    # xpad_ref : (B, H+2, W+2, C) f32 scratch (zero-padded activations)
    # patch_ref: (B, H, W, 9*C)   f32 scratch (im2col patches)
    # xflat_ref: (B, H*W*C)       f32 scratch (flattened features)
    B, H, W, _ = x_ref.shape
    C = w1_ref.shape[-1]
    P = H * W
    NPOL = pol_ref.shape[-1]
    CV = wv2_ref.shape[-1]

    # Zero the padded scratch once; the border stays zero for all three convs.
    xpad_ref[...] = jnp.zeros_like(xpad_ref)
    # conv1 input lives in channel 0 of the padded interior.
    xpad_ref[:, 1:H + 1, 1:W + 1, 0:1] = x_ref[...]

    def conv3x3_relu(cin, w_ref, b_ref):
        # im2col: copy the 9 shifted taps into the patch buffer lanes.
        for kh in range(3):
            for kw in range(3):
                t = kh * 3 + kw
                patch_ref[:, :, :, t * cin:(t + 1) * cin] = (
                    xpad_ref[:, kh:kh + H, kw:kw + W, 0:cin])
        # Single MXU matmul: (B*H*W, 9*cin) @ (9*cin, C), f32 accumulation.
        pat = patch_ref[:, :, :, 0:9 * cin].reshape(B * P, 9 * cin)
        acc = jnp.dot(pat.astype(jnp.bfloat16), w_ref[...],
                      preferred_element_type=jnp.float32)
        return jnp.maximum(acc + b_ref[...], 0.0)          # (B*P, C) f32

    y = conv3x3_relu(1, w1_ref, b1_ref)
    xpad_ref[:, 1:H + 1, 1:W + 1, :] = y.reshape(B, H, W, C)
    y = conv3x3_relu(C, w2_ref, b2_ref)
    xpad_ref[:, 1:H + 1, 1:W + 1, :] = y.reshape(B, H, W, C)
    y = conv3x3_relu(C, w3_ref, b3_ref)                     # (B*P, C)

    # Flatten NHWC -> (B, H*W*C) with per-position lane-offset stores (the
    # matching NCHW row permutation was folded into wh_ref at prepare time).
    y3 = y.reshape(B, P, C)
    for p in range(P):
        xflat_ref[:, p * C:(p + 1) * C] = y3[:, p, :]

    # Fused head matmul: [policy (padded to NPOL lanes) | value hidden].
    heads = jnp.dot(xflat_ref[...].astype(jnp.bfloat16), wh_ref[...],
                    preferred_element_type=jnp.float32) + bh_ref[...]
    pol_ref[...] = heads[:, 0:NPOL]                         # lane-dense store
    h = jnp.maximum(heads[:, NPOL:NPOL + CV], 0.0)          # (B, CV)
    # Final (CV -> 1) projection as a VPU lane reduction (no N=1 MXU op).
    v = jnp.sum(h * wv2_ref[...], axis=-1, keepdims=True) + bv2_ref[...]
    val_ref[...] = jnp.tanh(v)


# ----------------------------------------------------------------------------
# Parameter init (matches the PyTorch module's shapes, stored as (in, out)).
# ----------------------------------------------------------------------------
def init_params(key, board_size, action_size):
    ks = jax.random.split(key, 10)
    s = 0.05
    flatten_dim = 64 * board_size * board_size
    return {
        "w1": s * jax.random.normal(ks[0], (3, 3, 1, 64), jnp.float32),
        "b1": s * jax.random.normal(ks[1], (64,), jnp.float32),
        "w2": s * jax.random.normal(ks[2], (3, 3, 64, 64), jnp.float32),
        "b2": s * jax.random.normal(ks[3], (64,), jnp.float32),
        "w3": s * jax.random.normal(ks[4], (3, 3, 64, 64), jnp.float32),
        "b3": s * jax.random.normal(ks[5], (64,), jnp.float32),
        "wp": s * jax.random.normal(ks[6], (flatten_dim, action_size), jnp.float32),
        "bp": s * jax.random.normal(ks[7], (action_size,), jnp.float32),
        "wv1": s * jax.random.normal(ks[8], (flatten_dim, 64), jnp.float32),
        "bv1": jnp.zeros((64,), jnp.float32),
        "wv2": s * jax.random.normal(ks[9], (64, 1), jnp.float32),
        "bv2": jnp.zeros((1,), jnp.float32),
    }


def prepare_params(params, board_size, action_size):
    """One-time weight preprocessing (layout / dtype); no runtime cost."""
    H = W = board_size
    C = 64
    F = H * W * C
    # Conv weights (3,3,Cin,Cout) -> (9*Cin, Cout): row index (kh*3+kw)*Cin+ci
    # matches the tap-major / channel-minor im2col patch layout in the kernel.
    w1 = params["w1"].reshape(9, C).astype(jnp.bfloat16)
    w2 = params["w2"].reshape(9 * C, C).astype(jnp.bfloat16)
    w3 = params["w3"].reshape(9 * C, C).astype(jnp.bfloat16)
    b1 = params["b1"].reshape(1, C).astype(jnp.float32)
    b2 = params["b2"].reshape(1, C).astype(jnp.float32)
    b3 = params["b3"].reshape(1, C).astype(jnp.float32)

    # Fold torch's NCHW x.view(B, -1) flatten order into the head weights:
    # NHWC flat index k = (h*W + w)*C + c  <->  NCHW row c*H*W + h*W + w.
    k = jnp.arange(F)
    c = k % C
    w_ = (k // C) % W
    h = k // (C * W)
    perm = c * (H * W) + h * W + w_
    wp = params["wp"][perm]                      # (F, action_size)
    wv1 = params["wv1"][perm]                    # (F, 64)

    npol = ((action_size + 127) // 128) * 128    # lane-dense policy width
    wp_pad = jnp.zeros((F, npol), jnp.float32).at[:, :action_size].set(wp)
    bp_pad = jnp.zeros((npol,), jnp.float32).at[:action_size].set(params["bp"])
    whead = jnp.concatenate([wp_pad, wv1], axis=1).astype(jnp.bfloat16)
    bhead = jnp.concatenate([bp_pad, params["bv1"]]).reshape(1, npol + 64)
    bhead = bhead.astype(jnp.float32)
    wv2 = params["wv2"].reshape(1, 64).astype(jnp.float32)
    bv2 = params["bv2"].reshape(1, 1).astype(jnp.float32)
    return dict(w1=w1, b1=b1, w2=w2, b2=b2, w3=w3, b3=b3,
                whead=whead, bhead=bhead, wv2=wv2, bv2=bv2)


# ----------------------------------------------------------------------------
# Forward wrapper: one pallas_call for the whole net.
# ----------------------------------------------------------------------------
@functools.partial(jax.jit, static_argnames=("action_size",))
def othello_net_forward(prepped, x, *, action_size):
    # x: (B, board_size, board_size) float32 in {-1, 0, +1}
    B, H, W = x.shape
    C = prepped["w1"].shape[-1]                    # 64
    CV = prepped["wv2"].shape[-1]                  # 64
    NPOL = prepped["whead"].shape[-1] - CV         # padded policy width (128)

    x4 = x.reshape(B, H, W, 1).astype(jnp.float32)
    vmem = pl.BlockSpec(memory_space=pltpu.MemorySpace.VMEM)

    pol_pad, value = pl.pallas_call(
        _othello_fused_kernel,
        out_shape=(jax.ShapeDtypeStruct((B, NPOL), jnp.float32),
                   jax.ShapeDtypeStruct((B, 1), jnp.float32)),
        in_specs=[vmem] * 11,
        out_specs=(vmem, vmem),
        scratch_shapes=[
            pltpu.VMEM((B, H + 2, W + 2, C), jnp.float32),   # padded activations
            pltpu.VMEM((B, H, W, 9 * C), jnp.float32),       # im2col patches
            pltpu.VMEM((B, H * W * C), jnp.float32),         # flattened features
        ],
    )(x4, prepped["w1"], prepped["b1"], prepped["w2"], prepped["b2"],
      prepped["w3"], prepped["b3"], prepped["whead"], prepped["bhead"],
      prepped["wv2"], prepped["bv2"])

    return pol_pad[:, :action_size], value


if __name__ == "__main__":
    board_size = 8
    action_size = board_size * board_size + 1      # 65
    batch = 2

    key = jax.random.PRNGKey(0)
    k_param, k_board = jax.random.split(key)
    params = init_params(k_param, board_size, action_size)
    prepped = prepare_params(params, board_size, action_size)

    # Board states with values in {-1, 0, +1}
    x = jax.random.randint(k_board, (batch, board_size, board_size),
                           minval=-1, maxval=2).astype(jnp.float32)

    policy_logits, value = othello_net_forward(prepped, x,
                                               action_size=action_size)
    jax.block_until_ready((policy_logits, value))

    assert policy_logits.shape == (batch, action_size)
    assert value.shape == (batch, 1)
    assert bool(jnp.all(jnp.abs(value) <= 1.0))

    print("KERNEL_OK")
</pallas_src>

<mosaic_0001>
module attributes {stable_mosaic.version = 11 : i64} {
  func.func @_othello_fused_kernel(%arg0: memref<2x8x8x1xf32, #tpu.memory_space<vmem>>, %arg1: memref<9x64xbf16, #tpu.memory_space<vmem>>, %arg2: memref<1x64xf32, #tpu.memory_space<vmem>>, %arg3: memref<576x64xbf16, #tpu.memory_space<vmem>>, %arg4: memref<1x64xf32, #tpu.memory_space<vmem>>, %arg5: memref<576x64xbf16, #tpu.memory_space<vmem>>, %arg6: memref<1x64xf32, #tpu.memory_space<vmem>>, %arg7: memref<4096x192xbf16, #tpu.memory_space<vmem>>, %arg8: memref<1x192xf32, #tpu.memory_space<vmem>>, %arg9: memref<1x64xf32, #tpu.memory_space<vmem>>, %arg10: memref<1x1xf32, #tpu.memory_space<vmem>>, %arg11: memref<2x128xf32, #tpu.memory_space<vmem>>, %arg12: memref<2x1xf32, #tpu.memory_space<vmem>>, %arg13: memref<2x10x10x64xf32, #tpu.memory_space<vmem>>, %arg14: memref<2x8x8x576xf32, #tpu.memory_space<vmem>>, %arg15: memref<2x4096xf32, #tpu.memory_space<vmem>>) attributes {dimension_semantics = [], scalar_prefetch = 0 : i64, scratch_operands = 3 : i64, tpu.core_type = #tpu.core_type<tc>} {
    %cst = arith.constant 0.000000e+00 : f32
    %0 = vector.broadcast %cst : f32 to vector<2x10x10x64xf32>
    %c0 = arith.constant 0 : index
    %c0_0 = arith.constant 0 : index
    %c0_1 = arith.constant 0 : index
    %c0_2 = arith.constant 0 : index
    %1 = vector.load %arg13[%c0, %c0_0, %c0_1, %c0_2] : memref<2x10x10x64xf32, #tpu.memory_space<vmem>>, vector<2x10x10x64xf32>
    tpu.vector_store %arg13[%c0, %c0_0, %c0_1, %c0_2], %0 {strides = array<i32>} : memref<2x10x10x64xf32, #tpu.memory_space<vmem>>, vector<2x10x10x64xf32>,
    %c0_3 = arith.constant 0 : index
    %c0_4 = arith.constant 0 : index
    %c0_5 = arith.constant 0 : index
    %c0_6 = arith.constant 0 : index
    %2 = vector.load %arg0[%c0_3, %c0_4, %c0_5, %c0_6] : memref<2x8x8x1xf32, #tpu.memory_space<vmem>>, vector<2x8x8x1xf32>
    %c0_7 = arith.constant 0 : index
    %c1 = arith.constant 1 : index
    %c1_8 = arith.constant 1 : index
    %c0_9 = arith.constant 0 : index
    %3 = vector.load %arg13[%c0_7, %c1, %c1_8, %c0_9] : memref<2x10x10x64xf32, #tpu.memory_space<vmem>>, vector<2x8x8x1xf32>
    tpu.vector_store %arg13[%c0_7, %c1, %c1_8, %c0_9], %2 {strides = array<i32>} : memref<2x10x10x64xf32, #tpu.memory_space<vmem>>, vector<2x8x8x1xf32>,
    %c0_10 = arith.constant 0 : index
    %c0_11 = arith.constant 0 : index
    %c0_12 = arith.constant 0 : index
    %c0_13 = arith.constant 0 : index
    %4 = vector.load %arg13[%c0_10, %c0_11, %c0_12, %c0_13] : memref<2x10x10x64xf32, #tpu.memory_space<vmem>>, vector<2x8x8x1xf32>
    %c0_14 = arith.constant 0 : index
    %c0_15 = arith.constant 0 : index
    %c0_16 = arith.constant 0 : index
    %c0_17 = arith.constant 0 : index
    %5 = vector.load %arg14[%c0_14, %c0_15, %c0_16, %c0_17] : memref<2x8x8x576xf32, #tpu.memory_space<vmem>>, vector<2x8x8x1xf32>
    tpu.vector_store %arg14[%c0_14, %c0_15, %c0_16, %c0_17], %4 {strides = array<i32>} : memref<2x8x8x576xf32, #tpu.memory_space<vmem>>, vector<2x8x8x1xf32>,
    %c0_18 = arith.constant 0 : index
    %c0_19 = arith.constant 0 : index
    %c1_20 = arith.constant 1 : index
    %c0_21 = arith.constant 0 : index
    %6 = vector.load %arg13[%c0_18, %c0_19, %c1_20, %c0_21] : memref<2x10x10x64xf32, #tpu.memory_space<vmem>>, vector<2x8x8x1xf32>
    %c0_22 = arith.constant 0 : index
    %c0_23 = arith.constant 0 : index
    %c0_24 = arith.constant 0 : index
    %c1_25 = arith.constant 1 : index
    %7 = vector.load %arg14[%c0_22, %c0_23, %c0_24, %c1_25] : memref<2x8x8x576xf32, #tpu.memory_space<vmem>>, vector<2x8x8x1xf32>
    tpu.vector_store %arg14[%c0_22, %c0_23, %c0_24, %c1_25], %6 {strides = array<i32>} : memref<2x8x8x576xf32, #tpu.memory_space<vmem>>, vector<2x8x8x1xf32>,
    %c0_26 = arith.constant 0 : index
    %c0_27 = arith.constant 0 : index
    %c2 = arith.constant 2 : index
    %c0_28 = arith.constant 0 : index
    %8 = vector.load %arg13[%c0_26, %c0_27, %c2, %c0_28] : memref<2x10x10x64xf32, #tpu.memory_space<vmem>>, vector<2x8x8x1xf32>
    %c0_29 = arith.constant 0 : index
    %c0_30 = arith.constant 0 : index
    %c0_31 = arith.constant 0 : index
    %c2_32 = arith.constant 2 : index
    %9 = vector.load %arg14[%c0_29, %c0_30, %c0_31, %c2_32] : memref<2x8x8x576xf32, #tpu.memory_space<vmem>>, vector<2x8x8x1xf32>
    tpu.vector_store %arg14[%c0_29, %c0_30, %c0_31, %c2_32], %8 {strides = array<i32>} : memref<2x8x8x576xf32, #tpu.memory_space<vmem>>, vector<2x8x8x1xf32>,
    %c0_33 = arith.constant 0 : index
    %c1_34 = arith.constant 1 : index
    %c0_35 = arith.constant 0 : index
    %c0_36 = arith.constant 0 : index
    %10 = vector.load %arg13[%c0_33, %c1_34, %c0_35, %c0_36] : memref<2x10x10x64xf32, #tpu.memory_space<vmem>>, vector<2x8x8x1xf32>
    %c0_37 = arith.constant 0 : index
    %c0_38 = arith.constant 0 : index
    %c0_39 = arith.constant 0 : index
    %c3 = arith.constant 3 : index
    %11 = vector.load %arg14[%c0_37, %c0_38, %c0_39, %c3] : memref<2x8x8x576xf32, #tpu.memory_space<vmem>>, vector<2x8x8x1xf32>
    tpu.vector_store %arg14[%c0_37, %c0_38, %c0_39, %c3], %10 {strides = array<i32>} : memref<2x8x8x576xf32, #tpu.memory_space<vmem>>, vector<2x8x8x1xf32>,
    %c0_40 = arith.constant 0 : index
    %c1_41 = arith.constant 1 : index
    %c1_42 = arith.constant 1 : index
    %c0_43 = arith.constant 0 : index
    %12 = vector.load %arg13[%c0_40, %c1_41, %c1_42, %c0_43] : memref<2x10x10x64xf32, #tpu.memory_space<vmem>>, vector<2x8x8x1xf32>
    %c0_44 = arith.constant 0 : index
    %c0_45 = arith.constant 0 : index
    %c0_46 = arith.constant 0 : index
    %c4 = arith.constant 4 : index
    %13 = vector.load %arg14[%c0_44, %c0_45, %c0_46, %c4] : memref<2x8x8x576xf32, #tpu.memory_space<vmem>>, vector<2x8x8x1xf32>
    tpu.vector_store %arg14[%c0_44, %c0_45, %c0_46, %c4], %12 {strides = array<i32>} : memref<2x8x8x576xf32, #tpu.memory_space<vmem>>, vector<2x8x8x1xf32>,
    %c0_47 = arith.constant 0 : index
    %c1_48 = arith.constant 1 : index
    %c2_49 = arith.constant 2 : index
    %c0_50 = arith.constant 0 : index
    %14 = vector.load %arg13[%c0_47, %c1_48, %c2_49, %c0_50] : memref<2x10x10x64xf32, #tpu.memory_space<vmem>>, vector<2x8x8x1xf32>
    %c0_51 = arith.constant 0 : index
    %c0_52 = arith.constant 0 : index
    %c0_53 = arith.constant 0 : index
    %c5 = arith.constant 5 : index
    %15 = vector.load %arg14[%c0_51, %c0_52, %c0_53, %c5] : memref<2x8x8x576xf32, #tpu.memory_space<vmem>>, vector<2x8x8x1xf32>
    tpu.vector_store %arg14[%c0_51, %c0_52, %c0_53, %c5], %14 {strides = array<i32>} : memref<2x8x8x576xf32, #tpu.memory_space<vmem>>, vector<2x8x8x1xf32>,
    %c0_54 = arith.constant 0 : index
    %c2_55 = arith.constant 2 : index
    %c0_56 = arith.constant 0 : index
    %c0_57 = arith.constant 0 : index
    %16 = vector.load %arg13[%c0_54, %c2_55, %c0_56, %c0_57] : memref<2x10x10x64xf32, #tpu.memory_space<vmem>>, vector<2x8x8x1xf32>
    %c0_58 = arith.constant 0 : index
    %c0_59 = arith.constant 0 : index
    %c0_60 = arith.constant 0 : index
    %c6 = arith.constant 6 : index
    %17 = vector.load %arg14[%c0_58, %c0_59, %c0_60, %c6] : memref<2x8x8x576xf32, #tpu.memory_space<vmem>>, vector<2x8x8x1xf32>
    tpu.vector_store %arg14[%c0_58, %c0_59, %c0_60, %c6], %16 {strides = array<i32>} : memref<2x8x8x576xf32, #tpu.memory_space<vmem>>, vector<2x8x8x1xf32>,
    %c0_61 = arith.constant 0 : index
    %c2_62 = arith.constant 2 : index
    %c1_63 = arith.constant 1 : index
    %c0_64 = arith.constant 0 : index
    %18 = vector.load %arg13[%c0_61, %c2_62, %c1_63, %c0_64] : memref<2x10x10x64xf32, #tpu.memory_space<vmem>>, vector<2x8x8x1xf32>
    %c0_65 = arith.constant 0 : index
    %c0_66 = arith.constant 0 : index
    %c0_67 = arith.constant 0 : index
    %c7 = arith.constant 7 : index
    %19 = vector.load %arg14[%c0_65, %c0_66, %c0_67, %c7] : memref<2x8x8x576xf32, #tpu.memory_space<vmem>>, vector<2x8x8x1xf32>
    tpu.vector_store %arg14[%c0_65, %c0_66, %c0_67, %c7], %18 {strides = array<i32>} : memref<2x8x8x576xf32, #tpu.memory_space<vmem>>, vector<2x8x8x1xf32>,
    %c0_68 = arith.constant 0 : index
    %c2_69 = arith.constant 2 : index
    %c2_70 = arith.constant 2 : index
    %c0_71 = arith.constant 0 : index
    %20 = vector.load %arg13[%c0_68, %c2_69, %c2_70, %c0_71] : memref<2x10x10x64xf32, #tpu.memory_space<vmem>>, vector<2x8x8x1xf32>
    %c0_72 = arith.constant 0 : index
    %c0_73 = arith.constant 0 : index
    %c0_74 = arith.constant 0 : index
    %c8 = arith.constant 8 : index
    %21 = vector.load %arg14[%c0_72, %c0_73, %c0_74, %c8] : memref<2x8x8x576xf32, #tpu.memory_space<vmem>>, vector<2x8x8x1xf32>
    tpu.vector_store %arg14[%c0_72, %c0_73, %c0_74, %c8], %20 {strides = array<i32>} : memref<2x8x8x576xf32, #tpu.memory_space<vmem>>, vector<2x8x8x1xf32>,
    %c0_75 = arith.constant 0 : index
    %c0_76 = arith.constant 0 : index
    %c0_77 = arith.constant 0 : index
    %c0_78 = arith.constant 0 : index
    %22 = vector.load %arg14[%c0_75, %c0_76, %c0_77, %c0_78] : memref<2x8x8x576xf32, #tpu.memory_space<vmem>>, vector<2x8x8x9xf32>
    %23 = vector.shape_cast %22 : vector<2x8x8x9xf32> to vector<128x9xf32>
    %24 = arith.truncf %23 : vector<128x9xf32> to vector<128x9xbf16>
    %c0_79 = arith.constant 0 : index
    %c0_80 = arith.constant 0 : index
    %25 = vector.load %arg1[%c0_79, %c0_80] : memref<9x64xbf16, #tpu.memory_space<vmem>>, vector<9x64xbf16>
    %cst_81 = arith.constant dense<0.000000e+00> : vector<128x64xf32>
    %26 = tpu.matmul %24, %25, %cst_81 {dimension_numbers = #tpu.dot_dimension_numbers<[1], [0], [0], [1], [0, 0, 1, 1], [], []>} : vector<128x9xbf16>, vector<9x64xbf16>, vector<128x64xf32> -> vector<128x64xf32>
    %c0_82 = arith.constant 0 : index
    %c0_83 = arith.constant 0 : index
    %27 = vector.load %arg2[%c0_82, %c0_83] : memref<1x64xf32, #tpu.memory_space<vmem>>, vector<1x64xf32>
    %28 = vector.broadcast %27 : vector<1x64xf32> to vector<128x64xf32>
    %29 = arith.addf %26, %28 : vector<128x64xf32>
    %cst_84 = arith.constant 0.000000e+00 : f32
    %30 = vector.broadcast %cst_84 : f32 to vector<128x64xf32>
    %31 = arith.maximumf %29, %30 : vector<128x64xf32>
    %32 = vector.shape_cast %31 : vector<128x64xf32> to vector<2x8x8x64xf32>
    %c0_85 = arith.constant 0 : index
    %c1_86 = arith.constant 1 : index
    %c1_87 = arith.constant 1 : index
    %c0_88 = arith.constant 0 : index
    %33 = vector.load %arg13[%c0_85, %c1_86, %c1_87, %c0_88] : memref<2x10x10x64xf32, #tpu.memory_space<vmem>>, vector<2x8x8x64xf32>
    tpu.vector_store %arg13[%c0_85, %c1_86, %c1_87, %c0_88], %32 {strides = array<i32>} : memref<2x10x10x64xf32, #tpu.memory_space<vmem>>, vector<2x8x8x64xf32>,
    %c0_89 = arith.constant 0 : index
    %c0_90 = arith.constant 0 : index
    %c0_91 = arith.constant 0 : index
    %c0_92 = arith.constant 0 : index
    %34 = vector.load %arg13[%c0_89, %c0_90, %c0_91, %c0_92] : memref<2x10x10x64xf32, #tpu.memory_space<vmem>>, vector<2x8x8x64xf32>
    %c0_93 = arith.constant 0 : index
    %c0_94 = arith.constant 0 : index
    %c0_95 = arith.constant 0 : index
    %c0_96 = arith.constant 0 : index
    %35 = vector.load %arg14[%c0_93, %c0_94, %c0_95, %c0_96] : memref<2x8x8x576xf32, #tpu.memory_space<vmem>>, vector<2x8x8x64xf32>
    tpu.vector_store %arg14[%c0_93, %c0_94, %c0_95, %c0_96], %34 {strides = array<i32>} : memref<2x8x8x576xf32, #tpu.memory_space<vmem>>, vector<2x8x8x64xf32>,
    %c0_97 = arith.constant 0 : index
    %c0_98 = arith.constant 0 : index
    %c1_99 = arith.constant 1 : index
    %c0_100 = arith.constant 0 : index
    %36 = vector.load %arg13[%c0_97, %c0_98, %c1_99, %c0_100] : memref<2x10x10x64xf32, #tpu.memory_space<vmem>>, vector<2x8x8x64xf32>
    %c0_101 = arith.constant 0 : index
    %c0_102 = arith.constant 0 : index
    %c0_103 = arith.constant 0 : index
    %c64 = arith.constant 64 : index
    %37 = vector.load %arg14[%c0_101, %c0_102, %c0_103, %c64] : memref<2x8x8x576xf32, #tpu.memory_space<vmem>>, vector<2x8x8x64xf32>
    tpu.vector_store %arg14[%c0_101, %c0_102, %c0_103, %c64], %36 {strides = array<i32>} : memref<2x8x8x576xf32, #tpu.memory_space<vmem>>, vector<2x8x8x64xf32>,
    %c0_104 = arith.constant 0 : index
    %c0_105 = arith.constant 0 : index
    %c2_106 = arith.constant 2 : index
    %c0_107 = arith.constant 0 : index
    %38 = vector.load %arg13[%c0_104, %c0_105, %c2_106, %c0_107] : memref<2x10x10x64xf32, #tpu.memory_space<vmem>>, vector<2x8x8x64xf32>
    %c0_108 = arith.constant 0 : index
    %c0_109 = arith.constant 0 : index
    %c0_110 = arith.constant 0 : index
    %c128 = arith.constant 128 : index
    %39 = vector.load %arg14[%c0_108, %c0_109, %c0_110, %c128] : memref<2x8x8x576xf32, #tpu.memory_space<vmem>>, vector<2x8x8x64xf32>
    tpu.vector_store %arg14[%c0_108, %c0_109, %c0_110, %c128], %38 {strides = array<i32>} : memref<2x8x8x576xf32, #tpu.memory_space<vmem>>, vector<2x8x8x64xf32>,
    %c0_111 = arith.constant 0 : index
    %c1_112 = arith.constant 1 : index
    %c0_113 = arith.constant 0 : index
    %c0_114 = arith.constant 0 : index
    %40 = vector.load %arg13[%c0_111, %c1_112, %c0_113, %c0_114] : memref<2x10x10x64xf32, #tpu.memory_space<vmem>>, vector<2x8x8x64xf32>
    %c0_115 = arith.constant 0 : index
    %c0_116 = arith.constant 0 : index
    %c0_117 = arith.constant 0 : index
    %c192 = arith.constant 192 : index
    %41 = vector.load %arg14[%c0_115, %c0_116, %c0_117, %c192] : memref<2x8x8x576xf32, #tpu.memory_space<vmem>>, vector<2x8x8x64xf32>
    tpu.vector_store %arg14[%c0_115, %c0_116, %c0_117, %c192], %40 {strides = array<i32>} : memref<2x8x8x576xf32, #tpu.memory_space<vmem>>, vector<2x8x8x64xf32>,
    %c0_118 = arith.constant 0 : index
    %c1_119 = arith.constant 1 : index
    %c1_120 = arith.constant 1 : index
    %c0_121 = arith.constant 0 : index
    %42 = vector.load %arg13[%c0_118, %c1_119, %c1_120, %c0_121] : memref<2x10x10x64xf32, #tpu.memory_space<vmem>>, vector<2x8x8x64xf32>
    %c0_122 = arith.constant 0 : index
    %c0_123 = arith.constant 0 : index
    %c0_124 = arith.constant 0 : index
    %c256 = arith.constant 256 : index
    %43 = vector.load %arg14[%c0_122, %c0_123, %c0_124, %c256] : memref<2x8x8x576xf32, #tpu.memory_space<vmem>>, vector<2x8x8x64xf32>
    tpu.vector_store %arg14[%c0_122, %c0_123, %c0_124, %c256], %42 {strides = array<i32>} : memref<2x8x8x576xf32, #tpu.memory_space<vmem>>, vector<2x8x8x64xf32>,
    %c0_125 = arith.constant 0 : index
    %c1_126 = arith.constant 1 : index
    %c2_127 = arith.constant 2 : index
    %c0_128 = arith.constant 0 : index
    %44 = vector.load %arg13[%c0_125, %c1_126, %c2_127, %c0_128] : memref<2x10x10x64xf32, #tpu.memory_space<vmem>>, vector<2x8x8x64xf32>
    %c0_129 = arith.constant 0 : index
    %c0_130 = arith.constant 0 : index
    %c0_131 = arith.constant 0 : index
    %c320 = arith.constant 320 : index
    %45 = vector.load %arg14[%c0_129, %c0_130, %c0_131, %c320] : memref<2x8x8x576xf32, #tpu.memory_space<vmem>>, vector<2x8x8x64xf32>
    tpu.vector_store %arg14[%c0_129, %c0_130, %c0_131, %c320], %44 {strides = array<i32>} : memref<2x8x8x576xf32, #tpu.memory_space<vmem>>, vector<2x8x8x64xf32>,
    %c0_132 = arith.constant 0 : index
    %c2_133 = arith.constant 2 : index
    %c0_134 = arith.constant 0 : index
    %c0_135 = arith.constant 0 : index
    %46 = vector.load %arg13[%c0_132, %c2_133, %c0_134, %c0_135] : memref<2x10x10x64xf32, #tpu.memory_space<vmem>>, vector<2x8x8x64xf32>
    %c0_136 = arith.constant 0 : index
    %c0_137 = arith.constant 0 : index
    %c0_138 = arith.constant 0 : index
    %c384 = arith.constant 384 : index
    %47 = vector.load %arg14[%c0_136, %c0_137, %c0_138, %c384] : memref<2x8x8x576xf32, #tpu.memory_space<vmem>>, vector<2x8x8x64xf32>
    tpu.vector_store %arg14[%c0_136, %c0_137, %c0_138, %c384], %46 {strides = array<i32>} : memref<2x8x8x576xf32, #tpu.memory_space<vmem>>, vector<2x8x8x64xf32>,
    %c0_139 = arith.constant 0 : index
    %c2_140 = arith.constant 2 : index
    %c1_141 = arith.constant 1 : index
    %c0_142 = arith.constant 0 : index
    %48 = vector.load %arg13[%c0_139, %c2_140, %c1_141, %c0_142] : memref<2x10x10x64xf32, #tpu.memory_space<vmem>>, vector<2x8x8x64xf32>
    %c0_143 = arith.constant 0 : index
    %c0_144 = arith.constant 0 : index
    %c0_145 = arith.constant 0 : index
    %c448 = arith.constant 448 : index
    %49 = vector.load %arg14[%c0_143, %c0_144, %c0_145, %c448] : memref<2x8x8x576xf32, #tpu.memory_space<vmem>>, vector<2x8x8x64xf32>
    tpu.vector_store %arg14[%c0_143, %c0_144, %c0_145, %c448], %48 {strides = array<i32>} : memref<2x8x8x576xf32, #tpu.memory_space<vmem>>, vector<2x8x8x64xf32>,
    %c0_146 = arith.constant 0 : index
    %c2_147 = arith.constant 2 : index
    %c2_148 = arith.constant 2 : index
    %c0_149 = arith.constant 0 : index
    %50 = vector.load %arg13[%c0_146, %c2_147, %c2_148, %c0_149] : memref<2x10x10x64xf32, #tpu.memory_space<vmem>>, vector<2x8x8x64xf32>
    %c0_150 = arith.constant 0 : index
    %c0_151 = arith.constant 0 : index
    %c0_152 = arith.constant 0 : index
    %c512 = arith.constant 512 : index
    %51 = vector.load %arg14[%c0_150, %c0_151, %c0_152, %c512] : memref<2x8x8x576xf32, #tpu.memory_space<vmem>>, vector<2x8x8x64xf32>
    tpu.vector_store %arg14[%c0_150, %c0_151, %c0_152, %c512], %50 {strides = array<i32>} : memref<2x8x8x576xf32, #tpu.memory_space<vmem>>, vector<2x8x8x64xf32>,
    %c0_153 = arith.constant 0 : index
    %c0_154 = arith.constant 0 : index
    %c0_155 = arith.constant 0 : index
    %c0_156 = arith.constant 0 : index
    %52 = vector.load %arg14[%c0_153, %c0_154, %c0_155, %c0_156] : memref<2x8x8x576xf32, #tpu.memory_space<vmem>>, vector<2x8x8x576xf32>
    %53 = vector.shape_cast %52 : vector<2x8x8x576xf32> to vector<128x576xf32>
    %54 = arith.truncf %53 : vector<128x576xf32> to vector<128x576xbf16>
    %c0_157 = arith.constant 0 : index
    %c0_158 = arith.constant 0 : index
    %55 = vector.load %arg3[%c0_157, %c0_158] : memref<576x64xbf16, #tpu.memory_space<vmem>>, vector<576x64xbf16>
    %cst_159 = arith.constant dense<0.000000e+00> : vector<128x64xf32>
    %56 = tpu.matmul %54, %55, %cst_159 {dimension_numbers = #tpu.dot_dimension_numbers<[1], [0], [0], [1], [0, 0, 1, 1], [], []>} : vector<128x576xbf16>, vector<576x64xbf16>, vector<128x64xf32> -> vector<128x64xf32>
    %c0_160 = arith.constant 0 : index
    %c0_161 = arith.constant 0 : index
    %57 = vector.load %arg4[%c0_160, %c0_161] : memref<1x64xf32, #tpu.memory_space<vmem>>, vector<1x64xf32>
    %58 = vector.broadcast %57 : vector<1x64xf32> to vector<128x64xf32>
    %59 = arith.addf %56, %58 : vector<128x64xf32>
    %cst_162 = arith.constant 0.000000e+00 : f32
    %60 = vector.broadcast %cst_162 : f32 to vector<128x64xf32>
    %61 = arith.maximumf %59, %60 : vector<128x64xf32>
    %62 = vector.shape_cast %61 : vector<128x64xf32> to vector<2x8x8x64xf32>
    %c0_163 = arith.constant 0 : index
    %c1_164 = arith.constant 1 : index
    %c1_165 = arith.constant 1 : index
    %c0_166 = arith.constant 0 : index
    %63 = vector.load %arg13[%c0_163, %c1_164, %c1_165, %c0_166] : memref<2x10x10x64xf32, #tpu.memory_space<vmem>>, vector<2x8x8x64xf32>
    tpu.vector_store %arg13[%c0_163, %c1_164, %c1_165, %c0_166], %62 {strides = array<i32>} : memref<2x10x10x64xf32, #tpu.memory_space<vmem>>, vector<2x8x8x64xf32>,
    %c0_167 = arith.constant 0 : index
    %c0_168 = arith.constant 0 : index
    %c0_169 = arith.constant 0 : index
    %c0_170 = arith.constant 0 : index
    %64 = vector.load %arg13[%c0_167, %c0_168, %c0_169, %c0_170] : memref<2x10x10x64xf32, #tpu.memory_space<vmem>>, vector<2x8x8x64xf32>
    %c0_171 = arith.constant 0 : index
    %c0_172 = arith.constant 0 : index
    %c0_173 = arith.constant 0 : index
    %c0_174 = arith.constant 0 : index
    %65 = vector.load %arg14[%c0_171, %c0_172, %c0_173, %c0_174] : memref<2x8x8x576xf32, #tpu.memory_space<vmem>>, vector<2x8x8x64xf32>
    tpu.vector_store %arg14[%c0_171, %c0_172, %c0_173, %c0_174], %64 {strides = array<i32>} : memref<2x8x8x576xf32, #tpu.memory_space<vmem>>, vector<2x8x8x64xf32>,
    %c0_175 = arith.constant 0 : index
    %c0_176 = arith.constant 0 : index
    %c1_177 = arith.constant 1 : index
    %c0_178 = arith.constant 0 : index
    %66 = vector.load %arg13[%c0_175, %c0_176, %c1_177, %c0_178] : memref<2x10x10x64xf32, #tpu.memory_space<vmem>>, vector<2x8x8x64xf32>
    %c0_179 = arith.constant 0 : index
    %c0_180 = arith.constant 0 : index
    %c0_181 = arith.constant 0 : index
    %c64_182 = arith.constant 64 : index
    %67 = vector.load %arg14[%c0_179, %c0_180, %c0_181, %c64_182] : memref<2x8x8x576xf32, #tpu.memory_space<vmem>>, vector<2x8x8x64xf32>
    tpu.vector_store %arg14[%c0_179, %c0_180, %c0_181, %c64_182], %66 {strides = array<i32>} : memref<2x8x8x576xf32, #tpu.memory_space<vmem>>, vector<2x8x8x64xf32>,
    %c0_183 = arith.constant 0 : index
    %c0_184 = arith.constant 0 : index
    %c2_185 = arith.constant 2 : index
    %c0_186 = arith.constant 0 : index
    %68 = vector.load %arg13[%c0_183, %c0_184, %c2_185, %c0_186] : memref<2x10x10x64xf32, #tpu.memory_space<vmem>>, vector<2x8x8x64xf32>
    %c0_187 = arith.constant 0 : index
    %c0_188 = arith.constant 0 : index
    %c0_189 = arith.constant 0 : index
    %c128_190 = arith.constant 128 : index
    %69 = vector.load %arg14[%c0_187, %c0_188, %c0_189, %c128_190] : memref<2x8x8x576xf32, #tpu.memory_space<vmem>>, vector<2x8x8x64xf32>
    tpu.vector_store %arg14[%c0_187, %c0_188, %c0_189, %c128_190], %68 {strides = array<i32>} : memref<2x8x8x576xf32, #tpu.memory_space<vmem>>, vector<2x8x8x64xf32>,
    %c0_191 = arith.constant 0 : index
    %c1_192 = arith.constant 1 : index
    %c0_193 = arith.constant 0 : index
    %c0_194 = arith.constant 0 : index
    %70 = vector.load %arg13[%c0_191, %c1_192, %c0_193, %c0_194] : memref<2x10x10x64xf32, #tpu.memory_space<vmem>>, vector<2x8x8x64xf32>
    %c0_195 = arith.constant 0 : index
    %c0_196 = arith.constant 0 : index
    %c0_197 = arith.constant 0 : index
    %c192_198 = arith.constant 192 : index
    %71 = vector.load %arg14[%c0_195, %c0_196, %c0_197, %c192_198] : memref<2x8x8x576xf32, #tpu.memory_space<vmem>>, vector<2x8x8x64xf32>
    tpu.vector_store %arg14[%c0_195, %c0_196, %c0_197, %c192_198], %70 {strides = array<i32>} : memref<2x8x8x576xf32, #tpu.memory_space<vmem>>, vector<2x8x8x64xf32>,
    %c0_199 = arith.constant 0 : index
    %c1_200 = arith.constant 1 : index
    %c1_201 = arith.constant 1 : index
    %c0_202 = arith.constant 0 : index
    %72 = vector.load %arg13[%c0_199, %c1_200, %c1_201, %c0_202] : memref<2x10x10x64xf32, #tpu.memory_space<vmem>>, vector<2x8x8x64xf32>
    %c0_203 = arith.constant 0 : index
    %c0_204 = arith.constant 0 : index
    %c0_205 = arith.constant 0 : index
    %c256_206 = arith.constant 256 : index
    %73 = vector.load %arg14[%c0_203, %c0_204, %c0_205, %c256_206] : memref<2x8x8x576xf32, #tpu.memory_space<vmem>>, vector<2x8x8x64xf32>
    tpu.vector_store %arg14[%c0_203, %c0_204, %c0_205, %c256_206], %72 {strides = array<i32>} : memref<2x8x8x576xf32, #tpu.memory_space<vmem>>, vector<2x8x8x64xf32>,
    %c0_207 = arith.constant 0 : index
    %c1_208 = arith.constant 1 : index
    %c2_209 = arith.constant 2 : index
    %c0_210 = arith.constant 0 : index
    %74 = vector.load %arg13[%c0_207, %c1_208, %c2_209, %c0_210] : memref<2x10x10x64xf32, #tpu.memory_space<vmem>>, vector<2x8x8x64xf32>
    %c0_211 = arith.constant 0 : index
    %c0_212 = arith.constant 0 : index
    %c0_213 = arith.constant 0 : index
    %c320_214 = arith.constant 320 : index
    %75 = vector.load %arg14[%c0_211, %c0_212, %c0_213, %c320_214] : memref<2x8x8x576xf32, #tpu.memory_space<vmem>>, vector<2x8x8x64xf32>
    tpu.vector_store %arg14[%c0_211, %c0_212, %c0_213, %c320_214], %74 {strides = array<i32>} : memref<2x8x8x576xf32, #tpu.memory_space<vmem>>, vector<2x8x8x64xf32>,
    %c0_215 = arith.constant 0 : index
    %c2_216 = arith.constant 2 : index
    %c0_217 = arith.constant 0 : index
    %c0_218 = arith.constant 0 : index
    %76 = vector.load %arg13[%c0_215, %c2_216, %c0_217, %c0_218] : memref<2x10x10x64xf32, #tpu.memory_space<vmem>>, vector<2x8x8x64xf32>
    %c0_219 = arith.constant 0 : index
    %c0_220 = arith.constant 0 : index
    %c0_221 = arith.constant 0 : index
    %c384_222 = arith.constant 384 : index
    %77 = vector.load %arg14[%c0_219, %c0_220, %c0_221, %c384_222] : memref<2x8x8x576xf32, #tpu.memory_space<vmem>>, vector<2x8x8x64xf32>
    tpu.vector_store %arg14[%c0_219, %c0_220, %c0_221, %c384_222], %76 {strides = array<i32>} : memref<2x8x8x576xf32, #tpu.memory_space<vmem>>, vector<2x8x8x64xf32>,
    %c0_223 = arith.constant 0 : index
    %c2_224 = arith.constant 2 : index
    %c1_225 = arith.constant 1 : index
    %c0_226 = arith.constant 0 : index
    %78 = vector.load %arg13[%c0_223, %c2_224, %c1_225, %c0_226] : memref<2x10x10x64xf32, #tpu.memory_space<vmem>>, vector<2x8x8x64xf32>
    %c0_227 = arith.constant 0 : index
    %c0_228 = arith.constant 0 : index
    %c0_229 = arith.constant 0 : index
    %c448_230 = arith.constant 448 : index
    %79 = vector.load %arg14[%c0_227, %c0_228, %c0_229, %c448_230] : memref<2x8x8x576xf32, #tpu.memory_space<vmem>>, vector<2x8x8x64xf32>
    tpu.vector_store %arg14[%c0_227, %c0_228, %c0_229, %c448_230], %78 {strides = array<i32>} : memref<2x8x8x576xf32, #tpu.memory_space<vmem>>, vector<2x8x8x64xf32>,
    %c0_231 = arith.constant 0 : index
    %c2_232 = arith.constant 2 : index
    %c2_233 = arith.constant 2 : index
    %c0_234 = arith.constant 0 : index
    %80 = vector.load %arg13[%c0_231, %c2_232, %c2_233, %c0_234] : memref<2x10x10x64xf32, #tpu.memory_space<vmem>>, vector<2x8x8x64xf32>
    %c0_235 = arith.constant 0 : index
    %c0_236 = arith.constant 0 : index
    %c0_237 = arith.constant 0 : index
    %c512_238 = arith.constant 512 : index
    %81 = vector.load %arg14[%c0_235, %c0_236, %c0_237, %c512_238] : memref<2x8x8x576xf32, #tpu.memory_space<vmem>>, vector<2x8x8x64xf32>
    tpu.vector_store %arg14[%c0_235, %c0_236, %c0_237, %c512_238], %80 {strides = array<i32>} : memref<2x8x8x576xf32, #tpu.memory_space<vmem>>, vector<2x8x8x64xf32>,
    %c0_239 = arith.constant 0 : index
    %c0_240 = arith.constant 0 : index
    %c0_241 = arith.constant 0 : index
    %c0_242 = arith.constant 0 : index
    %82 = vector.load %arg14[%c0_239, %c0_240, %c0_241, %c0_242] : memref<2x8x8x576xf32, #tpu.memory_space<vmem>>, vector<2x8x8x576xf32>
    %83 = vector.shape_cast %82 : vector<2x8x8x576xf32> to vector<128x576xf32>
    %84 = arith.truncf %83 : vector<128x576xf32> to vector<128x576xbf16>
    %c0_243 = arith.constant 0 : index
    %c0_244 = arith.constant 0 : index
    %85 = vector.load %arg5[%c0_243, %c0_244] : memref<576x64xbf16, #tpu.memory_space<vmem>>, vector<576x64xbf16>
    %cst_245 = arith.constant dense<0.000000e+00> : vector<128x64xf32>
    %86 = tpu.matmul %84, %85, %cst_245 {dimension_numbers = #tpu.dot_dimension_numbers<[1], [0], [0], [1], [0, 0, 1, 1], [], []>} : vector<128x576xbf16>, vector<576x64xbf16>, vector<128x64xf32> -> vector<128x64xf32>
    %c0_246 = arith.constant 0 : index
    %c0_247 = arith.constant 0 : index
    %87 = vector.load %arg6[%c0_246, %c0_247] : memref<1x64xf32, #tpu.memory_space<vmem>>, vector<1x64xf32>
    %88 = vector.broadcast %87 : vector<1x64xf32> to vector<128x64xf32>
    %89 = arith.addf %86, %88 : vector<128x64xf32>
    %cst_248 = arith.constant 0.000000e+00 : f32
    %90 = vector.broadcast %cst_248 : f32 to vector<128x64xf32>
    %91 = arith.maximumf %89, %90 : vector<128x64xf32>
    %92 = vector.shape_cast %91 : vector<128x64xf32> to vector<2x64x64xf32>
    %93 = vector.extract_strided_slice %92 {offsets = [0, 0, 0], sizes = [2, 1, 64], strides = [1, 1, 1]} : vector<2x64x64xf32> to vector<2x1x64xf32>
    %94 = vector.shape_cast %93 : vector<2x1x64xf32> to vector<2x64xf32>
    %c0_249 = arith.constant 0 : index
    %c0_250 = arith.constant 0 : index
    %95 = vector.load %arg15[%c0_249, %c0_250] : memref<2x4096xf32, #tpu.memory_space<vmem>>, vector<2x64xf32>
    tpu.vector_store %arg15[%c0_249, %c0_250], %94 {strides = array<i32>} : memref<2x4096xf32, #tpu.memory_space<vmem>>, vector<2x64xf32>,
    %96 = vector.extract_strided_slice %92 {offsets = [0, 1, 0], sizes = [2, 1, 64], strides = [1, 1, 1]} : vector<2x64x64xf32> to vector<2x1x64xf32>
    %97 = vector.shape_cast %96 : vector<2x1x64xf32> to vector<2x64xf32>
    %c0_251 = arith.constant 0 : index
    %c64_252 = arith.constant 64 : index
    %98 = vector.load %arg15[%c0_251, %c64_252] : memref<2x4096xf32, #tpu.memory_space<vmem>>, vector<2x64xf32>
    tpu.vector_store %arg15[%c0_251, %c64_252], %97 {strides = array<i32>} : memref<2x4096xf32, #tpu.memory_space<vmem>>, vector<2x64xf32>,
    %99 = vector.extract_strided_slice %92 {offsets = [0, 2, 0], sizes = [2, 1, 64], strides = [1, 1, 1]} : vector<2x64x64xf32> to vector<2x1x64xf32>
    %100 = vector.shape_cast %99 : vector<2x1x64xf32> to vector<2x64xf32>
    %c0_253 = arith.constant 0 : index
    %c128_254 = arith.constant 128 : index
    %101 = vector.load %arg15[%c0_253, %c128_254] : memref<2x4096xf32, #tpu.memory_space<vmem>>, vector<2x64xf32>
    tpu.vector_store %arg15[%c0_253, %c128_254], %100 {strides = array<i32>} : memref<2x4096xf32, #tpu.memory_space<vmem>>, vector<2x64xf32>,
    %102 = vector.extract_strided_slice %92 {offsets = [0, 3, 0], sizes = [2, 1, 64], strides = [1, 1, 1]} : vector<2x64x64xf32> to vector<2x1x64xf32>
    %103 = vector.shape_cast %102 : vector<2x1x64xf32> to vector<2x64xf32>
    %c0_255 = arith.constant 0 : index
    %c192_256 = arith.constant 192 : index
    %104 = vector.load %arg15[%c0_255, %c192_256] : memref<2x4096xf32, #tpu.memory_space<vmem>>, vector<2x64xf32>
    tpu.vector_store %arg15[%c0_255, %c192_256], %103 {strides = array<i32>} : memref<2x4096xf32, #tpu.memory_space<vmem>>, vector<2x64xf32>,
    %105 = vector.extract_strided_slice %92 {offsets = [0, 4, 0], sizes = [2, 1, 64], strides = [1, 1, 1]} : vector<2x64x64xf32> to vector<2x1x64xf32>
    %106 = vector.shape_cast %105 : vector<2x1x64xf32> to vector<2x64xf32>
    %c0_257 = arith.constant 0 : index
    %c256_258 = arith.constant 256 : index
    %107 = vector.load %arg15[%c0_257, %c256_258] : memref<2x4096xf32, #tpu.memory_space<vmem>>, vector<2x64xf32>
    tpu.vector_store %arg15[%c0_257, %c256_258], %106 {strides = array<i32>} : memref<2x4096xf32, #tpu.memory_space<vmem>>, vector<2x64xf32>,
    %108 = vector.extract_strided_slice %92 {offsets = [0, 5, 0], sizes = [2, 1, 64], strides = [1, 1, 1]} : vector<2x64x64xf32> to vector<2x1x64xf32>
    %109 = vector.shape_cast %108 : vector<2x1x64xf32> to vector<2x64xf32>
    %c0_259 = arith.constant 0 : index
    %c320_260 = arith.constant 320 : index
    %110 = vector.load %arg15[%c0_259, %c320_260] : memref<2x4096xf32, #tpu.memory_space<vmem>>, vector<2x64xf32>
    tpu.vector_store %arg15[%c0_259, %c320_260], %109 {strides = array<i32>} : memref<2x4096xf32, #tpu.memory_space<vmem>>, vector<2x64xf32>,
    %111 = vector.extract_strided_slice %92 {offsets = [0, 6, 0], sizes = [2, 1, 64], strides = [1, 1, 1]} : vector<2x64x64xf32> to vector<2x1x64xf32>
    %112 = vector.shape_cast %111 : vector<2x1x64xf32> to vector<2x64xf32>
    %c0_261 = arith.constant 0 : index
    %c384_262 = arith.constant 384 : index
    %113 = vector.load %arg15[%c0_261, %c384_262] : memref<2x4096xf32, #tpu.memory_space<vmem>>, vector<2x64xf32>
    tpu.vector_store %arg15[%c0_261, %c384_262], %112 {strides = array<i32>} : memref<2x4096xf32, #tpu.memory_space<vmem>>, vector<2x64xf32>,
    %114 = vector.extract_strided_slice %92 {offsets = [0, 7, 0], sizes = [2, 1, 64], strides = [1, 1, 1]} : vector<2x64x64xf32> to vector<2x1x64xf32>
    %115 = vector.shape_cast %114 : vector<2x1x64xf32> to vector<2x64xf32>
    %c0_263 = arith.constant 0 : index
    %c448_264 = arith.constant 448 : index
    %116 = vector.load %arg15[%c0_263, %c448_264] : memref<2x4096xf32, #tpu.memory_space<vmem>>, vector<2x64xf32>
    tpu.vector_store %arg15[%c0_263, %c448_264], %115 {strides = array<i32>} : memref<2x4096xf32, #tpu.memory_space<vmem>>, vector<2x64xf32>,
    %117 = vector.extract_strided_slice %92 {offsets = [0, 8, 0], sizes = [2, 1, 64], strides = [1, 1, 1]} : vector<2x64x64xf32> to vector<2x1x64xf32>
    %118 = vector.shape_cast %117 : vector<2x1x64xf32> to vector<2x64xf32>
    %c0_265 = arith.constant 0 : index
    %c512_266 = arith.constant 512 : index
    %119 = vector.load %arg15[%c0_265, %c512_266] : memref<2x4096xf32, #tpu.memory_space<vmem>>, vector<2x64xf32>
    tpu.vector_store %arg15[%c0_265, %c512_266], %118 {strides = array<i32>} : memref<2x4096xf32, #tpu.memory_space<vmem>>, vector<2x64xf32>,
    %120 = vector.extract_strided_slice %92 {offsets = [0, 9, 0], sizes = [2, 1, 64], strides = [1, 1, 1]} : vector<2x64x64xf32> to vector<2x1x64xf32>
    %121 = vector.shape_cast %120 : vector<2x1x64xf32> to vector<2x64xf32>
    %c0_267 = arith.constant 0 : index
    %c576 = arith.constant 576 : index
    %122 = vector.load %arg15[%c0_267, %c576] : memref<2x4096xf32, #tpu.memory_space<vmem>>, vector<2x64xf32>
    tpu.vector_store %arg15[%c0_267, %c576], %121 {strides = array<i32>} : memref<2x4096xf32, #tpu.memory_space<vmem>>, vector<2x64xf32>,
    %123 = vector.extract_strided_slice %92 {offsets = [0, 10, 0], sizes = [2, 1, 64], strides = [1, 1, 1]} : vector<2x64x64xf32> to vector<2x1x64xf32>
    %124 = vector.shape_cast %123 : vector<2x1x64xf32> to vector<2x64xf32>
    %c0_268 = arith.constant 0 : index
    %c640 = arith.constant 640 : index
    %125 = vector.load %arg15[%c0_268, %c640] : memref<2x4096xf32, #tpu.memory_space<vmem>>, vector<2x64xf32>
    tpu.vector_store %arg15[%c0_268, %c640], %124 {strides = array<i32>} : memref<2x4096xf32, #tpu.memory_space<vmem>>, vector<2x64xf32>,
    %126 = vector.extract_strided_slice %92 {offsets = [0, 11, 0], sizes = [2, 1, 64], strides = [1, 1, 1]} : vector<2x64x64xf32> to vector<2x1x64xf32>
    %127 = vector.shape_cast %126 : vector<2x1x64xf32> to vector<2x64xf32>
    %c0_269 = arith.constant 0 : index
    %c704 = arith.constant 704 : index
    %128 = vector.load %arg15[%c0_269, %c704] : memref<2x4096xf32, #tpu.memory_space<vmem>>, vector<2x64xf32>
    tpu.vector_store %arg15[%c0_269, %c704], %127 {strides = array<i32>} : memref<2x4096xf32, #tpu.memory_space<vmem>>, vector<2x64xf32>,
    %129 = vector.extract_strided_slice %92 {offsets = [0, 12, 0], sizes = [2, 1, 64], strides = [1, 1, 1]} : vector<2x64x64xf32> to vector<2x1x64xf32>
    %130 = vector.shape_cast %129 : vector<2x1x64xf32> to vector<2x64xf32>
    %c0_270 = arith.constant 0 : index
    %c768 = arith.constant 768 : index
    %131 = vector.load %arg15[%c0_270, %c768] : memref<2x4096xf32, #tpu.memory_space<vmem>>, vector<2x64xf32>
    tpu.vector_store %arg15[%c0_270, %c768], %130 {strides = array<i32>} : memref<2x4096xf32, #tpu.memory_space<vmem>>, vector<2x64xf32>,
    %132 = vector.extract_strided_slice %92 {offsets = [0, 13, 0], sizes = [2, 1, 64], strides = [1, 1, 1]} : vector<2x64x64xf32> to vector<2x1x64xf32>
    %133 = vector.shape_cast %132 : vector<2x1x64xf32> to vector<2x64xf32>
    %c0_271 = arith.constant 0 : index
    %c832 = arith.constant 832 : index
    %134 = vector.load %arg15[%c0_271, %c832] : memref<2x4096xf32, #tpu.memory_space<vmem>>, vector<2x64xf32>
    tpu.vector_store %arg15[%c0_271, %c832], %133 {strides = array<i32>} : memref<2x4096xf32, #tpu.memory_space<vmem>>, vector<2x64xf32>,
    %135 = vector.extract_strided_slice %92 {offsets = [0, 14, 0], sizes = [2, 1, 64], strides = [1, 1, 1]} : vector<2x64x64xf32> to vector<2x1x64xf32>
    %136 = vector.shape_cast %135 : vector<2x1x64xf32> to vector<2x64xf32>
    %c0_272 = arith.constant 0 : index
    %c896 = arith.constant 896 : index
    %137 = vector.load %arg15[%c0_272, %c896] : memref<2x4096xf32, #tpu.memory_space<vmem>>, vector<2x64xf32>
    tpu.vector_store %arg15[%c0_272, %c896], %136 {strides = array<i32>} : memref<2x4096xf32, #tpu.memory_space<vmem>>, vector<2x64xf32>,
    %138 = vector.extract_strided_slice %92 {offsets = [0, 15, 0], sizes = [2, 1, 64], strides = [1, 1, 1]} : vector<2x64x64xf32> to vector<2x1x64xf32>
    %139 = vector.shape_cast %138 : vector<2x1x64xf32> to vector<2x64xf32>
    %c0_273 = arith.constant 0 : index
    %c960 = arith.constant 960 : index
    %140 = vector.load %arg15[%c0_273, %c960] : memref<2x4096xf32, #tpu.memory_space<vmem>>, vector<2x64xf32>
    tpu.vector_store %arg15[%c0_273, %c960], %139 {strides = array<i32>} : memref<2x4096xf32, #tpu.memory_space<vmem>>, vector<2x64xf32>,
    %141 = vector.extract_strided_slice %92 {offsets = [0, 16, 0], sizes = [2, 1, 64], strides = [1, 1, 1]} : vector<2x64x64xf32> to vector<2x1x64xf32>
    %142 = vector.shape_cast %141 : vector<2x1x64xf32> to vector<2x64xf32>
    %c0_274 = arith.constant 0 : index
    %c1024 = arith.constant 1024 : index
    %143 = vector.load %arg15[%c0_274, %c1024] : memref<2x4096xf32, #tpu.memory_space<vmem>>, vector<2x64xf32>
    tpu.vector_store %arg15[%c0_274, %c1024], %142 {strides = array<i32>} : memref<2x4096xf32, #tpu.memory_space<vmem>>, vector<2x64xf32>,
    %144 = vector.extract_strided_slice %92 {offsets = [0, 17, 0], sizes = [2, 1, 64], strides = [1, 1, 1]} : vector<2x64x64xf32> to vector<2x1x64xf32>
    %145 = vector.shape_cast %144 : vector<2x1x64xf32> to vector<2x64xf32>
    %c0_275 = arith.constant 0 : index
    %c1088 = arith.constant 1088 : index
    %146 = vector.load %arg15[%c0_275, %c1088] : memref<2x4096xf32, #tpu.memory_space<vmem>>, vector<2x64xf32>
    tpu.vector_store %arg15[%c0_275, %c1088], %145 {strides = array<i32>} : memref<2x4096xf32, #tpu.memory_space<vmem>>, vector<2x64xf32>,
    %147 = vector.extract_strided_slice %92 {offsets = [0, 18, 0], sizes = [2, 1, 64], strides = [1, 1, 1]} : vector<2x64x64xf32> to vector<2x1x64xf32>
    %148 = vector.shape_cast %147 : vector<2x1x64xf32> to vector<2x64xf32>
    %c0_276 = arith.constant 0 : index
    %c1152 = arith.constant 1152 : index
    %149 = vector.load %arg15[%c0_276, %c1152] : memref<2x4096xf32, #tpu.memory_space<vmem>>, vector<2x64xf32>
    tpu.vector_store %arg15[%c0_276, %c1152], %148 {strides = array<i32>} : memref<2x4096xf32, #tpu.memory_space<vmem>>, vector<2x64xf32>,
    %150 = vector.extract_strided_slice %92 {offsets = [0, 19, 0], sizes = [2, 1, 64], strides = [1, 1, 1]} : vector<2x64x64xf32> to vector<2x1x64xf32>
    %151 = vector.shape_cast %150 : vector<2x1x64xf32> to vector<2x64xf32>
    %c0_277 = arith.constant 0 : index
    %c1216 = arith.constant 1216 : index
    %152 = vector.load %arg15[%c0_277, %c1216] : memref<2x4096xf32, #tpu.memory_space<vmem>>, vector<2x64xf32>
    tpu.vector_store %arg15[%c0_277, %c1216], %151 {strides = array<i32>} : memref<2x4096xf32, #tpu.memory_space<vmem>>, vector<2x64xf32>,
    %153 = vector.extract_strided_slice %92 {offsets = [0, 20, 0], sizes = [2, 1, 64], strides = [1, 1, 1]} : vector<2x64x64xf32> to vector<2x1x64xf32>
    %154 = vector.shape_cast %153 : vector<2x1x64xf32> to vector<2x64xf32>
    %c0_278 = arith.constant 0 : index
    %c1280 = arith.constant 1280 : index
    %155 = vector.load %arg15[%c0_278, %c1280] : memref<2x4096xf32, #tpu.memory_space<vmem>>, vector<2x64xf32>
    tpu.vector_store %arg15[%c0_278, %c1280], %154 {strides = array<i32>} : memref<2x4096xf32, #tpu.memory_space<vmem>>, vector<2x64xf32>,
    %156 = vector.extract_strided_slice %92 {offsets = [0, 21, 0], sizes = [2, 1, 64], strides = [1, 1, 1]} : vector<2x64x64xf32> to vector<2x1x64xf32>
    %157 = vector.shape_cast %156 : vector<2x1x64xf32> to vector<2x64xf32>
    %c0_279 = arith.constant 0 : index
    %c1344 = arith.constant 1344 : index
    %158 = vector.load %arg15[%c0_279, %c1344] : memref<2x4096xf32, #tpu.memory_space<vmem>>, vector<2x64xf32>
    tpu.vector_store %arg15[%c0_279, %c1344], %157 {strides = array<i32>} : memref<2x4096xf32, #tpu.memory_space<vmem>>, vector<2x64xf32>,
    %159 = vector.extract_strided_slice %92 {offsets = [0, 22, 0], sizes = [2, 1, 64], strides = [1, 1, 1]} : vector<2x64x64xf32> to vector<2x1x64xf32>
    %160 = vector.shape_cast %159 : vector<2x1x64xf32> to vector<2x64xf32>
    %c0_280 = arith.constant 0 : index
    %c1408 = arith.constant 1408 : index
    %161 = vector.load %arg15[%c0_280, %c1408] : memref<2x4096xf32, #tpu.memory_space<vmem>>, vector<2x64xf32>
    tpu.vector_store %arg15[%c0_280, %c1408], %160 {strides = array<i32>} : memref<2x4096xf32, #tpu.memory_space<vmem>>, vector<2x64xf32>,
    %162 = vector.extract_strided_slice %92 {offsets = [0, 23, 0], sizes = [2, 1, 64], strides = [1, 1, 1]} : vector<2x64x64xf32> to vector<2x1x64xf32>
    %163 = vector.shape_cast %162 : vector<2x1x64xf32> to vector<2x64xf32>
    %c0_281 = arith.constant 0 : index
    %c1472 = arith.constant 1472 : index
    %164 = vector.load %arg15[%c0_281, %c1472] : memref<2x4096xf32, #tpu.memory_space<vmem>>, vector<2x64xf32>
    tpu.vector_store %arg15[%c0_281, %c1472], %163 {strides = array<i32>} : memref<2x4096xf32, #tpu.memory_space<vmem>>, vector<2x64xf32>,
    %165 = vector.extract_strided_slice %92 {offsets = [0, 24, 0], sizes = [2, 1, 64], strides = [1, 1, 1]} : vector<2x64x64xf32> to vector<2x1x64xf32>
    %166 = vector.shape_cast %165 : vector<2x1x64xf32> to vector<2x64xf32>
    %c0_282 = arith.constant 0 : index
    %c1536 = arith.constant 1536 : index
    %167 = vector.load %arg15[%c0_282, %c1536] : memref<2x4096xf32, #tpu.memory_space<vmem>>, vector<2x64xf32>
    tpu.vector_store %arg15[%c0_282, %c1536], %166 {strides = array<i32>} : memref<2x4096xf32, #tpu.memory_space<vmem>>, vector<2x64xf32>,
    %168 = vector.extract_strided_slice %92 {offsets = [0, 25, 0], sizes = [2, 1, 64], strides = [1, 1, 1]} : vector<2x64x64xf32> to vector<2x1x64xf32>
    %169 = vector.shape_cast %168 : vector<2x1x64xf32> to vector<2x64xf32>
    %c0_283 = arith.constant 0 : index
    %c1600 = arith.constant 1600 : index
    %170 = vector.load %arg15[%c0_283, %c1600] : memref<2x4096xf32, #tpu.memory_space<vmem>>, vector<2x64xf32>
    tpu.vector_store %arg15[%c0_283, %c1600], %169 {strides = array<i32>} : memref<2x4096xf32, #tpu.memory_space<vmem>>, vector<2x64xf32>,
    %171 = vector.extract_strided_slice %92 {offsets = [0, 26, 0], sizes = [2, 1, 64], strides = [1, 1, 1]} : vector<2x64x64xf32> to vector<2x1x64xf32>
    %172 = vector.shape_cast %171 : vector<2x1x64xf32> to vector<2x64xf32>
    %c0_284 = arith.constant 0 : index
    %c1664 = arith.constant 1664 : index
    %173 = vector.load %arg15[%c0_284, %c1664] : memref<2x4096xf32, #tpu.memory_space<vmem>>, vector<2x64xf32>
    tpu.vector_store %arg15[%c0_284, %c1664], %172 {strides = array<i32>} : memref<2x4096xf32, #tpu.memory_space<vmem>>, vector<2x64xf32>,
    %174 = vector.extract_strided_slice %92 {offsets = [0, 27, 0], sizes = [2, 1, 64], strides = [1, 1, 1]} : vector<2x64x64xf32> to vector<2x1x64xf32>
    %175 = vector.shape_cast %174 : vector<2x1x64xf32> to vector<2x64xf32>
    %c0_285 = arith.constant 0 : index
    %c1728 = arith.constant 1728 : index
    %176 = vector.load %arg15[%c0_285, %c1728] : memref<2x4096xf32, #tpu.memory_space<vmem>>, vector<2x64xf32>
    tpu.vector_store %arg15[%c0_285, %c1728], %175 {strides = array<i32>} : memref<2x4096xf32, #tpu.memory_space<vmem>>, vector<2x64xf32>,
    %177 = vector.extract_strided_slice %92 {offsets = [0, 28, 0], sizes = [2, 1, 64], strides = [1, 1, 1]} : vector<2x64x64xf32> to vector<2x1x64xf32>
    %178 = vector.shape_cast %177 : vector<2x1x64xf32> to vector<2x64xf32>
    %c0_286 = arith.constant 0 : index
    %c1792 = arith.constant 1792 : index
    %179 = vector.load %arg15[%c0_286, %c1792] : memref<2x4096xf32, #tpu.memory_space<vmem>>, vector<2x64xf32>
    tpu.vector_store %arg15[%c0_286, %c1792], %178 {strides = array<i32>} : memref<2x4096xf32, #tpu.memory_space<vmem>>, vector<2x64xf32>,
    %180 = vector.extract_strided_slice %92 {offsets = [0, 29, 0], sizes = [2, 1, 64], strides = [1, 1, 1]} : vector<2x64x64xf32> to vector<2x1x64xf32>
    %181 = vector.shape_cast %180 : vector<2x1x64xf32> to vector<2x64xf32>
    %c0_287 = arith.constant 0 : index
    %c1856 = arith.constant 1856 : index
    %182 = vector.load %arg15[%c0_287, %c1856] : memref<2x4096xf32, #tpu.memory_space<vmem>>, vector<2x64xf32>
    tpu.vector_store %arg15[%c0_287, %c1856], %181 {strides = array<i32>} : memref<2x4096xf32, #tpu.memory_space<vmem>>, vector<2x64xf32>,
    %183 = vector.extract_strided_slice %92 {offsets = [0, 30, 0], sizes = [2, 1, 64], strides = [1, 1, 1]} : vector<2x64x64xf32> to vector<2x1x64xf32>
    %184 = vector.shape_cast %183 : vector<2x1x64xf32> to vector<2x64xf32>
    %c0_288 = arith.constant 0 : index
    %c1920 = arith.constant 1920 : index
    %185 = vector.load %arg15[%c0_288, %c1920] : memref<2x4096xf32, #tpu.memory_space<vmem>>, vector<2x64xf32>
    tpu.vector_store %arg15[%c0_288, %c1920], %184 {strides = array<i32>} : memref<2x4096xf32, #tpu.memory_space<vmem>>, vector<2x64xf32>,
    %186 = vector.extract_strided_slice %92 {offsets = [0, 31, 0], sizes = [2, 1, 64], strides = [1, 1, 1]} : vector<2x64x64xf32> to vector<2x1x64xf32>
    %187 = vector.shape_cast %186 : vector<2x1x64xf32> to vector<2x64xf32>
    %c0_289 = arith.constant 0 : index
    %c1984 = arith.constant 1984 : index
    %188 = vector.load %arg15[%c0_289, %c1984] : memref<2x4096xf32, #tpu.memory_space<vmem>>, vector<2x64xf32>
    tpu.vector_store %arg15[%c0_289, %c1984], %187 {strides = array<i32>} : memref<2x4096xf32, #tpu.memory_space<vmem>>, vector<2x64xf32>,
    %189 = vector.extract_strided_slice %92 {offsets = [0, 32, 0], sizes = [2, 1, 64], strides = [1, 1, 1]} : vector<2x64x64xf32> to vector<2x1x64xf32>
    %190 = vector.shape_cast %189 : vector<2x1x64xf32> to vector<2x64xf32>
    %c0_290 = arith.constant 0 : index
    %c2048 = arith.constant 2048 : index
    %191 = vector.load %arg15[%c0_290, %c2048] : memref<2x4096xf32, #tpu.memory_space<vmem>>, vector<2x64xf32>
    tpu.vector_store %arg15[%c0_290, %c2048], %190 {strides = array<i32>} : memref<2x4096xf32, #tpu.memory_space<vmem>>, vector<2x64xf32>,
    %192 = vector.extract_strided_slice %92 {offsets = [0, 33, 0], sizes = [2, 1, 64], strides = [1, 1, 1]} : vector<2x64x64xf32> to vector<2x1x64xf32>
    %193 = vector.shape_cast %192 : vector<2x1x64xf32> to vector<2x64xf32>
    %c0_291 = arith.constant 0 : index
    %c2112 = arith.constant 2112 : index
    %194 = vector.load %arg15[%c0_291, %c2112] : memref<2x4096xf32, #tpu.memory_space<vmem>>, vector<2x64xf32>
    tpu.vector_store %arg15[%c0_291, %c2112], %193 {strides = array<i32>} : memref<2x4096xf32, #tpu.memory_space<vmem>>, vector<2x64xf32>,
    %195 = vector.extract_strided_slice %92 {offsets = [0, 34, 0], sizes = [2, 1, 64], strides = [1, 1, 1]} : vector<2x64x64xf32> to vector<2x1x64xf32>
    %196 = vector.shape_cast %195 : vector<2x1x64xf32> to vector<2x64xf32>
    %c0_292 = arith.constant 0 : index
    %c2176 = arith.constant 2176 : index
    %197 = vector.load %arg15[%c0_292, %c2176] : memref<2x4096xf32, #tpu.memory_space<vmem>>, vector<2x64xf32>
    tpu.vector_store %arg15[%c0_292, %c2176], %196 {strides = array<i32>} : memref<2x4096xf32, #tpu.memory_space<vmem>>, vector<2x64xf32>,
    %198 = vector.extract_strided_slice %92 {offsets = [0, 35, 0], sizes = [2, 1, 64], strides = [1, 1, 1]} : vector<2x64x64xf32> to vector<2x1x64xf32>
    %199 = vector.shape_cast %198 : vector<2x1x64xf32> to vector<2x64xf32>
    %c0_293 = arith.constant 0 : index
    %c2240 = arith.constant 2240 : index
    %200 = vector.load %arg15[%c0_293, %c2240] : memref<2x4096xf32, #tpu.memory_space<vmem>>, vector<2x64xf32>
    tpu.vector_store %arg15[%c0_293, %c2240], %199 {strides = array<i32>} : memref<2x4096xf32, #tpu.memory_space<vmem>>, vector<2x64xf32>,
    %201 = vector.extract_strided_slice %92 {offsets = [0, 36, 0], sizes = [2, 1, 64], strides = [1, 1, 1]} : vector<2x64x64xf32> to vector<2x1x64xf32>
    %202 = vector.shape_cast %201 : vector<2x1x64xf32> to vector<2x64xf32>
    %c0_294 = arith.constant 0 : index
    %c2304 = arith.constant 2304 : index
    %203 = vector.load %arg15[%c0_294, %c2304] : memref<2x4096xf32, #tpu.memory_space<vmem>>, vector<2x64xf32>
    tpu.vector_store %arg15[%c0_294, %c2304], %202 {strides = array<i32>} : memref<2x4096xf32, #tpu.memory_space<vmem>>, vector<2x64xf32>,
    %204 = vector.extract_strided_slice %92 {offsets = [0, 37, 0], sizes = [2, 1, 64], strides = [1, 1, 1]} : vector<2x64x64xf32> to vector<2x1x64xf32>
    %205 = vector.shape_cast %204 : vector<2x1x64xf32> to vector<2x64xf32>
    %c0_295 = arith.constant 0 : index
    %c2368 = arith.constant 2368 : index
    %206 = vector.load %arg15[%c0_295, %c2368] : memref<2x4096xf32, #tpu.memory_space<vmem>>, vector<2x64xf32>
    tpu.vector_store %arg15[%c0_295, %c2368], %205 {strides = array<i32>} : memref<2x4096xf32, #tpu.memory_space<vmem>>, vector<2x64xf32>,
    %207 = vector.extract_strided_slice %92 {offsets = [0, 38, 0], sizes = [2, 1, 64], strides = [1, 1, 1]} : vector<2x64x64xf32> to vector<2x1x64xf32>
    %208 = vector.shape_cast %207 : vector<2x1x64xf32> to vector<2x64xf32>
    %c0_296 = arith.constant 0 : index
    %c2432 = arith.constant 2432 : index
    %209 = vector.load %arg15[%c0_296, %c2432] : memref<2x4096xf32, #tpu.memory_space<vmem>>, vector<2x64xf32>
    tpu.vector_store %arg15[%c0_296, %c2432], %208 {strides = array<i32>} : memref<2x4096xf32, #tpu.memory_space<vmem>>, vector<2x64xf32>,
    %210 = vector.extract_strided_slice %92 {offsets = [0, 39, 0], sizes = [2, 1, 64], strides = [1, 1, 1]} : vector<2x64x64xf32> to vector<2x1x64xf32>
    %211 = vector.shape_cast %210 : vector<2x1x64xf32> to vector<2x64xf32>
    %c0_297 = arith.constant 0 : index
    %c2496 = arith.constant 2496 : index
    %212 = vector.load %arg15[%c0_297, %c2496] : memref<2x4096xf32, #tpu.memory_space<vmem>>, vector<2x64xf32>
    tpu.vector_store %arg15[%c0_297, %c2496], %211 {strides = array<i32>} : memref<2x4096xf32, #tpu.memory_space<vmem>>, vector<2x64xf32>,
    %213 = vector.extract_strided_slice %92 {offsets = [0, 40, 0], sizes = [2, 1, 64], strides = [1, 1, 1]} : vector<2x64x64xf32> to vector<2x1x64xf32>
    %214 = vector.shape_cast %213 : vector<2x1x64xf32> to vector<2x64xf32>
    %c0_298 = arith.constant 0 : index
    %c2560 = arith.constant 2560 : index
    %215 = vector.load %arg15[%c0_298, %c2560] : memref<2x4096xf32, #tpu.memory_space<vmem>>, vector<2x64xf32>
    tpu.vector_store %arg15[%c0_298, %c2560], %214 {strides = array<i32>} : memref<2x4096xf32, #tpu.memory_space<vmem>>, vector<2x64xf32>,
    %216 = vector.extract_strided_slice %92 {offsets = [0, 41, 0], sizes = [2, 1, 64], strides = [1, 1, 1]} : vector<2x64x64xf32> to vector<2x1x64xf32>
    %217 = vector.shape_cast %216 : vector<2x1x64xf32> to vector<2x64xf32>
    %c0_299 = arith.constant 0 : index
    %c2624 = arith.constant 2624 : index
    %218 = vector.load %arg15[%c0_299, %c2624] : memref<2x4096xf32, #tpu.memory_space<vmem>>, vector<2x64xf32>
    tpu.vector_store %arg15[%c0_299, %c2624], %217 {strides = array<i32>} : memref<2x4096xf32, #tpu.memory_space<vmem>>, vector<2x64xf32>,
    %219 = vector.extract_strided_slice %92 {offsets = [0, 42, 0], sizes = [2, 1, 64], strides = [1, 1, 1]} : vector<2x64x64xf32> to vector<2x1x64xf32>
    %220 = vector.shape_cast %219 : vector<2x1x64xf32> to vector<2x64xf32>
    %c0_300 = arith.constant 0 : index
    %c2688 = arith.constant 2688 : index
    %221 = vector.load %arg15[%c0_300, %c2688] : memref<2x4096xf32, #tpu.memory_space<vmem>>, vector<2x64xf32>
    tpu.vector_store %arg15[%c0_300, %c2688], %220 {strides = array<i32>} : memref<2x4096xf32, #tpu.memory_space<vmem>>, vector<2x64xf32>,
    %222 = vector.extract_strided_slice %92 {offsets = [0, 43, 0], sizes = [2, 1, 64], strides = [1, 1, 1]} : vector<2x64x64xf32> to vector<2x1x64xf32>
    %223 = vector.shape_cast %222 : vector<2x1x64xf32> to vector<2x64xf32>
    %c0_301 = arith.constant 0 : index
    %c2752 = arith.constant 2752 : index
    %224 = vector.load %arg15[%c0_301, %c2752] : memref<2x4096xf32, #tpu.memory_space<vmem>>, vector<2x64xf32>
    tpu.vector_store %arg15[%c0_301, %c2752], %223 {strides = array<i32>} : memref<2x4096xf32, #tpu.memory_space<vmem>>, vector<2x64xf32>,
    %225 = vector.extract_strided_slice %92 {offsets = [0, 44, 0], sizes = [2, 1, 64], strides = [1, 1, 1]} : vector<2x64x64xf32> to vector<2x1x64xf32>
    %226 = vector.shape_cast %225 : vector<2x1x64xf32> to vector<2x64xf32>
    %c0_302 = arith.constant 0 : index
    %c2816 = arith.constant 2816 : index
    %227 = vector.load %arg15[%c0_302, %c2816] : memref<2x4096xf32, #tpu.memory_space<vmem>>, vector<2x64xf32>
    tpu.vector_store %arg15[%c0_302, %c2816], %226 {strides = array<i32>} : memref<2x4096xf32, #tpu.memory_space<vmem>>, vector<2x64xf32>,
    %228 = vector.extract_strided_slice %92 {offsets = [0, 45, 0], sizes = [2, 1, 64], strides = [1, 1, 1]} : vector<2x64x64xf32> to vector<2x1x64xf32>
    %229 = vector.shape_cast %228 : vector<2x1x64xf32> to vector<2x64xf32>
    %c0_303 = arith.constant 0 : index
    %c2880 = arith.constant 2880 : index
    %230 = vector.load %arg15[%c0_303, %c2880] : memref<2x4096xf32, #tpu.memory_space<vmem>>, vector<2x64xf32>
    tpu.vector_store %arg15[%c0_303, %c2880], %229 {strides = array<i32>} : memref<2x4096xf32, #tpu.memory_space<vmem>>, vector<2x64xf32>,
    %231 = vector.extract_strided_slice %92 {offsets = [0, 46, 0], sizes = [2, 1, 64], strides = [1, 1, 1]} : vector<2x64x64xf32> to vector<2x1x64xf32>
    %232 = vector.shape_cast %231 : vector<2x1x64xf32> to vector<2x64xf32>
    %c0_304 = arith.constant 0 : index
    %c2944 = arith.constant 2944 : index
    %233 = vector.load %arg15[%c0_304, %c2944] : memref<2x4096xf32, #tpu.memory_space<vmem>>, vector<2x64xf32>
    tpu.vector_store %arg15[%c0_304, %c2944], %232 {strides = array<i32>} : memref<2x4096xf32, #tpu.memory_space<vmem>>, vector<2x64xf32>,
    %234 = vector.extract_strided_slice %92 {offsets = [0, 47, 0], sizes = [2, 1, 64], strides = [1, 1, 1]} : vector<2x64x64xf32> to vector<2x1x64xf32>
    %235 = vector.shape_cast %234 : vector<2x1x64xf32> to vector<2x64xf32>
    %c0_305 = arith.constant 0 : index
    %c3008 = arith.constant 3008 : index
    %236 = vector.load %arg15[%c0_305, %c3008] : memref<2x4096xf32, #tpu.memory_space<vmem>>, vector<2x64xf32>
    tpu.vector_store %arg15[%c0_305, %c3008], %235 {strides = array<i32>} : memref<2x4096xf32, #tpu.memory_space<vmem>>, vector<2x64xf32>,
    %237 = vector.extract_strided_slice %92 {offsets = [0, 48, 0], sizes = [2, 1, 64], strides = [1, 1, 1]} : vector<2x64x64xf32> to vector<2x1x64xf32>
    %238 = vector.shape_cast %237 : vector<2x1x64xf32> to vector<2x64xf32>
    %c0_306 = arith.constant 0 : index
    %c3072 = arith.constant 3072 : index
    %239 = vector.load %arg15[%c0_306, %c3072] : memref<2x4096xf32, #tpu.memory_space<vmem>>, vector<2x64xf32>
    tpu.vector_store %arg15[%c0_306, %c3072], %238 {strides = array<i32>} : memref<2x4096xf32, #tpu.memory_space<vmem>>, vector<2x64xf32>,
    %240 = vector.extract_strided_slice %92 {offsets = [0, 49, 0], sizes = [2, 1, 64], strides = [1, 1, 1]} : vector<2x64x64xf32> to vector<2x1x64xf32>
    %241 = vector.shape_cast %240 : vector<2x1x64xf32> to vector<2x64xf32>
    %c0_307 = arith.constant 0 : index
    %c3136 = arith.constant 3136 : index
    %242 = vector.load %arg15[%c0_307, %c3136] : memref<2x4096xf32, #tpu.memory_space<vmem>>, vector<2x64xf32>
    tpu.vector_store %arg15[%c0_307, %c3136], %241 {strides = array<i32>} : memref<2x4096xf32, #tpu.memory_space<vmem>>, vector<2x64xf32>,
    %243 = vector.extract_strided_slice %92 {offsets = [0, 50, 0], sizes = [2, 1, 64], strides = [1, 1, 1]} : vector<2x64x64xf32> to vector<2x1x64xf32>
    %244 = vector.shape_cast %243 : vector<2x1x64xf32> to vector<2x64xf32>
    %c0_308 = arith.constant 0 : index
    %c3200 = arith.constant 3200 : index
    %245 = vector.load %arg15[%c0_308, %c3200] : memref<2x4096xf32, #tpu.memory_space<vmem>>, vector<2x64xf32>
    tpu.vector_store %arg15[%c0_308, %c3200], %244 {strides = array<i32>} : memref<2x4096xf32, #tpu.memory_space<vmem>>, vector<2x64xf32>,
    %246 = vector.extract_strided_slice %92 {offsets = [0, 51, 0], sizes = [2, 1, 64], strides = [1, 1, 1]} : vector<2x64x64xf32> to vector<2x1x64xf32>
    %247 = vector.shape_cast %246 : vector<2x1x64xf32> to vector<2x64xf32>
    %c0_309 = arith.constant 0 : index
    %c3264 = arith.constant 3264 : index
    %248 = vector.load %arg15[%c0_309, %c3264] : memref<2x4096xf32, #tpu.memory_space<vmem>>, vector<2x64xf32>
    tpu.vector_store %arg15[%c0_309, %c3264], %247 {strides = array<i32>} : memref<2x4096xf32, #tpu.memory_space<vmem>>, vector<2x64xf32>,
    %249 = vector.extract_strided_slice %92 {offsets = [0, 52, 0], sizes = [2, 1, 64], strides = [1, 1, 1]} : vector<2x64x64xf32> to vector<2x1x64xf32>
    %250 = vector.shape_cast %249 : vector<2x1x64xf32> to vector<2x64xf32>
    %c0_310 = arith.constant 0 : index
    %c3328 = arith.constant 3328 : index
    %251 = vector.load %arg15[%c0_310, %c3328] : memref<2x4096xf32, #tpu.memory_space<vmem>>, vector<2x64xf32>
    tpu.vector_store %arg15[%c0_310, %c3328], %250 {strides = array<i32>} : memref<2x4096xf32, #tpu.memory_space<vmem>>, vector<2x64xf32>,
    %252 = vector.extract_strided_slice %92 {offsets = [0, 53, 0], sizes = [2, 1, 64], strides = [1, 1, 1]} : vector<2x64x64xf32> to vector<2x1x64xf32>
    %253 = vector.shape_cast %252 : vector<2x1x64xf32> to vector<2x64xf32>
    %c0_311 = arith.constant 0 : index
    %c3392 = arith.constant 3392 : index
    %254 = vector.load %arg15[%c0_311, %c3392] : memref<2x4096xf32, #tpu.memory_space<vmem>>, vector<2x64xf32>
    tpu.vector_store %arg15[%c0_311, %c3392], %253 {strides = array<i32>} : memref<2x4096xf32, #tpu.memory_space<vmem>>, vector<2x64xf32>,
    %255 = vector.extract_strided_slice %92 {offsets = [0, 54, 0], sizes = [2, 1, 64], strides = [1, 1, 1]} : vector<2x64x64xf32> to vector<2x1x64xf32>
    %256 = vector.shape_cast %255 : vector<2x1x64xf32> to vector<2x64xf32>
    %c0_312 = arith.constant 0 : index
    %c3456 = arith.constant 3456 : index
    %257 = vector.load %arg15[%c0_312, %c3456] : memref<2x4096xf32, #tpu.memory_space<vmem>>, vector<2x64xf32>
    tpu.vector_store %arg15[%c0_312, %c3456], %256 {strides = array<i32>} : memref<2x4096xf32, #tpu.memory_space<vmem>>, vector<2x64xf32>,
    %258 = vector.extract_strided_slice %92 {offsets = [0, 55, 0], sizes = [2, 1, 64], strides = [1, 1, 1]} : vector<2x64x64xf32> to vector<2x1x64xf32>
    %259 = vector.shape_cast %258 : vector<2x1x64xf32> to vector<2x64xf32>
    %c0_313 = arith.constant 0 : index
    %c3520 = arith.constant 3520 : index
    %260 = vector.load %arg15[%c0_313, %c3520] : memref<2x4096xf32, #tpu.memory_space<vmem>>, vector<2x64xf32>
    tpu.vector_store %arg15[%c0_313, %c3520], %259 {strides = array<i32>} : memref<2x4096xf32, #tpu.memory_space<vmem>>, vector<2x64xf32>,
    %261 = vector.extract_strided_slice %92 {offsets = [0, 56, 0], sizes = [2, 1, 64], strides = [1, 1, 1]} : vector<2x64x64xf32> to vector<2x1x64xf32>
    %262 = vector.shape_cast %261 : vector<2x1x64xf32> to vector<2x64xf32>
    %c0_314 = arith.constant 0 : index
    %c3584 = arith.constant 3584 : index
    %263 = vector.load %arg15[%c0_314, %c3584] : memref<2x4096xf32, #tpu.memory_space<vmem>>, vector<2x64xf32>
    tpu.vector_store %arg15[%c0_314, %c3584], %262 {strides = array<i32>} : memref<2x4096xf32, #tpu.memory_space<vmem>>, vector<2x64xf32>,
    %264 = vector.extract_strided_slice %92 {offsets = [0, 57, 0], sizes = [2, 1, 64], strides = [1, 1, 1]} : vector<2x64x64xf32> to vector<2x1x64xf32>
    %265 = vector.shape_cast %264 : vector<2x1x64xf32> to vector<2x64xf32>
    %c0_315 = arith.constant 0 : index
    %c3648 = arith.constant 3648 : index
    %266 = vector.load %arg15[%c0_315, %c3648] : memref<2x4096xf32, #tpu.memory_space<vmem>>, vector<2x64xf32>
    tpu.vector_store %arg15[%c0_315, %c3648], %265 {strides = array<i32>} : memref<2x4096xf32, #tpu.memory_space<vmem>>, vector<2x64xf32>,
    %267 = vector.extract_strided_slice %92 {offsets = [0, 58, 0], sizes = [2, 1, 64], strides = [1, 1, 1]} : vector<2x64x64xf32> to vector<2x1x64xf32>
    %268 = vector.shape_cast %267 : vector<2x1x64xf32> to vector<2x64xf32>
    %c0_316 = arith.constant 0 : index
    %c3712 = arith.constant 3712 : index
    %269 = vector.load %arg15[%c0_316, %c3712] : memref<2x4096xf32, #tpu.memory_space<vmem>>, vector<2x64xf32>
    tpu.vector_store %arg15[%c0_316, %c3712], %268 {strides = array<i32>} : memref<2x4096xf32, #tpu.memory_space<vmem>>, vector<2x64xf32>,
    %270 = vector.extract_strided_slice %92 {offsets = [0, 59, 0], sizes = [2, 1, 64], strides = [1, 1, 1]} : vector<2x64x64xf32> to vector<2x1x64xf32>
    %271 = vector.shape_cast %270 : vector<2x1x64xf32> to vector<2x64xf32>
    %c0_317 = arith.constant 0 : index
    %c3776 = arith.constant 3776 : index
    %272 = vector.load %arg15[%c0_317, %c3776] : memref<2x4096xf32, #tpu.memory_space<vmem>>, vector<2x64xf32>
    tpu.vector_store %arg15[%c0_317, %c3776], %271 {strides = array<i32>} : memref<2x4096xf32, #tpu.memory_space<vmem>>, vector<2x64xf32>,
    %273 = vector.extract_strided_slice %92 {offsets = [0, 60, 0], sizes = [2, 1, 64], strides = [1, 1, 1]} : vector<2x64x64xf32> to vector<2x1x64xf32>
    %274 = vector.shape_cast %273 : vector<2x1x64xf32> to vector<2x64xf32>
    %c0_318 = arith.constant 0 : index
    %c3840 = arith.constant 3840 : index
    %275 = vector.load %arg15[%c0_318, %c3840] : memref<2x4096xf32, #tpu.memory_space<vmem>>, vector<2x64xf32>
    tpu.vector_store %arg15[%c0_318, %c3840], %274 {strides = array<i32>} : memref<2x4096xf32, #tpu.memory_space<vmem>>, vector<2x64xf32>,
    %276 = vector.extract_strided_slice %92 {offsets = [0, 61, 0], sizes = [2, 1, 64], strides = [1, 1, 1]} : vector<2x64x64xf32> to vector<2x1x64xf32>
    %277 = vector.shape_cast %276 : vector<2x1x64xf32> to vector<2x64xf32>
    %c0_319 = arith.constant 0 : index
    %c3904 = arith.constant 3904 : index
    %278 = vector.load %arg15[%c0_319, %c3904] : memref<2x4096xf32, #tpu.memory_space<vmem>>, vector<2x64xf32>
    tpu.vector_store %arg15[%c0_319, %c3904], %277 {strides = array<i32>} : memref<2x4096xf32, #tpu.memory_space<vmem>>, vector<2x64xf32>,
    %279 = vector.extract_strided_slice %92 {offsets = [0, 62, 0], sizes = [2, 1, 64], strides = [1, 1, 1]} : vector<2x64x64xf32> to vector<2x1x64xf32>
    %280 = vector.shape_cast %279 : vector<2x1x64xf32> to vector<2x64xf32>
    %c0_320 = arith.constant 0 : index
    %c3968 = arith.constant 3968 : index
    %281 = vector.load %arg15[%c0_320, %c3968] : memref<2x4096xf32, #tpu.memory_space<vmem>>, vector<2x64xf32>
    tpu.vector_store %arg15[%c0_320, %c3968], %280 {strides = array<i32>} : memref<2x4096xf32, #tpu.memory_space<vmem>>, vector<2x64xf32>,
    %282 = vector.extract_strided_slice %92 {offsets = [0, 63, 0], sizes = [2, 1, 64], strides = [1, 1, 1]} : vector<2x64x64xf32> to vector<2x1x64xf32>
    %283 = vector.shape_cast %282 : vector<2x1x64xf32> to vector<2x64xf32>
    %c0_321 = arith.constant 0 : index
    %c4032 = arith.constant 4032 : index
    %284 = vector.load %arg15[%c0_321, %c4032] : memref<2x4096xf32, #tpu.memory_space<vmem>>, vector<2x64xf32>
    tpu.vector_store %arg15[%c0_321, %c4032], %283 {strides = array<i32>} : memref<2x4096xf32, #tpu.memory_space<vmem>>, vector<2x64xf32>,
    %c0_322 = arith.constant 0 : index
    %c0_323 = arith.constant 0 : index
    %285 = vector.load %arg15[%c0_322, %c0_323] : memref<2x4096xf32, #tpu.memory_space<vmem>>, vector<2x4096xf32>
    %286 = arith.truncf %285 : vector<2x4096xf32> to vector<2x4096xbf16>
    %c0_324 = arith.constant 0 : index
    %c0_325 = arith.constant 0 : index
    %287 = vector.load %arg7[%c0_324, %c0_325] : memref<4096x192xbf16, #tpu.memory_space<vmem>>, vector<4096x192xbf16>
    %cst_326 = arith.constant dense<0.000000e+00> : vector<2x192xf32>
    %288 = tpu.matmul %286, %287, %cst_326 {dimension_numbers = #tpu.dot_dimension_numbers<[1], [0], [0], [1], [0, 0, 1, 1], [], []>} : vector<2x4096xbf16>, vector<4096x192xbf16>, vector<2x192xf32> -> vector<2x192xf32>
    %c0_327 = arith.constant 0 : index
    %c0_328 = arith.constant 0 : index
    %289 = vector.load %arg8[%c0_327, %c0_328] : memref<1x192xf32, #tpu.memory_space<vmem>>, vector<1x192xf32>
    %290 = vector.broadcast %289 : vector<1x192xf32> to vector<2x192xf32>
    %291 = arith.addf %288, %290 : vector<2x192xf32>
    %292 = vector.extract_strided_slice %291 {offsets = [0, 0], sizes = [2, 128], strides = [1, 1]} : vector<2x192xf32> to vector<2x128xf32>
    %c0_329 = arith.constant 0 : index
    %c0_330 = arith.constant 0 : index
    %293 = vector.load %arg11[%c0_329, %c0_330] : memref<2x128xf32, #tpu.memory_space<vmem>>, vector<2x128xf32>
    tpu.vector_store %arg11[%c0_329, %c0_330], %292 {strides = array<i32>} : memref<2x128xf32, #tpu.memory_space<vmem>>, vector<2x128xf32>,
    %294 = vector.extract_strided_slice %291 {offsets = [0, 128], sizes = [2, 64], strides = [1, 1]} : vector<2x192xf32> to vector<2x64xf32>
    %cst_331 = arith.constant 0.000000e+00 : f32
    %295 = vector.broadcast %cst_331 : f32 to vector<2x64xf32>
    %296 = arith.maximumf %294, %295 : vector<2x64xf32>
    %c0_332 = arith.constant 0 : index
    %c0_333 = arith.constant 0 : index
    %297 = vector.load %arg9[%c0_332, %c0_333] : memref<1x64xf32, #tpu.memory_space<vmem>>, vector<1x64xf32>
    %298 = vector.broadcast %297 : vector<1x64xf32> to vector<2x64xf32>
    %299 = arith.mulf %296, %298 : vector<2x64xf32>
    %cst_334 = arith.constant dense<0.000000e+00> : vector<2xf32>
    %300 = vector.multi_reduction <add>, %299, %cst_334 [1] : vector<2x64xf32> to vector<2xf32>
    %301 = vector.shape_cast %300 : vector<2xf32> to vector<2x1xf32>
    %c0_335 = arith.constant 0 : index
    %c0_336 = arith.constant 0 : index
    %302 = vector.load %arg10[%c0_335, %c0_336] : memref<1x1xf32, #tpu.memory_space<vmem>>, vector<1x1xf32>
    %303 = vector.broadcast %302 : vector<1x1xf32> to vector<2x1xf32>
    %304 = arith.addf %301, %303 : vector<2x1xf32>
    %305 = math.tanh %304 : vector<2x1xf32>
    %c0_337 = arith.constant 0 : index
    %c0_338 = arith.constant 0 : index
    %306 = vector.load %arg12[%c0_337, %c0_338] : memref<2x1xf32, #tpu.memory_space<vmem>>, vector<2x1xf32>
    tpu.vector_store %arg12[%c0_337, %c0_338], %305 {strides = array<i32>} : memref<2x1xf32, #tpu.memory_space<vmem>>, vector<2x1xf32>,
    return
  }
}

</mosaic_0001>

<llo_original>
// kernel: othello_net_forward.1
$region0: #{othello_net_forward.1}
  #allocation0 [shape = 'u32[]', space=smem, size = 0x4, offset = 0x4, fixed_abs, tag = 'smem constant byte address 0x4 - core index']
  #allocation1 [shape = 'u32[144,128]{1,0:T(1,128)}', space=vmem, size = 0x12000, scoped, tag = 'internal scratch']
  #allocation2 [shape = 'f32[2,10,10,64]{3,2,1,0:T(8,128)}', space=vmem, size = 0x28000, scoped, tag = 'scratch operand']
  #allocation3 [shape = 'f32[2,8,8,576]{3,2,1,0:T(8,128)}', space=vmem, size = 0x50000, scoped, tag = 'scratch operand']
  #allocation4 [shape = 'f32[2,4096]{1,0:T(2,128)}', space=vmem, size = 0x8000, scoped, tag = 'scratch operand']
  #allocation5 [shape = 'f32[1,1]{1,0:T(1,128)S(1)}', space=vmem, size = 0x200, scoped, tag = 'scoped memory for othello_net_forward.1']
  %s0 = inlined_call_operand.vmem [shape: f32[2,8,8,1], index: 0, kind: input, shape index: {}]
  %s1 = inlined_call_operand.vmem [shape: bf16[9,64], index: 1, kind: input, shape index: {}]
  %s2 = inlined_call_operand.vmem [shape: f32[1,64], index: 2, kind: input, shape index: {}]
  %s3 = inlined_call_operand.vmem [shape: bf16[576,64], index: 3, kind: input, shape index: {}]
  %s4 = inlined_call_operand.vmem [shape: f32[1,64], index: 4, kind: input, shape index: {}]
  %s5 = inlined_call_operand.vmem [shape: bf16[576,64], index: 5, kind: input, shape index: {}]
  %s6 = inlined_call_operand.vmem [shape: f32[1,64], index: 6, kind: input, shape index: {}]
  %s7 = inlined_call_operand.vmem [shape: bf16[4096,192], index: 7, kind: input, shape index: {}]
  %s8 = inlined_call_operand.vmem [shape: f32[1,192], index: 8, kind: input, shape index: {}]
  %s9 = inlined_call_operand.vmem [shape: f32[1,64], index: 9, kind: input, shape index: {}]
  %s10 = inlined_call_operand.<no memory space> [shape: f32[1,1], index: 10, kind: input, shape index: {}]
  %s11 = inlined_call_operand.hbm [shape: f32[2,128], index: 11, kind: output, shape index: {0}]
  %s12 = inlined_call_operand.vmem [shape: f32[2,1], index: 12, kind: output, shape index: {1}]
  %13 = xla_tuple %s11, %s12
  %s14 = sld [smem:[#allocation0]]
  $region62: #{othello_net_forward.1} parent=0
    _
  %s16 = ssub.s32 1, %s14
  %s17 = scalar_select 0, %s16, %s14
  %v18 = vstv %s10
  %19 = vst [vmem:[#allocation5] sm:$0x1] %v18
  $region1: #{othello_net_forward.1} parent=0
    #allocation6 [shape = 'u8[1024]{0}', space=vmem, size = 0x400, scoped, tag = 'output window, operand 0, single buffered']
    #allocation7 [shape = 's32[1]{0}', space=sflag, size = 0x4, scoped, tag = 'scoped memory for othello_net_forward.1']
    %20 = vsyncpa [#allocation7], 0
    // Predicated region
    $region2: #{othello_net_forward.1} parent=1 // pred_check
      _
    $region3: #{othello_net_forward.1} parent=1 // pred_check_branch
      %22 = sbr.rel (0) target = $region5
    $region4: #{othello_net_forward.1} parent=1 // pred_region
      _
    $region5: #{othello_net_forward.1} parent=1 // pred_fallthru
      _
    // Predicated region
    $region6: #{othello_net_forward.1} parent=1 // pred_check
      _
    $region7: #{othello_net_forward.1} parent=1 // pred_check_branch
      %24 = sbr.rel (0) target = $region9
    $region8: #{othello_net_forward.1} parent=1 // pred_region
      _
    $region9: #{othello_net_forward.1} parent=1 // pred_fallthru
      _
    // Predicated region
    $region10: #{othello_net_forward.1} parent=1 // pred_check
      _
    $region11: #{othello_net_forward.1} parent=1 // pred_check_branch
      %26 = sbr.rel (0) target = $region13
    $region12: #{othello_net_forward.1} parent=1 // pred_region
      _
    $region13: #{othello_net_forward.1} parent=1 // pred_fallthru
      _
    // Predicated region
    $region14: #{othello_net_forward.1} parent=1 // pred_check
      _
    $region15: #{othello_net_forward.1} parent=1 // pred_check_branch
      %28 = sbr.rel (0) target = $region17
    $region16: #{othello_net_forward.1} parent=1 // pred_region
      _
    $region17: #{othello_net_forward.1} parent=1 // pred_fallthru
      _
    // Predicated region
    $region18: #{othello_net_forward.1} parent=1 // pred_check
      _
    $region19: #{othello_net_forward.1} parent=1 // pred_check_branch
      %30 = sbr.rel (0) target = $region21
    $region20: #{othello_net_forward.1} parent=1 // pred_region
      _
    $region21: #{othello_net_forward.1} parent=1 // pred_fallthru
      _
    // Predicated region
    $region22: #{othello_net_forward.1} parent=1 // pred_check
      _
    $region23: #{othello_net_forward.1} parent=1 // pred_check_branch
      %32 = sbr.rel (0) target = $region25
    $region24: #{othello_net_forward.1} parent=1 // pred_region
      _
    $region25: #{othello_net_forward.1} parent=1 // pred_fallthru
      _
    // Predicated region
    $region26: #{othello_net_forward.1} parent=1 // pred_check
      _
    $region27: #{othello_net_forward.1} parent=1 // pred_check_branch
      %34 = sbr.rel (0) target = $region29
    $region28: #{othello_net_forward.1} parent=1 // pred_region
      _
    $region29: #{othello_net_forward.1} parent=1 // pred_fallthru
      _
    // Predicated region
    $region30: #{othello_net_forward.1} parent=1 // pred_check
      _
    $region31: #{othello_net_forward.1} parent=1 // pred_check_branch
      %36 = sbr.rel (0) target = $region33
    $region32: #{othello_net_forward.1} parent=1 // pred_region
      _
    $region33: #{othello_net_forward.1} parent=1 // pred_fallthru
      _
    // Predicated region
    $region34: #{othello_net_forward.1} parent=1 // pred_check
      _
    $region35: #{othello_net_forward.1} parent=1 // pred_check_branch
      %38 = sbr.rel (0) target = $region37
    $region36: #{othello_net_forward.1} parent=1 // pred_region
      _
    $region37: #{othello_net_forward.1} parent=1 // pred_fallthru
      _
    // Predicated region
    $region38: #{othello_net_forward.1} parent=1 // pred_check
      _
    $region39: #{othello_net_forward.1} parent=1 // pred_check_branch
      %40 = sbr.rel (0) target = $region41
    $region40: #{othello_net_forward.1} parent=1 // pred_region
      _
    $region41: #{othello_net_forward.1} parent=1 // pred_fallthru
      _
    // Predicated region
    $region42: #{othello_net_forward.1} parent=1 // pred_check
      _
    $region43: #{othello_net_forward.1} parent=1 // pred_check_branch
      %42 = sbr.rel (0) target = $region45
    $region44: #{othello_net_forward.1} parent=1 // pred_region
      _
    $region45: #{othello_net_forward.1} parent=1 // pred_fallthru
      _
    %vm44 = vcmask 523264
    %45 = vst.msk [vmem:[#allocation2] sm:$0xff] %vm44, 0.0
    %vm46 = vcmask 517120
    %47 = vst.msk [vmem:[#allocation2 + $0x8] sm:$0x3] %vm46, 0.0
    %48 = vst.msk [vmem:[#allocation2 + $0x10] sm:$0xff] %vm44, 0.0
    %49 = vst.msk [vmem:[#allocation2 + $0x18] sm:$0x3] %vm46, 0.0
    %50 = vst.msk [vmem:[#allocation2 + $0x20] sm:$0xff] %vm44, 0.0
    %51 = vst.msk [vmem:[#allocation2 + $0x28] sm:$0x3] %vm46, 0.0
    %52 = vst.msk [vmem:[#allocation2 + $0x30] sm:$0xff] %vm44, 0.0
    %53 = vst.msk [vmem:[#allocation2 + $0x38] sm:$0x3] %vm46, 0.0
    %54 = vst.msk [vmem:[#allocation2 + $0x40] sm:$0xff] %vm44, 0.0
    %55 = vst.msk [vmem:[#allocation2 + $0x48] sm:$0x3] %vm46, 0.0
    %56 = vst.msk [vmem:[#allocation2 + $0x50] sm:$0xff] %vm44, 0.0
    %57 = vst.msk [vmem:[#allocation2 + $0x58] sm:$0x3] %vm46, 0.0
    %58 = vst.msk [vmem:[#allocation2 + $0x60] sm:$0xff] %vm44, 0.0
    %59 = vst.msk [vmem:[#allocation2 + $0x68] sm:$0x3] %vm46, 0.0
    %60 = vst.msk [vmem:[#allocation2 + $0x70] sm:$0xff] %vm44, 0.0
    %61 = vst.msk [vmem:[#allocation2 + $0x78] sm:$0x3] %vm46, 0.0
    %62 = vst.msk [vmem:[#allocation2 + $0x80] sm:$0xff] %vm44, 0.0
    %63 = vst.msk [vmem:[#allocation2 + $0x88] sm:$0x3] %vm46, 0.0
    %64 = vst.msk [vmem:[#allocation2 + $0x90] sm:$0xff] %vm44, 0.0
    %65 = vst.msk [vmem:[#allocation2 + $0x98] sm:$0x3] %vm46, 0.0
    %66 = vst.msk [vmem:[#allocation2 + $0xa0] sm:$0xff] %vm44, 0.0
    %67 = vst.msk [vmem:[#allocation2 + $0xa8] sm:$0x3] %vm46, 0.0
    %68 = vst.msk [vmem:[#allocation2 + $0xb0] sm:$0xff] %vm44, 0.0
    %69 = vst.msk [vmem:[#allocation2 + $0xb8] sm:$0x3] %vm46, 0.0
    %70 = vst.msk [vmem:[#allocation2 + $0xc0] sm:$0xff] %vm44, 0.0
    %71 = vst.msk [vmem:[#allocation2 + $0xc8] sm:$0x3] %vm46, 0.0
    %72 = vst.msk [vmem:[#allocation2 + $0xd0] sm:$0xff] %vm44, 0.0
    %73 = vst.msk [vmem:[#allocation2 + $0xd8] sm:$0x3] %vm46, 0.0
    %74 = vst.msk [vmem:[#allocation2 + $0xe0] sm:$0xff] %vm44, 0.0
    %75 = vst.msk [vmem:[#allocation2 + $0xe8] sm:$0x3] %vm46, 0.0
    %76 = vst.msk [vmem:[#allocation2 + $0xf0] sm:$0xff] %vm44, 0.0
    %77 = vst.msk [vmem:[#allocation2 + $0xf8] sm:$0x3] %vm46, 0.0
    %78 = vst.msk [vmem:[#allocation2 + $0x100] sm:$0xff] %vm44, 0.0
    %79 = vst.msk [vmem:[#allocation2 + $0x108] sm:$0x3] %vm46, 0.0
    %80 = vst.msk [vmem:[#allocation2 + $0x110] sm:$0xff] %vm44, 0.0
    %81 = vst.msk [vmem:[#allocation2 + $0x118] sm:$0x3] %vm46, 0.0
    %82 = vst.msk [vmem:[#allocation2 + $0x120] sm:$0xff] %vm44, 0.0
    %83 = vst.msk [vmem:[#allocation2 + $0x128] sm:$0x3] %vm46, 0.0
    %84 = vst.msk [vmem:[#allocation2 + $0x130] sm:$0xff] %vm44, 0.0
    %85 = vst.msk [vmem:[#allocation2 + $0x138] sm:$0x3] %vm46, 0.0
    %v86 = vld [vmem:[%s0] sm:$0xff]
    %v87 = vld [vmem:[%s0 + $0x8] sm:$0xff]
    %v88 = vld [vmem:[%s0 + $0x10] sm:$0xff]
    %v89 = vld [vmem:[%s0 + $0x18] sm:$0xff]
    %v90 = vld [vmem:[%s0 + $0x20] sm:$0xff]
    %v91 = vld [vmem:[%s0 + $0x28] sm:$0xff]
    %v92 = vld [vmem:[%s0 + $0x30] sm:$0xff]
    %v93 = vld [vmem:[%s0 + $0x38] sm:$0xff]
    %v94 = vld [vmem:[%s0 + $0x40] sm:$0xff]
    %v95 = vld [vmem:[%s0 + $0x48] sm:$0xff]
    %v96 = vld [vmem:[%s0 + $0x50] sm:$0xff]
    %v97 = vld [vmem:[%s0 + $0x58] sm:$0xff]
    %v98 = vld [vmem:[%s0 + $0x60] sm:$0xff]
    %v99 = vld [vmem:[%s0 + $0x68] sm:$0xff]
    %v100 = vld [vmem:[%s0 + $0x70] sm:$0xff]
    %v101 = vld [vmem:[%s0 + $0x78] sm:$0xff]
    %s102 = scalar_lea.vmem [#allocation2], 16
    %vm103 = vcmask 7168
    %104 = vst.msk [vmem:[%s102 + $0x1] sm:$0xff] %vm103, %v86
    %105 = vst.msk [vmem:[%s102 + $0x11] sm:$0xff] %vm103, %v87
    %106 = vst.msk [vmem:[%s102 + $0x21] sm:$0xff] %vm103, %v88
    %107 = vst.msk [vmem:[%s102 + $0x31] sm:$0xff] %vm103, %v89
    %108 = vst.msk [vmem:[%s102 + $0x41] sm:$0xff] %vm103, %v90
    %109 = vst.msk [vmem:[%s102 + $0x51] sm:$0xff] %vm103, %v91
    %110 = vst.msk [vmem:[%s102 + $0x61] sm:$0xff] %vm103, %v92
    %111 = vst.msk [vmem:[%s102 + $0x71] sm:$0xff] %vm103, %v93
    %112 = vst.msk [vmem:[%s102 + $0xa1] sm:$0xff] %vm103, %v94
    %113 = vst.msk [vmem:[%s102 + $0xb1] sm:$0xff] %vm103, %v95
    %114 = vst.msk [vmem:[%s102 + $0xc1] sm:$0xff] %vm103, %v96
    %115 = vst.msk [vmem:[%s102 + $0xd1] sm:$0xff] %vm103, %v97
    %116 = vst.msk [vmem:[%s102 + $0xe1] sm:$0xff] %vm103, %v98
    %117 = vst.msk [vmem:[%s102 + $0xf1] sm:$0xff] %vm103, %v99
    %118 = vst.msk [vmem:[%s102 + $0x101] sm:$0xff] %vm103, %v100
    %119 = vst.msk [vmem:[%s102 + $0x111] sm:$0xff] %vm103, %v101
    %v120 = vld [vmem:[#allocation2] sm:$0xff]
    %v121 = vld [vmem:[#allocation2 + $0x10] sm:$0xff]
    %v122 = vld [vmem:[#allocation2 + $0x20] sm:$0xff]
    %v123 = vld [vmem:[#allocation2 + $0x30] sm:$0xff]
    %v124 = vld [vmem:[#allocation2 + $0x40] sm:$0xff]
    %v125 = vld [vmem:[#allocation2 + $0x50] sm:$0xff]
    %v126 = vld [vmem:[#allocation2 + $0x60] sm:$0xff]
    %v127 = vld [vmem:[#allocation2 + $0x70] sm:$0xff]
    %v128 = vld [vmem:[#allocation2 + $0xa0] sm:$0xff]
    %v129 = vld [vmem:[#allocation2 + $0xb0] sm:$0xff]
    %v130 = vld [vmem:[#allocation2 + $0xc0] sm:$0xff]
    %v131 = vld [vmem:[#allocation2 + $0xd0] sm:$0xff]
    %v132 = vld [vmem:[#allocation2 + $0xe0] sm:$0xff]
    %v133 = vld [vmem:[#allocation2 + $0xf0] sm:$0xff]
    %v134 = vld [vmem:[#allocation2 + $0x100] sm:$0xff]
    %v135 = vld [vmem:[#allocation2 + $0x110] sm:$0xff]
    %136 = vst.msk [vmem:[#allocation3] sm:$0xff] %vm103, %v120
    %137 = vst.msk [vmem:[#allocation3 + $0x28] sm:$0xff] %vm103, %v121
    %138 = vst.msk [vmem:[#allocation3 + $0x50] sm:$0xff] %vm103, %v122
    %139 = vst.msk [vmem:[#allocation3 + $0x78] sm:$0xff] %vm103, %v123
    %140 = vst.msk [vmem:[#allocation3 + $0xa0] sm:$0xff] %vm103, %v124
    %141 = vst.msk [vmem:[#allocation3 + $0xc8] sm:$0xff] %vm103, %v125
    %142 = vst.msk [vmem:[#allocation3 + $0xf0] sm:$0xff] %vm103, %v126
    %143 = vst.msk [vmem:[#allocation3 + $0x118] sm:$0xff] %vm103, %v127
    %144 = vst.msk [vmem:[#allocation3 + $0x140] sm:$0xff] %vm103, %v128
    %145 = vst.msk [vmem:[#allocation3 + $0x168] sm:$0xff] %vm103, %v129
    %146 = vst.msk [vmem:[#allocation3 + $0x190] sm:$0xff] %vm103, %v130
    %147 = vst.msk [vmem:[#allocation3 + $0x1b8] sm:$0xff] %vm103, %v131
    %148 = vst.msk [vmem:[#allocation3 + $0x1e0] sm:$0xff] %vm103, %v132
    %149 = vst.msk [vmem:[#allocation3 + $0x208] sm:$0xff] %vm103, %v133
    %150 = vst.msk [vmem:[#allocation3 + $0x230] sm:$0xff] %vm103, %v134
    %151 = vst.msk [vmem:[#allocation3 + $0x258] sm:$0xff] %vm103, %v135
    %v152 = vld [vmem:[#allocation2 + $0x1] sm:$0xff]
    %v153 = vld [vmem:[#allocation2 + $0x11] sm:$0xff]
    %v154 = vld [vmem:[#allocation2 + $0x21] sm:$0xff]
    %v155 = vld [vmem:[#allocation2 + $0x31] sm:$0xff]
    %v156 = vld [vmem:[#allocation2 + $0x41] sm:$0xff]
    %v157 = vld [vmem:[#allocation2 + $0x51] sm:$0xff]
    %v158 = vld [vmem:[#allocation2 + $0x61] sm:$0xff]
    %v159 = vld [vmem:[#allocation2 + $0x71] sm:$0xff]
    %v160 = vld [vmem:[#allocation2 + $0xa1] sm:$0xff]
    %v161 = vld [vmem:[#allocation2 + $0xb1] sm:$0xff]
    %v162 = vld [vmem:[#allocation2 + $0xc1] sm:$0xff]
    %v163 = vld [vmem:[#allocation2 + $0xd1] sm:$0xff]
    %v164 = vld [vmem:[#allocation2 + $0xe1] sm:$0xff]
    %v165 = vld [vmem:[#allocation2 + $0xf1] sm:$0xff]
    %v166 = vld [vmem:[#allocation2 + $0x101] sm:$0xff]
    %v167 = vld [vmem:[#allocation2 + $0x111] sm:$0xff]
    %184 = vrot.lane.b32.xlu0 %v152, 1
    %v185 = vpop.permute.xlu0 %184
    %186 = vrot.lane.b32.xlu0 %v153, 1
    %v187 = vpop.permute.xlu0 %186
    %188 = vrot.lane.b32.xlu0 %v154, 1
    %v189 = vpop.permute.xlu0 %188
    %190 = vrot.lane.b32.xlu0 %v155, 1
    %v191 = vpop.permute.xlu0 %190
    %192 = vrot.lane.b32.xlu0 %v156, 1
    %v193 = vpop.permute.xlu0 %192
    %194 = vrot.lane.b32.xlu0 %v157, 1
    %v195 = vpop.permute.xlu0 %194
    %196 = vrot.lane.b32.xlu0 %v158, 1
    %v197 = vpop.permute.xlu0 %196
    %198 = vrot.lane.b32.xlu0 %v159, 1
    %v199 = vpop.permute.xlu0 %198
    %200 = vrot.lane.b32.xlu0 %v160, 1
    %v201 = vpop.permute.xlu0 %200
    %202 = vrot.lane.b32.xlu0 %v161, 1
    %v203 = vpop.permute.xlu0 %202
    %204 = vrot.lane.b32.xlu0 %v162, 1
    %v205 = vpop.permute.xlu0 %204
    %206 = vrot.lane.b32.xlu0 %v163, 1
    %v207 = vpop.permute.xlu0 %206
    %208 = vrot.lane.b32.xlu0 %v164, 1
    %v209 = vpop.permute.xlu0 %208
    %210 = vrot.lane.b32.xlu0 %v165, 1
    %v211 = vpop.permute.xlu0 %210
    %212 = vrot.lane.b32.xlu0 %v166, 1
    %v213 = vpop.permute.xlu0 %212
    %214 = vrot.lane.b32.xlu0 %v167, 1
    %v215 = vpop.permute.xlu0 %214
    %vm232 = vcmask 15368
    %233 = vst.msk [vmem:[#allocation3] sm:$0xff] %vm232, %v185
    %234 = vst.msk [vmem:[#allocation3 + $0x28] sm:$0xff] %vm232, %v187
    %235 = vst.msk [vmem:[#allocation3 + $0x50] sm:$0xff] %vm232, %v189
    %236 = vst.msk [vmem:[#allocation3 + $0x78] sm:$0xff] %vm232, %v191
    %237 = vst.msk [vmem:[#allocation3 + $0xa0] sm:$0xff] %vm232, %v193
    %238 = vst.msk [vmem:[#allocation3 + $0xc8] sm:$0xff] %vm232, %v195
    %239 = vst.msk [vmem:[#allocation3 + $0xf0] sm:$0xff] %vm232, %v197
    %240 = vst.msk [vmem:[#allocation3 + $0x118] sm:$0xff] %vm232, %v199
    %241 = vst.msk [vmem:[#allocation3 + $0x140] sm:$0xff] %vm232, %v201
    %242 = vst.msk [vmem:[#allocation3 + $0x168] sm:$0xff] %vm232, %v203
    %243 = vst.msk [vmem:[#allocation3 + $0x190] sm:$0xff] %vm232, %v205
    %244 = vst.msk [vmem:[#allocation3 + $0x1b8] sm:$0xff] %vm232, %v207
    %245 = vst.msk [vmem:[#allocation3 + $0x1e0] sm:$0xff] %vm232, %v209
    %246 = vst.msk [vmem:[#allocation3 + $0x208] sm:$0xff] %vm232, %v211
    %247 = vst.msk [vmem:[#allocation3 + $0x230] sm:$0xff] %vm232, %v213
    %248 = vst.msk [vmem:[#allocation3 + $0x258] sm:$0xff] %vm232, %v215
    %v249 = vld [vmem:[#allocation2 + $0x2] sm:$0xff]
    %v250 = vld [vmem:[#allocation2 + $0x12] sm:$0xff]
    %v251 = vld [vmem:[#allocation2 + $0x22] sm:$0xff]
    %v252 = vld [vmem:[#allocation2 + $0x32] sm:$0xff]
    %v253 = vld [vmem:[#allocation2 + $0x42] sm:$0xff]
    %v254 = vld [vmem:[#allocation2 + $0x52] sm:$0xff]
    %v255 = vld [vmem:[#allocation2 + $0x62] sm:$0xff]
    %v256 = vld [vmem:[#allocation2 + $0x72] sm:$0xff]
    %v257 = vld [vmem:[#allocation2 + $0xa2] sm:$0xff]
    %v258 = vld [vmem:[#allocation2 + $0xb2] sm:$0xff]
    %v259 = vld [vmem:[#allocation2 + $0xc2] sm:$0xff]
    %v260 = vld [vmem:[#allocation2 + $0xd2] sm:$0xff]
    %v261 = vld [vmem:[#allocation2 + $0xe2] sm:$0xff]
    %v262 = vld [vmem:[#allocation2 + $0xf2] sm:$0xff]
    %v263 = vld [vmem:[#allocation2 + $0x102] sm:$0xff]
    %v264 = vld [vmem:[#allocation2 + $0x112] sm:$0xff]
    %281 = vrot.lane.b32.xlu0 %v249, 2
    %v282 = vpop.permute.xlu0 %281
    %283 = vrot.lane.b32.xlu0 %v250, 2
    %v284 = vpop.permute.xlu0 %283
    %285 = vrot.lane.b32.xlu0 %v251, 2
    %v286 = vpop.permute.xlu0 %285
    %287 = vrot.lane.b32.xlu0 %v252, 2
    %v288 = vpop.permute.xlu0 %287
    %289 = vrot.lane.b32.xlu0 %v253, 2
    %v290 = vpop.permute.xlu0 %289
    %291 = vrot.lane.b32.xlu0 %v254, 2
    %v292 = vpop.permute.xlu0 %291
    %293 = vrot.lane.b32.xlu0 %v255, 2
    %v294 = vpop.permute.xlu0 %293
    %295 = vrot.lane.b32.xlu0 %v256, 2
    %v296 = vpop.permute.xlu0 %295
    %297 = vrot.lane.b32.xlu0 %v257, 2
    %v298 = vpop.permute.xlu0 %297
    %299 = vrot.lane.b32.xlu0 %v258, 2
    %v300 = vpop.permute.xlu0 %299
    %301 = vrot.lane.b32.xlu0 %v259, 2
    %v302 = vpop.permute.xlu0 %301
    %303 = vrot.lane.b32.xlu0 %v260, 2
    %v304 = vpop.permute.xlu0 %303
    %305 = vrot.lane.b32.xlu0 %v261, 2
    %v306 = vpop.permute.xlu0 %305
    %307 = vrot.lane.b32.xlu0 %v262, 2
    %v308 = vpop.permute.xlu0 %307
    %309 = vrot.lane.b32.xlu0 %v263, 2
    %v310 = vpop.permute.xlu0 %309
    %311 = vrot.lane.b32.xlu0 %v264, 2
    %v312 = vpop.permute.xlu0 %311
    %vm329 = vcmask 23568
    %330 = vst.msk [vmem:[#allocation3] sm:$0xff] %vm329, %v282
    %331 = vst.msk [vmem:[#allocation3 + $0x28] sm:$0xff] %vm329, %v284
    %332 = vst.msk [vmem:[#allocation3 + $0x50] sm:$0xff] %vm329, %v286
    %333 = vst.msk [vmem:[#allocation3 + $0x78] sm:$0xff] %vm329, %v288
    %334 = vst.msk [vmem:[#allocation3 + $0xa0] sm:$0xff] %vm329, %v290
    %335 = vst.msk [vmem:[#allocation3 + $0xc8] sm:$0xff] %vm329, %v292
    %336 = vst.msk [vmem:[#allocation3 + $0xf0] sm:$0xff] %vm329, %v294
    %337 = vst.msk [vmem:[#allocation3 + $0x118] sm:$0xff] %vm329, %v296
    %338 = vst.msk [vmem:[#allocation3 + $0x140] sm:$0xff] %vm329, %v298
    %339 = vst.msk [vmem:[#allocation3 + $0x168] sm:$0xff] %vm329, %v300
    %340 = vst.msk [vmem:[#allocation3 + $0x190] sm:$0xff] %vm329, %v302
    %341 = vst.msk [vmem:[#allocation3 + $0x1b8] sm:$0xff] %vm329, %v304
    %342 = vst.msk [vmem:[#allocation3 + $0x1e0] sm:$0xff] %vm329, %v306
    %343 = vst.msk [vmem:[#allocation3 + $0x208] sm:$0xff] %vm329, %v308
    %344 = vst.msk [vmem:[#allocation3 + $0x230] sm:$0xff] %vm329, %v310
    %345 = vst.msk [vmem:[#allocation3 + $0x258] sm:$0xff] %vm329, %v312
    %v346 = vld [vmem:[%s102] sm:$0xff]
    %v347 = vld [vmem:[%s102 + $0x10] sm:$0xff]
    %v348 = vld [vmem:[%s102 + $0x20] sm:$0xff]
    %v349 = vld [vmem:[%s102 + $0x30] sm:$0xff]
    %v350 = vld [vmem:[%s102 + $0x40] sm:$0xff]
    %v351 = vld [vmem:[%s102 + $0x50] sm:$0xff]
    %v352 = vld [vmem:[%s102 + $0x60] sm:$0xff]
    %v353 = vld [vmem:[%s102 + $0x70] sm:$0xff]
    %v354 = vld [vmem:[%s102 + $0xa0] sm:$0xff]
    %v355 = vld [vmem:[%s102 + $0xb0] sm:$0xff]
    %v356 = vld [vmem:[%s102 + $0xc0] sm:$0xff]
    %v357 = vld [vmem:[%s102 + $0xd0] sm:$0xff]
    %v358 = vld [vmem:[%s102 + $0xe0] sm:$0xff]
    %v359 = vld [vmem:[%s102 + $0xf0] sm:$0xff]
    %v360 = vld [vmem:[%s102 + $0x100] sm:$0xff]
    %v361 = vld [vmem:[%s102 + $0x110] sm:$0xff]
    %378 = vrot.lane.b32.xlu0 %v346, 3
    %v379 = vpop.permute.xlu0 %378
    %380 = vrot.lane.b32.xlu0 %v347, 3
    %v381 = vpop.permute.xlu0 %380
    %382 = vrot.lane.b32.xlu0 %v348, 3
    %v383 = vpop.permute.xlu0 %382
    %384 = vrot.lane.b32.xlu0 %v349, 3
    %v385 = vpop.permute.xlu0 %384
    %386 = vrot.lane.b32.xlu0 %v350, 3
    %v387 = vpop.permute.xlu0 %386
    %388 = vrot.lane.b32.xlu0 %v351, 3
    %v389 = vpop.permute.xlu0 %388
    %390 = vrot.lane.b32.xlu0 %v352, 3
    %v391 = vpop.permute.xlu0 %390
    %392 = vrot.lane.b32.xlu0 %v353, 3
    %v393 = vpop.permute.xlu0 %392
    %394 = vrot.lane.b32.xlu0 %v354, 3
    %v395 = vpop.permute.xlu0 %394
    %396 = vrot.lane.b32.xlu0 %v355, 3
    %v397 = vpop.permute.xlu0 %396
    %398 = vrot.lane.b32.xlu0 %v356, 3
    %v399 = vpop.permute.xlu0 %398
    %400 = vrot.lane.b32.xlu0 %v357, 3
    %v401 = vpop.permute.xlu0 %400
    %402 = vrot.lane.b32.xlu0 %v358, 3
    %v403 = vpop.permute.xlu0 %402
    %404 = vrot.lane.b32.xlu0 %v359, 3
    %v405 = vpop.permute.xlu0 %404
    %406 = vrot.lane.b32.xlu0 %v360, 3
    %v407 = vpop.permute.xlu0 %406
    %408 = vrot.lane.b32.xlu0 %v361, 3
    %v409 = vpop.permute.xlu0 %408
    %vm426 = vcmask 31768
    %427 = vst.msk [vmem:[#allocation3] sm:$0xff] %vm426, %v379
    %428 = vst.msk [vmem:[#allocation3 + $0x28] sm:$0xff] %vm426, %v381
    %429 = vst.msk [vmem:[#allocation3 + $0x50] sm:$0xff] %vm426, %v383
    %430 = vst.msk [vmem:[#allocation3 + $0x78] sm:$0xff] %vm426, %v385
    %431 = vst.msk [vmem:[#allocation3 + $0xa0] sm:$0xff] %vm426, %v387
    %432 = vst.msk [vmem:[#allocation3 + $0xc8] sm:$0xff] %vm426, %v389
    %433 = vst.msk [vmem:[#allocation3 + $0xf0] sm:$0xff] %vm426, %v391
    %434 = vst.msk [vmem:[#allocation3 + $0x118] sm:$0xff] %vm426, %v393
    %435 = vst.msk [vmem:[#allocation3 + $0x140] sm:$0xff] %vm426, %v395
    %436 = vst.msk [vmem:[#allocation3 + $0x168] sm:$0xff] %vm426, %v397
    %437 = vst.msk [vmem:[#allocation3 + $0x190] sm:$0xff] %vm426, %v399
    %438 = vst.msk [vmem:[#allocation3 + $0x1b8] sm:$0xff] %vm426, %v401
    %439 = vst.msk [vmem:[#allocation3 + $0x1e0] sm:$0xff] %vm426, %v403
    %440 = vst.msk [vmem:[#allocation3 + $0x208] sm:$0xff] %vm426, %v405
    %441 = vst.msk [vmem:[#allocation3 + $0x230] sm:$0xff] %vm426, %v407
    %442 = vst.msk [vmem:[#allocation3 + $0x258] sm:$0xff] %vm426, %v409
    %v443 = vld [vmem:[%s102 + $0x1] sm:$0xff]
    %v444 = vld [vmem:[%s102 + $0x11] sm:$0xff]
    %v445 = vld [vmem:[%s102 + $0x21] sm:$0xff]
    %v446 = vld [vmem:[%s102 + $0x31] sm:$0xff]
    %v447 = vld [vmem:[%s102 + $0x41] sm:$0xff]
    %v448 = vld [vmem:[%s102 + $0x51] sm:$0xff]
    %v449 = vld [vmem:[%s102 + $0x61] sm:$0xff]
    %v450 = vld [vmem:[%s102 + $0x71] sm:$0xff]
    %v451 = vld [vmem:[%s102 + $0xa1] sm:$0xff]
    %v452 = vld [vmem:[%s102 + $0xb1] sm:$0xff]
    %v453 = vld [vmem:[%s102 + $0xc1] sm:$0xff]
    %v454 = vld [vmem:[%s102 + $0xd1] sm:$0xff]
    %v455 = vld [vmem:[%s102 + $0xe1] sm:$0xff]
    %v456 = vld [vmem:[%s102 + $0xf1] sm:$0xff]
    %v457 = vld [vmem:[%s102 + $0x101] sm:$0xff]
    %v458 = vld [vmem:[%s102 + $0x111] sm:$0xff]
    %475 = vrot.lane.b32.xlu0 %v443, 4
    %v476 = vpop.permute.xlu0 %475
    %477 = vrot.lane.b32.xlu0 %v444, 4
    %v478 = vpop.permute.xlu0 %477
    %479 = vrot.lane.b32.xlu0 %v445, 4
    %v480 = vpop.permute.xlu0 %479
    %481 = vrot.lane.b32.xlu0 %v446, 4
    %v482 = vpop.permute.xlu0 %481
    %483 = vrot.lane.b32.xlu0 %v447, 4
    %v484 = vpop.permute.xlu0 %483
    %485 = vrot.lane.b32.xlu0 %v448, 4
    %v486 = vpop.permute.xlu0 %485
    %487 = vrot.lane.b32.xlu0 %v449, 4
    %v488 = vpop.permute.xlu0 %487
    %489 = vrot.lane.b32.xlu0 %v450, 4
    %v490 = vpop.permute.xlu0 %489
    %491 = vrot.lane.b32.xlu0 %v451, 4
    %v492 = vpop.permute.xlu0 %491
    %493 = vrot.lane.b32.xlu0 %v452, 4
    %v494 = vpop.permute.xlu0 %493
    %495 = vrot.lane.b32.xlu0 %v453, 4
    %v496 = vpop.permute.xlu0 %495
    %497 = vrot.lane.b32.xlu0 %v454, 4
    %v498 = vpop.permute.xlu0 %497
    %499 = vrot.lane.b32.xlu0 %v455, 4
    %v500 = vpop.permute.xlu0 %499
    %501 = vrot.lane.b32.xlu0 %v456, 4
    %v502 = vpop.permute.xlu0 %501
    %503 = vrot.lane.b32.xlu0 %v457, 4
    %v504 = vpop.permute.xlu0 %503
    %505 = vrot.lane.b32.xlu0 %v458, 4
    %v506 = vpop.permute.xlu0 %505
    %vm523 = vcmask 39968
    %524 = vst.msk [vmem:[#allocation3] sm:$0xff] %vm523, %v476
    %525 = vst.msk [vmem:[#allocation3 + $0x28] sm:$0xff] %vm523, %v478
    %526 = vst.msk [vmem:[#allocation3 + $0x50] sm:$0xff] %vm523, %v480
    %527 = vst.msk [vmem:[#allocation3 + $0x78] sm:$0xff] %vm523, %v482
    %528 = vst.msk [vmem:[#allocation3 + $0xa0] sm:$0xff] %vm523, %v484
    %529 = vst.msk [vmem:[#allocation3 + $0xc8] sm:$0xff] %vm523, %v486
    %530 = vst.msk [vmem:[#allocation3 + $0xf0] sm:$0xff] %vm523, %v488
    %531 = vst.msk [vmem:[#allocation3 + $0x118] sm:$0xff] %vm523, %v490
    %532 = vst.msk [vmem:[#allocation3 + $0x140] sm:$0xff] %vm523, %v492
    %533 = vst.msk [vmem:[#allocation3 + $0x168] sm:$0xff] %vm523, %v494
    %534 = vst.msk [vmem:[#allocation3 + $0x190] sm:$0xff] %vm523, %v496
    %535 = vst.msk [vmem:[#allocation3 + $0x1b8] sm:$0xff] %vm523, %v498
    %536 = vst.msk [vmem:[#allocation3 + $0x1e0] sm:$0xff] %vm523, %v500
    %537 = vst.msk [vmem:[#allocation3 + $0x208] sm:$0xff] %vm523, %v502
    %538 = vst.msk [vmem:[#allocation3 + $0x230] sm:$0xff] %vm523, %v504
    %539 = vst.msk [vmem:[#allocation3 + $0x258] sm:$0xff] %vm523, %v506
    %v540 = vld [vmem:[%s102 + $0x2] sm:$0xff]
    %v541 = vld [vmem:[%s102 + $0x12] sm:$0xff]
    %v542 = vld [vmem:[%s102 + $0x22] sm:$0xff]
    %v543 = vld [vmem:[%s102 + $0x32] sm:$0xff]
    %v544 = vld [vmem:[%s102 + $0x42] sm:$0xff]
    %v545 = vld [vmem:[%s102 + $0x52] sm:$0xff]
    %v546 = vld [vmem:[%s102 + $0x62] sm:$0xff]
    %v547 = vld [vmem:[%s102 + $0x72] sm:$0xff]
    %v548 = vld [vmem:[%s102 + $0xa2] sm:$0xff]
    %v549 = vld [vmem:[%s102 + $0xb2] sm:$0xff]
    %v550 = vld [vmem:[%s102 + $0xc2] sm:$0xff]
    %v551 = vld [vmem:[%s102 + $0xd2] sm:$0xff]
    %v552 = vld [vmem:[%s102 + $0xe2] sm:$0xff]
    %v553 = vld [vmem:[%s102 + $0xf2] sm:$0xff]
    %v554 = vld [vmem:[%s102 + $0x102] sm:$0xff]
    %v555 = vld [vmem:[%s102 + $0x112] sm:$0xff]
    %572 = vrot.lane.b32.xlu0 %v540, 5
    %v573 = vpop.permute.xlu0 %572
    %574 = vrot.lane.b32.xlu0 %v541, 5
    %v575 = vpop.permute.xlu0 %574
    %576 = vrot.lane.b32.xlu0 %v542, 5
    %v577 = vpop.permute.xlu0 %576
    %578 = vrot.lane.b32.xlu0 %v543, 5
    %v579 = vpop.permute.xlu0 %578
    %580 = vrot.lane.b32.xlu0 %v544, 5
    %v581 = vpop.permute.xlu0 %580
    %582 = vrot.lane.b32.xlu0 %v545, 5
    %v583 = vpop.permute.xlu0 %582
    %584 = vrot.lane.b32.xlu0 %v546, 5
    %v585 = vpop.permute.xlu0 %584
    %586 = vrot.lane.b32.xlu0 %v547, 5
    %v587 = vpop.permute.xlu0 %586
    %588 = vrot.lane.b32.xlu0 %v548, 5
    %v589 = vpop.permute.xlu0 %588
    %590 = vrot.lane.b32.xlu0 %v549, 5
    %v591 = vpop.permute.xlu0 %590
    %592 = vrot.lane.b32.xlu0 %v550, 5
    %v593 = vpop.permute.xlu0 %592
    %594 = vrot.lane.b32.xlu0 %v551, 5
    %v595 = vpop.permute.xlu0 %594
    %596 = vrot.lane.b32.xlu0 %v552, 5
    %v597 = vpop.permute.xlu0 %596
    %598 = vrot.lane.b32.xlu0 %v553, 5
    %v599 = vpop.permute.xlu0 %598
    %600 = vrot.lane.b32.xlu0 %v554, 5
    %v601 = vpop.permute.xlu0 %600
    %602 = vrot.lane.b32.xlu0 %v555, 5
    %v603 = vpop.permute.xlu0 %602
    %vm620 = vcmask 48168
    %621 = vst.msk [vmem:[#allocation3] sm:$0xff] %vm620, %v573
    %622 = vst.msk [vmem:[#allocation3 + $0x28] sm:$0xff] %vm620, %v575
    %623 = vst.msk [vmem:[#allocation3 + $0x50] sm:$0xff] %vm620, %v577
    %624 = vst.msk [vmem:[#allocation3 + $0x78] sm:$0xff] %vm620, %v579
    %625 = vst.msk [vmem:[#allocation3 + $0xa0] sm:$0xff] %vm620, %v581
    %626 = vst.msk [vmem:[#allocation3 + $0xc8] sm:$0xff] %vm620, %v583
    %627 = vst.msk [vmem:[#allocation3 + $0xf0] sm:$0xff] %vm620, %v585
    %628 = vst.msk [vmem:[#allocation3 + $0x118] sm:$0xff] %vm620, %v587
    %629 = vst.msk [vmem:[#allocation3 + $0x140] sm:$0xff] %vm620, %v589
    %630 = vst.msk [vmem:[#allocation3 + $0x168] sm:$0xff] %vm620, %v591
    %631 = vst.msk [vmem:[#allocation3 + $0x190] sm:$0xff] %vm620, %v593
    %632 = vst.msk [vmem:[#allocation3 + $0x1b8] sm:$0xff] %vm620, %v595
    %633 = vst.msk [vmem:[#allocation3 + $0x1e0] sm:$0xff] %vm620, %v597
    %634 = vst.msk [vmem:[#allocation3 + $0x208] sm:$0xff] %vm620, %v599
    %635 = vst.msk [vmem:[#allocation3 + $0x230] sm:$0xff] %vm620, %v601
    %636 = vst.msk [vmem:[#allocation3 + $0x258] sm:$0xff] %vm620, %v603
    %s637 = scalar_lea.vmem [#allocation2], 32
    %v638 = vld [vmem:[%s637] sm:$0xff]
    %v639 = vld [vmem:[%s637 + $0x10] sm:$0xff]
    %v640 = vld [vmem:[%s637 + $0x20] sm:$0xff]
    %v641 = vld [vmem:[%s637 + $0x30] sm:$0xff]
    %v642 = vld [vmem:[%s637 + $0x40] sm:$0xff]
    %v643 = vld [vmem:[%s637 + $0x50] sm:$0xff]
    %v644 = vld [vmem:[%s637 + $0x60] sm:$0xff]
    %v645 = vld [vmem:[%s637 + $0x70] sm:$0xff]
    %v646 = vld [vmem:[%s637 + $0xa0] sm:$0xff]
    %v647 = vld [vmem:[%s637 + $0xb0] sm:$0xff]
    %v648 = vld [vmem:[%s637 + $0xc0] sm:$0xff]
    %v649 = vld [vmem:[%s637 + $0xd0] sm:$0xff]
    %v650 = vld [vmem:[%s637 + $0xe0] sm:$0xff]
    %v651 = vld [vmem:[%s637 + $0xf0] sm:$0xff]
    %v652 = vld [vmem:[%s637 + $0x100] sm:$0xff]
    %v653 = vld [vmem:[%s637 + $0x110] sm:$0xff]
    %670 = vrot.lane.b32.xlu0 %v638, 6
    %v671 = vpop.permute.xlu0 %670
    %672 = vrot.lane.b32.xlu0 %v639, 6
    %v673 = vpop.permute.xlu0 %672
    %674 = vrot.lane.b32.xlu0 %v640, 6
    %v675 = vpop.permute.xlu0 %674
    %676 = vrot.lane.b32.xlu0 %v641, 6
    %v677 = vpop.permute.xlu0 %676
    %678 = vrot.lane.b32.xlu0 %v642, 6
    %v679 = vpop.permute.xlu0 %678
    %680 = vrot.lane.b32.xlu0 %v643, 6
    %v681 = vpop.permute.xlu0 %680
    %682 = vrot.lane.b32.xlu0 %v644, 6
    %v683 = vpop.permute.xlu0 %682
    %684 = vrot.lane.b32.xlu0 %v645, 6
    %v685 = vpop.permute.xlu0 %684
    %686 = vrot.lane.b32.xlu0 %v646, 6
    %v687 = vpop.permute.xlu0 %686
    %688 = vrot.lane.b32.xlu0 %v647, 6
    %v689 = vpop.permute.xlu0 %688
    %690 = vrot.lane.b32.xlu0 %v648, 6
    %v691 = vpop.permute.xlu0 %690
    %692 = vrot.lane.b32.xlu0 %v649, 6
    %v693 = vpop.permute.xlu0 %692
    %694 = vrot.lane.b32.xlu0 %v650, 6
    %v695 = vpop.permute.xlu0 %694
    %696 = vrot.lane.b32.xlu0 %v651, 6
    %v697 = vpop.permute.xlu0 %696
    %698 = vrot.lane.b32.xlu0 %v652, 6
    %v699 = vpop.permute.xlu0 %698
    %700 = vrot.lane.b32.xlu0 %v653, 6
    %v701 = vpop.permute.xlu0 %700
    %vm718 = vcmask 56368
    %719 = vst.msk [vmem:[#allocation3] sm:$0xff] %vm718, %v671
    %720 = vst.msk [vmem:[#allocation3 + $0x28] sm:$0xff] %vm718, %v673
    %721 = vst.msk [vmem:[#allocation3 + $0x50] sm:$0xff] %vm718, %v675
    %722 = vst.msk [vmem:[#allocation3 + $0x78] sm:$0xff] %vm718, %v677
    %723 = vst.msk [vmem:[#allocation3 + $0xa0] sm:$0xff] %vm718, %v679
    %724 = vst.msk [vmem:[#allocation3 + $0xc8] sm:$0xff] %vm718, %v681
    %725 = vst.msk [vmem:[#allocation3 + $0xf0] sm:$0xff] %vm718, %v683
    %726 = vst.msk [vmem:[#allocation3 + $0x118] sm:$0xff] %vm718, %v685
    %727 = vst.msk [vmem:[#allocation3 + $0x140] sm:$0xff] %vm718, %v687
    %728 = vst.msk [vmem:[#allocation3 + $0x168] sm:$0xff] %vm718, %v689
    %729 = vst.msk [vmem:[#allocation3 + $0x190] sm:$0xff] %vm718, %v691
    %730 = vst.msk [vmem:[#allocation3 + $0x1b8] sm:$0xff] %vm718, %v693
    %731 = vst.msk [vmem:[#allocation3 + $0x1e0] sm:$0xff] %vm718, %v695
    %732 = vst.msk [vmem:[#allocation3 + $0x208] sm:$0xff] %vm718, %v697
    %733 = vst.msk [vmem:[#allocation3 + $0x230] sm:$0xff] %vm718, %v699
    %734 = vst.msk [vmem:[#allocation3 + $0x258] sm:$0xff] %vm718, %v701
    %v735 = vld [vmem:[%s637 + $0x1] sm:$0xff]
    %v736 = vld [vmem:[%s637 + $0x11] sm:$0xff]
    %v737 = vld [vmem:[%s637 + $0x21] sm:$0xff]
    %v738 = vld [vmem:[%s637 + $0x31] sm:$0xff]
    %v739 = vld [vmem:[%s637 + $0x41] sm:$0xff]
    %v740 = vld [vmem:[%s637 + $0x51] sm:$0xff]
    %v741 = vld [vmem:[%s637 + $0x61] sm:$0xff]
    %v742 = vld [vmem:[%s637 + $0x71] sm:$0xff]
    %v743 = vld [vmem:[%s637 + $0xa1] sm:$0xff]
    %v744 = vld [vmem:[%s637 + $0xb1] sm:$0xff]
    %v745 = vld [vmem:[%s637 + $0xc1] sm:$0xff]
    %v746 = vld [vmem:[%s637 + $0xd1] sm:$0xff]
    %v747 = vld [vmem:[%s637 + $0xe1] sm:$0xff]
    %v748 = vld [vmem:[%s637 + $0xf1] sm:$0xff]
    %v749 = vld [vmem:[%s637 + $0x101] sm:$0xff]
    %v750 = vld [vmem:[%s637 + $0x111] sm:$0xff]
    %767 = vrot.lane.b32.xlu0 %v735, 7
    %v768 = vpop.permute.xlu0 %767
    %769 = vrot.lane.b32.xlu0 %v736, 7
    %v770 = vpop.permute.xlu0 %769
    %771 = vrot.lane.b32.xlu0 %v737, 7
    %v772 = vpop.permute.xlu0 %771
    %773 = vrot.lane.b32.xlu0 %v738, 7
    %v774 = vpop.permute.xlu0 %773
    %775 = vrot.lane.b32.xlu0 %v739, 7
    %v776 = vpop.permute.xlu0 %775
    %777 = vrot.lane.b32.xlu0 %v740, 7
    %v778 = vpop.permute.xlu0 %777
    %779 = vrot.lane.b32.xlu0 %v741, 7
    %v780 = vpop.permute.xlu0 %779
    %781 = vrot.lane.b32.xlu0 %v742, 7
    %v782 = vpop.permute.xlu0 %781
    %783 = vrot.lane.b32.xlu0 %v743, 7
    %v784 = vpop.permute.xlu0 %783
    %785 = vrot.lane.b32.xlu0 %v744, 7
    %v786 = vpop.permute.xlu0 %785
    %787 = vrot.lane.b32.xlu0 %v745, 7
    %v788 = vpop.permute.xlu0 %787
    %789 = vrot.lane.b32.xlu0 %v746, 7
    %v790 = vpop.permute.xlu0 %789
    %791 = vrot.lane.b32.xlu0 %v747, 7
    %v792 = vpop.permute.xlu0 %791
    %793 = vrot.lane.b32.xlu0 %v748, 7
    %v794 = vpop.permute.xlu0 %793
    %795 = vrot.lane.b32.xlu0 %v749, 7
    %v796 = vpop.permute.xlu0 %795
    %797 = vrot.lane.b32.xlu0 %v750, 7
    %v798 = vpop.permute.xlu0 %797
    %vm815 = vcmask 64568
    %816 = vst.msk [vmem:[#allocation3] sm:$0xff] %vm815, %v768
    %817 = vst.msk [vmem:[#allocation3 + $0x28] sm:$0xff] %vm815, %v770
    %818 = vst.msk [vmem:[#allocation3 + $0x50] sm:$0xff] %vm815, %v772
    %819 = vst.msk [vmem:[#allocation3 + $0x78] sm:$0xff] %vm815, %v774
    %820 = vst.msk [vmem:[#allocation3 + $0xa0] sm:$0xff] %vm815, %v776
    %821 = vst.msk [vmem:[#allocation3 + $0xc8] sm:$0xff] %vm815, %v778
    %822 = vst.msk [vmem:[#allocation3 + $0xf0] sm:$0xff] %vm815, %v780
    %823 = vst.msk [vmem:[#allocation3 + $0x118] sm:$0xff] %vm815, %v782
    %824 = vst.msk [vmem:[#allocation3 + $0x140] sm:$0xff] %vm815, %v784
    %825 = vst.msk [vmem:[#allocation3 + $0x168] sm:$0xff] %vm815, %v786
    %826 = vst.msk [vmem:[#allocation3 + $0x190] sm:$0xff] %vm815, %v788
    %827 = vst.msk [vmem:[#allocation3 + $0x1b8] sm:$0xff] %vm815, %v790
    %828 = vst.msk [vmem:[#allocation3 + $0x1e0] sm:$0xff] %vm815, %v792
    %829 = vst.msk [vmem:[#allocation3 + $0x208] sm:$0xff] %vm815, %v794
    %830 = vst.msk [vmem:[#allocation3 + $0x230] sm:$0xff] %vm815, %v796
    %831 = vst.msk [vmem:[#allocation3 + $0x258] sm:$0xff] %vm815, %v798
    %v832 = vld [vmem:[%s637 + $0x2] sm:$0xff]
    %v833 = vld [vmem:[%s637 + $0x12] sm:$0xff]
    %v834 = vld [vmem:[%s637 + $0x22] sm:$0xff]
    %v835 = vld [vmem:[%s637 + $0x32] sm:$0xff]
    %v836 = vld [vmem:[%s637 + $0x42] sm:$0xff]
    %v837 = vld [vmem:[%s637 + $0x52] sm:$0xff]
    %v838 = vld [vmem:[%s637 + $0x62] sm:$0xff]
    %v839 = vld [vmem:[%s637 + $0x72] sm:$0xff]
    %v840 = vld [vmem:[%s637 + $0xa2] sm:$0xff]
    %v841 = vld [vmem:[%s637 + $0xb2] sm:$0xff]
    %v842 = vld [vmem:[%s637 + $0xc2] sm:$0xff]
    %v843 = vld [vmem:[%s637 + $0xd2] sm:$0xff]
    %v844 = vld [vmem:[%s637 + $0xe2] sm:$0xff]
    %v845 = vld [vmem:[%s637 + $0xf2] sm:$0xff]
    %v846 = vld [vmem:[%s637 + $0x102] sm:$0xff]
    %v847 = vld [vmem:[%s637 + $0x112] sm:$0xff]
    %864 = vrot.lane.b32.xlu0 %v832, 8
    %v865 = vpop.permute.xlu0 %864
    %866 = vrot.lane.b32.xlu0 %v833, 8
    %v867 = vpop.permute.xlu0 %866
    %868 = vrot.lane.b32.xlu0 %v834, 8
    %v869 = vpop.permute.xlu0 %868
    %870 = vrot.lane.b32.xlu0 %v835, 8
    %v871 = vpop.permute.xlu0 %870
    %872 = vrot.lane.b32.xlu0 %v836, 8
    %v873 = vpop.permute.xlu0 %872
    %874 = vrot.lane.b32.xlu0 %v837, 8
    %v875 = vpop.permute.xlu0 %874
    %876 = vrot.lane.b32.xlu0 %v838, 8
    %v877 = vpop.permute.xlu0 %876
    %878 = vrot.lane.b32.xlu0 %v839, 8
    %v879 = vpop.permute.xlu0 %878
    %880 = vrot.lane.b32.xlu0 %v840, 8
    %v881 = vpop.permute.xlu0 %880
    %882 = vrot.lane.b32.xlu0 %v841, 8
    %v883 = vpop.permute.xlu0 %882
    %884 = vrot.lane.b32.xlu0 %v842, 8
    %v885 = vpop.permute.xlu0 %884
    %886 = vrot.lane.b32.xlu0 %v843, 8
    %v887 = vpop.permute.xlu0 %886
    %888 = vrot.lane.b32.xlu0 %v844, 8
    %v889 = vpop.permute.xlu0 %888
    %890 = vrot.lane.b32.xlu0 %v845, 8
    %v891 = vpop.permute.xlu0 %890
    %892 = vrot.lane.b32.xlu0 %v846, 8
    %v893 = vpop.permute.xlu0 %892
    %894 = vrot.lane.b32.xlu0 %v847, 8
    %v895 = vpop.permute.xlu0 %894
    %vm912 = vcmask 72768
    %913 = vst.msk [vmem:[#allocation3] sm:$0xff] %vm912, %v865
    %914 = vst.msk [vmem:[#allocation3 + $0x28] sm:$0xff] %vm912, %v867
    %915 = vst.msk [vmem:[#allocation3 + $0x50] sm:$0xff] %vm912, %v869
    %916 = vst.msk [vmem:[#allocation3 + $0x78] sm:$0xff] %vm912, %v871
    %917 = vst.msk [vmem:[#allocation3 + $0xa0] sm:$0xff] %vm912, %v873
    %918 = vst.msk [vmem:[#allocation3 + $0xc8] sm:$0xff] %vm912, %v875
    %919 = vst.msk [vmem:[#allocation3 + $0xf0] sm:$0xff] %vm912, %v877
    %920 = vst.msk [vmem:[#allocation3 + $0x118] sm:$0xff] %vm912, %v879
    %921 = vst.msk [vmem:[#allocation3 + $0x140] sm:$0xff] %vm912, %v881
    %922 = vst.msk [vmem:[#allocation3 + $0x168] sm:$0xff] %vm912, %v883
    %923 = vst.msk [vmem:[#allocation3 + $0x190] sm:$0xff] %vm912, %v885
    %924 = vst.msk [vmem:[#allocation3 + $0x1b8] sm:$0xff] %vm912, %v887
    %925 = vst.msk [vmem:[#allocation3 + $0x1e0] sm:$0xff] %vm912, %v889
    %926 = vst.msk [vmem:[#allocation3 + $0x208] sm:$0xff] %vm912, %v891
    %927 = vst.msk [vmem:[#allocation3 + $0x230] sm:$0xff] %vm912, %v893
    %928 = vst.msk [vmem:[#allocation3 + $0x258] sm:$0xff] %vm912, %v895
    %v929 = vld [vmem:[#allocation3] sm:$0xff]
    %v930 = vld [vmem:[#allocation3 + $0x28] sm:$0xff]
    %v931 = vld [vmem:[#allocation3 + $0x50] sm:$0xff]
    %v932 = vld [vmem:[#allocation3 + $0x78] sm:$0xff]
    %v933 = vld [vmem:[#allocation3 + $0xa0] sm:$0xff]
    %v934 = vld [vmem:[#allocation3 + $0xc8] sm:$0xff]
    %v935 = vld [vmem:[#allocation3 + $0xf0] sm:$0xff]
    %v936 = vld [vmem:[#allocation3 + $0x118] sm:$0xff]
    %v937 = vld [vmem:[#allocation3 + $0x140] sm:$0xff]
    %v938 = vld [vmem:[#allocation3 + $0x168] sm:$0xff]
    %v939 = vld [vmem:[#allocation3 + $0x190] sm:$0xff]
    %v940 = vld [vmem:[#allocation3 + $0x1b8] sm:$0xff]
    %v941 = vld [vmem:[#allocation3 + $0x1e0] sm:$0xff]
    %v942 = vld [vmem:[#allocation3 + $0x208] sm:$0xff]
    %v943 = vld [vmem:[#allocation3 + $0x230] sm:$0xff]
    %v944 = vld [vmem:[#allocation3 + $0x258] sm:$0xff]
    %v945 = vpack.c.bf16 %v930, %v929
    %v946 = vpack.c.bf16 %v932, %v931
    %v947 = vpack.c.bf16 %v934, %v933
    %v948 = vpack.c.bf16 %v936, %v935
    %v949 = vpack.c.bf16 %v938, %v937
    %v950 = vpack.c.bf16 %v940, %v939
    %v951 = vpack.c.bf16 %v942, %v941
    %v952 = vpack.c.bf16 %v944, %v943
    %v953 = vld [vmem:[%s1] sm:$0xf]
    %v954 = vld [vmem:[%s1 + $0x4] sm:$0x1]
    %v955 = vld [vmem:[%s2] sm:$0x1]
    %v957 = vlaneseq
    %v958 = vshrl.u32 %v957, 7
    %v959 = vsub.s32 0, %v958
    %v960 = vrot.slane %v955, %v959
    %v964 = vunpack.c.l.b16 %v953
    %v965 = vunpack.c.l.b16 %v954
    %v966 = vpack.c.b16 %v965, %v964
    %vm967 = vcmask 72704
    %v969 = vsel %vm967, %v945, 0
    %v972 = vsel %vm967, %v946, 0
    %v975 = vsel %vm967, %v947, 0
    %v978 = vsel %vm967, %v948, 0
    %v981 = vsel %vm967, %v949, 0
    %v984 = vsel %vm967, %v950, 0
    %v987 = vsel %vm967, %v951, 0
    %v990 = vsel %vm967, %v952, 0
    %vm992 = vcmask 1043456
    %vm993 = vcmask 1044480
    %v994 = vsel %vm992, 4294967295, 65535
    %v995 = vsel %vm993, %v994, 0
    %v997 = vand.u32 %v966, %v995
    %999 = vmatprep.subr.bf16.mxu0 0
    %1000 = vmatpush1.bf16.msra.mxu0 %v997
    %1001 = vmatprep.subr.bf16.mxu0 0
    %1002 = vmatpush1.bf16.msra.mxu0 0
    %1003 = vmatprep.subr.bf16.mxu0 0
    %1004 = vmatpush1.bf16.msra.mxu0 0
    %1005 = vmatprep.subr.bf16.mxu0 0
    %1006 = vmatpush1.bf16.msra.mxu0 0
    %1007 = vmatprep.subr.bf16.mxu0 0
    %1008 = vmatpush1.bf16.msra.mxu0 0
    %1009 = vmatprep.subr.bf16.mxu0 0
    %1010 = vmatpush1.bf16.msra.mxu0 0
    %1011 = vmatprep.subr.bf16.mxu0 0
    %1012 = vmatpush1.bf16.msra.mxu0 0
    %1013 = vmatprep.subr.bf16.mxu0 0
    %1014 = vmatpush1.bf16.msra.mxu0 0
    %1015 = vmatprep.subr.bf16.mxu0 0
    %1016 = vmatpush1.bf16.msra.mxu0 0
    %1017 = vmatprep.subr.bf16.mxu0 0
    %1018 = vmatpush1.bf16.msra.mxu0 0
    %1019 = vmatprep.subr.bf16.mxu0 0
    %1020 = vmatpush1.bf16.msra.mxu0 0
    %1021 = vmatprep.subr.bf16.mxu0 0
    %1022 = vmatpush1.bf16.msra.mxu0 0
    %1023 = vmatprep.subr.bf16.mxu0 0
    %1024 = vmatpush1.bf16.msra.mxu0 0
    %1025 = vmatprep.subr.bf16.mxu0 0
    %1026 = vmatpush1.bf16.msra.mxu0 0
    %1027 = vmatprep.subr.bf16.mxu0 0
    %1028 = vmatpush1.bf16.msra.mxu0 0
    %1029 = vmatprep.subr.bf16.mxu0 0
    %1030 = vmatpush1.bf16.msra.mxu0 0
    %1031 = vmatprep.mubr.bf16.mxu0 0
    %1032 = vmatmul.mubr.bf16.gmra.mrb[0].mxu0 %v969
    %v1033 = vpop.f32.mrb[0].mxu0
    %v1034 = vadd.f32 %v960, %v1033
    %v1035 = vpop.f32.mrb[0].mxu0
    %v1036 = vpop.f32.mrb[0].mxu0
    %v1037 = vadd.f32 %v960, %v1036
    %v1038 = vpop.f32.mrb[0].mxu0
    %1039 = vmatprep.mubr.bf16.mxu0 0
    %1040 = vmatmul.mubr.bf16.gmra.mrb[0].mxu0 %v972
    %v1041 = vpop.f32.mrb[0].mxu0
    %v1042 = vadd.f32 %v960, %v1041
    %v1043 = vpop.f32.mrb[0].mxu0
    %v1044 = vpop.f32.mrb[0].mxu0
    %v1045 = vadd.f32 %v960, %v1044
    %v1046 = vpop.f32.mrb[0].mxu0
    %1047 = vmatprep.mubr.bf16.mxu0 0
    %1048 = vmatmul.mubr.bf16.gmra.mrb[0].mxu0 %v975
    %v1049 = vpop.f32.mrb[0].mxu0
    %v1050 = vadd.f32 %v960, %v1049
    %v1051 = vpop.f32.mrb[0].mxu0
    %v1052 = vpop.f32.mrb[0].mxu0
    %v1053 = vadd.f32 %v960, %v1052
    %v1054 = vpop.f32.mrb[0].mxu0
    %1055 = vmatprep.mubr.bf16.mxu0 0
    %1056 = vmatmul.mubr.bf16.gmra.mrb[0].mxu0 %v978
    %v1057 = vpop.f32.mrb[0].mxu0
    %v1058 = vadd.f32 %v960, %v1057
    %v1059 = vpop.f32.mrb[0].mxu0
    %v1060 = vpop.f32.mrb[0].mxu0
    %v1061 = vadd.f32 %v960, %v1060
    %v1062 = vpop.f32.mrb[0].mxu0
    %1063 = vmatprep.mubr.bf16.mxu0 0
    %1064 = vmatmul.mubr.bf16.gmra.mrb[0].mxu0 %v981
    %v1065 = vpop.f32.mrb[0].mxu0
    %v1066 = vadd.f32 %v960, %v1065
    %v1067 = vpop.f32.mrb[0].mxu0
    %v1068 = vpop.f32.mrb[0].mxu0
    %v1069 = vadd.f32 %v960, %v1068
    %v1070 = vpop.f32.mrb[0].mxu0
    %1071 = vmatprep.mubr.bf16.mxu0 0
    %1072 = vmatmul.mubr.bf16.gmra.mrb[0].mxu0 %v984
    %v1073 = vpop.f32.mrb[0].mxu0
    %v1074 = vadd.f32 %v960, %v1073
    %v1075 = vpop.f32.mrb[0].mxu0
    %v1076 = vpop.f32.mrb[0].mxu0
    %v1077 = vadd.f32 %v960, %v1076
    %v1078 = vpop.f32.mrb[0].mxu0
    %1079 = vmatprep.mubr.bf16.mxu0 0
    %1080 = vmatmul.mubr.bf16.gmra.mrb[0].mxu0 %v987
    %v1081 = vpop.f32.mrb[0].mxu0
    %v1082 = vadd.f32 %v960, %v1081
    %v1083 = vpop.f32.mrb[0].mxu0
    %v1084 = vpop.f32.mrb[0].mxu0
    %v1085 = vadd.f32 %v960, %v1084
    %v1086 = vpop.f32.mrb[0].mxu0
    %1087 = vmatprep.mubr.bf16.mxu0 0
    %1088 = vmatmul.mubr.bf16.gmra.mrb[0].mxu0 %v990
    %v1089 = vpop.f32.mrb[0].mxu0
    %v1090 = vadd.f32 %v960, %v1089
    %v1091 = vpop.f32.mrb[0].mxu0
    %v1092 = vpop.f32.mrb[0].mxu0
    %v1093 = vadd.f32 %v960, %v1092
    %v1094 = vpop.f32.mrb[0].mxu0
    %1095 = vdwg.mxu0
    %v1096 = vmax.f32 %v1034, 0.0
    %v1097 = vmax.f32 %v1037, 0.0
    %v1098 = vmax.f32 %v1042, 0.0
    %v1099 = vmax.f32 %v1045, 0.0
    %v1100 = vmax.f32 %v1050, 0.0
    %v1101 = vmax.f32 %v1053, 0.0
    %v1102 = vmax.f32 %v1058, 0.0
    %v1103 = vmax.f32 %v1061, 0.0
    %v1104 = vmax.f32 %v1066, 0.0
    %v1105 = vmax.f32 %v1069, 0.0
    %v1106 = vmax.f32 %v1074, 0.0
    %v1107 = vmax.f32 %v1077, 0.0
    %v1108 = vmax.f32 %v1082, 0.0
    %v1109 = vmax.f32 %v1085, 0.0
    %v1110 = vmax.f32 %v1090, 0.0
    %v1111 = vmax.f32 %v1093, 0.0
    %1112 = vst.msk [vmem:[%s102 + $0x1] sm:$0xff] %vm44, %v1096
    %1113 = vst.msk [vmem:[%s102 + $0x11] sm:$0xff] %vm44, %v1097
    %1114 = vst.msk [vmem:[%s102 + $0x21] sm:$0xff] %vm44, %v1098
    %1115 = vst.msk [vmem:[%s102 + $0x31] sm:$0xff] %vm44, %v1099
    %1116 = vst.msk [vmem:[%s102 + $0x41] sm:$0xff] %vm44, %v1100
    %1117 = vst.msk [vmem:[%s102 + $0x51] sm:$0xff] %vm44, %v1101
    %1118 = vst.msk [vmem:[%s102 + $0x61] sm:$0xff] %vm44, %v1102
    %1119 = vst.msk [vmem:[%s102 + $0x71] sm:$0xff] %vm44, %v1103
    %1120 = vst.msk [vmem:[%s102 + $0xa1] sm:$0xff] %vm44, %v1104
    %1121 = vst.msk [vmem:[%s102 + $0xb1] sm:$0xff] %vm44, %v1105
    %1122 = vst.msk [vmem:[%s102 + $0xc1] sm:$0xff] %vm44, %v1106
    %1123 = vst.msk [vmem:[%s102 + $0xd1] sm:$0xff] %vm44, %v1107
    %1124 = vst.msk [vmem:[%s102 + $0xe1] sm:$0xff] %vm44, %v1108
    %1125 = vst.msk [vmem:[%s102 + $0xf1] sm:$0xff] %vm44, %v1109
    %1126 = vst.msk [vmem:[%s102 + $0x101] sm:$0xff] %vm44, %v1110
    %1127 = vst.msk [vmem:[%s102 + $0x111] sm:$0xff] %vm44, %v1111
    %v1128 = vld [vmem:[#allocation2] sm:$0xff]
    %v1129 = vld [vmem:[#allocation2 + $0x10] sm:$0xff]
    %v1130 = vld [vmem:[#allocation2 + $0x20] sm:$0xff]
    %v1131 = vld [vmem:[#allocation2 + $0x30] sm:$0xff]
    %v1132 = vld [vmem:[#allocation2 + $0x40] sm:$0xff]
    %v1133 = vld [vmem:[#allocation2 + $0x50] sm:$0xff]
    %v1134 = vld [vmem:[#allocation2 + $0x60] sm:$0xff]
    %v1135 = vld [vmem:[#allocation2 + $0x70] sm:$0xff]
    %v1136 = vld [vmem:[#allocation2 + $0xa0] sm:$0xff]
    %v1137 = vld [vmem:[#allocation2 + $0xb0] sm:$0xff]
    %v1138 = vld [vmem:[#allocation2 + $0xc0] sm:$0xff]
    %v1139 = vld [vmem:[#allocation2 + $0xd0] sm:$0xff]
    %v1140 = vld [vmem:[#allocation2 + $0xe0] sm:$0xff]
    %v1141 = vld [vmem:[#allocation2 + $0xf0] sm:$0xff]
    %v1142 = vld [vmem:[#allocation2 + $0x100] sm:$0xff]
    %v1143 = vld [vmem:[#allocation2 + $0x110] sm:$0xff]
    %1144 = vst.msk [vmem:[#allocation3] sm:$0xff] %vm44, %v1128
    %1145 = vst.msk [vmem:[#allocation3 + $0x28] sm:$0xff] %vm44, %v1129
    %1146 = vst.msk [vmem:[#allocation3 + $0x50] sm:$0xff] %vm44, %v1130
    %1147 = vst.msk [vmem:[#allocation3 + $0x78] sm:$0xff] %vm44, %v1131
    %1148 = vst.msk [vmem:[#allocation3 + $0xa0] sm:$0xff] %vm44, %v1132
    %1149 = vst.msk [vmem:[#allocation3 + $0xc8] sm:$0xff] %vm44, %v1133
    %1150 = vst.msk [vmem:[#allocation3 + $0xf0] sm:$0xff] %vm44, %v1134
    %1151 = vst.msk [vmem:[#allocation3 + $0x118] sm:$0xff] %vm44, %v1135
    %1152 = vst.msk [vmem:[#allocation3 + $0x140] sm:$0xff] %vm44, %v1136
    %1153 = vst.msk [vmem:[#allocation3 + $0x168] sm:$0xff] %vm44, %v1137
    %1154 = vst.msk [vmem:[#allocation3 + $0x190] sm:$0xff] %vm44, %v1138
    %1155 = vst.msk [vmem:[#allocation3 + $0x1b8] sm:$0xff] %vm44, %v1139
    %1156 = vst.msk [vmem:[#allocation3 + $0x1e0] sm:$0xff] %vm44, %v1140
    %1157 = vst.msk [vmem:[#allocation3 + $0x208] sm:$0xff] %vm44, %v1141
    %1158 = vst.msk [vmem:[#allocation3 + $0x230] sm:$0xff] %vm44, %v1142
    %1159 = vst.msk [vmem:[#allocation3 + $0x258] sm:$0xff] %vm44, %v1143
    %v1160 = vld [vmem:[#allocation2 + $0x1] sm:$0xff]
    %v1161 = vld [vmem:[#allocation2 + $0x11] sm:$0xff]
    %v1162 = vld [vmem:[#allocation2 + $0x21] sm:$0xff]
    %v1163 = vld [vmem:[#allocation2 + $0x31] sm:$0xff]
    %v1164 = vld [vmem:[#allocation2 + $0x41] sm:$0xff]
    %v1165 = vld [vmem:[#allocation2 + $0x51] sm:$0xff]
    %v1166 = vld [vmem:[#allocation2 + $0x61] sm:$0xff]
    %v1167 = vld [vmem:[#allocation2 + $0x71] sm:$0xff]
    %v1168 = vld [vmem:[#allocation2 + $0xa1] sm:$0xff]
    %v1169 = vld [vmem:[#allocation2 + $0xb1] sm:$0xff]
    %v1170 = vld [vmem:[#allocation2 + $0xc1] sm:$0xff]
    %v1171 = vld [vmem:[#allocation2 + $0xd1] sm:$0xff]
    %v1172 = vld [vmem:[#allocation2 + $0xe1] sm:$0xff]
    %v1173 = vld [vmem:[#allocation2 + $0xf1] sm:$0xff]
    %v1174 = vld [vmem:[#allocation2 + $0x101] sm:$0xff]
    %v1175 = vld [vmem:[#allocation2 + $0x111] sm:$0xff]
    %1192 = vrot.lane.b32.xlu0 %v1160, 64
    %v1193 = vpop.permute.xlu0 %1192
    %1194 = vrot.lane.b32.xlu0 %v1161, 64
    %v1195 = vpop.permute.xlu0 %1194
    %1196 = vrot.lane.b32.xlu0 %v1162, 64
    %v1197 = vpop.permute.xlu0 %1196
    %1198 = vrot.lane.b32.xlu0 %v1163, 64
    %v1199 = vpop.permute.xlu0 %1198
    %1200 = vrot.lane.b32.xlu0 %v1164, 64
    %v1201 = vpop.permute.xlu0 %1200
    %1202 = vrot.lane.b32.xlu0 %v1165, 64
    %v1203 = vpop.permute.xlu0 %1202
    %1204 = vrot.lane.b32.xlu0 %v1166, 64
    %v1205 = vpop.permute.xlu0 %1204
    %1206 = vrot.lane.b32.xlu0 %v1167, 64
    %v1207 = vpop.permute.xlu0 %1206
    %1208 = vrot.lane.b32.xlu0 %v1168, 64
    %v1209 = vpop.permute.xlu0 %1208
    %1210 = vrot.lane.b32.xlu0 %v1169, 64
    %v1211 = vpop.permute.xlu0 %1210
    %1212 = vrot.lane.b32.xlu0 %v1170, 64
    %v1213 = vpop.permute.xlu0 %1212
    %1214 = vrot.lane.b32.xlu0 %v1171, 64
    %v1215 = vpop.permute.xlu0 %1214
    %1216 = vrot.lane.b32.xlu0 %v1172, 64
    %v1217 = vpop.permute.xlu0 %1216
    %1218 = vrot.lane.b32.xlu0 %v1173, 64
    %v1219 = vpop.permute.xlu0 %1218
    %1220 = vrot.lane.b32.xlu0 %v1174, 64
    %v1221 = vpop.permute.xlu0 %1220
    %1222 = vrot.lane.b32.xlu0 %v1175, 64
    %v1223 = vpop.permute.xlu0 %1222
    %vm1240 = vcmask 1048064
    %1241 = vst.msk [vmem:[#allocation3] sm:$0xff] %vm1240, %v1193
    %1242 = vst.msk [vmem:[#allocation3 + $0x28] sm:$0xff] %vm1240, %v1195
    %1243 = vst.msk [vmem:[#allocation3 + $0x50] sm:$0xff] %vm1240, %v1197
    %1244 = vst.msk [vmem:[#allocation3 + $0x78] sm:$0xff] %vm1240, %v1199
    %1245 = vst.msk [vmem:[#allocation3 + $0xa0] sm:$0xff] %vm1240, %v1201
    %1246 = vst.msk [vmem:[#allocation3 + $0xc8] sm:$0xff] %vm1240, %v1203
    %1247 = vst.msk [vmem:[#allocation3 + $0xf0] sm:$0xff] %vm1240, %v1205
    %1248 = vst.msk [vmem:[#allocation3 + $0x118] sm:$0xff] %vm1240, %v1207
    %1249 = vst.msk [vmem:[#allocation3 + $0x140] sm:$0xff] %vm1240, %v1209
    %1250 = vst.msk [vmem:[#allocation3 + $0x168] sm:$0xff] %vm1240, %v1211
    %1251 = vst.msk [vmem:[#allocation3 + $0x190] sm:$0xff] %vm1240, %v1213
    %1252 = vst.msk [vmem:[#allocation3 + $0x1b8] sm:$0xff] %vm1240, %v1215
    %1253 = vst.msk [vmem:[#allocation3 + $0x1e0] sm:$0xff] %vm1240, %v1217
    %1254 = vst.msk [vmem:[#allocation3 + $0x208] sm:$0xff] %vm1240, %v1219
    %1255 = vst.msk [vmem:[#allocation3 + $0x230] sm:$0xff] %vm1240, %v1221
    %1256 = vst.msk [vmem:[#allocation3 + $0x258] sm:$0xff] %vm1240, %v1223
    %v1257 = vld [vmem:[#allocation2 + $0x2] sm:$0xff]
    %v1258 = vld [vmem:[#allocation2 + $0x12] sm:$0xff]
    %v1259 = vld [vmem:[#allocation2 + $0x22] sm:$0xff]
    %v1260 = vld [vmem:[#allocation2 + $0x32] sm:$0xff]
    %v1261 = vld [vmem:[#allocation2 + $0x42] sm:$0xff]
    %v1262 = vld [vmem:[#allocation2 + $0x52] sm:$0xff]
    %v1263 = vld [vmem:[#allocation2 + $0x62] sm:$0xff]
    %v1264 = vld [vmem:[#allocation2 + $0x72] sm:$0xff]
    %v1265 = vld [vmem:[#allocation2 + $0xa2] sm:$0xff]
    %v1266 = vld [vmem:[#allocation2 + $0xb2] sm:$0xff]
    %v1267 = vld [vmem:[#allocation2 + $0xc2] sm:$0xff]
    %v1268 = vld [vmem:[#allocation2 + $0xd2] sm:$0xff]
    %v1269 = vld [vmem:[#allocation2 + $0xe2] sm:$0xff]
    %v1270 = vld [vmem:[#allocation2 + $0xf2] sm:$0xff]
    %v1271 = vld [vmem:[#allocation2 + $0x102] sm:$0xff]
    %v1272 = vld [vmem:[#allocation2 + $0x112] sm:$0xff]
    %1273 = vst.msk [vmem:[#allocation3 + $0x8] sm:$0xff] %vm44, %v1257
    %1274 = vst.msk [vmem:[#allocation3 + $0x30] sm:$0xff] %vm44, %v1258
    %1275 = vst.msk [vmem:[#allocation3 + $0x58] sm:$0xff] %vm44, %v1259
    %1276 = vst.msk [vmem:[#allocation3 + $0x80] sm:$0xff] %vm44, %v1260
    %1277 = vst.msk [vmem:[#allocation3 + $0xa8] sm:$0xff] %vm44, %v1261
    %1278 = vst.msk [vmem:[#allocation3 + $0xd0] sm:$0xff] %vm44, %v1262
    %1279 = vst.msk [vmem:[#allocation3 + $0xf8] sm:$0xff] %vm44, %v1263
    %1280 = vst.msk [vmem:[#allocation3 + $0x120] sm:$0xff] %vm44, %v1264
    %1281 = vst.msk [vmem:[#allocation3 + $0x148] sm:$0xff] %vm44, %v1265
    %1282 = vst.msk [vmem:[#allocation3 + $0x170] sm:$0xff] %vm44, %v1266
    %1283 = vst.msk [vmem:[#allocation3 + $0x198] sm:$0xff] %vm44, %v1267
    %1284 = vst.msk [vmem:[#allocation3 + $0x1c0] sm:$0xff] %vm44, %v1268
    %1285 = vst.msk [vmem:[#allocation3 + $0x1e8] sm:$0xff] %vm44, %v1269
    %1286 = vst.msk [vmem:[#allocation3 + $0x210] sm:$0xff] %vm44, %v1270
    %1287 = vst.msk [vmem:[#allocation3 + $0x238] sm:$0xff] %vm44, %v1271
    %1288 = vst.msk [vmem:[#allocation3 + $0x260] sm:$0xff] %vm44, %v1272
    %v1289 = vld [vmem:[%s102] sm:$0xff]
    %v1290 = vld [vmem:[%s102 + $0x10] sm:$0xff]
    %v1291 = vld [vmem:[%s102 + $0x20] sm:$0xff]
    %v1292 = vld [vmem:[%s102 + $0x30] sm:$0xff]
    %v1293 = vld [vmem:[%s102 + $0x40] sm:$0xff]
    %v1294 = vld [vmem:[%s102 + $0x50] sm:$0xff]
    %v1295 = vld [vmem:[%s102 + $0x60] sm:$0xff]
    %v1296 = vld [vmem:[%s102 + $0x70] sm:$0xff]
    %v1297 = vld [vmem:[%s102 + $0xa0] sm:$0xff]
    %v1298 = vld [vmem:[%s102 + $0xb0] sm:$0xff]
    %v1299 = vld [vmem:[%s102 + $0xc0] sm:$0xff]
    %v1300 = vld [vmem:[%s102 + $0xd0] sm:$0xff]
    %v1301 = vld [vmem:[%s102 + $0xe0] sm:$0xff]
    %v1302 = vld [vmem:[%s102 + $0xf0] sm:$0xff]
    %v1303 = vld [vmem:[%s102 + $0x100] sm:$0xff]
    %v1304 = vld [vmem:[%s102 + $0x110] sm:$0xff]
    %1321 = vrot.lane.b32.xlu0 %v1289, 64
    %v1322 = vpop.permute.xlu0 %1321
    %1323 = vrot.lane.b32.xlu0 %v1290, 64
    %v1324 = vpop.permute.xlu0 %1323
    %1325 = vrot.lane.b32.xlu0 %v1291, 64
    %v1326 = vpop.permute.xlu0 %1325
    %1327 = vrot.lane.b32.xlu0 %v1292, 64
    %v1328 = vpop.permute.xlu0 %1327
    %1329 = vrot.lane.b32.xlu0 %v1293, 64
    %v1330 = vpop.permute.xlu0 %1329
    %1331 = vrot.lane.b32.xlu0 %v1294, 64
    %v1332 = vpop.permute.xlu0 %1331
    %1333 = vrot.lane.b32.xlu0 %v1295, 64
    %v1334 = vpop.permute.xlu0 %1333
    %1335 = vrot.lane.b32.xlu0 %v1296, 64
    %v1336 = vpop.permute.xlu0 %1335
    %1337 = vrot.lane.b32.xlu0 %v1297, 64
    %v1338 = vpop.permute.xlu0 %1337
    %1339 = vrot.lane.b32.xlu0 %v1298, 64
    %v1340 = vpop.permute.xlu0 %1339
    %1341 = vrot.lane.b32.xlu0 %v1299, 64
    %v1342 = vpop.permute.xlu0 %1341
    %1343 = vrot.lane.b32.xlu0 %v1300, 64
    %v1344 = vpop.permute.xlu0 %1343
    %1345 = vrot.lane.b32.xlu0 %v1301, 64
    %v1346 = vpop.permute.xlu0 %1345
    %1347 = vrot.lane.b32.xlu0 %v1302, 64
    %v1348 = vpop.permute.xlu0 %1347
    %1349 = vrot.lane.b32.xlu0 %v1303, 64
    %v1350 = vpop.permute.xlu0 %1349
    %1351 = vrot.lane.b32.xlu0 %v1304, 64
    %v1352 = vpop.permute.xlu0 %1351
    %1369 = vst.msk [vmem:[#allocation3 + $0x8] sm:$0xff] %vm1240, %v1322
    %1370 = vst.msk [vmem:[#allocation3 + $0x30] sm:$0xff] %vm1240, %v1324
    %1371 = vst.msk [vmem:[#allocation3 + $0x58] sm:$0xff] %vm1240, %v1326
    %1372 = vst.msk [vmem:[#allocation3 + $0x80] sm:$0xff] %vm1240, %v1328
    %1373 = vst.msk [vmem:[#allocation3 + $0xa8] sm:$0xff] %vm1240, %v1330
    %1374 = vst.msk [vmem:[#allocation3 + $0xd0] sm:$0xff] %vm1240, %v1332
    %1375 = vst.msk [vmem:[#allocation3 + $0xf8] sm:$0xff] %vm1240, %v1334
    %1376 = vst.msk [vmem:[#allocation3 + $0x120] sm:$0xff] %vm1240, %v1336
    %1377 = vst.msk [vmem:[#allocation3 + $0x148] sm:$0xff] %vm1240, %v1338
    %1378 = vst.msk [vmem:[#allocation3 + $0x170] sm:$0xff] %vm1240, %v1340
    %1379 = vst.msk [vmem:[#allocation3 + $0x198] sm:$0xff] %vm1240, %v1342
    %1380 = vst.msk [vmem:[#allocation3 + $0x1c0] sm:$0xff] %vm1240, %v1344
    %1381 = vst.msk [vmem:[#allocation3 + $0x1e8] sm:$0xff] %vm1240, %v1346
    %1382 = vst.msk [vmem:[#allocation3 + $0x210] sm:$0xff] %vm1240, %v1348
    %1383 = vst.msk [vmem:[#allocation3 + $0x238] sm:$0xff] %vm1240, %v1350
    %1384 = vst.msk [vmem:[#allocation3 + $0x260] sm:$0xff] %vm1240, %v1352
    %v1385 = vld [vmem:[%s102 + $0x1] sm:$0xff]
    %v1386 = vld [vmem:[%s102 + $0x11] sm:$0xff]
    %v1387 = vld [vmem:[%s102 + $0x21] sm:$0xff]
    %v1388 = vld [vmem:[%s102 + $0x31] sm:$0xff]
    %v1389 = vld [vmem:[%s102 + $0x41] sm:$0xff]
    %v1390 = vld [vmem:[%s102 + $0x51] sm:$0xff]
    %v1391 = vld [vmem:[%s102 + $0x61] sm:$0xff]
    %v1392 = vld [vmem:[%s102 + $0x71] sm:$0xff]
    %v1393 = vld [vmem:[%s102 + $0xa1] sm:$0xff]
    %v1394 = vld [vmem:[%s102 + $0xb1] sm:$0xff]
    %v1395 = vld [vmem:[%s102 + $0xc1] sm:$0xff]
    %v1396 = vld [vmem:[%s102 + $0xd1] sm:$0xff]
    %v1397 = vld [vmem:[%s102 + $0xe1] sm:$0xff]
    %v1398 = vld [vmem:[%s102 + $0xf1] sm:$0xff]
    %v1399 = vld [vmem:[%s102 + $0x101] sm:$0xff]
    %v1400 = vld [vmem:[%s102 + $0x111] sm:$0xff]
    %1401 = vst.msk [vmem:[#allocation3 + $0x10] sm:$0xff] %vm44, %v1385
    %1402 = vst.msk [vmem:[#allocation3 + $0x38] sm:$0xff] %vm44, %v1386
    %1403 = vst.msk [vmem:[#allocation3 + $0x60] sm:$0xff] %vm44, %v1387
    %1404 = vst.msk [vmem:[#allocation3 + $0x88] sm:$0xff] %vm44, %v1388
    %1405 = vst.msk [vmem:[#allocation3 + $0xb0] sm:$0xff] %vm44, %v1389
    %1406 = vst.msk [vmem:[#allocation3 + $0xd8] sm:$0xff] %vm44, %v1390
    %1407 = vst.msk [vmem:[#allocation3 + $0x100] sm:$0xff] %vm44, %v1391
    %1408 = vst.msk [vmem:[#allocation3 + $0x128] sm:$0xff] %vm44, %v1392
    %1409 = vst.msk [vmem:[#allocation3 + $0x150] sm:$0xff] %vm44, %v1393
    %1410 = vst.msk [vmem:[#allocation3 + $0x178] sm:$0xff] %vm44, %v1394
    %1411 = vst.msk [vmem:[#allocation3 + $0x1a0] sm:$0xff] %vm44, %v1395
    %1412 = vst.msk [vmem:[#allocation3 + $0x1c8] sm:$0xff] %vm44, %v1396
    %1413 = vst.msk [vmem:[#allocation3 + $0x1f0] sm:$0xff] %vm44, %v1397
    %1414 = vst.msk [vmem:[#allocation3 + $0x218] sm:$0xff] %vm44, %v1398
    %1415 = vst.msk [vmem:[#allocation3 + $0x240] sm:$0xff] %vm44, %v1399
    %1416 = vst.msk [vmem:[#allocation3 + $0x268] sm:$0xff] %vm44, %v1400
    %v1417 = vld [vmem:[%s102 + $0x2] sm:$0xff]
    %v1418 = vld [vmem:[%s102 + $0x12] sm:$0xff]
    %v1419 = vld [vmem:[%s102 + $0x22] sm:$0xff]
    %v1420 = vld [vmem:[%s102 + $0x32] sm:$0xff]
    %v1421 = vld [vmem:[%s102 + $0x42] sm:$0xff]
    %v1422 = vld [vmem:[%s102 + $0x52] sm:$0xff]
    %v1423 = vld [vmem:[%s102 + $0x62] sm:$0xff]
    %v1424 = vld [vmem:[%s102 + $0x72] sm:$0xff]
    %v1425 = vld [vmem:[%s102 + $0xa2] sm:$0xff]
    %v1426 = vld [vmem:[%s102 + $0xb2] sm:$0xff]
    %v1427 = vld [vmem:[%s102 + $0xc2] sm:$0xff]
    %v1428 = vld [vmem:[%s102 + $0xd2] sm:$0xff]
    %v1429 = vld [vmem:[%s102 + $0xe2] sm:$0xff]
    %v1430 = vld [vmem:[%s102 + $0xf2] sm:$0xff]
    %v1431 = vld [vmem:[%s102 + $0x102] sm:$0xff]
    %v1432 = vld [vmem:[%s102 + $0x112] sm:$0xff]
    %1449 = vrot.lane.b32.xlu0 %v1417, 64
    %v1450 = vpop.permute.xlu0 %1449
    %1451 = vrot.lane.b32.xlu0 %v1418, 64
    %v1452 = vpop.permute.xlu0 %1451
    %1453 = vrot.lane.b32.xlu0 %v1419, 64
    %v1454 = vpop.permute.xlu0 %1453
    %1455 = vrot.lane.b32.xlu0 %v1420, 64
    %v1456 = vpop.permute.xlu0 %1455
    %1457 = vrot.lane.b32.xlu0 %v1421, 64
    %v1458 = vpop.permute.xlu0 %1457
    %1459 = vrot.lane.b32.xlu0 %v1422, 64
    %v1460 = vpop.permute.xlu0 %1459
    %1461 = vrot.lane.b32.xlu0 %v1423, 64
    %v1462 = vpop.permute.xlu0 %1461
    %1463 = vrot.lane.b32.xlu0 %v1424, 64
    %v1464 = vpop.permute.xlu0 %1463
    %1465 = vrot.lane.b32.xlu0 %v1425, 64
    %v1466 = vpop.permute.xlu0 %1465
    %1467 = vrot.lane.b32.xlu0 %v1426, 64
    %v1468 = vpop.permute.xlu0 %1467
    %1469 = vrot.lane.b32.xlu0 %v1427, 64
    %v1470 = vpop.permute.xlu0 %1469
    %1471 = vrot.lane.b32.xlu0 %v1428, 64
    %v1472 = vpop.permute.xlu0 %1471
    %1473 = vrot.lane.b32.xlu0 %v1429, 64
    %v1474 = vpop.permute.xlu0 %1473
    %1475 = vrot.lane.b32.xlu0 %v1430, 64
    %v1476 = vpop.permute.xlu0 %1475
    %1477 = vrot.lane.b32.xlu0 %v1431, 64
    %v1478 = vpop.permute.xlu0 %1477
    %1479 = vrot.lane.b32.xlu0 %v1432, 64
    %v1480 = vpop.permute.xlu0 %1479
    %1497 = vst.msk [vmem:[#allocation3 + $0x10] sm:$0xff] %vm1240, %v1450
    %1498 = vst.msk [vmem:[#allocation3 + $0x38] sm:$0xff] %vm1240, %v1452
    %1499 = vst.msk [vmem:[#allocation3 + $0x60] sm:$0xff] %vm1240, %v1454
    %1500 = vst.msk [vmem:[#allocation3 + $0x88] sm:$0xff] %vm1240, %v1456
    %1501 = vst.msk [vmem:[#allocation3 + $0xb0] sm:$0xff] %vm1240, %v1458
    %1502 = vst.msk [vmem:[#allocation3 + $0xd8] sm:$0xff] %vm1240, %v1460
    %1503 = vst.msk [vmem:[#allocation3 + $0x100] sm:$0xff] %vm1240, %v1462
    %1504 = vst.msk [vmem:[#allocation3 + $0x128] sm:$0xff] %vm1240, %v1464
    %1505 = vst.msk [vmem:[#allocation3 + $0x150] sm:$0xff] %vm1240, %v1466
    %1506 = vst.msk [vmem:[#allocation3 + $0x178] sm:$0xff] %vm1240, %v1468
    %1507 = vst.msk [vmem:[#allocation3 + $0x1a0] sm:$0xff] %vm1240, %v1470
    %1508 = vst.msk [vmem:[#allocation3 + $0x1c8] sm:$0xff] %vm1240, %v1472
    %1509 = vst.msk [vmem:[#allocation3 + $0x1f0] sm:$0xff] %vm1240, %v1474
    %1510 = vst.msk [vmem:[#allocation3 + $0x218] sm:$0xff] %vm1240, %v1476
    %1511 = vst.msk [vmem:[#allocation3 + $0x240] sm:$0xff] %vm1240, %v1478
    %1512 = vst.msk [vmem:[#allocation3 + $0x268] sm:$0xff] %vm1240, %v1480
    %v1513 = vld [vmem:[%s637] sm:$0xff]
    %v1514 = vld [vmem:[%s637 + $0x10] sm:$0xff]
    %v1515 = vld [vmem:[%s637 + $0x20] sm:$0xff]
    %v1516 = vld [vmem:[%s637 + $0x30] sm:$0xff]
    %v1517 = vld [vmem:[%s637 + $0x40] sm:$0xff]
    %v1518 = vld [vmem:[%s637 + $0x50] sm:$0xff]
    %v1519 = vld [vmem:[%s637 + $0x60] sm:$0xff]
    %v1520 = vld [vmem:[%s637 + $0x70] sm:$0xff]
    %v1521 = vld [vmem:[%s637 + $0xa0] sm:$0xff]
    %v1522 = vld [vmem:[%s637 + $0xb0] sm:$0xff]
    %v1523 = vld [vmem:[%s637 + $0xc0] sm:$0xff]
    %v1524 = vld [vmem:[%s637 + $0xd0] sm:$0xff]
    %v1525 = vld [vmem:[%s637 + $0xe0] sm:$0xff]
    %v1526 = vld [vmem:[%s637 + $0xf0] sm:$0xff]
    %v1527 = vld [vmem:[%s637 + $0x100] sm:$0xff]
    %v1528 = vld [vmem:[%s637 + $0x110] sm:$0xff]
    %1529 = vst.msk [vmem:[#allocation3 + $0x18] sm:$0xff] %vm44, %v1513
    %1530 = vst.msk [vmem:[#allocation3 + $0x40] sm:$0xff] %vm44, %v1514
    %1531 = vst.msk [vmem:[#allocation3 + $0x68] sm:$0xff] %vm44, %v1515
    %1532 = vst.msk [vmem:[#allocation3 + $0x90] sm:$0xff] %vm44, %v1516
    %1533 = vst.msk [vmem:[#allocation3 + $0xb8] sm:$0xff] %vm44, %v1517
    %1534 = vst.msk [vmem:[#allocation3 + $0xe0] sm:$0xff] %vm44, %v1518
    %1535 = vst.msk [vmem:[#allocation3 + $0x108] sm:$0xff] %vm44, %v1519
    %1536 = vst.msk [vmem:[#allocation3 + $0x130] sm:$0xff] %vm44, %v1520
    %1537 = vst.msk [vmem:[#allocation3 + $0x158] sm:$0xff] %vm44, %v1521
    %1538 = vst.msk [vmem:[#allocation3 + $0x180] sm:$0xff] %vm44, %v1522
    %1539 = vst.msk [vmem:[#allocation3 + $0x1a8] sm:$0xff] %vm44, %v1523
    %1540 = vst.msk [vmem:[#allocation3 + $0x1d0] sm:$0xff] %vm44, %v1524
    %1541 = vst.msk [vmem:[#allocation3 + $0x1f8] sm:$0xff] %vm44, %v1525
    %1542 = vst.msk [vmem:[#allocation3 + $0x220] sm:$0xff] %vm44, %v1526
    %1543 = vst.msk [vmem:[#allocation3 + $0x248] sm:$0xff] %vm44, %v1527
    %1544 = vst.msk [vmem:[#allocation3 + $0x270] sm:$0xff] %vm44, %v1528
    %v1545 = vld [vmem:[%s637 + $0x1] sm:$0xff]
    %v1546 = vld [vmem:[%s637 + $0x11] sm:$0xff]
    %v1547 = vld [vmem:[%s637 + $0x21] sm:$0xff]
    %v1548 = vld [vmem:[%s637 + $0x31] sm:$0xff]
    %v1549 = vld [vmem:[%s637 + $0x41] sm:$0xff]
    %v1550 = vld [vmem:[%s637 + $0x51] sm:$0xff]
    %v1551 = vld [vmem:[%s637 + $0x61] sm:$0xff]
    %v1552 = vld [vmem:[%s637 + $0x71] sm:$0xff]
    %v1553 = vld [vmem:[%s637 + $0xa1] sm:$0xff]
    %v1554 = vld [vmem:[%s637 + $0xb1] sm:$0xff]
    %v1555 = vld [vmem:[%s637 + $0xc1] sm:$0xff]
    %v1556 = vld [vmem:[%s637 + $0xd1] sm:$0xff]
    %v1557 = vld [vmem:[%s637 + $0xe1] sm:$0xff]
    %v1558 = vld [vmem:[%s637 + $0xf1] sm:$0xff]
    %v1559 = vld [vmem:[%s637 + $0x101] sm:$0xff]
    %v1560 = vld [vmem:[%s637 + $0x111] sm:$0xff]
    %1577 = vrot.lane.b32.xlu0 %v1545, 64
    %v1578 = vpop.permute.xlu0 %1577
    %1579 = vrot.lane.b32.xlu0 %v1546, 64
    %v1580 = vpop.permute.xlu0 %1579
    %1581 = vrot.lane.b32.xlu0 %v1547, 64
    %v1582 = vpop.permute.xlu0 %1581
    %1583 = vrot.lane.b32.xlu0 %v1548, 64
    %v1584 = vpop.permute.xlu0 %1583
    %1585 = vrot.lane.b32.xlu0 %v1549, 64
    %v1586 = vpop.permute.xlu0 %1585
    %1587 = vrot.lane.b32.xlu0 %v1550, 64
    %v1588 = vpop.permute.xlu0 %1587
    %1589 = vrot.lane.b32.xlu0 %v1551, 64
    %v1590 = vpop.permute.xlu0 %1589
    %1591 = vrot.lane.b32.xlu0 %v1552, 64
    %v1592 = vpop.permute.xlu0 %1591
    %1593 = vrot.lane.b32.xlu0 %v1553, 64
    %v1594 = vpop.permute.xlu0 %1593
    %1595 = vrot.lane.b32.xlu0 %v1554, 64
    %v1596 = vpop.permute.xlu0 %1595
    %1597 = vrot.lane.b32.xlu0 %v1555, 64
    %v1598 = vpop.permute.xlu0 %1597
    %1599 = vrot.lane.b32.xlu0 %v1556, 64
    %v1600 = vpop.permute.xlu0 %1599
    %1601 = vrot.lane.b32.xlu0 %v1557, 64
    %v1602 = vpop.permute.xlu0 %1601
    %1603 = vrot.lane.b32.xlu0 %v1558, 64
    %v1604 = vpop.permute.xlu0 %1603
    %1605 = vrot.lane.b32.xlu0 %v1559, 64
    %v1606 = vpop.permute.xlu0 %1605
    %1607 = vrot.lane.b32.xlu0 %v1560, 64
    %v1608 = vpop.permute.xlu0 %1607
    %1625 = vst.msk [vmem:[#allocation3 + $0x18] sm:$0xff] %vm1240, %v1578
    %1626 = vst.msk [vmem:[#allocation3 + $0x40] sm:$0xff] %vm1240, %v1580
    %1627 = vst.msk [vmem:[#allocation3 + $0x68] sm:$0xff] %vm1240, %v1582
    %1628 = vst.msk [vmem:[#allocation3 + $0x90] sm:$0xff] %vm1240, %v1584
    %1629 = vst.msk [vmem:[#allocation3 + $0xb8] sm:$0xff] %vm1240, %v1586
    %1630 = vst.msk [vmem:[#allocation3 + $0xe0] sm:$0xff] %vm1240, %v1588
    %1631 = vst.msk [vmem:[#allocation3 + $0x108] sm:$0xff] %vm1240, %v1590
    %1632 = vst.msk [vmem:[#allocation3 + $0x130] sm:$0xff] %vm1240, %v1592
    %1633 = vst.msk [vmem:[#allocation3 + $0x158] sm:$0xff] %vm1240, %v1594
    %1634 = vst.msk [vmem:[#allocation3 + $0x180] sm:$0xff] %vm1240, %v1596
    %1635 = vst.msk [vmem:[#allocation3 + $0x1a8] sm:$0xff] %vm1240, %v1598
    %1636 = vst.msk [vmem:[#allocation3 + $0x1d0] sm:$0xff] %vm1240, %v1600
    %1637 = vst.msk [vmem:[#allocation3 + $0x1f8] sm:$0xff] %vm1240, %v1602
    %1638 = vst.msk [vmem:[#allocation3 + $0x220] sm:$0xff] %vm1240, %v1604
    %1639 = vst.msk [vmem:[#allocation3 + $0x248] sm:$0xff] %vm1240, %v1606
    %1640 = vst.msk [vmem:[#allocation3 + $0x270] sm:$0xff] %vm1240, %v1608
    %v1641 = vld [vmem:[%s637 + $0x2] sm:$0xff]
    %v1642 = vld [vmem:[%s637 + $0x12] sm:$0xff]
    %v1643 = vld [vmem:[%s637 + $0x22] sm:$0xff]
    %v1644 = vld [vmem:[%s637 + $0x32] sm:$0xff]
    %v1645 = vld [vmem:[%s637 + $0x42] sm:$0xff]
    %v1646 = vld [vmem:[%s637 + $0x52] sm:$0xff]
    %v1647 = vld [vmem:[%s637 + $0x62] sm:$0xff]
    %v1648 = vld [vmem:[%s637 + $0x72] sm:$0xff]
    %v1649 = vld [vmem:[%s637 + $0xa2] sm:$0xff]
    %v1650 = vld [vmem:[%s637 + $0xb2] sm:$0xff]
    %v1651 = vld [vmem:[%s637 + $0xc2] sm:$0xff]
    %v1652 = vld [vmem:[%s637 + $0xd2] sm:$0xff]
    %v1653 = vld [vmem:[%s637 + $0xe2] sm:$0xff]
    %v1654 = vld [vmem:[%s637 + $0xf2] sm:$0xff]
    %v1655 = vld [vmem:[%s637 + $0x102] sm:$0xff]
    %v1656 = vld [vmem:[%s637 + $0x112] sm:$0xff]
    %1657 = vst.msk [vmem:[#allocation3 + $0x20] sm:$0xff] %vm44, %v1641
    %1658 = vst.msk [vmem:[#allocation3 + $0x48] sm:$0xff] %vm44, %v1642
    %1659 = vst.msk [vmem:[#allocation3 + $0x70] sm:$0xff] %vm44, %v1643
    %1660 = vst.msk [vmem:[#allocation3 + $0x98] sm:$0xff] %vm44, %v1644
    %1661 = vst.msk [vmem:[#allocation3 + $0xc0] sm:$0xff] %vm44, %v1645
    %1662 = vst.msk [vmem:[#allocation3 + $0xe8] sm:$0xff] %vm44, %v1646
    %1663 = vst.msk [vmem:[#allocation3 + $0x110] sm:$0xff] %vm44, %v1647
    %1664 = vst.msk [vmem:[#allocation3 + $0x138] sm:$0xff] %vm44, %v1648
    %1665 = vst.msk [vmem:[#allocation3 + $0x160] sm:$0xff] %vm44, %v1649
    %1666 = vst.msk [vmem:[#allocation3 + $0x188] sm:$0xff] %vm44, %v1650
    %1667 = vst.msk [vmem:[#allocation3 + $0x1b0] sm:$0xff] %vm44, %v1651
    %1668 = vst.msk [vmem:[#allocation3 + $0x1d8] sm:$0xff] %vm44, %v1652
    %1669 = vst.msk [vmem:[#allocation3 + $0x200] sm:$0xff] %vm44, %v1653
    %1670 = vst.msk [vmem:[#allocation3 + $0x228] sm:$0xff] %vm44, %v1654
    %1671 = vst.msk [vmem:[#allocation3 + $0x250] sm:$0xff] %vm44, %v1655
    %1672 = vst.msk [vmem:[#allocation3 + $0x278] sm:$0xff] %vm44, %v1656
    %v1673 = vld [vmem:[#allocation3] sm:$0xff]
    %v1674 = vld [vmem:[#allocation3 + $0x8] sm:$0xff]
    %v1675 = vld [vmem:[#allocation3 + $0x10] sm:$0xff]
    %v1676 = vld [vmem:[#allocation3 + $0x18] sm:$0xff]
    %v1677 = vld [vmem:[#allocation3 + $0x20] sm:$0xff]
    %v1678 = vld [vmem:[#allocation3 + $0x28] sm:$0xff]
    %v1679 = vld [vmem:[#allocation3 + $0x30] sm:$0xff]
    %v1680 = vld [vmem:[#allocation3 + $0x38] sm:$0xff]
    %v1681 = vld [vmem:[#allocation3 + $0x40] sm:$0xff]
    %v1682 = vld [vmem:[#allocation3 + $0x48] sm:$0xff]
    %v1683 = vld [vmem:[#allocation3 + $0x50] sm:$0xff]
    %v1684 = vld [vmem:[#allocation3 + $0x58] sm:$0xff]
    %v1685 = vld [vmem:[#allocation3 + $0x60] sm:$0xff]
    %v1686 = vld [vmem:[#allocation3 + $0x68] sm:$0xff]
    %v1687 = vld [vmem:[#allocation3 + $0x70] sm:$0xff]
    %v1688 = vld [vmem:[#allocation3 + $0x78] sm:$0xff]
    %v1689 = vld [vmem:[#allocation3 + $0x80] sm:$0xff]
    %v1690 = vld [vmem:[#allocation3 + $0x88] sm:$0xff]
    %v1691 = vld [vmem:[#allocation3 + $0x90] sm:$0xff]
    %v1692 = vld [vmem:[#allocation3 + $0x98] sm:$0xff]
    %v1693 = vld [vmem:[#allocation3 + $0xa0] sm:$0xff]
    %v1694 = vld [vmem:[#allocation3 + $0xa8] sm:$0xff]
    %v1695 = vld [vmem:[#allocation3 + $0xb0] sm:$0xff]
    %v1696 = vld [vmem:[#allocation3 + $0xb8] sm:$0xff]
    %v1697 = vld [vmem:[#allocation3 + $0xc0] sm:$0xff]
    %v1698 = vld [vmem:[#allocation3 + $0xc8] sm:$0xff]
    %v1699 = vld [vmem:[#allocation3 + $0xd0] sm:$0xff]
    %v1700 = vld [vmem:[#allocation3 + $0xd8] sm:$0xff]
    %v1701 = vld [vmem:[#allocation3 + $0xe0] sm:$0xff]
    %v1702 = vld [vmem:[#allocation3 + $0xe8] sm:$0xff]
    %v1703 = vld [vmem:[#allocation3 + $0xf0] sm:$0xff]
    %v1704 = vld [vmem:[#allocation3 + $0xf8] sm:$0xff]
    %v1705 = vld [vmem:[#allocation3 + $0x100] sm:$0xff]
    %v1706 = vld [vmem:[#allocation3 + $0x108] sm:$0xff]
    %v1707 = vld [vmem:[#allocation3 + $0x110] sm:$0xff]
    %v1708 = vld [vmem:[#allocation3 + $0x118] sm:$0xff]
    %v1709 = vld [vmem:[#allocation3 + $0x120] sm:$0xff]
    %v1710 = vld [vmem:[#allocation3 + $0x128] sm:$0xff]
    %v1711 = vld [vmem:[#allocation3 + $0x130] sm:$0xff]
    %v1712 = vld [vmem:[#allocation3 + $0x138] sm:$0xff]
    %v1713 = vld [vmem:[#allocation3 + $0x140] sm:$0xff]
    %v1714 = vld [vmem:[#allocation3 + $0x148] sm:$0xff]
    %v1715 = vld [vmem:[#allocation3 + $0x150] sm:$0xff]
    %v1716 = vld [vmem:[#allocation3 + $0x158] sm:$0xff]
    %v1717 = vld [vmem:[#allocation3 + $0x160] sm:$0xff]
    %v1718 = vld [vmem:[#allocation3 + $0x168] sm:$0xff]
    %v1719 = vld [vmem:[#allocation3 + $0x170] sm:$0xff]
    %v1720 = vld [vmem:[#allocation3 + $0x178] sm:$0xff]
    %v1721 = vld [vmem:[#allocation3 + $0x180] sm:$0xff]
    %v1722 = vld [vmem:[#allocation3 + $0x188] sm:$0xff]
    %v1723 = vld [vmem:[#allocation3 + $0x190] sm:$0xff]
    %v1724 = vld [vmem:[#allocation3 + $0x198] sm:$0xff]
    %v1725 = vld [vmem:[#allocation3 + $0x1a0] sm:$0xff]
    %v1726 = vld [vmem:[#allocation3 + $0x1a8] sm:$0xff]
    %v1727 = vld [vmem:[#allocation3 + $0x1b0] sm:$0xff]
    %v1728 = vld [vmem:[#allocation3 + $0x1b8] sm:$0xff]
    %v1729 = vld [vmem:[#allocation3 + $0x1c0] sm:$0xff]
    %v1730 = vld [vmem:[#allocation3 + $0x1c8] sm:$0xff]
    %v1731 = vld [vmem:[#allocation3 + $0x1d0] sm:$0xff]
    %v1732 = vld [vmem:[#allocation3 + $0x1d8] sm:$0xff]
    %v1733 = vld [vmem:[#allocation3 + $0x1e0] sm:$0xff]
    %v1734 = vld [vmem:[#allocation3 + $0x1e8] sm:$0xff]
    %v1735 = vld [vmem:[#allocation3 + $0x1f0] sm:$0xff]
    %v1736 = vld [vmem:[#allocation3 + $0x1f8] sm:$0xff]
    %v1737 = vld [vmem:[#allocation3 + $0x200] sm:$0xff]
    %v1738 = vld [vmem:[#allocation3 + $0x208] sm:$0xff]
    %v1739 = vld [vmem:[#allocation3 + $0x210] sm:$0xff]
    %v1740 = vld [vmem:[#allocation3 + $0x218] sm:$0xff]
    %v1741 = vld [vmem:[#allocation3 + $0x220] sm:$0xff]
    %v1742 = vld [vmem:[#allocation3 + $0x228] sm:$0xff]
    %v1743 = vld [vmem:[#allocation3 + $0x230] sm:$0xff]
    %v1744 = vld [vmem:[#allocation3 + $0x238] sm:$0xff]
    %v1745 = vld [vmem:[#allocation3 + $0x240] sm:$0xff]
    %v1746 = vld [vmem:[#allocation3 + $0x248] sm:$0xff]
    %v1747 = vld [vmem:[#allocation3 + $0x250] sm:$0xff]
    %v1748 = vld [vmem:[#allocation3 + $0x258] sm:$0xff]
    %v1749 = vld [vmem:[#allocation3 + $0x260] sm:$0xff]
    %v1750 = vld [vmem:[#allocation3 + $0x268] sm:$0xff]
    %v1751 = vld [vmem:[#allocation3 + $0x270] sm:$0xff]
    %v1752 = vld [vmem:[#allocation3 + $0x278] sm:$0xff]
    %v1753 = vpack.c.bf16 %v1678, %v1673
    %v1754 = vpack.c.bf16 %v1679, %v1674
    %v1755 = vpack.c.bf16 %v1680, %v1675
    %v1756 = vpack.c.bf16 %v1681, %v1676
    %v1757 = vpack.c.bf16 %v1682, %v1677
    %v1758 = vpack.c.bf16 %v1688, %v1683
    %v1759 = vpack.c.bf16 %v1689, %v1684
    %v1760 = vpack.c.bf16 %v1690, %v1685
    %v1761 = vpack.c.bf16 %v1691, %v1686
    %v1762 = vpack.c.bf16 %v1692, %v1687
    %v1763 = vpack.c.bf16 %v1698, %v1693
    %v1764 = vpack.c.bf16 %v1699, %v1694
    %v1765 = vpack.c.bf16 %v1700, %v1695
    %v1766 = vpack.c.bf16 %v1701, %v1696
    %v1767 = vpack.c.bf16 %v1702, %v1697
    %v1768 = vpack.c.bf16 %v1708, %v1703
    %v1769 = vpack.c.bf16 %v1709, %v1704
    %v1770 = vpack.c.bf16 %v1710, %v1705
    %v1771 = vpack.c.bf16 %v1711, %v1706
    %v1772 = vpack.c.bf16 %v1712, %v1707
    %v1773 = vpack.c.bf16 %v1718, %v1713
    %v1774 = vpack.c.bf16 %v1719, %v1714
    %v1775 = vpack.c.bf16 %v1720, %v1715
    %v1776 = vpack.c.bf16 %v1721, %v1716
    %v1777 = vpack.c.bf16 %v1722, %v1717
    %v1778 = vpack.c.bf16 %v1728, %v1723
    %v1779 = vpack.c.bf16 %v1729, %v1724
    %v1780 = vpack.c.bf16 %v1730, %v1725
    %v1781 = vpack.c.bf16 %v1731, %v1726
    %v1782 = vpack.c.bf16 %v1732, %v1727
    %v1783 = vpack.c.bf16 %v1738, %v1733
    %v1784 = vpack.c.bf16 %v1739, %v1734
    %v1785 = vpack.c.bf16 %v1740, %v1735
    %v1786 = vpack.c.bf16 %v1741, %v1736
    %v1787 = vpack.c.bf16 %v1742, %v1737
    %v1788 = vpack.c.bf16 %v1748, %v1743
    %v1789 = vpack.c.bf16 %v1749, %v1744
    %v1790 = vpack.c.bf16 %v1750, %v1745
    %v1791 = vpack.c.bf16 %v1751, %v1746
    %v1792 = vpack.c.bf16 %v1752, %v1747
    %v1793 = vld [vmem:[%s3] sm:$0xf]
    %v1794 = vld [vmem:[%s3 + $0x4] sm:$0xf]
    %v1795 = vld [vmem:[%s3 + $0x8] sm:$0xf]
    %v1796 = vld [vmem:[%s3 + $0xc] sm:$0xf]
    %v1797 = vld [vmem:[%s3 + $0x10] sm:$0xf]
    %v1798 = vld [vmem:[%s3 + $0x14] sm:$0xf]
    %v1799 = vld [vmem:[%s3 + $0x18] sm:$0xf]
    %v1800 = vld [vmem:[%s3 + $0x1c] sm:$0xf]
    %v1801 = vld [vmem:[%s3 + $0x20] sm:$0xf]
    %v1802 = vld [vmem:[%s3 + $0x24] sm:$0xf]
    %v1803 = vld [vmem:[%s3 + $0x28] sm:$0xf]
    %v1804 = vld [vmem:[%s3 + $0x2c] sm:$0xf]
    %v1805 = vld [vmem:[%s3 + $0x30] sm:$0xf]
    %v1806 = vld [vmem:[%s3 + $0x34] sm:$0xf]
    %v1807 = vld [vmem:[%s3 + $0x38] sm:$0xf]
    %v1808 = vld [vmem:[%s3 + $0x3c] sm:$0xf]
    %v1809 = vld [vmem:[%s3 + $0x40] sm:$0xf]
    %v1810 = vld [vmem:[%s3 + $0x44] sm:$0xf]
    %v1811 = vld [vmem:[%s3 + $0x48] sm:$0xf]
    %v1812 = vld [vmem:[%s3 + $0x4c] sm:$0xf]
    %v1813 = vld [vmem:[%s3 + $0x50] sm:$0xf]
    %v1814 = vld [vmem:[%s3 + $0x54] sm:$0xf]
    %v1815 = vld [vmem:[%s3 + $0x58] sm:$0xf]
    %v1816 = vld [vmem:[%s3 + $0x5c] sm:$0xf]
    %v1817 = vld [vmem:[%s3 + $0x60] sm:$0xf]
    %v1818 = vld [vmem:[%s3 + $0x64] sm:$0xf]
    %v1819 = vld [vmem:[%s3 + $0x68] sm:$0xf]
    %v1820 = vld [vmem:[%s3 + $0x6c] sm:$0xf]
    %v1821 = vld [vmem:[%s3 + $0x70] sm:$0xf]
    %v1822 = vld [vmem:[%s3 + $0x74] sm:$0xf]
    %v1823 = vld [vmem:[%s3 + $0x78] sm:$0xf]
    %v1824 = vld [vmem:[%s3 + $0x7c] sm:$0xf]
    %v1825 = vld [vmem:[%s3 + $0x80] sm:$0xf]
    %v1826 = vld [vmem:[%s3 + $0x84] sm:$0xf]
    %v1827 = vld [vmem:[%s3 + $0x88] sm:$0xf]
    %v1828 = vld [vmem:[%s3 + $0x8c] sm:$0xf]
    %v1829 = vld [vmem:[%s3 + $0x90] sm:$0xf]
    %v1830 = vld [vmem:[%s3 + $0x94] sm:$0xf]
    %v1831 = vld [vmem:[%s3 + $0x98] sm:$0xf]
    %v1832 = vld [vmem:[%s3 + $0x9c] sm:$0xf]
    %v1833 = vld [vmem:[%s3 + $0xa0] sm:$0xf]
    %v1834 = vld [vmem:[%s3 + $0xa4] sm:$0xf]
    %v1835 = vld [vmem:[%s3 + $0xa8] sm:$0xf]
    %v1836 = vld [vmem:[%s3 + $0xac] sm:$0xf]
    %v1837 = vld [vmem:[%s3 + $0xb0] sm:$0xf]
    %v1838 = vld [vmem:[%s3 + $0xb4] sm:$0xf]
    %v1839 = vld [vmem:[%s3 + $0xb8] sm:$0xf]
    %v1840 = vld [vmem:[%s3 + $0xbc] sm:$0xf]
    %v1841 = vld [vmem:[%s3 + $0xc0] sm:$0xf]
    %v1842 = vld [vmem:[%s3 + $0xc4] sm:$0xf]
    %v1843 = vld [vmem:[%s3 + $0xc8] sm:$0xf]
    %v1844 = vld [vmem:[%s3 + $0xcc] sm:$0xf]
    %v1845 = vld [vmem:[%s3 + $0xd0] sm:$0xf]
    %v1846 = vld [vmem:[%s3 + $0xd4] sm:$0xf]
    %v1847 = vld [vmem:[%s3 + $0xd8] sm:$0xf]
    %v1848 = vld [vmem:[%s3 + $0xdc] sm:$0xf]
    %v1849 = vld [vmem:[%s3 + $0xe0] sm:$0xf]
    %v1850 = vld [vmem:[%s3 + $0xe4] sm:$0xf]
    %v1851 = vld [vmem:[%s3 + $0xe8] sm:$0xf]
    %v1852 = vld [vmem:[%s3 + $0xec] sm:$0xf]
    %v1853 = vld [vmem:[%s3 + $0xf0] sm:$0xf]
    %v1854 = vld [vmem:[%s3 + $0xf4] sm:$0xf]
    %v1855 = vld [vmem:[%s3 + $0xf8] sm:$0xf]
    %v1856 = vld [vmem:[%s3 + $0xfc] sm:$0xf]
    %v1857 = vld [vmem:[%s3 + $0x100] sm:$0xf]
    %v1858 = vld [vmem:[%s3 + $0x104] sm:$0xf]
    %v1859 = vld [vmem:[%s3 + $0x108] sm:$0xf]
    %v1860 = vld [vmem:[%s3 + $0x10c] sm:$0xf]
    %v1861 = vld [vmem:[%s3 + $0x110] sm:$0xf]
    %v1862 = vld [vmem:[%s3 + $0x114] sm:$0xf]
    %v1863 = vld [vmem:[%s3 + $0x118] sm:$0xf]
    %v1864 = vld [vmem:[%s3 + $0x11c] sm:$0xf]
    %v1865 = vld [vmem:[%s4] sm:$0x1]
    %v1867 = vlaneseq
    %v1868 = vshrl.u32 %v1867, 7
    %v1869 = vsub.s32 0, %v1868
    %v1870 = vrot.slane %v1865, %v1869
    %v1944 = vunpack.c.l.b16 %v1793
    %v1945 = vunpack.c.l.b16 %v1794
    %v1946 = vunpack.c.l.b16 %v1795
    %v1947 = vunpack.c.l.b16 %v1796
    %v1948 = vunpack.c.l.b16 %v1797
    %v1949 = vunpack.c.l.b16 %v1798
    %v1950 = vunpack.c.l.b16 %v1799
    %v1951 = vunpack.c.l.b16 %v1800
    %v1952 = vunpack.c.l.b16 %v1801
    %v1953 = vunpack.c.l.b16 %v1802
    %v1954 = vunpack.c.l.b16 %v1803
    %v1955 = vunpack.c.l.b16 %v1804
    %v1956 = vunpack.c.l.b16 %v1805
    %v1957 = vunpack.c.l.b16 %v1806
    %v1958 = vunpack.c.l.b16 %v1807
    %v1959 = vunpack.c.l.b16 %v1808
    %v1960 = vunpack.c.l.b16 %v1809
    %v1961 = vunpack.c.l.b16 %v1810
    %v1962 = vunpack.c.l.b16 %v1811
    %v1963 = vunpack.c.l.b16 %v1812
    %v1964 = vunpack.c.l.b16 %v1813
    %v1965 = vunpack.c.l.b16 %v1814
    %v1966 = vunpack.c.l.b16 %v1815
    %v1967 = vunpack.c.l.b16 %v1816
    %v1968 = vunpack.c.l.b16 %v1817
    %v1969 = vunpack.c.l.b16 %v1818
    %v1970 = vunpack.c.l.b16 %v1819
    %v1971 = vunpack.c.l.b16 %v1820
    %v1972 = vunpack.c.l.b16 %v1821
    %v1973 = vunpack.c.l.b16 %v1822
    %v1974 = vunpack.c.l.b16 %v1823
    %v1975 = vunpack.c.l.b16 %v1824
    %v1976 = vunpack.c.l.b16 %v1825
    %v1977 = vunpack.c.l.b16 %v1826
    %v1978 = vunpack.c.l.b16 %v1827
    %v1979 = vunpack.c.l.b16 %v1828
    %v1980 = vunpack.c.l.b16 %v1829
    %v1981 = vunpack.c.l.b16 %v1830
    %v1982 = vunpack.c.l.b16 %v1831
    %v1983 = vunpack.c.l.b16 %v1832
    %v1984 = vunpack.c.l.b16 %v1833
    %v1985 = vunpack.c.l.b16 %v1834
    %v1986 = vunpack.c.l.b16 %v1835
    %v1987 = vunpack.c.l.b16 %v1836
    %v1988 = vunpack.c.l.b16 %v1837
    %v1989 = vunpack.c.l.b16 %v1838
    %v1990 = vunpack.c.l.b16 %v1839
    %v1991 = vunpack.c.l.b16 %v1840
    %v1992 = vunpack.c.l.b16 %v1841
    %v1993 = vunpack.c.l.b16 %v1842
    %v1994 = vunpack.c.l.b16 %v1843
    %v1995 = vunpack.c.l.b16 %v1844
    %v1996 = vunpack.c.l.b16 %v1845
    %v1997 = vunpack.c.l.b16 %v1846
    %v1998 = vunpack.c.l.b16 %v1847
    %v1999 = vunpack.c.l.b16 %v1848
    %v2000 = vunpack.c.l.b16 %v1849
    %v2001 = vunpack.c.l.b16 %v1850
    %v2002 = vunpack.c.l.b16 %v1851
    %v2003 = vunpack.c.l.b16 %v1852
    %v2004 = vunpack.c.l.b16 %v1853
    %v2005 = vunpack.c.l.b16 %v1854
    %v2006 = vunpack.c.l.b16 %v1855
    %v2007 = vunpack.c.l.b16 %v1856
    %v2008 = vunpack.c.l.b16 %v1857
    %v2009 = vunpack.c.l.b16 %v1858
    %v2010 = vunpack.c.l.b16 %v1859
    %v2011 = vunpack.c.l.b16 %v1860
    %v2012 = vunpack.c.l.b16 %v1861
    %v2013 = vunpack.c.l.b16 %v1862
    %v2014 = vunpack.c.l.b16 %v1863
    %v2015 = vunpack.c.l.b16 %v1864
    %v2016 = vpack.c.b16 %v1945, %v1944
    %v2017 = vpack.c.b16 %v1947, %v1946
    %v2018 = vpack.c.b16 %v1949, %v1948
    %v2019 = vpack.c.b16 %v1951, %v1950
    %v2020 = vpack.c.b16 %v1953, %v1952
    %v2021 = vpack.c.b16 %v1955, %v1954
    %v2022 = vpack.c.b16 %v1957, %v1956
    %v2023 = vpack.c.b16 %v1959, %v1958
    %v2024 = vpack.c.b16 %v1961, %v1960
    %v2025 = vpack.c.b16 %v1963, %v1962
    %v2026 = vpack.c.b16 %v1965, %v1964
    %v2027 = vpack.c.b16 %v1967, %v1966
    %v2028 = vpack.c.b16 %v1969, %v1968
    %v2029 = vpack.c.b16 %v1971, %v1970
    %v2030 = vpack.c.b16 %v1973, %v1972
    %v2031 = vpack.c.b16 %v1975, %v1974
    %v2032 = vpack.c.b16 %v1977, %v1976
    %v2033 = vpack.c.b16 %v1979, %v1978
    %v2034 = vpack.c.b16 %v1981, %v1980
    %v2035 = vpack.c.b16 %v1983, %v1982
    %v2036 = vpack.c.b16 %v1985, %v1984
    %v2037 = vpack.c.b16 %v1987, %v1986
    %v2038 = vpack.c.b16 %v1989, %v1988
    %v2039 = vpack.c.b16 %v1991, %v1990
    %v2040 = vpack.c.b16 %v1993, %v1992
    %v2041 = vpack.c.b16 %v1995, %v1994
    %v2042 = vpack.c.b16 %v1997, %v1996
    %v2043 = vpack.c.b16 %v1999, %v1998
    %v2044 = vpack.c.b16 %v2001, %v2000
    %v2045 = vpack.c.b16 %v2003, %v2002
    %v2046 = vpack.c.b16 %v2005, %v2004
    %v2047 = vpack.c.b16 %v2007, %v2006
    %v2048 = vpack.c.b16 %v2009, %v2008
    %v2049 = vpack.c.b16 %v2011, %v2010
    %v2050 = vpack.c.b16 %v2013, %v2012
    %v2051 = vpack.c.b16 %v2015, %v2014
    %v2089 = vsel %vm44, %v1757, 0
    %v2092 = vsel %vm44, %v1762, 0
    %v2095 = vsel %vm44, %v1767, 0
    %v2098 = vsel %vm44, %v1772, 0
    %v2101 = vsel %vm44, %v1777, 0
    %v2104 = vsel %vm44, %v1782, 0
    %v2107 = vsel %vm44, %v1787, 0
    %v2110 = vsel %vm44, %v1792, 0
    %2112 = vmatprep.subr.bf16.mxu0 0
    %2113 = vmatpush1.bf16.msra.mxu0 %v2016
    %2114 = vmatprep.subr.bf16.mxu0 0
    %2115 = vmatpush1.bf16.msra.mxu0 %v2017
    %2116 = vmatprep.subr.bf16.mxu0 0
    %2117 = vmatpush1.bf16.msra.mxu0 %v2018
    %2118 = vmatprep.subr.bf16.mxu0 0
    %2119 = vmatpush1.bf16.msra.mxu0 %v2019
    %2120 = vmatprep.subr.bf16.mxu0 0
    %2121 = vmatpush1.bf16.msra.mxu0 %v2020
    %2122 = vmatprep.subr.bf16.mxu0 0
    %2123 = vmatpush1.bf16.msra.mxu0 %v2021
    %2124 = vmatprep.subr.bf16.mxu0 0
    %2125 = vmatpush1.bf16.msra.mxu0 %v2022
    %2126 = vmatprep.subr.bf16.mxu0 0
    %2127 = vmatpush1.bf16.msra.mxu0 %v2023
    %2128 = vmatprep.subr.bf16.mxu0 0
    %2129 = vmatpush1.bf16.msra.mxu0 %v2024
    %2130 = vmatprep.subr.bf16.mxu0 0
    %2131 = vmatpush1.bf16.msra.mxu0 %v2025
    %2132 = vmatprep.subr.bf16.mxu0 0
    %2133 = vmatpush1.bf16.msra.mxu0 %v2026
    %2134 = vmatprep.subr.bf16.mxu0 0
    %2135 = vmatpush1.bf16.msra.mxu0 %v2027
    %2136 = vmatprep.subr.bf16.mxu0 0
    %2137 = vmatpush1.bf16.msra.mxu0 %v2028
    %2138 = vmatprep.subr.bf16.mxu0 0
    %2139 = vmatpush1.bf16.msra.mxu0 %v2029
    %2140 = vmatprep.subr.bf16.mxu0 0
    %2141 = vmatpush1.bf16.msra.mxu0 %v2030
    %2142 = vmatprep.subr.bf16.mxu0 0
    %2143 = vmatpush1.bf16.msra.mxu0 %v2031
    %2144 = vmatprep.mubr.bf16.mxu0 %v1754
    %2145 = vmatmul.mubr.bf16.gmra.mrb[0].mxu0 %v1753
    %v2146 = vpop.f32.mrb[0].mxu0
    %v2147 = vadd.f32 %v1870, %v2146
    %v2148 = vpop.f32.mrb[0].mxu0
    %v2149 = vpop.f32.mrb[0].mxu0
    %v2150 = vadd.f32 %v1870, %v2149
    %v2151 = vpop.f32.mrb[0].mxu0
    %2152 = vmatprep.mubr.bf16.mxu0 %v1759
    %2153 = vmatmul.mubr.bf16.gmra.mrb[0].mxu0 %v1758
    %v2154 = vpop.f32.mrb[0].mxu0
    %v2155 = vadd.f32 %v1870, %v2154
    %v2156 = vpop.f32.mrb[0].mxu0
    %v2157 = vpop.f32.mrb[0].mxu0
    %v2158 = vadd.f32 %v1870, %v2157
    %v2159 = vpop.f32.mrb[0].mxu0
    %2160 = vmatprep.mubr.bf16.mxu0 %v1764
    %2161 = vmatmul.mubr.bf16.gmra.mrb[0].mxu0 %v1763
    %v2162 = vpop.f32.mrb[0].mxu0
    %v2163 = vadd.f32 %v1870, %v2162
    %v2164 = vpop.f32.mrb[0].mxu0
    %v2165 = vpop.f32.mrb[0].mxu0
    %v2166 = vadd.f32 %v1870, %v2165
    %v2167 = vpop.f32.mrb[0].mxu0
    %2168 = vmatprep.mubr.bf16.mxu0 %v1769
    %2169 = vmatmul.mubr.bf16.gmra.mrb[0].mxu0 %v1768
    %v2170 = vpop.f32.mrb[0].mxu0
    %v2171 = vadd.f32 %v1870, %v2170
    %v2172 = vpop.f32.mrb[0].mxu0
    %v2173 = vpop.f32.mrb[0].mxu0
    %v2174 = vadd.f32 %v1870, %v2173
    %v2175 = vpop.f32.mrb[0].mxu0
    %2176 = vmatprep.mubr.bf16.mxu0 %v1774
    %2177 = vmatmul.mubr.bf16.gmra.mrb[0].mxu0 %v1773
    %v2178 = vpop.f32.mrb[0].mxu0
    %v2179 = vadd.f32 %v1870, %v2178
    %v2180 = vpop.f32.mrb[0].mxu0
    %v2181 = vpop.f32.mrb[0].mxu0
    %v2182 = vadd.f32 %v1870, %v2181
    %v2183 = vpop.f32.mrb[0].mxu0
    %2184 = vmatprep.mubr.bf16.mxu0 %v1779
    %2185 = vmatmul.mubr.bf16.gmra.mrb[0].mxu0 %v1778
    %v2186 = vpop.f32.mrb[0].mxu0
    %v2187 = vadd.f32 %v1870, %v2186
    %v2188 = vpop.f32.mrb[0].mxu0
    %v2189 = vpop.f32.mrb[0].mxu0
    %v2190 = vadd.f32 %v1870, %v2189
    %v2191 = vpop.f32.mrb[0].mxu0
    %2192 = vmatprep.mubr.bf16.mxu0 %v1784
    %2193 = vmatmul.mubr.bf16.gmra.mrb[0].mxu0 %v1783
    %v2194 = vpop.f32.mrb[0].mxu0
    %v2195 = vadd.f32 %v1870, %v2194
    %v2196 = vpop.f32.mrb[0].mxu0
    %v2197 = vpop.f32.mrb[0].mxu0
    %v2198 = vadd.f32 %v1870, %v2197
    %v2199 = vpop.f32.mrb[0].mxu0
    %2200 = vmatprep.mubr.bf16.mxu0 %v1789
    %2201 = vmatmul.mubr.bf16.gmra.mrb[0].mxu0 %v1788
    %v2202 = vpop.f32.mrb[0].mxu0
    %v2203 = vadd.f32 %v1870, %v2202
    %v2204 = vpop.f32.mrb[0].mxu0
    %v2205 = vpop.f32.mrb[0].mxu0
    %v2206 = vadd.f32 %v1870, %v2205
    %v2207 = vpop.f32.mrb[0].mxu0
    %2208 = vdwg.mxu0
    %2209 = vmatprep.subr.bf16.mxu0 0
    %2210 = vmatpush1.bf16.msra.mxu0 %v2032
    %2211 = vmatprep.subr.bf16.mxu0 0
    %2212 = vmatpush1.bf16.msra.mxu0 %v2033
    %2213 = vmatprep.subr.bf16.mxu0 0
    %2214 = vmatpush1.bf16.msra.mxu0 %v2034
    %2215 = vmatprep.subr.bf16.mxu0 0
    %2216 = vmatpush1.bf16.msra.mxu0 %v2035
    %2217 = vmatprep.subr.bf16.mxu0 0
    %2218 = vmatpush1.bf16.msra.mxu0 %v2036
    %2219 = vmatprep.subr.bf16.mxu0 0
    %2220 = vmatpush1.bf16.msra.mxu0 %v2037
    %2221 = vmatprep.subr.bf16.mxu0 0
    %2222 = vmatpush1.bf16.msra.mxu0 %v2038
    %2223 = vmatprep.subr.bf16.mxu0 0
    %2224 = vmatpush1.bf16.msra.mxu0 %v2039
    %2225 = vmatprep.subr.bf16.mxu0 0
    %2226 = vmatpush1.bf16.msra.mxu0 %v2040
    %2227 = vmatprep.subr.bf16.mxu0 0
    %2228 = vmatpush1.bf16.msra.mxu0 %v2041
    %2229 = vmatprep.subr.bf16.mxu0 0
    %2230 = vmatpush1.bf16.msra.mxu0 %v2042
    %2231 = vmatprep.subr.bf16.mxu0 0
    %2232 = vmatpush1.bf16.msra.mxu0 %v2043
    %2233 = vmatprep.subr.bf16.mxu0 0
    %2234 = vmatpush1.bf16.msra.mxu0 %v2044
    %2235 = vmatprep.subr.bf16.mxu0 0
    %2236 = vmatpush1.bf16.msra.mxu0 %v2045
    %2237 = vmatprep.subr.bf16.mxu0 0
    %2238 = vmatpush1.bf16.msra.mxu0 %v2046
    %2239 = vmatprep.subr.bf16.mxu0 0
    %2240 = vmatpush1.bf16.msra.mxu0 %v2047
    %2241 = vmatprep.mubr.bf16.mxu0 %v1756
    %2242 = vmatmul.mubr.bf16.gmra.mrb[0].mxu0 %v1755
    %v2243 = vpop.f32.mrb[0].mxu0
    %v2244 = vadd.f32 %v2147, %v2243
    %v2245 = vpop.f32.mrb[0].mxu0
    %v2246 = vpop.f32.mrb[0].mxu0
    %v2247 = vadd.f32 %v2150, %v2246
    %v2248 = vpop.f32.mrb[0].mxu0
    %2249 = vmatprep.mubr.bf16.mxu0 %v1761
    %2250 = vmatmul.mubr.bf16.gmra.mrb[0].mxu0 %v1760
    %v2251 = vpop.f32.mrb[0].mxu0
    %v2252 = vadd.f32 %v2155, %v2251
    %v2253 = vpop.f32.mrb[0].mxu0
    %v2254 = vpop.f32.mrb[0].mxu0
    %v2255 = vadd.f32 %v2158, %v2254
    %v2256 = vpop.f32.mrb[0].mxu0
    %2257 = vmatprep.mubr.bf16.mxu0 %v1766
    %2258 = vmatmul.mubr.bf16.gmra.mrb[0].mxu0 %v1765
    %v2259 = vpop.f32.mrb[0].mxu0
    %v2260 = vadd.f32 %v2163, %v2259
    %v2261 = vpop.f32.mrb[0].mxu0
    %v2262 = vpop.f32.mrb[0].mxu0
    %v2263 = vadd.f32 %v2166, %v2262
    %v2264 = vpop.f32.mrb[0].mxu0
    %2265 = vmatprep.mubr.bf16.mxu0 %v1771
    %2266 = vmatmul.mubr.bf16.gmra.mrb[0].mxu0 %v1770
    %v2267 = vpop.f32.mrb[0].mxu0
    %v2268 = vadd.f32 %v2171, %v2267
    %v2269 = vpop.f32.mrb[0].mxu0
    %v2270 = vpop.f32.mrb[0].mxu0
    %v2271 = vadd.f32 %v2174, %v2270
    %v2272 = vpop.f32.mrb[0].mxu0
    %2273 = vmatprep.mubr.bf16.mxu0 %v1776
    %2274 = vmatmul.mubr.bf16.gmra.mrb[0].mxu0 %v1775
    %v2275 = vpop.f32.mrb[0].mxu0
    %v2276 = vadd.f32 %v2179, %v2275
    %v2277 = vpop.f32.mrb[0].mxu0
    %v2278 = vpop.f32.mrb[0].mxu0
    %v2279 = vadd.f32 %v2182, %v2278
    %v2280 = vpop.f32.mrb[0].mxu0
    %2281 = vmatprep.mubr.bf16.mxu0 %v1781
    %2282 = vmatmul.mubr.bf16.gmra.mrb[0].mxu0 %v1780
    %v2283 = vpop.f32.mrb[0].mxu0
    %v2284 = vadd.f32 %v2187, %v2283
    %v2285 = vpop.f32.mrb[0].mxu0
    %v2286 = vpop.f32.mrb[0].mxu0
    %v2287 = vadd.f32 %v2190, %v2286
    %v2288 = vpop.f32.mrb[0].mxu0
    %2289 = vmatprep.mubr.bf16.mxu0 %v1786
    %2290 = vmatmul.mubr.bf16.gmra.mrb[0].mxu0 %v1785
    %v2291 = vpop.f32.mrb[0].mxu0
    %v2292 = vadd.f32 %v2195, %v2291
    %v2293 = vpop.f32.mrb[0].mxu0
    %v2294 = vpop.f32.mrb[0].mxu0
    %v2295 = vadd.f32 %v2198, %v2294
    %v2296 = vpop.f32.mrb[0].mxu0
    %2297 = vmatprep.mubr.bf16.mxu0 %v1791
    %2298 = vmatmul.mubr.bf16.gmra.mrb[0].mxu0 %v1790
    %v2299 = vpop.f32.mrb[0].mxu0
    %v2300 = vadd.f32 %v2203, %v2299
    %v2301 = vpop.f32.mrb[0].mxu0
    %v2302 = vpop.f32.mrb[0].mxu0
    %v2303 = vadd.f32 %v2206, %v2302
    %v2304 = vpop.f32.mrb[0].mxu0
    %2305 = vdwg.mxu0
    %2306 = vmatprep.subr.bf16.mxu0 0
    %2307 = vmatpush1.bf16.msra.mxu0 %v2048
    %2308 = vmatprep.subr.bf16.mxu0 0
    %2309 = vmatpush1.bf16.msra.mxu0 %v2049
    %2310 = vmatprep.subr.bf16.mxu0 0
    %2311 = vmatpush1.bf16.msra.mxu0 %v2050
    %2312 = vmatprep.subr.bf16.mxu0 0
    %2313 = vmatpush1.bf16.msra.mxu0 %v2051
    %2314 = vmatprep.subr.bf16.mxu0 0
    %2315 = vmatpush1.bf16.msra.mxu0 0
    %2316 = vmatprep.subr.bf16.mxu0 0
    %2317 = vmatpush1.bf16.msra.mxu0 0
    %2318 = vmatprep.subr.bf16.mxu0 0
    %2319 = vmatpush1.bf16.msra.mxu0 0
    %2320 = vmatprep.subr.bf16.mxu0 0
    %2321 = vmatpush1.bf16.msra.mxu0 0
    %2322 = vmatprep.subr.bf16.mxu0 0
    %2323 = vmatpush1.bf16.msra.mxu0 0
    %2324 = vmatprep.subr.bf16.mxu0 0
    %2325 = vmatpush1.bf16.msra.mxu0 0
    %2326 = vmatprep.subr.bf16.mxu0 0
    %2327 = vmatpush1.bf16.msra.mxu0 0
    %2328 = vmatprep.subr.bf16.mxu0 0
    %2329 = vmatpush1.bf16.msra.mxu0 0
    %2330 = vmatprep.subr.bf16.mxu0 0
    %2331 = vmatpush1.bf16.msra.mxu0 0
    %2332 = vmatprep.subr.bf16.mxu0 0
    %2333 = vmatpush1.bf16.msra.mxu0 0
    %2334 = vmatprep.subr.bf16.mxu0 0
    %2335 = vmatpush1.bf16.msra.mxu0 0
    %2336 = vmatprep.subr.bf16.mxu0 0
    %2337 = vmatpush1.bf16.msra.mxu0 0
    %2338 = vmatprep.mubr.bf16.mxu0 0
    %2339 = vmatmul.mubr.bf16.gmra.mrb[0].mxu0 %v2089
    %v2340 = vpop.f32.mrb[0].mxu0
    %v2341 = vadd.f32 %v2244, %v2340
    %v2342 = vpop.f32.mrb[0].mxu0
    %v2343 = vpop.f32.mrb[0].mxu0
    %v2344 = vadd.f32 %v2247, %v2343
    %v2345 = vpop.f32.mrb[0].mxu0
    %2346 = vmatprep.mubr.bf16.mxu0 0
    %2347 = vmatmul.mubr.bf16.gmra.mrb[0].mxu0 %v2092
    %v2348 = vpop.f32.mrb[0].mxu0
    %v2349 = vadd.f32 %v2252, %v2348
    %v2350 = vpop.f32.mrb[0].mxu0
    %v2351 = vpop.f32.mrb[0].mxu0
    %v2352 = vadd.f32 %v2255, %v2351
    %v2353 = vpop.f32.mrb[0].mxu0
    %2354 = vmatprep.mubr.bf16.mxu0 0
    %2355 = vmatmul.mubr.bf16.gmra.mrb[0].mxu0 %v2095
    %v2356 = vpop.f32.mrb[0].mxu0
    %v2357 = vadd.f32 %v2260, %v2356
    %v2358 = vpop.f32.mrb[0].mxu0
    %v2359 = vpop.f32.mrb[0].mxu0
    %v2360 = vadd.f32 %v2263, %v2359
    %v2361 = vpop.f32.mrb[0].mxu0
    %2362 = vmatprep.mubr.bf16.mxu0 0
    %2363 = vmatmul.mubr.bf16.gmra.mrb[0].mxu0 %v2098
    %v2364 = vpop.f32.mrb[0].mxu0
    %v2365 = vadd.f32 %v2268, %v2364
    %v2366 = vpop.f32.mrb[0].mxu0
    %v2367 = vpop.f32.mrb[0].mxu0
    %v2368 = vadd.f32 %v2271, %v2367
    %v2369 = vpop.f32.mrb[0].mxu0
    %2370 = vmatprep.mubr.bf16.mxu0 0
    %2371 = vmatmul.mubr.bf16.gmra.mrb[0].mxu0 %v2101
    %v2372 = vpop.f32.mrb[0].mxu0
    %v2373 = vadd.f32 %v2276, %v2372
    %v2374 = vpop.f32.mrb[0].mxu0
    %v2375 = vpop.f32.mrb[0].mxu0
    %v2376 = vadd.f32 %v2279, %v2375
    %v2377 = vpop.f32.mrb[0].mxu0
    %2378 = vmatprep.mubr.bf16.mxu0 0
    %2379 = vmatmul.mubr.bf16.gmra.mrb[0].mxu0 %v2104
    %v2380 = vpop.f32.mrb[0].mxu0
    %v2381 = vadd.f32 %v2284, %v2380
    %v2382 = vpop.f32.mrb[0].mxu0
    %v2383 = vpop.f32.mrb[0].mxu0
    %v2384 = vadd.f32 %v2287, %v2383
    %v2385 = vpop.f32.mrb[0].mxu0
    %2386 = vmatprep.mubr.bf16.mxu0 0
    %2387 = vmatmul.mubr.bf16.gmra.mrb[0].mxu0 %v2107
    %v2388 = vpop.f32.mrb[0].mxu0
    %v2389 = vadd.f32 %v2292, %v2388
    %v2390 = vpop.f32.mrb[0].mxu0
    %v2391 = vpop.f32.mrb[0].mxu0
    %v2392 = vadd.f32 %v2295, %v2391
    %v2393 = vpop.f32.mrb[0].mxu0
    %2394 = vmatprep.mubr.bf16.mxu0 0
    %2395 = vmatmul.mubr.bf16.gmra.mrb[0].mxu0 %v2110
    %v2396 = vpop.f32.mrb[0].mxu0
    %v2397 = vadd.f32 %v2300, %v2396
    %v2398 = vpop.f32.mrb[0].mxu0
    %v2399 = vpop.f32.mrb[0].mxu0
    %v2400 = vadd.f32 %v2303, %v2399
    %v2401 = vpop.f32.mrb[0].mxu0
    %2402 = vdwg.mxu0
    %v2403 = vmax.f32 %v2341, 0.0
    %v2404 = vmax.f32 %v2344, 0.0
    %v2405 = vmax.f32 %v2349, 0.0
    %v2406 = vmax.f32 %v2352, 0.0
    %v2407 = vmax.f32 %v2357, 0.0
    %v2408 = vmax.f32 %v2360, 0.0
    %v2409 = vmax.f32 %v2365, 0.0
    %v2410 = vmax.f32 %v2368, 0.0
    %v2411 = vmax.f32 %v2373, 0.0
    %v2412 = vmax.f32 %v2376, 0.0
    %v2413 = vmax.f32 %v2381, 0.0
    %v2414 = vmax.f32 %v2384, 0.0
    %v2415 = vmax.f32 %v2389, 0.0
    %v2416 = vmax.f32 %v2392, 0.0
    %v2417 = vmax.f32 %v2397, 0.0
    %v2418 = vmax.f32 %v2400, 0.0
    %2419 = vst.msk [vmem:[%s102 + $0x1] sm:$0xff] %vm44, %v2403
    %2420 = vst.msk [vmem:[%s102 + $0x11] sm:$0xff] %vm44, %v2404
    %2421 = vst.msk [vmem:[%s102 + $0x21] sm:$0xff] %vm44, %v2405
    %2422 = vst.msk [vmem:[%s102 + $0x31] sm:$0xff] %vm44, %v2406
    %2423 = vst.msk [vmem:[%s102 + $0x41] sm:$0xff] %vm44, %v2407
    %2424 = vst.msk [vmem:[%s102 + $0x51] sm:$0xff] %vm44, %v2408
    %2425 = vst.msk [vmem:[%s102 + $0x61] sm:$0xff] %vm44, %v2409
    %2426 = vst.msk [vmem:[%s102 + $0x71] sm:$0xff] %vm44, %v2410
    %2427 = vst.msk [vmem:[%s102 + $0xa1] sm:$0xff] %vm44, %v2411
    %2428 = vst.msk [vmem:[%s102 + $0xb1] sm:$0xff] %vm44, %v2412
    %2429 = vst.msk [vmem:[%s102 + $0xc1] sm:$0xff] %vm44, %v2413
    %2430 = vst.msk [vmem:[%s102 + $0xd1] sm:$0xff] %vm44, %v2414
    %2431 = vst.msk [vmem:[%s102 + $0xe1] sm:$0xff] %vm44, %v2415
    %2432 = vst.msk [vmem:[%s102 + $0xf1] sm:$0xff] %vm44, %v2416
    %2433 = vst.msk [vmem:[%s102 + $0x101] sm:$0xff] %vm44, %v2417
    %2434 = vst.msk [vmem:[%s102 + $0x111] sm:$0xff] %vm44, %v2418
    %v2435 = vld [vmem:[#allocation2] sm:$0xff]
    %v2436 = vld [vmem:[#allocation2 + $0x10] sm:$0xff]
    %v2437 = vld [vmem:[#allocation2 + $0x20] sm:$0xff]
    %v2438 = vld [vmem:[#allocation2 + $0x30] sm:$0xff]
    %v2439 = vld [vmem:[#allocation2 + $0x40] sm:$0xff]
    %v2440 = vld [vmem:[#allocation2 + $0x50] sm:$0xff]
    %v2441 = vld [vmem:[#allocation2 + $0x60] sm:$0xff]
    %v2442 = vld [vmem:[#allocation2 + $0x70] sm:$0xff]
    %v2443 = vld [vmem:[#allocation2 + $0xa0] sm:$0xff]
    %v2444 = vld [vmem:[#allocation2 + $0xb0] sm:$0xff]
    %v2445 = vld [vmem:[#allocation2 + $0xc0] sm:$0xff]
    %v2446 = vld [vmem:[#allocation2 + $0xd0] sm:$0xff]
    %v2447 = vld [vmem:[#allocation2 + $0xe0] sm:$0xff]
    %v2448 = vld [vmem:[#allocation2 + $0xf0] sm:$0xff]
    %v2449 = vld [vmem:[#allocation2 + $0x100] sm:$0xff]
    %v2450 = vld [vmem:[#allocation2 + $0x110] sm:$0xff]
    %2451 = vst.msk [vmem:[#allocation3] sm:$0xff] %vm44, %v2435
    %2452 = vst.msk [vmem:[#allocation3 + $0x28] sm:$0xff] %vm44, %v2436
    %2453 = vst.msk [vmem:[#allocation3 + $0x50] sm:$0xff] %vm44, %v2437
    %2454 = vst.msk [vmem:[#allocation3 + $0x78] sm:$0xff] %vm44, %v2438
    %2455 = vst.msk [vmem:[#allocation3 + $0xa0] sm:$0xff] %vm44, %v2439
    %2456 = vst.msk [vmem:[#allocation3 + $0xc8] sm:$0xff] %vm44, %v2440
    %2457 = vst.msk [vmem:[#allocation3 + $0xf0] sm:$0xff] %vm44, %v2441
    %2458 = vst.msk [vmem:[#allocation3 + $0x118] sm:$0xff] %vm44, %v2442
    %2459 = vst.msk [vmem:[#allocation3 + $0x140] sm:$0xff] %vm44, %v2443
    %2460 = vst.msk [vmem:[#allocation3 + $0x168] sm:$0xff] %vm44, %v2444
    %2461 = vst.msk [vmem:[#allocation3 + $0x190] sm:$0xff] %vm44, %v2445
    %2462 = vst.msk [vmem:[#allocation3 + $0x1b8] sm:$0xff] %vm44, %v2446
    %2463 = vst.msk [vmem:[#allocation3 + $0x1e0] sm:$0xff] %vm44, %v2447
    %2464 = vst.msk [vmem:[#allocation3 + $0x208] sm:$0xff] %vm44, %v2448
    %2465 = vst.msk [vmem:[#allocation3 + $0x230] sm:$0xff] %vm44, %v2449
    %2466 = vst.msk [vmem:[#allocation3 + $0x258] sm:$0xff] %vm44, %v2450
    %v2467 = vld [vmem:[#allocation2 + $0x1] sm:$0xff]
    %v2468 = vld [vmem:[#allocation2 + $0x11] sm:$0xff]
    %v2469 = vld [vmem:[#allocation2 + $0x21] sm:$0xff]
    %v2470 = vld [vmem:[#allocation2 + $0x31] sm:$0xff]
    %v2471 = vld [vmem:[#allocation2 + $0x41] sm:$0xff]
    %v2472 = vld [vmem:[#allocation2 + $0x51] sm:$0xff]
    %v2473 = vld [vmem:[#allocation2 + $0x61] sm:$0xff]
    %v2474 = vld [vmem:[#allocation2 + $0x71] sm:$0xff]
    %v2475 = vld [vmem:[#allocation2 + $0xa1] sm:$0xff]
    %v2476 = vld [vmem:[#allocation2 + $0xb1] sm:$0xff]
    %v2477 = vld [vmem:[#allocation2 + $0xc1] sm:$0xff]
    %v2478 = vld [vmem:[#allocation2 + $0xd1] sm:$0xff]
    %v2479 = vld [vmem:[#allocation2 + $0xe1] sm:$0xff]
    %v2480 = vld [vmem:[#allocation2 + $0xf1] sm:$0xff]
    %v2481 = vld [vmem:[#allocation2 + $0x101] sm:$0xff]
    %v2482 = vld [vmem:[#allocation2 + $0x111] sm:$0xff]
    %2499 = vrot.lane.b32.xlu0 %v2467, 64
    %v2500 = vpop.permute.xlu0 %2499
    %2501 = vrot.lane.b32.xlu0 %v2468, 64
    %v2502 = vpop.permute.xlu0 %2501
    %2503 = vrot.lane.b32.xlu0 %v2469, 64
    %v2504 = vpop.permute.xlu0 %2503
    %2505 = vrot.lane.b32.xlu0 %v2470, 64
    %v2506 = vpop.permute.xlu0 %2505
    %2507 = vrot.lane.b32.xlu0 %v2471, 64
    %v2508 = vpop.permute.xlu0 %2507
    %2509 = vrot.lane.b32.xlu0 %v2472, 64
    %v2510 = vpop.permute.xlu0 %2509
    %2511 = vrot.lane.b32.xlu0 %v2473, 64
    %v2512 = vpop.permute.xlu0 %2511
    %2513 = vrot.lane.b32.xlu0 %v2474, 64
    %v2514 = vpop.permute.xlu0 %2513
    %2515 = vrot.lane.b32.xlu0 %v2475, 64
    %v2516 = vpop.permute.xlu0 %2515
    %2517 = vrot.lane.b32.xlu0 %v2476, 64
    %v2518 = vpop.permute.xlu0 %2517
    %2519 = vrot.lane.b32.xlu0 %v2477, 64
    %v2520 = vpop.permute.xlu0 %2519
    %2521 = vrot.lane.b32.xlu0 %v2478, 64
    %v2522 = vpop.permute.xlu0 %2521
    %2523 = vrot.lane.b32.xlu0 %v2479, 64
    %v2524 = vpop.permute.xlu0 %2523
    %2525 = vrot.lane.b32.xlu0 %v2480, 64
    %v2526 = vpop.permute.xlu0 %2525
    %2527 = vrot.lane.b32.xlu0 %v2481, 64
    %v2528 = vpop.permute.xlu0 %2527
    %2529 = vrot.lane.b32.xlu0 %v2482, 64
    %v2530 = vpop.permute.xlu0 %2529
    %2547 = vst.msk [vmem:[#allocation3] sm:$0xff] %vm1240, %v2500
    %2548 = vst.msk [vmem:[#allocation3 + $0x28] sm:$0xff] %vm1240, %v2502
    %2549 = vst.msk [vmem:[#allocation3 + $0x50] sm:$0xff] %vm1240, %v2504
    %2550 = vst.msk [vmem:[#allocation3 + $0x78] sm:$0xff] %vm1240, %v2506
    %2551 = vst.msk [vmem:[#allocation3 + $0xa0] sm:$0xff] %vm1240, %v2508
    %2552 = vst.msk [vmem:[#allocation3 + $0xc8] sm:$0xff] %vm1240, %v2510
    %2553 = vst.msk [vmem:[#allocation3 + $0xf0] sm:$0xff] %vm1240, %v2512
    %2554 = vst.msk [vmem:[#allocation3 + $0x118] sm:$0xff] %vm1240, %v2514
    %2555 = vst.msk [vmem:[#allocation3 + $0x140] sm:$0xff] %vm1240, %v2516
    %2556 = vst.msk [vmem:[#allocation3 + $0x168] sm:$0xff] %vm1240, %v2518
    %2557 = vst.msk [vmem:[#allocation3 + $0x190] sm:$0xff] %vm1240, %v2520
    %2558 = vst.msk [vmem:[#allocation3 + $0x1b8] sm:$0xff] %vm1240, %v2522
    %2559 = vst.msk [vmem:[#allocation3 + $0x1e0] sm:$0xff] %vm1240, %v2524
    %2560 = vst.msk [vmem:[#allocation3 + $0x208] sm:$0xff] %vm1240, %v2526
    %2561 = vst.msk [vmem:[#allocation3 + $0x230] sm:$0xff] %vm1240, %v2528
    %2562 = vst.msk [vmem:[#allocation3 + $0x258] sm:$0xff] %vm1240, %v2530
    %v2563 = vld [vmem:[#allocation2 + $0x2] sm:$0xff]
    %v2564 = vld [vmem:[#allocation2 + $0x12] sm:$0xff]
    %v2565 = vld [vmem:[#allocation2 + $0x22] sm:$0xff]
    %v2566 = vld [vmem:[#allocation2 + $0x32] sm:$0xff]
    %v2567 = vld [vmem:[#allocation2 + $0x42] sm:$0xff]
    %v2568 = vld [vmem:[#allocation2 + $0x52] sm:$0xff]
    %v2569 = vld [vmem:[#allocation2 + $0x62] sm:$0xff]
    %v2570 = vld [vmem:[#allocation2 + $0x72] sm:$0xff]
    %v2571 = vld [vmem:[#allocation2 + $0xa2] sm:$0xff]
    %v2572 = vld [vmem:[#allocation2 + $0xb2] sm:$0xff]
    %v2573 = vld [vmem:[#allocation2 + $0xc2] sm:$0xff]
    %v2574 = vld [vmem:[#allocation2 + $0xd2] sm:$0xff]
    %v2575 = vld [vmem:[#allocation2 + $0xe2] sm:$0xff]
    %v2576 = vld [vmem:[#allocation2 + $0xf2] sm:$0xff]
    %v2577 = vld [vmem:[#allocation2 + $0x102] sm:$0xff]
    %v2578 = vld [vmem:[#allocation2 + $0x112] sm:$0xff]
    %2579 = vst.msk [vmem:[#allocation3 + $0x8] sm:$0xff] %vm44, %v2563
    %2580 = vst.msk [vmem:[#allocation3 + $0x30] sm:$0xff] %vm44, %v2564
    %2581 = vst.msk [vmem:[#allocation3 + $0x58] sm:$0xff] %vm44, %v2565
    %2582 = vst.msk [vmem:[#allocation3 + $0x80] sm:$0xff] %vm44, %v2566
    %2583 = vst.msk [vmem:[#allocation3 + $0xa8] sm:$0xff] %vm44, %v2567
    %2584 = vst.msk [vmem:[#allocation3 + $0xd0] sm:$0xff] %vm44, %v2568
    %2585 = vst.msk [vmem:[#allocation3 + $0xf8] sm:$0xff] %vm44, %v2569
    %2586 = vst.msk [vmem:[#allocation3 + $0x120] sm:$0xff] %vm44, %v2570
    %2587 = vst.msk [vmem:[#allocation3 + $0x148] sm:$0xff] %vm44, %v2571
    %2588 = vst.msk [vmem:[#allocation3 + $0x170] sm:$0xff] %vm44, %v2572
    %2589 = vst.msk [vmem:[#allocation3 + $0x198] sm:$0xff] %vm44, %v2573
    %2590 = vst.msk [vmem:[#allocation3 + $0x1c0] sm:$0xff] %vm44, %v2574
    %2591 = vst.msk [vmem:[#allocation3 + $0x1e8] sm:$0xff] %vm44, %v2575
    %2592 = vst.msk [vmem:[#allocation3 + $0x210] sm:$0xff] %vm44, %v2576
    %2593 = vst.msk [vmem:[#allocation3 + $0x238] sm:$0xff] %vm44, %v2577
    %2594 = vst.msk [vmem:[#allocation3 + $0x260] sm:$0xff] %vm44, %v2578
    %v2595 = vld [vmem:[%s102] sm:$0xff]
    %v2596 = vld [vmem:[%s102 + $0x10] sm:$0xff]
    %v2597 = vld [vmem:[%s102 + $0x20] sm:$0xff]
    %v2598 = vld [vmem:[%s102 + $0x30] sm:$0xff]
    %v2599 = vld [vmem:[%s102 + $0x40] sm:$0xff]
    %v2600 = vld [vmem:[%s102 + $0x50] sm:$0xff]
    %v2601 = vld [vmem:[%s102 + $0x60] sm:$0xff]
    %v2602 = vld [vmem:[%s102 + $0x70] sm:$0xff]
    %v2603 = vld [vmem:[%s102 + $0xa0] sm:$0xff]
    %v2604 = vld [vmem:[%s102 + $0xb0] sm:$0xff]
    %v2605 = vld [vmem:[%s102 + $0xc0] sm:$0xff]
    %v2606 = vld [vmem:[%s102 + $0xd0] sm:$0xff]
    %v2607 = vld [vmem:[%s102 + $0xe0] sm:$0xff]
    %v2608 = vld [vmem:[%s102 + $0xf0] sm:$0xff]
    %v2609 = vld [vmem:[%s102 + $0x100] sm:$0xff]
    %v2610 = vld [vmem:[%s102 + $0x110] sm:$0xff]
    %2627 = vrot.lane.b32.xlu0 %v2595, 64
    %v2628 = vpop.permute.xlu0 %2627
    %2629 = vrot.lane.b32.xlu0 %v2596, 64
    %v2630 = vpop.permute.xlu0 %2629
    %2631 = vrot.lane.b32.xlu0 %v2597, 64
    %v2632 = vpop.permute.xlu0 %2631
    %2633 = vrot.lane.b32.xlu0 %v2598, 64
    %v2634 = vpop.permute.xlu0 %2633
    %2635 = vrot.lane.b32.xlu0 %v2599, 64
    %v2636 = vpop.permute.xlu0 %2635
    %2637 = vrot.lane.b32.xlu0 %v2600, 64
    %v2638 = vpop.permute.xlu0 %2637
    %2639 = vrot.lane.b32.xlu0 %v2601, 64
    %v2640 = vpop.permute.xlu0 %2639
    %2641 = vrot.lane.b32.xlu0 %v2602, 64
    %v2642 = vpop.permute.xlu0 %2641
    %2643 = vrot.lane.b32.xlu0 %v2603, 64
    %v2644 = vpop.permute.xlu0 %2643
    %2645 = vrot.lane.b32.xlu0 %v2604, 64
    %v2646 = vpop.permute.xlu0 %2645
    %2647 = vrot.lane.b32.xlu0 %v2605, 64
    %v2648 = vpop.permute.xlu0 %2647
    %2649 = vrot.lane.b32.xlu0 %v2606, 64
    %v2650 = vpop.permute.xlu0 %2649
    %2651 = vrot.lane.b32.xlu0 %v2607, 64
    %v2652 = vpop.permute.xlu0 %2651
    %2653 = vrot.lane.b32.xlu0 %v2608, 64
    %v2654 = vpop.permute.xlu0 %2653
    %2655 = vrot.lane.b32.xlu0 %v2609, 64
    %v2656 = vpop.permute.xlu0 %2655
    %2657 = vrot.lane.b32.xlu0 %v2610, 64
    %v2658 = vpop.permute.xlu0 %2657
    %2675 = vst.msk [vmem:[#allocation3 + $0x8] sm:$0xff] %vm1240, %v2628
    %2676 = vst.msk [vmem:[#allocation3 + $0x30] sm:$0xff] %vm1240, %v2630
    %2677 = vst.msk [vmem:[#allocation3 + $0x58] sm:$0xff] %vm1240, %v2632
    %2678 = vst.msk [vmem:[#allocation3 + $0x80] sm:$0xff] %vm1240, %v2634
    %2679 = vst.msk [vmem:[#allocation3 + $0xa8] sm:$0xff] %vm1240, %v2636
    %2680 = vst.msk [vmem:[#allocation3 + $0xd0] sm:$0xff] %vm1240, %v2638
    %2681 = vst.msk [vmem:[#allocation3 + $0xf8] sm:$0xff] %vm1240, %v2640
    %2682 = vst.msk [vmem:[#allocation3 + $0x120] sm:$0xff] %vm1240, %v2642
    %2683 = vst.msk [vmem:[#allocation3 + $0x148] sm:$0xff] %vm1240, %v2644
    %2684 = vst.msk [vmem:[#allocation3 + $0x170] sm:$0xff] %vm1240, %v2646
    %2685 = vst.msk [vmem:[#allocation3 + $0x198] sm:$0xff] %vm1240, %v2648
    %2686 = vst.msk [vmem:[#allocation3 + $0x1c0] sm:$0xff] %vm1240, %v2650
    %2687 = vst.msk [vmem:[#allocation3 + $0x1e8] sm:$0xff] %vm1240, %v2652
    %2688 = vst.msk [vmem:[#allocation3 + $0x210] sm:$0xff] %vm1240, %v2654
    %2689 = vst.msk [vmem:[#allocation3 + $0x238] sm:$0xff] %vm1240, %v2656
    %2690 = vst.msk [vmem:[#allocation3 + $0x260] sm:$0xff] %vm1240, %v2658
    %v2691 = vld [vmem:[%s102 + $0x1] sm:$0xff]
    %v2692 = vld [vmem:[%s102 + $0x11] sm:$0xff]
    %v2693 = vld [vmem:[%s102 + $0x21] sm:$0xff]
    %v2694 = vld [vmem:[%s102 + $0x31] sm:$0xff]
    %v2695 = vld [vmem:[%s102 + $0x41] sm:$0xff]
    %v2696 = vld [vmem:[%s102 + $0x51] sm:$0xff]
    %v2697 = vld [vmem:[%s102 + $0x61] sm:$0xff]
    %v2698 = vld [vmem:[%s102 + $0x71] sm:$0xff]
    %v2699 = vld [vmem:[%s102 + $0xa1] sm:$0xff]
    %v2700 = vld [vmem:[%s102 + $0xb1] sm:$0xff]
    %v2701 = vld [vmem:[%s102 + $0xc1] sm:$0xff]
    %v2702 = vld [vmem:[%s102 + $0xd1] sm:$0xff]
    %v2703 = vld [vmem:[%s102 + $0xe1] sm:$0xff]
    %v2704 = vld [vmem:[%s102 + $0xf1] sm:$0xff]
    %v2705 = vld [vmem:[%s102 + $0x101] sm:$0xff]
    %v2706 = vld [vmem:[%s102 + $0x111] sm:$0xff]
    %2707 = vst.msk [vmem:[#allocation3 + $0x10] sm:$0xff] %vm44, %v2691
    %2708 = vst.msk [vmem:[#allocation3 + $0x38] sm:$0xff] %vm44, %v2692
    %2709 = vst.msk [vmem:[#allocation3 + $0x60] sm:$0xff] %vm44, %v2693
    %2710 = vst.msk [vmem:[#allocation3 + $0x88] sm:$0xff] %vm44, %v2694
    %2711 = vst.msk [vmem:[#allocation3 + $0xb0] sm:$0xff] %vm44, %v2695
    %2712 = vst.msk [vmem:[#allocation3 + $0xd8] sm:$0xff] %vm44, %v2696
    %2713 = vst.msk [vmem:[#allocation3 + $0x100] sm:$0xff] %vm44, %v2697
    %2714 = vst.msk [vmem:[#allocation3 + $0x128] sm:$0xff] %vm44, %v2698
    %2715 = vst.msk [vmem:[#allocation3 + $0x150] sm:$0xff] %vm44, %v2699
    %2716 = vst.msk [vmem:[#allocation3 + $0x178] sm:$0xff] %vm44, %v2700
    %2717 = vst.msk [vmem:[#allocation3 + $0x1a0] sm:$0xff] %vm44, %v2701
    %2718 = vst.msk [vmem:[#allocation3 + $0x1c8] sm:$0xff] %vm44, %v2702
    %2719 = vst.msk [vmem:[#allocation3 + $0x1f0] sm:$0xff] %vm44, %v2703
    %2720 = vst.msk [vmem:[#allocation3 + $0x218] sm:$0xff] %vm44, %v2704
    %2721 = vst.msk [vmem:[#allocation3 + $0x240] sm:$0xff] %vm44, %v2705
    %2722 = vst.msk [vmem:[#allocation3 + $0x268] sm:$0xff] %vm44, %v2706
    %v2723 = vld [vmem:[%s102 + $0x2] sm:$0xff]
    %v2724 = vld [vmem:[%s102 + $0x12] sm:$0xff]
    %v2725 = vld [vmem:[%s102 + $0x22] sm:$0xff]
    %v2726 = vld [vmem:[%s102 + $0x32] sm:$0xff]
    %v2727 = vld [vmem:[%s102 + $0x42] sm:$0xff]
    %v2728 = vld [vmem:[%s102 + $0x52] sm:$0xff]
    %v2729 = vld [vmem:[%s102 + $0x62] sm:$0xff]
    %v2730 = vld [vmem:[%s102 + $0x72] sm:$0xff]
    %v2731 = vld [vmem:[%s102 + $0xa2] sm:$0xff]
    %v2732 = vld [vmem:[%s102 + $0xb2] sm:$0xff]
    %v2733 = vld [vmem:[%s102 + $0xc2] sm:$0xff]
    %v2734 = vld [vmem:[%s102 + $0xd2] sm:$0xff]
    %v2735 = vld [vmem:[%s102 + $0xe2] sm:$0xff]
    %v2736 = vld [vmem:[%s102 + $0xf2] sm:$0xff]
    %v2737 = vld [vmem:[%s102 + $0x102] sm:$0xff]
    %v2738 = vld [vmem:[%s102 + $0x112] sm:$0xff]
    %2755 = vrot.lane.b32.xlu0 %v2723, 64
    %v2756 = vpop.permute.xlu0 %2755
    %2757 = vrot.lane.b32.xlu0 %v2724, 64
    %v2758 = vpop.permute.xlu0 %2757
    %2759 = vrot.lane.b32.xlu0 %v2725, 64
    %v2760 = vpop.permute.xlu0 %2759
    %2761 = vrot.lane.b32.xlu0 %v2726, 64
    %v2762 = vpop.permute.xlu0 %2761
    %2763 = vrot.lane.b32.xlu0 %v2727, 64
    %v2764 = vpop.permute.xlu0 %2763
    %2765 = vrot.lane.b32.xlu0 %v2728, 64
    %v2766 = vpop.permute.xlu0 %2765
    %2767 = vrot.lane.b32.xlu0 %v2729, 64
    %v2768 = vpop.permute.xlu0 %2767
    %2769 = vrot.lane.b32.xlu0 %v2730, 64
    %v2770 = vpop.permute.xlu0 %2769
    %2771 = vrot.lane.b32.xlu0 %v2731, 64
    %v2772 = vpop.permute.xlu0 %2771
    %2773 = vrot.lane.b32.xlu0 %v2732, 64
    %v2774 = vpop.permute.xlu0 %2773
    %2775 = vrot.lane.b32.xlu0 %v2733, 64
    %v2776 = vpop.permute.xlu0 %2775
    %2777 = vrot.lane.b32.xlu0 %v2734, 64
    %v2778 = vpop.permute.xlu0 %2777
    %2779 = vrot.lane.b32.xlu0 %v2735, 64
    %v2780 = vpop.permute.xlu0 %2779
    %2781 = vrot.lane.b32.xlu0 %v2736, 64
    %v2782 = vpop.permute.xlu0 %2781
    %2783 = vrot.lane.b32.xlu0 %v2737, 64
    %v2784 = vpop.permute.xlu0 %2783
    %2785 = vrot.lane.b32.xlu0 %v2738, 64
    %v2786 = vpop.permute.xlu0 %2785
    %2803 = vst.msk [vmem:[#allocation3 + $0x10] sm:$0xff] %vm1240, %v2756
    %2804 = vst.msk [vmem:[#allocation3 + $0x38] sm:$0xff] %vm1240, %v2758
    %2805 = vst.msk [vmem:[#allocation3 + $0x60] sm:$0xff] %vm1240, %v2760
    %2806 = vst.msk [vmem:[#allocation3 + $0x88] sm:$0xff] %vm1240, %v2762
    %2807 = vst.msk [vmem:[#allocation3 + $0xb0] sm:$0xff] %vm1240, %v2764
    %2808 = vst.msk [vmem:[#allocation3 + $0xd8] sm:$0xff] %vm1240, %v2766
    %2809 = vst.msk [vmem:[#allocation3 + $0x100] sm:$0xff] %vm1240, %v2768
    %2810 = vst.msk [vmem:[#allocation3 + $0x128] sm:$0xff] %vm1240, %v2770
    %2811 = vst.msk [vmem:[#allocation3 + $0x150] sm:$0xff] %vm1240, %v2772
    %2812 = vst.msk [vmem:[#allocation3 + $0x178] sm:$0xff] %vm1240, %v2774
    %2813 = vst.msk [vmem:[#allocation3 + $0x1a0] sm:$0xff] %vm1240, %v2776
    %2814 = vst.msk [vmem:[#allocation3 + $0x1c8] sm:$0xff] %vm1240, %v2778
    %2815 = vst.msk [vmem:[#allocation3 + $0x1f0] sm:$0xff] %vm1240, %v2780
    %2816 = vst.msk [vmem:[#allocation3 + $0x218] sm:$0xff] %vm1240, %v2782
    %2817 = vst.msk [vmem:[#allocation3 + $0x240] sm:$0xff] %vm1240, %v2784
    %2818 = vst.msk [vmem:[#allocation3 + $0x268] sm:$0xff] %vm1240, %v2786
    %v2819 = vld [vmem:[%s637] sm:$0xff]
    %v2820 = vld [vmem:[%s637 + $0x10] sm:$0xff]
    %v2821 = vld [vmem:[%s637 + $0x20] sm:$0xff]
    %v2822 = vld [vmem:[%s637 + $0x30] sm:$0xff]
    %v2823 = vld [vmem:[%s637 + $0x40] sm:$0xff]
    %v2824 = vld [vmem:[%s637 + $0x50] sm:$0xff]
    %v2825 = vld [vmem:[%s637 + $0x60] sm:$0xff]
    %v2826 = vld [vmem:[%s637 + $0x70] sm:$0xff]
    %v2827 = vld [vmem:[%s637 + $0xa0] sm:$0xff]
    %v2828 = vld [vmem:[%s637 + $0xb0] sm:$0xff]
    %v2829 = vld [vmem:[%s637 + $0xc0] sm:$0xff]
    %v2830 = vld [vmem:[%s637 + $0xd0] sm:$0xff]
    %v2831 = vld [vmem:[%s637 + $0xe0] sm:$0xff]
    %v2832 = vld [vmem:[%s637 + $0xf0] sm:$0xff]
    %v2833 = vld [vmem:[%s637 + $0x100] sm:$0xff]
    %v2834 = vld [vmem:[%s637 + $0x110] sm:$0xff]
    %2835 = vst.msk [vmem:[#allocation3 + $0x18] sm:$0xff] %vm44, %v2819
    %2836 = vst.msk [vmem:[#allocation3 + $0x40] sm:$0xff] %vm44, %v2820
    %2837 = vst.msk [vmem:[#allocation3 + $0x68] sm:$0xff] %vm44, %v2821
    %2838 = vst.msk [vmem:[#allocation3 + $0x90] sm:$0xff] %vm44, %v2822
    %2839 = vst.msk [vmem:[#allocation3 + $0xb8] sm:$0xff] %vm44, %v2823
    %2840 = vst.msk [vmem:[#allocation3 + $0xe0] sm:$0xff] %vm44, %v2824
    %2841 = vst.msk [vmem:[#allocation3 + $0x108] sm:$0xff] %vm44, %v2825
    %2842 = vst.msk [vmem:[#allocation3 + $0x130] sm:$0xff] %vm44, %v2826
    %2843 = vst.msk [vmem:[#allocation3 + $0x158] sm:$0xff] %vm44, %v2827
    %2844 = vst.msk [vmem:[#allocation3 + $0x180] sm:$0xff] %vm44, %v2828
    %2845 = vst.msk [vmem:[#allocation3 + $0x1a8] sm:$0xff] %vm44, %v2829
    %2846 = vst.msk [vmem:[#allocation3 + $0x1d0] sm:$0xff] %vm44, %v2830
    %2847 = vst.msk [vmem:[#allocation3 + $0x1f8] sm:$0xff] %vm44, %v2831
    %2848 = vst.msk [vmem:[#allocation3 + $0x220] sm:$0xff] %vm44, %v2832
    %2849 = vst.msk [vmem:[#allocation3 + $0x248] sm:$0xff] %vm44, %v2833
    %2850 = vst.msk [vmem:[#allocation3 + $0x270] sm:$0xff] %vm44, %v2834
    %v2851 = vld [vmem:[%s637 + $0x1] sm:$0xff]
    %v2852 = vld [vmem:[%s637 + $0x11] sm:$0xff]
    %v2853 = vld [vmem:[%s637 + $0x21] sm:$0xff]
    %v2854 = vld [vmem:[%s637 + $0x31] sm:$0xff]
    %v2855 = vld [vmem:[%s637 + $0x41] sm:$0xff]
    %v2856 = vld [vmem:[%s637 + $0x51] sm:$0xff]
    %v2857 = vld [vmem:[%s637 + $0x61] sm:$0xff]
    %v2858 = vld [vmem:[%s637 + $0x71] sm:$0xff]
    %v2859 = vld [vmem:[%s637 + $0xa1] sm:$0xff]
    %v2860 = vld [vmem:[%s637 + $0xb1] sm:$0xff]
    %v2861 = vld [vmem:[%s637 + $0xc1] sm:$0xff]
    %v2862 = vld [vmem:[%s637 + $0xd1] sm:$0xff]
    %v2863 = vld [vmem:[%s637 + $0xe1] sm:$0xff]
    %v2864 = vld [vmem:[%s637 + $0xf1] sm:$0xff]
    %v2865 = vld [vmem:[%s637 + $0x101] sm:$0xff]
    %v2866 = vld [vmem:[%s637 + $0x111] sm:$0xff]
    %2883 = vrot.lane.b32.xlu0 %v2851, 64
    %v2884 = vpop.permute.xlu0 %2883
    %2885 = vrot.lane.b32.xlu0 %v2852, 64
    %v2886 = vpop.permute.xlu0 %2885
    %2887 = vrot.lane.b32.xlu0 %v2853, 64
    %v2888 = vpop.permute.xlu0 %2887
    %2889 = vrot.lane.b32.xlu0 %v2854, 64
    %v2890 = vpop.permute.xlu0 %2889
    %2891 = vrot.lane.b32.xlu0 %v2855, 64
    %v2892 = vpop.permute.xlu0 %2891
    %2893 = vrot.lane.b32.xlu0 %v2856, 64
    %v2894 = vpop.permute.xlu0 %2893
    %2895 = vrot.lane.b32.xlu0 %v2857, 64
    %v2896 = vpop.permute.xlu0 %2895
    %2897 = vrot.lane.b32.xlu0 %v2858, 64
    %v2898 = vpop.permute.xlu0 %2897
    %2899 = vrot.lane.b32.xlu0 %v2859, 64
    %v2900 = vpop.permute.xlu0 %2899
    %2901 = vrot.lane.b32.xlu0 %v2860, 64
    %v2902 = vpop.permute.xlu0 %2901
    %2903 = vrot.lane.b32.xlu0 %v2861, 64
    %v2904 = vpop.permute.xlu0 %2903
    %2905 = vrot.lane.b32.xlu0 %v2862, 64
    %v2906 = vpop.permute.xlu0 %2905
    %2907 = vrot.lane.b32.xlu0 %v2863, 64
    %v2908 = vpop.permute.xlu0 %2907
    %2909 = vrot.lane.b32.xlu0 %v2864, 64
    %v2910 = vpop.permute.xlu0 %2909
    %2911 = vrot.lane.b32.xlu0 %v2865, 64
    %v2912 = vpop.permute.xlu0 %2911
    %2913 = vrot.lane.b32.xlu0 %v2866, 64
    %v2914 = vpop.permute.xlu0 %2913
    %2931 = vst.msk [vmem:[#allocation3 + $0x18] sm:$0xff] %vm1240, %v2884
    %2932 = vst.msk [vmem:[#allocation3 + $0x40] sm:$0xff] %vm1240, %v2886
    %2933 = vst.msk [vmem:[#allocation3 + $0x68] sm:$0xff] %vm1240, %v2888
    %2934 = vst.msk [vmem:[#allocation3 + $0x90] sm:$0xff] %vm1240, %v2890
    %2935 = vst.msk [vmem:[#allocation3 + $0xb8] sm:$0xff] %vm1240, %v2892
    %2936 = vst.msk [vmem:[#allocation3 + $0xe0] sm:$0xff] %vm1240, %v2894
    %2937 = vst.msk [vmem:[#allocation3 + $0x108] sm:$0xff] %vm1240, %v2896
    %2938 = vst.msk [vmem:[#allocation3 + $0x130] sm:$0xff] %vm1240, %v2898
    %2939 = vst.msk [vmem:[#allocation3 + $0x158] sm:$0xff] %vm1240, %v2900
    %2940 = vst.msk [vmem:[#allocation3 + $0x180] sm:$0xff] %vm1240, %v2902
    %2941 = vst.msk [vmem:[#allocation3 + $0x1a8] sm:$0xff] %vm1240, %v2904
    %2942 = vst.msk [vmem:[#allocation3 + $0x1d0] sm:$0xff] %vm1240, %v2906
    %2943 = vst.msk [vmem:[#allocation3 + $0x1f8] sm:$0xff] %vm1240, %v2908
    %2944 = vst.msk [vmem:[#allocation3 + $0x220] sm:$0xff] %vm1240, %v2910
    %2945 = vst.msk [vmem:[#allocation3 + $0x248] sm:$0xff] %vm1240, %v2912
    %2946 = vst.msk [vmem:[#allocation3 + $0x270] sm:$0xff] %vm1240, %v2914
    %v2947 = vld [vmem:[%s637 + $0x2] sm:$0xff]
    %v2948 = vld [vmem:[%s637 + $0x12] sm:$0xff]
    %v2949 = vld [vmem:[%s637 + $0x22] sm:$0xff]
    %v2950 = vld [vmem:[%s637 + $0x32] sm:$0xff]
    %v2951 = vld [vmem:[%s637 + $0x42] sm:$0xff]
    %v2952 = vld [vmem:[%s637 + $0x52] sm:$0xff]
    %v2953 = vld [vmem:[%s637 + $0x62] sm:$0xff]
    %v2954 = vld [vmem:[%s637 + $0x72] sm:$0xff]
    %v2955 = vld [vmem:[%s637 + $0xa2] sm:$0xff]
    %v2956 = vld [vmem:[%s637 + $0xb2] sm:$0xff]
    %v2957 = vld [vmem:[%s637 + $0xc2] sm:$0xff]
    %v2958 = vld [vmem:[%s637 + $0xd2] sm:$0xff]
    %v2959 = vld [vmem:[%s637 + $0xe2] sm:$0xff]
    %v2960 = vld [vmem:[%s637 + $0xf2] sm:$0xff]
    %v2961 = vld [vmem:[%s637 + $0x102] sm:$0xff]
    %v2962 = vld [vmem:[%s637 + $0x112] sm:$0xff]
    %2963 = vst.msk [vmem:[#allocation3 + $0x20] sm:$0xff] %vm44, %v2947
    %2964 = vst.msk [vmem:[#allocation3 + $0x48] sm:$0xff] %vm44, %v2948
    %2965 = vst.msk [vmem:[#allocation3 + $0x70] sm:$0xff] %vm44, %v2949
    %2966 = vst.msk [vmem:[#allocation3 + $0x98] sm:$0xff] %vm44, %v2950
    %2967 = vst.msk [vmem:[#allocation3 + $0xc0] sm:$0xff] %vm44, %v2951
    %2968 = vst.msk [vmem:[#allocation3 + $0xe8] sm:$0xff] %vm44, %v2952
    %2969 = vst.msk [vmem:[#allocation3 + $0x110] sm:$0xff] %vm44, %v2953
    %2970 = vst.msk [vmem:[#allocation3 + $0x138] sm:$0xff] %vm44, %v2954
    %2971 = vst.msk [vmem:[#allocation3 + $0x160] sm:$0xff] %vm44, %v2955
    %2972 = vst.msk [vmem:[#allocation3 + $0x188] sm:$0xff] %vm44, %v2956
    %2973 = vst.msk [vmem:[#allocation3 + $0x1b0] sm:$0xff] %vm44, %v2957
    %2974 = vst.msk [vmem:[#allocation3 + $0x1d8] sm:$0xff] %vm44, %v2958
    %2975 = vst.msk [vmem:[#allocation3 + $0x200] sm:$0xff] %vm44, %v2959
    %2976 = vst.msk [vmem:[#allocation3 + $0x228] sm:$0xff] %vm44, %v2960
    %2977 = vst.msk [vmem:[#allocation3 + $0x250] sm:$0xff] %vm44, %v2961
    %2978 = vst.msk [vmem:[#allocation3 + $0x278] sm:$0xff] %vm44, %v2962
    %v2979 = vld [vmem:[#allocation3] sm:$0xff]
    %v2980 = vld [vmem:[#allocation3 + $0x8] sm:$0xff]
    %v2981 = vld [vmem:[#allocation3 + $0x10] sm:$0xff]
    %v2982 = vld [vmem:[#allocation3 + $0x18] sm:$0xff]
    %v2983 = vld [vmem:[#allocation3 + $0x20] sm:$0xff]
    %v2984 = vld [vmem:[#allocation3 + $0x28] sm:$0xff]
    %v2985 = vld [vmem:[#allocation3 + $0x30] sm:$0xff]
    %v2986 = vld [vmem:[#allocation3 + $0x38] sm:$0xff]
    %v2987 = vld [vmem:[#allocation3 + $0x40] sm:$0xff]
    %v2988 = vld [vmem:[#allocation3 + $0x48] sm:$0xff]
    %v2989 = vld [vmem:[#allocation3 + $0x50] sm:$0xff]
    %v2990 = vld [vmem:[#allocation3 + $0x58] sm:$0xff]
    %v2991 = vld [vmem:[#allocation3 + $0x60] sm:$0xff]
    %v2992 = vld [vmem:[#allocation3 + $0x68] sm:$0xff]
    %v2993 = vld [vmem:[#allocation3 + $0x70] sm:$0xff]
    %v2994 = vld [vmem:[#allocation3 + $0x78] sm:$0xff]
    %v2995 = vld [vmem:[#allocation3 + $0x80] sm:$0xff]
    %v2996 = vld [vmem:[#allocation3 + $0x88] sm:$0xff]
    %v2997 = vld [vmem:[#allocation3 + $0x90] sm:$0xff]
    %v2998 = vld [vmem:[#allocation3 + $0x98] sm:$0xff]
    %v2999 = vld [vmem:[#allocation3 + $0xa0] sm:$0xff]
    %v3000 = vld [vmem:[#allocation3 + $0xa8] sm:$0xff]
    %v3001 = vld [vmem:[#allocation3 + $0xb0] sm:$0xff]
    %v3002 = vld [vmem:[#allocation3 + $0xb8] sm:$0xff]
    %v3003 = vld [vmem:[#allocation3 + $0xc0] sm:$0xff]
    %v3004 = vld [vmem:[#allocation3 + $0xc8] sm:$0xff]
    %v3005 = vld [vmem:[#allocation3 + $0xd0] sm:$0xff]
    %v3006 = vld [vmem:[#allocation3 + $0xd8] sm:$0xff]
    %v3007 = vld [vmem:[#allocation3 + $0xe0] sm:$0xff]
    %v3008 = vld [vmem:[#allocation3 + $0xe8] sm:$0xff]
    %v3009 = vld [vmem:[#allocation3 + $0xf0] sm:$0xff]
    %v3010 = vld [vmem:[#allocation3 + $0xf8] sm:$0xff]
    %v3011 = vld [vmem:[#allocation3 + $0x100] sm:$0xff]
    %v3012 = vld [vmem:[#allocation3 + $0x108] sm:$0xff]
    %v3013 = vld [vmem:[#allocation3 + $0x110] sm:$0xff]
    %v3014 = vld [vmem:[#allocation3 + $0x118] sm:$0xff]
    %v3015 = vld [vmem:[#allocation3 + $0x120] sm:$0xff]
    %v3016 = vld [vmem:[#allocation3 + $0x128] sm:$0xff]
    %v3017 = vld [vmem:[#allocation3 + $0x130] sm:$0xff]
    %v3018 = vld [vmem:[#allocation3 + $0x138] sm:$0xff]
    %v3019 = vld [vmem:[#allocation3 + $0x140] sm:$0xff]
    %v3020 = vld [vmem:[#allocation3 + $0x148] sm:$0xff]
    %v3021 = vld [vmem:[#allocation3 + $0x150] sm:$0xff]
    %v3022 = vld [vmem:[#allocation3 + $0x158] sm:$0xff]
    %v3023 = vld [vmem:[#allocation3 + $0x160] sm:$0xff]
    %v3024 = vld [vmem:[#allocation3 + $0x168] sm:$0xff]
    %v3025 = vld [vmem:[#allocation3 + $0x170] sm:$0xff]
    %v3026 = vld [vmem:[#allocation3 + $0x178] sm:$0xff]
    %v3027 = vld [vmem:[#allocation3 + $0x180] sm:$0xff]
    %v3028 = vld [vmem:[#allocation3 + $0x188] sm:$0xff]
    %v3029 = vld [vmem:[#allocation3 + $0x190] sm:$0xff]
    %v3030 = vld [vmem:[#allocation3 + $0x198] sm:$0xff]
    %v3031 = vld [vmem:[#allocation3 + $0x1a0] sm:$0xff]
    %v3032 = vld [vmem:[#allocation3 + $0x1a8] sm:$0xff]
    %v3033 = vld [vmem:[#allocation3 + $0x1b0] sm:$0xff]
    %v3034 = vld [vmem:[#allocation3 + $0x1b8] sm:$0xff]
    %v3035 = vld [vmem:[#allocation3 + $0x1c0] sm:$0xff]
    %v3036 = vld [vmem:[#allocation3 + $0x1c8] sm:$0xff]
    %v3037 = vld [vmem:[#allocation3 + $0x1d0] sm:$0xff]
    %v3038 = vld [vmem:[#allocation3 + $0x1d8] sm:$0xff]
    %v3039 = vld [vmem:[#allocation3 + $0x1e0] sm:$0xff]
    %v3040 = vld [vmem:[#allocation3 + $0x1e8] sm:$0xff]
    %v3041 = vld [vmem:[#allocation3 + $0x1f0] sm:$0xff]
    %v3042 = vld [vmem:[#allocation3 + $0x1f8] sm:$0xff]
    %v3043 = vld [vmem:[#allocation3 + $0x200] sm:$0xff]
    %v3044 = vld [vmem:[#allocation3 + $0x208] sm:$0xff]
    %v3045 = vld [vmem:[#allocation3 + $0x210] sm:$0xff]
    %v3046 = vld [vmem:[#allocation3 + $0x218] sm:$0xff]
    %v3047 = vld [vmem:[#allocation3 + $0x220] sm:$0xff]
    %v3048 = vld [vmem:[#allocation3 + $0x228] sm:$0xff]
    %v3049 = vld [vmem:[#allocation3 + $0x230] sm:$0xff]
    %v3050 = vld [vmem:[#allocation3 + $0x238] sm:$0xff]
    %v3051 = vld [vmem:[#allocation3 + $0x240] sm:$0xff]
    %v3052 = vld [vmem:[#allocation3 + $0x248] sm:$0xff]
    %v3053 = vld [vmem:[#allocation3 + $0x250] sm:$0xff]
    %v3054 = vld [vmem:[#allocation3 + $0x258] sm:$0xff]
    %v3055 = vld [vmem:[#allocation3 + $0x260] sm:$0xff]
    %v3056 = vld [vmem:[#allocation3 + $0x268] sm:$0xff]
    %v3057 = vld [vmem:[#allocation3 + $0x270] sm:$0xff]
    %v3058 = vld [vmem:[#allocation3 + $0x278] sm:$0xff]
    %v3059 = vpack.c.bf16 %v2984, %v2979
    %v3060 = vpack.c.bf16 %v2985, %v2980
    %v3061 = vpack.c.bf16 %v2986, %v2981
    %v3062 = vpack.c.bf16 %v2987, %v2982
    %v3063 = vpack.c.bf16 %v2988, %v2983
    %v3064 = vpack.c.bf16 %v2994, %v2989
    %v3065 = vpack.c.bf16 %v2995, %v2990
    %v3066 = vpack.c.bf16 %v2996, %v2991
    %v3067 = vpack.c.bf16 %v2997, %v2992
    %v3068 = vpack.c.bf16 %v2998, %v2993
    %v3069 = vpack.c.bf16 %v3004, %v2999
    %v3070 = vpack.c.bf16 %v3005, %v3000
    %v3071 = vpack.c.bf16 %v3006, %v3001
    %v3072 = vpack.c.bf16 %v3007, %v3002
    %v3073 = vpack.c.bf16 %v3008, %v3003
    %v3074 = vpack.c.bf16 %v3014, %v3009
    %v3075 = vpack.c.bf16 %v3015, %v3010
    %v3076 = vpack.c.bf16 %v3016, %v3011
    %v3077 = vpack.c.bf16 %v3017, %v3012
    %v3078 = vpack.c.bf16 %v3018, %v3013
    %v3079 = vpack.c.bf16 %v3024, %v3019
    %v3080 = vpack.c.bf16 %v3025, %v3020
    %v3081 = vpack.c.bf16 %v3026, %v3021
    %v3082 = vpack.c.bf16 %v3027, %v3022
    %v3083 = vpack.c.bf16 %v3028, %v3023
    %v3084 = vpack.c.bf16 %v3034, %v3029
    %v3085 = vpack.c.bf16 %v3035, %v3030
    %v3086 = vpack.c.bf16 %v3036, %v3031
    %v3087 = vpack.c.bf16 %v3037, %v3032
    %v3088 = vpack.c.bf16 %v3038, %v3033
    %v3089 = vpack.c.bf16 %v3044, %v3039
    %v3090 = vpack.c.bf16 %v3045, %v3040
    %v3091 = vpack.c.bf16 %v3046, %v3041
    %v3092 = vpack.c.bf16 %v3047, %v3042
    %v3093 = vpack.c.bf16 %v3048, %v3043
    %v3094 = vpack.c.bf16 %v3054, %v3049
    %v3095 = vpack.c.bf16 %v3055, %v3050
    %v3096 = vpack.c.bf16 %v3056, %v3051
    %v3097 = vpack.c.bf16 %v3057, %v3052
    %v3098 = vpack.c.bf16 %v3058, %v3053
    %v3099 = vld [vmem:[%s5] sm:$0xf]
    %v3100 = vld [vmem:[%s5 + $0x4] sm:$0xf]
    %v3101 = vld [vmem:[%s5 + $0x8] sm:$0xf]
    %v3102 = vld [vmem:[%s5 + $0xc] sm:$0xf]
    %v3103 = vld [vmem:[%s5 + $0x10] sm:$0xf]
    %v3104 = vld [vmem:[%s5 + $0x14] sm:$0xf]
    %v3105 = vld [vmem:[%s5 + $0x18] sm:$0xf]
    %v3106 = vld [vmem:[%s5 + $0x1c] sm:$0xf]
    %v3107 = vld [vmem:[%s5 + $0x20] sm:$0xf]
    %v3108 = vld [vmem:[%s5 + $0x24] sm:$0xf]
    %v3109 = vld [vmem:[%s5 + $0x28] sm:$0xf]
    %v3110 = vld [vmem:[%s5 + $0x2c] sm:$0xf]
    %v3111 = vld [vmem:[%s5 + $0x30] sm:$0xf]
    %v3112 = vld [vmem:[%s5 + $0x34] sm:$0xf]
    %v3113 = vld [vmem:[%s5 + $0x38] sm:$0xf]
    %v3114 = vld [vmem:[%s5 + $0x3c] sm:$0xf]
    %v3115 = vld [vmem:[%s5 + $0x40] sm:$0xf]
    %v3116 = vld [vmem:[%s5 + $0x44] sm:$0xf]
    %v3117 = vld [vmem:[%s5 + $0x48] sm:$0xf]
    %v3118 = vld [vmem:[%s5 + $0x4c] sm:$0xf]
    %v3119 = vld [vmem:[%s5 + $0x50] sm:$0xf]
    %v3120 = vld [vmem:[%s5 + $0x54] sm:$0xf]
    %v3121 = vld [vmem:[%s5 + $0x58] sm:$0xf]
    %v3122 = vld [vmem:[%s5 + $0x5c] sm:$0xf]
    %v3123 = vld [vmem:[%s5 + $0x60] sm:$0xf]
    %v3124 = vld [vmem:[%s5 + $0x64] sm:$0xf]
    %v3125 = vld [vmem:[%s5 + $0x68] sm:$0xf]
    %v3126 = vld [vmem:[%s5 + $0x6c] sm:$0xf]
    %v3127 = vld [vmem:[%s5 + $0x70] sm:$0xf]
    %v3128 = vld [vmem:[%s5 + $0x74] sm:$0xf]
    %v3129 = vld [vmem:[%s5 + $0x78] sm:$0xf]
    %v3130 = vld [vmem:[%s5 + $0x7c] sm:$0xf]
    %v3131 = vld [vmem:[%s5 + $0x80] sm:$0xf]
    %v3132 = vld [vmem:[%s5 + $0x84] sm:$0xf]
    %v3133 = vld [vmem:[%s5 + $0x88] sm:$0xf]
    %v3134 = vld [vmem:[%s5 + $0x8c] sm:$0xf]
    %v3135 = vld [vmem:[%s5 + $0x90] sm:$0xf]
    %v3136 = vld [vmem:[%s5 + $0x94] sm:$0xf]
    %v3137 = vld [vmem:[%s5 + $0x98] sm:$0xf]
    %v3138 = vld [vmem:[%s5 + $0x9c] sm:$0xf]
    %v3139 = vld [vmem:[%s5 + $0xa0] sm:$0xf]
    %v3140 = vld [vmem:[%s5 + $0xa4] sm:$0xf]
    %v3141 = vld [vmem:[%s5 + $0xa8] sm:$0xf]
    %v3142 = vld [vmem:[%s5 + $0xac] sm:$0xf]
    %v3143 = vld [vmem:[%s5 + $0xb0] sm:$0xf]
    %v3144 = vld [vmem:[%s5 + $0xb4] sm:$0xf]
    %v3145 = vld [vmem:[%s5 + $0xb8] sm:$0xf]
    %v3146 = vld [vmem:[%s5 + $0xbc] sm:$0xf]
    %v3147 = vld [vmem:[%s5 + $0xc0] sm:$0xf]
    %v3148 = vld [vmem:[%s5 + $0xc4] sm:$0xf]
    %v3149 = vld [vmem:[%s5 + $0xc8] sm:$0xf]
    %v3150 = vld [vmem:[%s5 + $0xcc] sm:$0xf]
    %v3151 = vld [vmem:[%s5 + $0xd0] sm:$0xf]
    %v3152 = vld [vmem:[%s5 + $0xd4] sm:$0xf]
    %v3153 = vld [vmem:[%s5 + $0xd8] sm:$0xf]
    %v3154 = vld [vmem:[%s5 + $0xdc] sm:$0xf]
    %v3155 = vld [vmem:[%s5 + $0xe0] sm:$0xf]
    %v3156 = vld [vmem:[%s5 + $0xe4] sm:$0xf]
    %v3157 = vld [vmem:[%s5 + $0xe8] sm:$0xf]
    %v3158 = vld [vmem:[%s5 + $0xec] sm:$0xf]
    %v3159 = vld [vmem:[%s5 + $0xf0] sm:$0xf]
    %v3160 = vld [vmem:[%s5 + $0xf4] sm:$0xf]
    %v3161 = vld [vmem:[%s5 + $0xf8] sm:$0xf]
    %v3162 = vld [vmem:[%s5 + $0xfc] sm:$0xf]
    %v3163 = vld [vmem:[%s5 + $0x100] sm:$0xf]
    %v3164 = vld [vmem:[%s5 + $0x104] sm:$0xf]
    %v3165 = vld [vmem:[%s5 + $0x108] sm:$0xf]
    %v3166 = vld [vmem:[%s5 + $0x10c] sm:$0xf]
    %v3167 = vld [vmem:[%s5 + $0x110] sm:$0xf]
    %v3168 = vld [vmem:[%s5 + $0x114] sm:$0xf]
    %v3169 = vld [vmem:[%s5 + $0x118] sm:$0xf]
    %v3170 = vld [vmem:[%s5 + $0x11c] sm:$0xf]
    %v3171 = vld [vmem:[%s6] sm:$0x1]
    %v3173 = vlaneseq
    %v3174 = vshrl.u32 %v3173, 7
    %v3175 = vsub.s32 0, %v3174
    %v3176 = vrot.slane %v3171, %v3175
    %v3250 = vunpack.c.l.b16 %v3099
    %v3251 = vunpack.c.l.b16 %v3100
    %v3252 = vunpack.c.l.b16 %v3101
    %v3253 = vunpack.c.l.b16 %v3102
    %v3254 = vunpack.c.l.b16 %v3103
    %v3255 = vunpack.c.l.b16 %v3104
    %v3256 = vunpack.c.l.b16 %v3105
    %v3257 = vunpack.c.l.b16 %v3106
    %v3258 = vunpack.c.l.b16 %v3107
    %v3259 = vunpack.c.l.b16 %v3108
    %v3260 = vunpack.c.l.b16 %v3109
    %v3261 = vunpack.c.l.b16 %v3110
    %v3262 = vunpack.c.l.b16 %v3111
    %v3263 = vunpack.c.l.b16 %v3112
    %v3264 = vunpack.c.l.b16 %v3113
    %v3265 = vunpack.c.l.b16 %v3114
    %v3266 = vunpack.c.l.b16 %v3115
    %v3267 = vunpack.c.l.b16 %v3116
    %v3268 = vunpack.c.l.b16 %v3117
    %v3269 = vunpack.c.l.b16 %v3118
    %v3270 = vunpack.c.l.b16 %v3119
    %v3271 = vunpack.c.l.b16 %v3120
    %v3272 = vunpack.c.l.b16 %v3121
    %v3273 = vunpack.c.l.b16 %v3122
    %v3274 = vunpack.c.l.b16 %v3123
    %v3275 = vunpack.c.l.b16 %v3124
    %v3276 = vunpack.c.l.b16 %v3125
    %v3277 = vunpack.c.l.b16 %v3126
    %v3278 = vunpack.c.l.b16 %v3127
    %v3279 = vunpack.c.l.b16 %v3128
    %v3280 = vunpack.c.l.b16 %v3129
    %v3281 = vunpack.c.l.b16 %v3130
    %v3282 = vunpack.c.l.b16 %v3131
    %v3283 = vunpack.c.l.b16 %v3132
    %v3284 = vunpack.c.l.b16 %v3133
    %v3285 = vunpack.c.l.b16 %v3134
    %v3286 = vunpack.c.l.b16 %v3135
    %v3287 = vunpack.c.l.b16 %v3136
    %v3288 = vunpack.c.l.b16 %v3137
    %v3289 = vunpack.c.l.b16 %v3138
    %v3290 = vunpack.c.l.b16 %v3139
    %v3291 = vunpack.c.l.b16 %v3140
    %v3292 = vunpack.c.l.b16 %v3141
    %v3293 = vunpack.c.l.b16 %v3142
    %v3294 = vunpack.c.l.b16 %v3143
    %v3295 = vunpack.c.l.b16 %v3144
    %v3296 = vunpack.c.l.b16 %v3145
    %v3297 = vunpack.c.l.b16 %v3146
    %v3298 = vunpack.c.l.b16 %v3147
    %v3299 = vunpack.c.l.b16 %v3148
    %v3300 = vunpack.c.l.b16 %v3149
    %v3301 = vunpack.c.l.b16 %v3150
    %v3302 = vunpack.c.l.b16 %v3151
    %v3303 = vunpack.c.l.b16 %v3152
    %v3304 = vunpack.c.l.b16 %v3153
    %v3305 = vunpack.c.l.b16 %v3154
    %v3306 = vunpack.c.l.b16 %v3155
    %v3307 = vunpack.c.l.b16 %v3156
    %v3308 = vunpack.c.l.b16 %v3157
    %v3309 = vunpack.c.l.b16 %v3158
    %v3310 = vunpack.c.l.b16 %v3159
    %v3311 = vunpack.c.l.b16 %v3160
    %v3312 = vunpack.c.l.b16 %v3161
    %v3313 = vunpack.c.l.b16 %v3162
    %v3314 = vunpack.c.l.b16 %v3163
    %v3315 = vunpack.c.l.b16 %v3164
    %v3316 = vunpack.c.l.b16 %v3165
    %v3317 = vunpack.c.l.b16 %v3166
    %v3318 = vunpack.c.l.b16 %v3167
    %v3319 = vunpack.c.l.b16 %v3168
    %v3320 = vunpack.c.l.b16 %v3169
    %v3321 = vunpack.c.l.b16 %v3170
    %v3322 = vpack.c.b16 %v3251, %v3250
    %v3323 = vpack.c.b16 %v3253, %v3252
    %v3324 = vpack.c.b16 %v3255, %v3254
    %v3325 = vpack.c.b16 %v3257, %v3256
    %v3326 = vpack.c.b16 %v3259, %v3258
    %v3327 = vpack.c.b16 %v3261, %v3260
    %v3328 = vpack.c.b16 %v3263, %v3262
    %v3329 = vpack.c.b16 %v3265, %v3264
    %v3330 = vpack.c.b16 %v3267, %v3266
    %v3331 = vpack.c.b16 %v3269, %v3268
    %v3332 = vpack.c.b16 %v3271, %v3270
    %v3333 = vpack.c.b16 %v3273, %v3272
    %v3334 = vpack.c.b16 %v3275, %v3274
    %v3335 = vpack.c.b16 %v3277, %v3276
    %v3336 = vpack.c.b16 %v3279, %v3278
    %v3337 = vpack.c.b16 %v3281, %v3280
    %v3338 = vpack.c.b16 %v3283, %v3282
    %v3339 = vpack.c.b16 %v3285, %v3284
    %v3340 = vpack.c.b16 %v3287, %v3286
    %v3341 = vpack.c.b16 %v3289, %v3288
    %v3342 = vpack.c.b16 %v3291, %v3290
    %v3343 = vpack.c.b16 %v3293, %v3292
    %v3344 = vpack.c.b16 %v3295, %v3294
    %v3345 = vpack.c.b16 %v3297, %v3296
    %v3346 = vpack.c.b16 %v3299, %v3298
    %v3347 = vpack.c.b16 %v3301, %v3300
    %v3348 = vpack.c.b16 %v3303, %v3302
    %v3349 = vpack.c.b16 %v3305, %v3304
    %v3350 = vpack.c.b16 %v3307, %v3306
    %v3351 = vpack.c.b16 %v3309, %v3308
    %v3352 = vpack.c.b16 %v3311, %v3310
    %v3353 = vpack.c.b16 %v3313, %v3312
    %v3354 = vpack.c.b16 %v3315, %v3314
    %v3355 = vpack.c.b16 %v3317, %v3316
    %v3356 = vpack.c.b16 %v3319, %v3318
    %v3357 = vpack.c.b16 %v3321, %v3320
    %v3395 = vsel %vm44, %v3063, 0
    %v3398 = vsel %vm44, %v3068, 0
    %v3401 = vsel %vm44, %v3073, 0
    %v3404 = vsel %vm44, %v3078, 0
    %v3407 = vsel %vm44, %v3083, 0
    %v3410 = vsel %vm44, %v3088, 0
    %v3413 = vsel %vm44, %v3093, 0
    %v3416 = vsel %vm44, %v3098, 0
    %3418 = vmatprep.subr.bf16.mxu0 0
    %3419 = vmatpush1.bf16.msra.mxu0 %v3322
    %3420 = vmatprep.subr.bf16.mxu0 0
    %3421 = vmatpush1.bf16.msra.mxu0 %v3323
    %3422 = vmatprep.subr.bf16.mxu0 0
    %3423 = vmatpush1.bf16.msra.mxu0 %v3324
    %3424 = vmatprep.subr.bf16.mxu0 0
    %3425 = vmatpush1.bf16.msra.mxu0 %v3325
    %3426 = vmatprep.subr.bf16.mxu0 0
    %3427 = vmatpush1.bf16.msra.mxu0 %v3326
    %3428 = vmatprep.subr.bf16.mxu0 0
    %3429 = vmatpush1.bf16.msra.mxu0 %v3327
    %3430 = vmatprep.subr.bf16.mxu0 0
    %3431 = vmatpush1.bf16.msra.mxu0 %v3328
    %3432 = vmatprep.subr.bf16.mxu0 0
    %3433 = vmatpush1.bf16.msra.mxu0 %v3329
    %3434 = vmatprep.subr.bf16.mxu0 0
    %3435 = vmatpush1.bf16.msra.mxu0 %v3330
    %3436 = vmatprep.subr.bf16.mxu0 0
    %3437 = vmatpush1.bf16.msra.mxu0 %v3331
    %3438 = vmatprep.subr.bf16.mxu0 0
    %3439 = vmatpush1.bf16.msra.mxu0 %v3332
    %3440 = vmatprep.subr.bf16.mxu0 0
    %3441 = vmatpush1.bf16.msra.mxu0 %v3333
    %3442 = vmatprep.subr.bf16.mxu0 0
    %3443 = vmatpush1.bf16.msra.mxu0 %v3334
    %3444 = vmatprep.subr.bf16.mxu0 0
    %3445 = vmatpush1.bf16.msra.mxu0 %v3335
    %3446 = vmatprep.subr.bf16.mxu0 0
    %3447 = vmatpush1.bf16.msra.mxu0 %v3336
    %3448 = vmatprep.subr.bf16.mxu0 0
    %3449 = vmatpush1.bf16.msra.mxu0 %v3337
    %3450 = vmatprep.mubr.bf16.mxu0 %v3060
    %3451 = vmatmul.mubr.bf16.gmra.mrb[0].mxu0 %v3059
    %v3452 = vpop.f32.mrb[0].mxu0
    %v3453 = vadd.f32 %v3176, %v3452
    %v3454 = vpop.f32.mrb[0].mxu0
    %v3455 = vpop.f32.mrb[0].mxu0
    %v3456 = vadd.f32 %v3176, %v3455
    %v3457 = vpop.f32.mrb[0].mxu0
    %3458 = vmatprep.mubr.bf16.mxu0 %v3065
    %3459 = vmatmul.mubr.bf16.gmra.mrb[0].mxu0 %v3064
    %v3460 = vpop.f32.mrb[0].mxu0
    %v3461 = vadd.f32 %v3176, %v3460
    %v3462 = vpop.f32.mrb[0].mxu0
    %v3463 = vpop.f32.mrb[0].mxu0
    %v3464 = vadd.f32 %v3176, %v3463
    %v3465 = vpop.f32.mrb[0].mxu0
    %3466 = vmatprep.mubr.bf16.mxu0 %v3070
    %3467 = vmatmul.mubr.bf16.gmra.mrb[0].mxu0 %v3069
    %v3468 = vpop.f32.mrb[0].mxu0
    %v3469 = vadd.f32 %v3176, %v3468
    %v3470 = vpop.f32.mrb[0].mxu0
    %v3471 = vpop.f32.mrb[0].mxu0
    %v3472 = vadd.f32 %v3176, %v3471
    %v3473 = vpop.f32.mrb[0].mxu0
    %3474 = vmatprep.mubr.bf16.mxu0 %v3075
    %3475 = vmatmul.mubr.bf16.gmra.mrb[0].mxu0 %v3074
    %v3476 = vpop.f32.mrb[0].mxu0
    %v3477 = vadd.f32 %v3176, %v3476
    %v3478 = vpop.f32.mrb[0].mxu0
    %v3479 = vpop.f32.mrb[0].mxu0
    %v3480 = vadd.f32 %v3176, %v3479
    %v3481 = vpop.f32.mrb[0].mxu0
    %3482 = vmatprep.mubr.bf16.mxu0 %v3080
    %3483 = vmatmul.mubr.bf16.gmra.mrb[0].mxu0 %v3079
    %v3484 = vpop.f32.mrb[0].mxu0
    %v3485 = vadd.f32 %v3176, %v3484
    %v3486 = vpop.f32.mrb[0].mxu0
    %v3487 = vpop.f32.mrb[0].mxu0
    %v3488 = vadd.f32 %v3176, %v3487
    %v3489 = vpop.f32.mrb[0].mxu0
    %3490 = vmatprep.mubr.bf16.mxu0 %v3085
    %3491 = vmatmul.mubr.bf16.gmra.mrb[0].mxu0 %v3084
    %v3492 = vpop.f32.mrb[0].mxu0
    %v3493 = vadd.f32 %v3176, %v3492
    %v3494 = vpop.f32.mrb[0].mxu0
    %v3495 = vpop.f32.mrb[0].mxu0
    %v3496 = vadd.f32 %v3176, %v3495
    %v3497 = vpop.f32.mrb[0].mxu0
    %3498 = vmatprep.mubr.bf16.mxu0 %v3090
    %3499 = vmatmul.mubr.bf16.gmra.mrb[0].mxu0 %v3089
    %v3500 = vpop.f32.mrb[0].mxu0
    %v3501 = vadd.f32 %v3176, %v3500
    %v3502 = vpop.f32.mrb[0].mxu0
    %v3503 = vpop.f32.mrb[0].mxu0
    %v3504 = vadd.f32 %v3176, %v3503
    %v3505 = vpop.f32.mrb[0].mxu0
    %3506 = vmatprep.mubr.bf16.mxu0 %v3095
    %3507 = vmatmul.mubr.bf16.gmra.mrb[0].mxu0 %v3094
    %v3508 = vpop.f32.mrb[0].mxu0
    %v3509 = vadd.f32 %v3176, %v3508
    %v3510 = vpop.f32.mrb[0].mxu0
    %v3511 = vpop.f32.mrb[0].mxu0
    %v3512 = vadd.f32 %v3176, %v3511
    %v3513 = vpop.f32.mrb[0].mxu0
    %3514 = vdwg.mxu0
    %3515 = vmatprep.subr.bf16.mxu0 0
    %3516 = vmatpush1.bf16.msra.mxu0 %v3338
    %3517 = vmatprep.subr.bf16.mxu0 0
    %3518 = vmatpush1.bf16.msra.mxu0 %v3339
    %3519 = vmatprep.subr.bf16.mxu0 0
    %3520 = vmatpush1.bf16.msra.mxu0 %v3340
    %3521 = vmatprep.subr.bf16.mxu0 0
    %3522 = vmatpush1.bf16.msra.mxu0 %v3341
    %3523 = vmatprep.subr.bf16.mxu0 0
    %3524 = vmatpush1.bf16.msra.mxu0 %v3342
    %3525 = vmatprep.subr.bf16.mxu0 0
    %3526 = vmatpush1.bf16.msra.mxu0 %v3343
    %3527 = vmatprep.subr.bf16.mxu0 0
    %3528 = vmatpush1.bf16.msra.mxu0 %v3344
    %3529 = vmatprep.subr.bf16.mxu0 0
    %3530 = vmatpush1.bf16.msra.mxu0 %v3345
    %3531 = vmatprep.subr.bf16.mxu0 0
    %3532 = vmatpush1.bf16.msra.mxu0 %v3346
    %3533 = vmatprep.subr.bf16.mxu0 0
    %3534 = vmatpush1.bf16.msra.mxu0 %v3347
    %3535 = vmatprep.subr.bf16.mxu0 0
    %3536 = vmatpush1.bf16.msra.mxu0 %v3348
    %3537 = vmatprep.subr.bf16.mxu0 0
    %3538 = vmatpush1.bf16.msra.mxu0 %v3349
    %3539 = vmatprep.subr.bf16.mxu0 0
    %3540 = vmatpush1.bf16.msra.mxu0 %v3350
    %3541 = vmatprep.subr.bf16.mxu0 0
    %3542 = vmatpush1.bf16.msra.mxu0 %v3351
    %3543 = vmatprep.subr.bf16.mxu0 0
    %3544 = vmatpush1.bf16.msra.mxu0 %v3352
    %3545 = vmatprep.subr.bf16.mxu0 0
    %3546 = vmatpush1.bf16.msra.mxu0 %v3353
    %3547 = vmatprep.mubr.bf16.mxu0 %v3062
    %3548 = vmatmul.mubr.bf16.gmra.mrb[0].mxu0 %v3061
    %v3549 = vpop.f32.mrb[0].mxu0
    %v3550 = vadd.f32 %v3453, %v3549
    %v3551 = vpop.f32.mrb[0].mxu0
    %v3552 = vpop.f32.mrb[0].mxu0
    %v3553 = vadd.f32 %v3456, %v3552
    %v3554 = vpop.f32.mrb[0].mxu0
    %3555 = vmatprep.mubr.bf16.mxu0 %v3067
    %3556 = vmatmul.mubr.bf16.gmra.mrb[0].mxu0 %v3066
    %v3557 = vpop.f32.mrb[0].mxu0
    %v3558 = vadd.f32 %v3461, %v3557
    %v3559 = vpop.f32.mrb[0].mxu0
    %v3560 = vpop.f32.mrb[0].mxu0
    %v3561 = vadd.f32 %v3464, %v3560
    %v3562 = vpop.f32.mrb[0].mxu0
    %3563 = vmatprep.mubr.bf16.mxu0 %v3072
    %3564 = vmatmul.mubr.bf16.gmra.mrb[0].mxu0 %v3071
    %v3565 = vpop.f32.mrb[0].mxu0
    %v3566 = vadd.f32 %v3469, %v3565
    %v3567 = vpop.f32.mrb[0].mxu0
    %v3568 = vpop.f32.mrb[0].mxu0
    %v3569 = vadd.f32 %v3472, %v3568
    %v3570 = vpop.f32.mrb[0].mxu0
    %3571 = vmatprep.mubr.bf16.mxu0 %v3077
    %3572 = vmatmul.mubr.bf16.gmra.mrb[0].mxu0 %v3076
    %v3573 = vpop.f32.mrb[0].mxu0
    %v3574 = vadd.f32 %v3477, %v3573
    %v3575 = vpop.f32.mrb[0].mxu0
    %v3576 = vpop.f32.mrb[0].mxu0
    %v3577 = vadd.f32 %v3480, %v3576
    %v3578 = vpop.f32.mrb[0].mxu0
    %3579 = vmatprep.mubr.bf16.mxu0 %v3082
    %3580 = vmatmul.mubr.bf16.gmra.mrb[0].mxu0 %v3081
    %v3581 = vpop.f32.mrb[0].mxu0
    %v3582 = vadd.f32 %v3485, %v3581
    %v3583 = vpop.f32.mrb[0].mxu0
    %v3584 = vpop.f32.mrb[0].mxu0
    %v3585 = vadd.f32 %v3488, %v3584
    %v3586 = vpop.f32.mrb[0].mxu0
    %3587 = vmatprep.mubr.bf16.mxu0 %v3087
    %3588 = vmatmul.mubr.bf16.gmra.mrb[0].mxu0 %v3086
    %v3589 = vpop.f32.mrb[0].mxu0
    %v3590 = vadd.f32 %v3493, %v3589
    %v3591 = vpop.f32.mrb[0].mxu0
    %v3592 = vpop.f32.mrb[0].mxu0
    %v3593 = vadd.f32 %v3496, %v3592
    %v3594 = vpop.f32.mrb[0].mxu0
    %3595 = vmatprep.mubr.bf16.mxu0 %v3092
    %3596 = vmatmul.mubr.bf16.gmra.mrb[0].mxu0 %v3091
    %v3597 = vpop.f32.mrb[0].mxu0
    %v3598 = vadd.f32 %v3501, %v3597
    %v3599 = vpop.f32.mrb[0].mxu0
    %v3600 = vpop.f32.mrb[0].mxu0
    %v3601 = vadd.f32 %v3504, %v3600
    %v3602 = vpop.f32.mrb[0].mxu0
    %3603 = vmatprep.mubr.bf16.mxu0 %v3097
    %3604 = vmatmul.mubr.bf16.gmra.mrb[0].mxu0 %v3096
    %v3605 = vpop.f32.mrb[0].mxu0
    %v3606 = vadd.f32 %v3509, %v3605
    %v3607 = vpop.f32.mrb[0].mxu0
    %v3608 = vpop.f32.mrb[0].mxu0
    %v3609 = vadd.f32 %v3512, %v3608
    %v3610 = vpop.f32.mrb[0].mxu0
    %3611 = vdwg.mxu0
    %3612 = vmatprep.subr.bf16.mxu0 0
    %3613 = vmatpush1.bf16.msra.mxu0 %v3354
    %3614 = vmatprep.subr.bf16.mxu0 0
    %3615 = vmatpush1.bf16.msra.mxu0 %v3355
    %3616 = vmatprep.subr.bf16.mxu0 0
    %3617 = vmatpush1.bf16.msra.mxu0 %v3356
    %3618 = vmatprep.subr.bf16.mxu0 0
    %3619 = vmatpush1.bf16.msra.mxu0 %v3357
    %3620 = vmatprep.subr.bf16.mxu0 0
    %3621 = vmatpush1.bf16.msra.mxu0 0
    %3622 = vmatprep.subr.bf16.mxu0 0
    %3623 = vmatpush1.bf16.msra.mxu0 0
    %3624 = vmatprep.subr.bf16.mxu0 0
    %3625 = vmatpush1.bf16.msra.mxu0 0
    %3626 = vmatprep.subr.bf16.mxu0 0
    %3627 = vmatpush1.bf16.msra.mxu0 0
    %3628 = vmatprep.subr.bf16.mxu0 0
    %3629 = vmatpush1.bf16.msra.mxu0 0
    %3630 = vmatprep.subr.bf16.mxu0 0
    %3631 = vmatpush1.bf16.msra.mxu0 0
    %3632 = vmatprep.subr.bf16.mxu0 0
    %3633 = vmatpush1.bf16.msra.mxu0 0
    %3634 = vmatprep.subr.bf16.mxu0 0
    %3635 = vmatpush1.bf16.msra.mxu0 0
    %3636 = vmatprep.subr.bf16.mxu0 0
    %3637 = vmatpush1.bf16.msra.mxu0 0
    %3638 = vmatprep.subr.bf16.mxu0 0
    %3639 = vmatpush1.bf16.msra.mxu0 0
    %3640 = vmatprep.subr.bf16.mxu0 0
    %3641 = vmatpush1.bf16.msra.mxu0 0
    %3642 = vmatprep.subr.bf16.mxu0 0
    %3643 = vmatpush1.bf16.msra.mxu0 0
    %3644 = vmatprep.mubr.bf16.mxu0 0
    %3645 = vmatmul.mubr.bf16.gmra.mrb[0].mxu0 %v3395
    %v3646 = vpop.f32.mrb[0].mxu0
    %v3647 = vadd.f32 %v3550, %v3646
    %v3648 = vpop.f32.mrb[0].mxu0
    %v3649 = vpop.f32.mrb[0].mxu0
    %v3650 = vadd.f32 %v3553, %v3649
    %v3651 = vpop.f32.mrb[0].mxu0
    %3652 = vmatprep.mubr.bf16.mxu0 0
    %3653 = vmatmul.mubr.bf16.gmra.mrb[0].mxu0 %v3398
    %v3654 = vpop.f32.mrb[0].mxu0
    %v3655 = vadd.f32 %v3558, %v3654
    %v3656 = vpop.f32.mrb[0].mxu0
    %v3657 = vpop.f32.mrb[0].mxu0
    %v3658 = vadd.f32 %v3561, %v3657
    %v3659 = vpop.f32.mrb[0].mxu0
    %3660 = vmatprep.mubr.bf16.mxu0 0
    %3661 = vmatmul.mubr.bf16.gmra.mrb[0].mxu0 %v3401
    %v3662 = vpop.f32.mrb[0].mxu0
    %v3663 = vadd.f32 %v3566, %v3662
    %v3664 = vpop.f32.mrb[0].mxu0
    %v3665 = vpop.f32.mrb[0].mxu0
    %v3666 = vadd.f32 %v3569, %v3665
    %v3667 = vpop.f32.mrb[0].mxu0
    %3668 = vmatprep.mubr.bf16.mxu0 0
    %3669 = vmatmul.mubr.bf16.gmra.mrb[0].mxu0 %v3404
    %v3670 = vpop.f32.mrb[0].mxu0
    %v3671 = vadd.f32 %v3574, %v3670
    %v3672 = vpop.f32.mrb[0].mxu0
    %v3673 = vpop.f32.mrb[0].mxu0
    %v3674 = vadd.f32 %v3577, %v3673
    %v3675 = vpop.f32.mrb[0].mxu0
    %3676 = vmatprep.mubr.bf16.mxu0 0
    %3677 = vmatmul.mubr.bf16.gmra.mrb[0].mxu0 %v3407
    %v3678 = vpop.f32.mrb[0].mxu0
    %v3679 = vadd.f32 %v3582, %v3678
    %v3680 = vpop.f32.mrb[0].mxu0
    %v3681 = vpop.f32.mrb[0].mxu0
    %v3682 = vadd.f32 %v3585, %v3681
    %v3683 = vpop.f32.mrb[0].mxu0
    %3684 = vmatprep.mubr.bf16.mxu0 0
    %3685 = vmatmul.mubr.bf16.gmra.mrb[0].mxu0 %v3410
    %v3686 = vpop.f32.mrb[0].mxu0
    %v3687 = vadd.f32 %v3590, %v3686
    %v3688 = vpop.f32.mrb[0].mxu0
    %v3689 = vpop.f32.mrb[0].mxu0
    %v3690 = vadd.f32 %v3593, %v3689
    %v3691 = vpop.f32.mrb[0].mxu0
    %3692 = vmatprep.mubr.bf16.mxu0 0
    %3693 = vmatmul.mubr.bf16.gmra.mrb[0].mxu0 %v3413
    %v3694 = vpop.f32.mrb[0].mxu0
    %v3695 = vadd.f32 %v3598, %v3694
    %v3696 = vpop.f32.mrb[0].mxu0
    %v3697 = vpop.f32.mrb[0].mxu0
    %v3698 = vadd.f32 %v3601, %v3697
    %v3699 = vpop.f32.mrb[0].mxu0
    %3700 = vmatprep.mubr.bf16.mxu0 0
    %3701 = vmatmul.mubr.bf16.gmra.mrb[0].mxu0 %v3416
    %v3702 = vpop.f32.mrb[0].mxu0
    %v3703 = vadd.f32 %v3606, %v3702
    %v3704 = vpop.f32.mrb[0].mxu0
    %v3705 = vpop.f32.mrb[0].mxu0
    %v3706 = vadd.f32 %v3609, %v3705
    %v3707 = vpop.f32.mrb[0].mxu0
    %3708 = vdwg.mxu0
    %v3709 = vmax.f32 %v3647, 0.0
    %v3710 = vmax.f32 %v3650, 0.0
    %v3711 = vmax.f32 %v3655, 0.0
    %v3712 = vmax.f32 %v3658, 0.0
    %v3713 = vmax.f32 %v3663, 0.0
    %v3714 = vmax.f32 %v3666, 0.0
    %v3715 = vmax.f32 %v3671, 0.0
    %v3716 = vmax.f32 %v3674, 0.0
    %v3717 = vmax.f32 %v3679, 0.0
    %v3718 = vmax.f32 %v3682, 0.0
    %v3719 = vmax.f32 %v3687, 0.0
    %v3720 = vmax.f32 %v3690, 0.0
    %v3721 = vmax.f32 %v3695, 0.0
    %v3722 = vmax.f32 %v3698, 0.0
    %v3723 = vmax.f32 %v3703, 0.0
    %v3724 = vmax.f32 %v3706, 0.0
    %v3728 = vunpack.c.l.s4 1983009808
    %v3729 = vunpack.c.0.s8 %v3728
    %v3730 = vlaneseq
    %v3731 = vshrl.u32 %v3730, 7
    %v3732 = vsub.s32 %v3729, %v3731
    %v3733 = vrot.slane %v3709, %v3732
    %v3735 = vunpack.c.l.s4 1983009808
    %v3736 = vunpack.c.0.s8 %v3735
    %v3737 = vlaneseq
    %v3738 = vshrl.u32 %v3737, 7
    %v3739 = vsub.s32 %v3736, %v3738
    %v3740 = vrot.slane %v3717, %v3739
    %vm3741 = vcmask 1044484
    %v3742 = vsel %vm3741, %v3733, %v3733
    %vm3743 = vcmask 1046534
    %v3744 = vsel %vm3743, %v3733, %v3742
    %v3745 = vrot.slane %v3740, 7
    %vm3746 = vcmask 1041409
    %v3747 = vsel %vm3746, %v3745, %v3744
    %vm3748 = vcmask 1043459
    %v3749 = vsel %vm3748, %v3745, %v3747
    %vm3750 = vcmask 1045509
    %v3751 = vsel %vm3750, %v3745, %v3749
    %vm3752 = vcmask 1047559
    %v3753 = vsel %vm3752, %v3745, %v3751
    %3755 = vst.msk [vmem:[#allocation4] sm:$0x3] %vm46, %v3753
    %v3756 = vrot.slane %v3733, 1
    %v3757 = vsel %vm3741, %v3756, %v3756
    %v3758 = vsel %vm3743, %v3756, %v3757
    %v3759 = vsel %vm3746, %v3740, %v3758
    %v3760 = vsel %vm3748, %v3740, %v3759
    %v3761 = vsel %vm3750, %v3740, %v3760
    %v3762 = vsel %vm3752, %v3740, %v3761
    %3763 = vrot.lane.b32.xlu0 %v3762, 64
    %v3764 = vpop.permute.xlu0 %3763
    %vm3766 = vcmask 1041920
    %3767 = vst.msk [vmem:[#allocation4] sm:$0x3] %vm3766, %v3764
    %v3768 = vcombine.high %v3733, %v3733
    %v3769 = vcombine.high %v3740, %v3740
    %v3770 = vsel %vm3741, %v3768, %v3768
    %v3771 = vsel %vm3743, %v3768, %v3770
    %v3772 = vrot.slane %v3769, 7
    %v3773 = vsel %vm3746, %v3772, %v3771
    %v3774 = vsel %vm3748, %v3772, %v3773
    %v3775 = vsel %vm3750, %v3772, %v3774
    %v3776 = vsel %vm3752, %v3772, %v3775
    %3778 = vst.msk [vmem:[#allocation4 + $0x2] sm:$0x3] %vm46, %v3776
    %v3779 = vrot.slane %v3768, 1
    %v3780 = vsel %vm3741, %v3779, %v3779
    %v3781 = vsel %vm3743, %v3779, %v3780
    %v3782 = vsel %vm3746, %v3769, %v3781
    %v3783 = vsel %vm3748, %v3769, %v3782
    %v3784 = vsel %vm3750, %v3769, %v3783
    %v3785 = vsel %vm3752, %v3769, %v3784
    %3786 = vrot.lane.b32.xlu0 %v3785, 64
    %v3787 = vpop.permute.xlu0 %3786
    %3789 = vst.msk [vmem:[#allocation4 + $0x2] sm:$0x3] %vm3766, %v3787
    %v3790 = vcombine.high %v3709, %v3709
    %v3792 = vunpack.c.l.s4 1983009808
    %v3793 = vunpack.c.0.s8 %v3792
    %v3794 = vlaneseq
    %v3795 = vshrl.u32 %v3794, 7
    %v3796 = vsub.s32 %v3793, %v3795
    %v3797 = vrot.slane %v3790, %v3796
    %v3798 = vcombine.high %v3717, %v3717
    %v3800 = vunpack.c.l.s4 1983009808
    %v3801 = vunpack.c.0.s8 %v3800
    %v3802 = vlaneseq
    %v3803 = vshrl.u32 %v3802, 7
    %v3804 = vsub.s32 %v3801, %v3803
    %v3805 = vrot.slane %v3798, %v3804
    %v3806 = vsel %vm3741, %v3797, %v3797
    %v3807 = vsel %vm3743, %v3797, %v3806
    %v3808 = vrot.slane %v3805, 7
    %v3809 = vsel %vm3746, %v3808, %v3807
    %v3810 = vsel %vm3748, %v3808, %v3809
    %v3811 = vsel %vm3750, %v3808, %v3810
    %v3812 = vsel %vm3752, %v3808, %v3811
    %3814 = vst.msk [vmem:[#allocation4 + $0x4] sm:$0x3] %vm46, %v3812
    %v3815 = vrot.slane %v3797, 1
    %v3816 = vsel %vm3741, %v3815, %v3815
    %v3817 = vsel %vm3743, %v3815, %v3816
    %v3818 = vsel %vm3746, %v3805, %v3817
    %v3819 = vsel %vm3748, %v3805, %v3818
    %v3820 = vsel %vm3750, %v3805, %v3819
    %v3821 = vsel %vm3752, %v3805, %v3820
    %3822 = vrot.lane.b32.xlu0 %v3821, 64
    %v3823 = vpop.permute.xlu0 %3822
    %3825 = vst.msk [vmem:[#allocation4 + $0x4] sm:$0x3] %vm3766, %v3823
    %v3826 = vcombine.high %v3797, %v3797
    %v3827 = vcombine.high %v3805, %v3805
    %v3828 = vsel %vm3741, %v3826, %v3826
    %v3829 = vsel %vm3743, %v3826, %v3828
    %v3830 = vrot.slane %v3827, 7
    %v3831 = vsel %vm3746, %v3830, %v3829
    %v3832 = vsel %vm3748, %v3830, %v3831
    %v3833 = vsel %vm3750, %v3830, %v3832
    %v3834 = vsel %vm3752, %v3830, %v3833
    %3836 = vst.msk [vmem:[#allocation4 + $0x6] sm:$0x3] %vm46, %v3834
    %v3837 = vrot.slane %v3826, 1
    %v3838 = vsel %vm3741, %v3837, %v3837
    %v3839 = vsel %vm3743, %v3837, %v3838
    %v3840 = vsel %vm3746, %v3827, %v3839
    %v3841 = vsel %vm3748, %v3827, %v3840
    %v3842 = vsel %vm3750, %v3827, %v3841
    %v3843 = vsel %vm3752, %v3827, %v3842
    %3844 = vrot.lane.b32.xlu0 %v3843, 64
    %v3845 = vpop.permute.xlu0 %3844
    %3847 = vst.msk [vmem:[#allocation4 + $0x6] sm:$0x3] %vm3766, %v3845
    %v3851 = vunpack.c.l.s4 1983009808
    %v3852 = vunpack.c.0.s8 %v3851
    %v3853 = vlaneseq
    %v3854 = vshrl.u32 %v3853, 7
    %v3855 = vsub.s32 %v3852, %v3854
    %v3856 = vrot.slane %v3710, %v3855
    %v3858 = vunpack.c.l.s4 1983009808
    %v3859 = vunpack.c.0.s8 %v3858
    %v3860 = vlaneseq
    %v3861 = vshrl.u32 %v3860, 7
    %v3862 = vsub.s32 %v3859, %v3861
    %v3863 = vrot.slane %v3718, %v3862
    %v3864 = vsel %vm3741, %v3856, %v3856
    %v3865 = vsel %vm3743, %v3856, %v3864
    %v3866 = vrot.slane %v3863, 7
    %v3867 = vsel %vm3746, %v3866, %v3865
    %v3868 = vsel %vm3748, %v3866, %v3867
    %v3869 = vsel %vm3750, %v3866, %v3868
    %v3870 = vsel %vm3752, %v3866, %v3869
    %3872 = vst.msk [vmem:[#allocation4 + $0x8] sm:$0x3] %vm46, %v3870
    %v3873 = vrot.slane %v3856, 1
    %v3874 = vsel %vm3741, %v3873, %v3873
    %v3875 = vsel %vm3743, %v3873, %v3874
    %v3876 = vsel %vm3746, %v3863, %v3875
    %v3877 = vsel %vm3748, %v3863, %v3876
    %v3878 = vsel %vm3750, %v3863, %v3877
    %v3879 = vsel %vm3752, %v3863, %v3878
    %3880 = vrot.lane.b32.xlu0 %v3879, 64
    %v3881 = vpop.permute.xlu0 %3880
    %3883 = vst.msk [vmem:[#allocation4 + $0x8] sm:$0x3] %vm3766, %v3881
    %v3884 = vcombine.high %v3856, %v3856
    %v3885 = vcombine.high %v3863, %v3863
    %v3886 = vsel %vm3741, %v3884, %v3884
    %v3887 = vsel %vm3743, %v3884, %v3886
    %v3888 = vrot.slane %v3885, 7
    %v3889 = vsel %vm3746, %v3888, %v3887
    %v3890 = vsel %vm3748, %v3888, %v3889
    %v3891 = vsel %vm3750, %v3888, %v3890
    %v3892 = vsel %vm3752, %v3888, %v3891
    %3894 = vst.msk [vmem:[#allocation4 + $0xa] sm:$0x3] %vm46, %v3892
    %v3895 = vrot.slane %v3884, 1
    %v3896 = vsel %vm3741, %v3895, %v3895
    %v3897 = vsel %vm3743, %v3895, %v3896
    %v3898 = vsel %vm3746, %v3885, %v3897
    %v3899 = vsel %vm3748, %v3885, %v3898
    %v3900 = vsel %vm3750, %v3885, %v3899
    %v3901 = vsel %vm3752, %v3885, %v3900
    %3902 = vrot.lane.b32.xlu0 %v3901, 64
    %v3903 = vpop.permute.xlu0 %3902
    %3905 = vst.msk [vmem:[#allocation4 + $0xa] sm:$0x3] %vm3766, %v3903
    %v3906 = vcombine.high %v3710, %v3710
    %v3908 = vunpack.c.l.s4 1983009808
    %v3909 = vunpack.c.0.s8 %v3908
    %v3910 = vlaneseq
    %v3911 = vshrl.u32 %v3910, 7
    %v3912 = vsub.s32 %v3909, %v3911
    %v3913 = vrot.slane %v3906, %v3912
    %v3914 = vcombine.high %v3718, %v3718
    %v3916 = vunpack.c.l.s4 1983009808
    %v3917 = vunpack.c.0.s8 %v3916
    %v3918 = vlaneseq
    %v3919 = vshrl.u32 %v3918, 7
    %v3920 = vsub.s32 %v3917, %v3919
    %v3921 = vrot.slane %v3914, %v3920
    %v3922 = vsel %vm3741, %v3913, %v3913
    %v3923 = vsel %vm3743, %v3913, %v3922
    %v3924 = vrot.slane %v3921, 7
    %v3925 = vsel %vm3746, %v3924, %v3923
    %v3926 = vsel %vm3748, %v3924, %v3925
    %v3927 = vsel %vm3750, %v3924, %v3926
    %v3928 = vsel %vm3752, %v3924, %v3927
    %3930 = vst.msk [vmem:[#allocation4 + $0xc] sm:$0x3] %vm46, %v3928
    %v3931 = vrot.slane %v3913, 1
    %v3932 = vsel %vm3741, %v3931, %v3931
    %v3933 = vsel %vm3743, %v3931, %v3932
    %v3934 = vsel %vm3746, %v3921, %v3933
    %v3935 = vsel %vm3748, %v3921, %v3934
    %v3936 = vsel %vm3750, %v3921, %v3935
    %v3937 = vsel %vm3752, %v3921, %v3936
    %3938 = vrot.lane.b32.xlu0 %v3937, 64
    %v3939 = vpop.permute.xlu0 %3938
    %3941 = vst.msk [vmem:[#allocation4 + $0xc] sm:$0x3] %vm3766, %v3939
    %v3942 = vcombine.high %v3913, %v3913
    %v3943 = vcombine.high %v3921, %v3921
    %v3944 = vsel %vm3741, %v3942, %v3942
    %v3945 = vsel %vm3743, %v3942, %v3944
    %v3946 = vrot.slane %v3943, 7
    %v3947 = vsel %vm3746, %v3946, %v3945
    %v3948 = vsel %vm3748, %v3946, %v3947
    %v3949 = vsel %vm3750, %v3946, %v3948
    %v3950 = vsel %vm3752, %v3946, %v3949
    %3952 = vst.msk [vmem:[#allocation4 + $0xe] sm:$0x3] %vm46, %v3950
    %v3953 = vrot.slane %v3942, 1
    %v3954 = vsel %vm3741, %v3953, %v3953
    %v3955 = vsel %vm3743, %v3953, %v3954
    %v3956 = vsel %vm3746, %v3943, %v3955
    %v3957 = vsel %vm3748, %v3943, %v3956
    %v3958 = vsel %vm3750, %v3943, %v3957
    %v3959 = vsel %vm3752, %v3943, %v3958
    %3960 = vrot.lane.b32.xlu0 %v3959, 64
    %v3961 = vpop.permute.xlu0 %3960
    %3963 = vst.msk [vmem:[#allocation4 + $0xe] sm:$0x3] %vm3766, %v3961
    %v3967 = vunpack.c.l.s4 1983009808
    %v3968 = vunpack.c.0.s8 %v3967
    %v3969 = vlaneseq
    %v3970 = vshrl.u32 %v3969, 7
    %v3971 = vsub.s32 %v3968, %v3970
    %v3972 = vrot.slane %v3711, %v3971
    %v3974 = vunpack.c.l.s4 1983009808
    %v3975 = vunpack.c.0.s8 %v3974
    %v3976 = vlaneseq
    %v3977 = vshrl.u32 %v3976, 7
    %v3978 = vsub.s32 %v3975, %v3977
    %v3979 = vrot.slane %v3719, %v3978
    %v3980 = vsel %vm3741, %v3972, %v3972
    %v3981 = vsel %vm3743, %v3972, %v3980
    %v3982 = vrot.slane %v3979, 7
    %v3983 = vsel %vm3746, %v3982, %v3981
    %v3984 = vsel %vm3748, %v3982, %v3983
    %v3985 = vsel %vm3750, %v3982, %v3984
    %v3986 = vsel %vm3752, %v3982, %v3985
    %3988 = vst.msk [vmem:[#allocation4 + $0x10] sm:$0x3] %vm46, %v3986
    %v3989 = vrot.slane %v3972, 1
    %v3990 = vsel %vm3741, %v3989, %v3989
    %v3991 = vsel %vm3743, %v3989, %v3990
    %v3992 = vsel %vm3746, %v3979, %v3991
    %v3993 = vsel %vm3748, %v3979, %v3992
    %v3994 = vsel %vm3750, %v3979, %v3993
    %v3995 = vsel %vm3752, %v3979, %v3994
    %3996 = vrot.lane.b32.xlu0 %v3995, 64
    %v3997 = vpop.permute.xlu0 %3996
    %3999 = vst.msk [vmem:[#allocation4 + $0x10] sm:$0x3] %vm3766, %v3997
    %v4000 = vcombine.high %v3972, %v3972
    %v4001 = vcombine.high %v3979, %v3979
    %v4002 = vsel %vm3741, %v4000, %v4000
    %v4003 = vsel %vm3743, %v4000, %v4002
    %v4004 = vrot.slane %v4001, 7
    %v4005 = vsel %vm3746, %v4004, %v4003
    %v4006 = vsel %vm3748, %v4004, %v4005
    %v4007 = vsel %vm3750, %v4004, %v4006
    %v4008 = vsel %vm3752, %v4004, %v4007
    %4010 = vst.msk [vmem:[#allocation4 + $0x12] sm:$0x3] %vm46, %v4008
    %v4011 = vrot.slane %v4000, 1
    %v4012 = vsel %vm3741, %v4011, %v4011
    %v4013 = vsel %vm3743, %v4011, %v4012
    %v4014 = vsel %vm3746, %v4001, %v4013
    %v4015 = vsel %vm3748, %v4001, %v4014
    %v4016 = vsel %vm3750, %v4001, %v4015
    %v4017 = vsel %vm3752, %v4001, %v4016
    %4018 = vrot.lane.b32.xlu0 %v4017, 64
    %v4019 = vpop.permute.xlu0 %4018
    %4021 = vst.msk [vmem:[#allocation4 + $0x12] sm:$0x3] %vm3766, %v4019
    %v4022 = vcombine.high %v3711, %v3711
    %v4024 = vunpack.c.l.s4 1983009808
    %v4025 = vunpack.c.0.s8 %v4024
    %v4026 = vlaneseq
    %v4027 = vshrl.u32 %v4026, 7
    %v4028 = vsub.s32 %v4025, %v4027
    %v4029 = vrot.slane %v4022, %v4028
    %v4030 = vcombine.high %v3719, %v3719
    %v4032 = vunpack.c.l.s4 1983009808
    %v4033 = vunpack.c.0.s8 %v4032
    %v4034 = vlaneseq
    %v4035 = vshrl.u32 %v4034, 7
    %v4036 = vsub.s32 %v4033, %v4035
    %v4037 = vrot.slane %v4030, %v4036
    %v4038 = vsel %vm3741, %v4029, %v4029
    %v4039 = vsel %vm3743, %v4029, %v4038
    %v4040 = vrot.slane %v4037, 7
    %v4041 = vsel %vm3746, %v4040, %v4039
    %v4042 = vsel %vm3748, %v4040, %v4041
    %v4043 = vsel %vm3750, %v4040, %v4042
    %v4044 = vsel %vm3752, %v4040, %v4043
    %4046 = vst.msk [vmem:[#allocation4 + $0x14] sm:$0x3] %vm46, %v4044
    %v4047 = vrot.slane %v4029, 1
    %v4048 = vsel %vm3741, %v4047, %v4047
    %v4049 = vsel %vm3743, %v4047, %v4048
    %v4050 = vsel %vm3746, %v4037, %v4049
    %v4051 = vsel %vm3748, %v4037, %v4050
    %v4052 = vsel %vm3750, %v4037, %v4051
    %v4053 = vsel %vm3752, %v4037, %v4052
    %4054 = vrot.lane.b32.xlu0 %v4053, 64
    %v4055 = vpop.permute.xlu0 %4054
    %4057 = vst.msk [vmem:[#allocation4 + $0x14] sm:$0x3] %vm3766, %v4055
    %v4058 = vcombine.high %v4029, %v4029
    %v4059 = vcombine.high %v4037, %v4037
    %v4060 = vsel %vm3741, %v4058, %v4058
    %v4061 = vsel %vm3743, %v4058, %v4060
    %v4062 = vrot.slane %v4059, 7
    %v4063 = vsel %vm3746, %v4062, %v4061
    %v4064 = vsel %vm3748, %v4062, %v4063
    %v4065 = vsel %vm3750, %v4062, %v4064
    %v4066 = vsel %vm3752, %v4062, %v4065
    %4068 = vst.msk [vmem:[#allocation4 + $0x16] sm:$0x3] %vm46, %v4066
    %v4069 = vrot.slane %v4058, 1
    %v4070 = vsel %vm3741, %v4069, %v4069
    %v4071 = vsel %vm3743, %v4069, %v4070
    %v4072 = vsel %vm3746, %v4059, %v4071
    %v4073 = vsel %vm3748, %v4059, %v4072
    %v4074 = vsel %vm3750, %v4059, %v4073
    %v4075 = vsel %vm3752, %v4059, %v4074
    %4076 = vrot.lane.b32.xlu0 %v4075, 64
    %v4077 = vpop.permute.xlu0 %4076
    %4079 = vst.msk [vmem:[#allocation4 + $0x16] sm:$0x3] %vm3766, %v4077
    %v4083 = vunpack.c.l.s4 1983009808
    %v4084 = vunpack.c.0.s8 %v4083
    %v4085 = vlaneseq
    %v4086 = vshrl.u32 %v4085, 7
    %v4087 = vsub.s32 %v4084, %v4086
    %v4088 = vrot.slane %v3712, %v4087
    %v4090 = vunpack.c.l.s4 1983009808
    %v4091 = vunpack.c.0.s8 %v4090
    %v4092 = vlaneseq
    %v4093 = vshrl.u32 %v4092, 7
    %v4094 = vsub.s32 %v4091, %v4093
    %v4095 = vrot.slane %v3720, %v4094
    %v4096 = vsel %vm3741, %v4088, %v4088
    %v4097 = vsel %vm3743, %v4088, %v4096
    %v4098 = vrot.slane %v4095, 7
    %v4099 = vsel %vm3746, %v4098, %v4097
    %v4100 = vsel %vm3748, %v4098, %v4099
    %v4101 = vsel %vm3750, %v4098, %v4100
    %v4102 = vsel %vm3752, %v4098, %v4101
    %4104 = vst.msk [vmem:[#allocation4 + $0x18] sm:$0x3] %vm46, %v4102
    %v4105 = vrot.slane %v4088, 1
    %v4106 = vsel %vm3741, %v4105, %v4105
    %v4107 = vsel %vm3743, %v4105, %v4106
    %v4108 = vsel %vm3746, %v4095, %v4107
    %v4109 = vsel %vm3748, %v4095, %v4108
    %v4110 = vsel %vm3750, %v4095, %v4109
    %v4111 = vsel %vm3752, %v4095, %v4110
    %4112 = vrot.lane.b32.xlu0 %v4111, 64
    %v4113 = vpop.permute.xlu0 %4112
    %4115 = vst.msk [vmem:[#allocation4 + $0x18] sm:$0x3] %vm3766, %v4113
    %v4116 = vcombine.high %v4088, %v4088
    %v4117 = vcombine.high %v4095, %v4095
    %v4118 = vsel %vm3741, %v4116, %v4116
    %v4119 = vsel %vm3743, %v4116, %v4118
    %v4120 = vrot.slane %v4117, 7
    %v4121 = vsel %vm3746, %v4120, %v4119
    %v4122 = vsel %vm3748, %v4120, %v4121
    %v4123 = vsel %vm3750, %v4120, %v4122
    %v4124 = vsel %vm3752, %v4120, %v4123
    %4126 = vst.msk [vmem:[#allocation4 + $0x1a] sm:$0x3] %vm46, %v4124
    %v4127 = vrot.slane %v4116, 1
    %v4128 = vsel %vm3741, %v4127, %v4127
    %v4129 = vsel %vm3743, %v4127, %v4128
    %v4130 = vsel %vm3746, %v4117, %v4129
    %v4131 = vsel %vm3748, %v4117, %v4130
    %v4132 = vsel %vm3750, %v4117, %v4131
    %v4133 = vsel %vm3752, %v4117, %v4132
    %4134 = vrot.lane.b32.xlu0 %v4133, 64
    %v4135 = vpop.permute.xlu0 %4134
    %4137 = vst.msk [vmem:[#allocation4 + $0x1a] sm:$0x3] %vm3766, %v4135
    %v4138 = vcombine.high %v3712, %v3712
    %v4140 = vunpack.c.l.s4 1983009808
    %v4141 = vunpack.c.0.s8 %v4140
    %v4142 = vlaneseq
    %v4143 = vshrl.u32 %v4142, 7
    %v4144 = vsub.s32 %v4141, %v4143
    %v4145 = vrot.slane %v4138, %v4144
    %v4146 = vcombine.high %v3720, %v3720
    %v4148 = vunpack.c.l.s4 1983009808
    %v4149 = vunpack.c.0.s8 %v4148
    %v4150 = vlaneseq
    %v4151 = vshrl.u32 %v4150, 7
    %v4152 = vsub.s32 %v4149, %v4151
    %v4153 = vrot.slane %v4146, %v4152
    %v4154 = vsel %vm3741, %v4145, %v4145
    %v4155 = vsel %vm3743, %v4145, %v4154
    %v4156 = vrot.slane %v4153, 7
    %v4157 = vsel %vm3746, %v4156, %v4155
    %v4158 = vsel %vm3748, %v4156, %v4157
    %v4159 = vsel %vm3750, %v4156, %v4158
    %v4160 = vsel %vm3752, %v4156, %v4159
    %4162 = vst.msk [vmem:[#allocation4 + $0x1c] sm:$0x3] %vm46, %v4160
    %v4163 = vrot.slane %v4145, 1
    %v4164 = vsel %vm3741, %v4163, %v4163
    %v4165 = vsel %vm3743, %v4163, %v4164
    %v4166 = vsel %vm3746, %v4153, %v4165
    %v4167 = vsel %vm3748, %v4153, %v4166
    %v4168 = vsel %vm3750, %v4153, %v4167
    %v4169 = vsel %vm3752, %v4153, %v4168
    %4170 = vrot.lane.b32.xlu0 %v4169, 64
    %v4171 = vpop.permute.xlu0 %4170
    %4173 = vst.msk [vmem:[#allocation4 + $0x1c] sm:$0x3] %vm3766, %v4171
    %v4174 = vcombine.high %v4145, %v4145
    %v4175 = vcombine.high %v4153, %v4153
    %v4176 = vsel %vm3741, %v4174, %v4174
    %v4177 = vsel %vm3743, %v4174, %v4176
    %v4178 = vrot.slane %v4175, 7
    %v4179 = vsel %vm3746, %v4178, %v4177
    %v4180 = vsel %vm3748, %v4178, %v4179
    %v4181 = vsel %vm3750, %v4178, %v4180
    %v4182 = vsel %vm3752, %v4178, %v4181
    %4184 = vst.msk [vmem:[#allocation4 + $0x1e] sm:$0x3] %vm46, %v4182
    %v4185 = vrot.slane %v4174, 1
    %v4186 = vsel %vm3741, %v4185, %v4185
    %v4187 = vsel %vm3743, %v4185, %v4186
    %v4188 = vsel %vm3746, %v4175, %v4187
    %v4189 = vsel %vm3748, %v4175, %v4188
    %v4190 = vsel %vm3750, %v4175, %v4189
    %v4191 = vsel %vm3752, %v4175, %v4190
    %4192 = vrot.lane.b32.xlu0 %v4191, 64
    %v4193 = vpop.permute.xlu0 %4192
    %4195 = vst.msk [vmem:[#allocation4 + $0x1e] sm:$0x3] %vm3766, %v4193
    %v4199 = vunpack.c.l.s4 1983009808
    %v4200 = vunpack.c.0.s8 %v4199
    %v4201 = vlaneseq
    %v4202 = vshrl.u32 %v4201, 7
    %v4203 = vsub.s32 %v4200, %v4202
    %v4204 = vrot.slane %v3713, %v4203
    %v4206 = vunpack.c.l.s4 1983009808
    %v4207 = vunpack.c.0.s8 %v4206
    %v4208 = vlaneseq
    %v4209 = vshrl.u32 %v4208, 7
    %v4210 = vsub.s32 %v4207, %v4209
    %v4211 = vrot.slane %v3721, %v4210
    %v4212 = vsel %vm3741, %v4204, %v4204
    %v4213 = vsel %vm3743, %v4204, %v4212
    %v4214 = vrot.slane %v4211, 7
    %v4215 = vsel %vm3746, %v4214, %v4213
    %v4216 = vsel %vm3748, %v4214, %v4215
    %v4217 = vsel %vm3750, %v4214, %v4216
    %v4218 = vsel %vm3752, %v4214, %v4217
    %4220 = vst.msk [vmem:[#allocation4 + $0x20] sm:$0x3] %vm46, %v4218
    %v4221 = vrot.slane %v4204, 1
    %v4222 = vsel %vm3741, %v4221, %v4221
    %v4223 = vsel %vm3743, %v4221, %v4222
    %v4224 = vsel %vm3746, %v4211, %v4223
    %v4225 = vsel %vm3748, %v4211, %v4224
    %v4226 = vsel %vm3750, %v4211, %v4225
    %v4227 = vsel %vm3752, %v4211, %v4226
    %4228 = vrot.lane.b32.xlu0 %v4227, 64
    %v4229 = vpop.permute.xlu0 %4228
    %4231 = vst.msk [vmem:[#allocation4 + $0x20] sm:$0x3] %vm3766, %v4229
    %v4232 = vcombine.high %v4204, %v4204
    %v4233 = vcombine.high %v4211, %v4211
    %v4234 = vsel %vm3741, %v4232, %v4232
    %v4235 = vsel %vm3743, %v4232, %v4234
    %v4236 = vrot.slane %v4233, 7
    %v4237 = vsel %vm3746, %v4236, %v4235
    %v4238 = vsel %vm3748, %v4236, %v4237
    %v4239 = vsel %vm3750, %v4236, %v4238
    %v4240 = vsel %vm3752, %v4236, %v4239
    %4242 = vst.msk [vmem:[#allocation4 + $0x22] sm:$0x3] %vm46, %v4240
    %v4243 = vrot.slane %v4232, 1
    %v4244 = vsel %vm3741, %v4243, %v4243
    %v4245 = vsel %vm3743, %v4243, %v4244
    %v4246 = vsel %vm3746, %v4233, %v4245
    %v4247 = vsel %vm3748, %v4233, %v4246
    %v4248 = vsel %vm3750, %v4233, %v4247
    %v4249 = vsel %vm3752, %v4233, %v4248
    %4250 = vrot.lane.b32.xlu0 %v4249, 64
    %v4251 = vpop.permute.xlu0 %4250
    %4253 = vst.msk [vmem:[#allocation4 + $0x22] sm:$0x3] %vm3766, %v4251
    %v4254 = vcombine.high %v3713, %v3713
    %v4256 = vunpack.c.l.s4 1983009808
    %v4257 = vunpack.c.0.s8 %v4256
    %v4258 = vlaneseq
    %v4259 = vshrl.u32 %v4258, 7
    %v4260 = vsub.s32 %v4257, %v4259
    %v4261 = vrot.slane %v4254, %v4260
    %v4262 = vcombine.high %v3721, %v3721
    %v4264 = vunpack.c.l.s4 1983009808
    %v4265 = vunpack.c.0.s8 %v4264
    %v4266 = vlaneseq
    %v4267 = vshrl.u32 %v4266, 7
    %v4268 = vsub.s32 %v4265, %v4267
    %v4269 = vrot.slane %v4262, %v4268
    %v4270 = vsel %vm3741, %v4261, %v4261
    %v4271 = vsel %vm3743, %v4261, %v4270
    %v4272 = vrot.slane %v4269, 7
    %v4273 = vsel %vm3746, %v4272, %v4271
    %v4274 = vsel %vm3748, %v4272, %v4273
    %v4275 = vsel %vm3750, %v4272, %v4274
    %v4276 = vsel %vm3752, %v4272, %v4275
    %4278 = vst.msk [vmem:[#allocation4 + $0x24] sm:$0x3] %vm46, %v4276
    %v4279 = vrot.slane %v4261, 1
    %v4280 = vsel %vm3741, %v4279, %v4279
    %v4281 = vsel %vm3743, %v4279, %v4280
    %v4282 = vsel %vm3746, %v4269, %v4281
    %v4283 = vsel %vm3748, %v4269, %v4282
    %v4284 = vsel %vm3750, %v4269, %v4283
    %v4285 = vsel %vm3752, %v4269, %v4284
    %4286 = vrot.lane.b32.xlu0 %v4285, 64
    %v4287 = vpop.permute.xlu0 %4286
    %4289 = vst.msk [vmem:[#allocation4 + $0x24] sm:$0x3] %vm3766, %v4287
    %v4290 = vcombine.high %v4261, %v4261
    %v4291 = vcombine.high %v4269, %v4269
    %v4292 = vsel %vm3741, %v4290, %v4290
    %v4293 = vsel %vm3743, %v4290, %v4292
    %v4294 = vrot.slane %v4291, 7
    %v4295 = vsel %vm3746, %v4294, %v4293
    %v4296 = vsel %vm3748, %v4294, %v4295
    %v4297 = vsel %vm3750, %v4294, %v4296
    %v4298 = vsel %vm3752, %v4294, %v4297
    %4300 = vst.msk [vmem:[#allocation4 + $0x26] sm:$0x3] %vm46, %v4298
    %v4301 = vrot.slane %v4290, 1
    %v4302 = vsel %vm3741, %v4301, %v4301
    %v4303 = vsel %vm3743, %v4301, %v4302
    %v4304 = vsel %vm3746, %v4291, %v4303
    %v4305 = vsel %vm3748, %v4291, %v4304
    %v4306 = vsel %vm3750, %v4291, %v4305
    %v4307 = vsel %vm3752, %v4291, %v4306
    %4308 = vrot.lane.b32.xlu0 %v4307, 64
    %v4309 = vpop.permute.xlu0 %4308
    %4311 = vst.msk [vmem:[#allocation4 + $0x26] sm:$0x3] %vm3766, %v4309
    %v4315 = vunpack.c.l.s4 1983009808
    %v4316 = vunpack.c.0.s8 %v4315
    %v4317 = vlaneseq
    %v4318 = vshrl.u32 %v4317, 7
    %v4319 = vsub.s32 %v4316, %v4318
    %v4320 = vrot.slane %v3714, %v4319
    %v4322 = vunpack.c.l.s4 1983009808
    %v4323 = vunpack.c.0.s8 %v4322
    %v4324 = vlaneseq
    %v4325 = vshrl.u32 %v4324, 7
    %v4326 = vsub.s32 %v4323, %v4325
    %v4327 = vrot.slane %v3722, %v4326
    %v4328 = vsel %vm3741, %v4320, %v4320
    %v4329 = vsel %vm3743, %v4320, %v4328
    %v4330 = vrot.slane %v4327, 7
    %v4331 = vsel %vm3746, %v4330, %v4329
    %v4332 = vsel %vm3748, %v4330, %v4331
    %v4333 = vsel %vm3750, %v4330, %v4332
    %v4334 = vsel %vm3752, %v4330, %v4333
    %4336 = vst.msk [vmem:[#allocation4 + $0x28] sm:$0x3] %vm46, %v4334
    %v4337 = vrot.slane %v4320, 1
    %v4338 = vsel %vm3741, %v4337, %v4337
    %v4339 = vsel %vm3743, %v4337, %v4338
    %v4340 = vsel %vm3746, %v4327, %v4339
    %v4341 = vsel %vm3748, %v4327, %v4340
    %v4342 = vsel %vm3750, %v4327, %v4341
    %v4343 = vsel %vm3752, %v4327, %v4342
    %4344 = vrot.lane.b32.xlu0 %v4343, 64
    %v4345 = vpop.permute.xlu0 %4344
    %4347 = vst.msk [vmem:[#allocation4 + $0x28] sm:$0x3] %vm3766, %v4345
    %v4348 = vcombine.high %v4320, %v4320
    %v4349 = vcombine.high %v4327, %v4327
    %v4350 = vsel %vm3741, %v4348, %v4348
    %v4351 = vsel %vm3743, %v4348, %v4350
    %v4352 = vrot.slane %v4349, 7
    %v4353 = vsel %vm3746, %v4352, %v4351
    %v4354 = vsel %vm3748, %v4352, %v4353
    %v4355 = vsel %vm3750, %v4352, %v4354
    %v4356 = vsel %vm3752, %v4352, %v4355
    %4358 = vst.msk [vmem:[#allocation4 + $0x2a] sm:$0x3] %vm46, %v4356
    %v4359 = vrot.slane %v4348, 1
    %v4360 = vsel %vm3741, %v4359, %v4359
    %v4361 = vsel %vm3743, %v4359, %v4360
    %v4362 = vsel %vm3746, %v4349, %v4361
    %v4363 = vsel %vm3748, %v4349, %v4362
    %v4364 = vsel %vm3750, %v4349, %v4363
    %v4365 = vsel %vm3752, %v4349, %v4364
    %4366 = vrot.lane.b32.xlu0 %v4365, 64
    %v4367 = vpop.permute.xlu0 %4366
    %4369 = vst.msk [vmem:[#allocation4 + $0x2a] sm:$0x3] %vm3766, %v4367
    %v4370 = vcombine.high %v3714, %v3714
    %v4372 = vunpack.c.l.s4 1983009808
    %v4373 = vunpack.c.0.s8 %v4372
    %v4374 = vlaneseq
    %v4375 = vshrl.u32 %v4374, 7
    %v4376 = vsub.s32 %v4373, %v4375
    %v4377 = vrot.slane %v4370, %v4376
    %v4378 = vcombine.high %v3722, %v3722
    %v4380 = vunpack.c.l.s4 1983009808
    %v4381 = vunpack.c.0.s8 %v4380
    %v4382 = vlaneseq
    %v4383 = vshrl.u32 %v4382, 7
    %v4384 = vsub.s32 %v4381, %v4383
    %v4385 = vrot.slane %v4378, %v4384
    %v4386 = vsel %vm3741, %v4377, %v4377
    %v4387 = vsel %vm3743, %v4377, %v4386
    %v4388 = vrot.slane %v4385, 7
    %v4389 = vsel %vm3746, %v4388, %v4387
    %v4390 = vsel %vm3748, %v4388, %v4389
    %v4391 = vsel %vm3750, %v4388, %v4390
    %v4392 = vsel %vm3752, %v4388, %v4391
    %4394 = vst.msk [vmem:[#allocation4 + $0x2c] sm:$0x3] %vm46, %v4392
    %v4395 = vrot.slane %v4377, 1
    %v4396 = vsel %vm3741, %v4395, %v4395
    %v4397 = vsel %vm3743, %v4395, %v4396
    %v4398 = vsel %vm3746, %v4385, %v4397
    %v4399 = vsel %vm3748, %v4385, %v4398
    %v4400 = vsel %vm3750, %v4385, %v4399
    %v4401 = vsel %vm3752, %v4385, %v4400
    %4402 = vrot.lane.b32.xlu0 %v4401, 64
    %v4403 = vpop.permute.xlu0 %4402
    %4405 = vst.msk [vmem:[#allocation4 + $0x2c] sm:$0x3] %vm3766, %v4403
    %v4406 = vcombine.high %v4377, %v4377
    %v4407 = vcombine.high %v4385, %v4385
    %v4408 = vsel %vm3741, %v4406, %v4406
    %v4409 = vsel %vm3743, %v4406, %v4408
    %v4410 = vrot.slane %v4407, 7
    %v4411 = vsel %vm3746, %v4410, %v4409
    %v4412 = vsel %vm3748, %v4410, %v4411
    %v4413 = vsel %vm3750, %v4410, %v4412
    %v4414 = vsel %vm3752, %v4410, %v4413
    %4416 = vst.msk [vmem:[#allocation4 + $0x2e] sm:$0x3] %vm46, %v4414
    %v4417 = vrot.slane %v4406, 1
    %v4418 = vsel %vm3741, %v4417, %v4417
    %v4419 = vsel %vm3743, %v4417, %v4418
    %v4420 = vsel %vm3746, %v4407, %v4419
    %v4421 = vsel %vm3748, %v4407, %v4420
    %v4422 = vsel %vm3750, %v4407, %v4421
    %v4423 = vsel %vm3752, %v4407, %v4422
    %4424 = vrot.lane.b32.xlu0 %v4423, 64
    %v4425 = vpop.permute.xlu0 %4424
    %4427 = vst.msk [vmem:[#allocation4 + $0x2e] sm:$0x3] %vm3766, %v4425
    %v4431 = vunpack.c.l.s4 1983009808
    %v4432 = vunpack.c.0.s8 %v4431
    %v4433 = vlaneseq
    %v4434 = vshrl.u32 %v4433, 7
    %v4435 = vsub.s32 %v4432, %v4434
    %v4436 = vrot.slane %v3715, %v4435
    %v4438 = vunpack.c.l.s4 1983009808
    %v4439 = vunpack.c.0.s8 %v4438
    %v4440 = vlaneseq
    %v4441 = vshrl.u32 %v4440, 7
    %v4442 = vsub.s32 %v4439, %v4441
    %v4443 = vrot.slane %v3723, %v4442
    %v4444 = vsel %vm3741, %v4436, %v4436
    %v4445 = vsel %vm3743, %v4436, %v4444
    %v4446 = vrot.slane %v4443, 7
    %v4447 = vsel %vm3746, %v4446, %v4445
    %v4448 = vsel %vm3748, %v4446, %v4447
    %v4449 = vsel %vm3750, %v4446, %v4448
    %v4450 = vsel %vm3752, %v4446, %v4449
    %4452 = vst.msk [vmem:[#allocation4 + $0x30] sm:$0x3] %vm46, %v4450
    %v4453 = vrot.slane %v4436, 1
    %v4454 = vsel %vm3741, %v4453, %v4453
    %v4455 = vsel %vm3743, %v4453, %v4454
    %v4456 = vsel %vm3746, %v4443, %v4455
    %v4457 = vsel %vm3748, %v4443, %v4456
    %v4458 = vsel %vm3750, %v4443, %v4457
    %v4459 = vsel %vm3752, %v4443, %v4458
    %4460 = vrot.lane.b32.xlu0 %v4459, 64
    %v4461 = vpop.permute.xlu0 %4460
    %4463 = vst.msk [vmem:[#allocation4 + $0x30] sm:$0x3] %vm3766, %v4461
    %v4464 = vcombine.high %v4436, %v4436
    %v4465 = vcombine.high %v4443, %v4443
    %v4466 = vsel %vm3741, %v4464, %v4464
    %v4467 = vsel %vm3743, %v4464, %v4466
    %v4468 = vrot.slane %v4465, 7
    %v4469 = vsel %vm3746, %v4468, %v4467
    %v4470 = vsel %vm3748, %v4468, %v4469
    %v4471 = vsel %vm3750, %v4468, %v4470
    %v4472 = vsel %vm3752, %v4468, %v4471
    %4474 = vst.msk [vmem:[#allocation4 + $0x32] sm:$0x3] %vm46, %v4472
    %v4475 = vrot.slane %v4464, 1
    %v4476 = vsel %vm3741, %v4475, %v4475
    %v4477 = vsel %vm3743, %v4475, %v4476
    %v4478 = vsel %vm3746, %v4465, %v4477
    %v4479 = vsel %vm3748, %v4465, %v4478
    %v4480 = vsel %vm3750, %v4465, %v4479
    %v4481 = vsel %vm3752, %v4465, %v4480
    %4482 = vrot.lane.b32.xlu0 %v4481, 64
    %v4483 = vpop.permute.xlu0 %4482
    %4485 = vst.msk [vmem:[#allocation4 + $0x32] sm:$0x3] %vm3766, %v4483
    %v4486 = vcombine.high %v3715, %v3715
    %v4488 = vunpack.c.l.s4 1983009808
    %v4489 = vunpack.c.0.s8 %v4488
    %v4490 = vlaneseq
    %v4491 = vshrl.u32 %v4490, 7
    %v4492 = vsub.s32 %v4489, %v4491
    %v4493 = vrot.slane %v4486, %v4492
    %v4494 = vcombine.high %v3723, %v3723
    %v4496 = vunpack.c.l.s4 1983009808
    %v4497 = vunpack.c.0.s8 %v4496
    %v4498 = vlaneseq
    %v4499 = vshrl.u32 %v4498, 7
    %v4500 = vsub.s32 %v4497, %v4499
    %v4501 = vrot.slane %v4494, %v4500
    %v4502 = vsel %vm3741, %v4493, %v4493
    %v4503 = vsel %vm3743, %v4493, %v4502
    %v4504 = vrot.slane %v4501, 7
    %v4505 = vsel %vm3746, %v4504, %v4503
    %v4506 = vsel %vm3748, %v4504, %v4505
    %v4507 = vsel %vm3750, %v4504, %v4506
    %v4508 = vsel %vm3752, %v4504, %v4507
    %4510 = vst.msk [vmem:[#allocation4 + $0x34] sm:$0x3] %vm46, %v4508
    %v4511 = vrot.slane %v4493, 1
    %v4512 = vsel %vm3741, %v4511, %v4511
    %v4513 = vsel %vm3743, %v4511, %v4512
    %v4514 = vsel %vm3746, %v4501, %v4513
    %v4515 = vsel %vm3748, %v4501, %v4514
    %v4516 = vsel %vm3750, %v4501, %v4515
    %v4517 = vsel %vm3752, %v4501, %v4516
    %4518 = vrot.lane.b32.xlu0 %v4517, 64
    %v4519 = vpop.permute.xlu0 %4518
    %4521 = vst.msk [vmem:[#allocation4 + $0x34] sm:$0x3] %vm3766, %v4519
    %v4522 = vcombine.high %v4493, %v4493
    %v4523 = vcombine.high %v4501, %v4501
    %v4524 = vsel %vm3741, %v4522, %v4522
    %v4525 = vsel %vm3743, %v4522, %v4524
    %v4526 = vrot.slane %v4523, 7
    %v4527 = vsel %vm3746, %v4526, %v4525
    %v4528 = vsel %vm3748, %v4526, %v4527
    %v4529 = vsel %vm3750, %v4526, %v4528
    %v4530 = vsel %vm3752, %v4526, %v4529
    %4532 = vst.msk [vmem:[#allocation4 + $0x36] sm:$0x3] %vm46, %v4530
    %v4533 = vrot.slane %v4522, 1
    %v4534 = vsel %vm3741, %v4533, %v4533
    %v4535 = vsel %vm3743, %v4533, %v4534
    %v4536 = vsel %vm3746, %v4523, %v4535
    %v4537 = vsel %vm3748, %v4523, %v4536
    %v4538 = vsel %vm3750, %v4523, %v4537
    %v4539 = vsel %vm3752, %v4523, %v4538
    %4540 = vrot.lane.b32.xlu0 %v4539, 64
    %v4541 = vpop.permute.xlu0 %4540
    %4543 = vst.msk [vmem:[#allocation4 + $0x36] sm:$0x3] %vm3766, %v4541
    %v4547 = vunpack.c.l.s4 1983009808
    %v4548 = vunpack.c.0.s8 %v4547
    %v4549 = vlaneseq
    %v4550 = vshrl.u32 %v4549, 7
    %v4551 = vsub.s32 %v4548, %v4550
    %v4552 = vrot.slane %v3716, %v4551
    %v4554 = vunpack.c.l.s4 1983009808
    %v4555 = vunpack.c.0.s8 %v4554
    %v4556 = vlaneseq
    %v4557 = vshrl.u32 %v4556, 7
    %v4558 = vsub.s32 %v4555, %v4557
    %v4559 = vrot.slane %v3724, %v4558
    %v4560 = vsel %vm3741, %v4552, %v4552
    %v4561 = vsel %vm3743, %v4552, %v4560
    %v4562 = vrot.slane %v4559, 7
    %v4563 = vsel %vm3746, %v4562, %v4561
    %v4564 = vsel %vm3748, %v4562, %v4563
    %v4565 = vsel %vm3750, %v4562, %v4564
    %v4566 = vsel %vm3752, %v4562, %v4565
    %4568 = vst.msk [vmem:[#allocation4 + $0x38] sm:$0x3] %vm46, %v4566
    %v4569 = vrot.slane %v4552, 1
    %v4570 = vsel %vm3741, %v4569, %v4569
    %v4571 = vsel %vm3743, %v4569, %v4570
    %v4572 = vsel %vm3746, %v4559, %v4571
    %v4573 = vsel %vm3748, %v4559, %v4572
    %v4574 = vsel %vm3750, %v4559, %v4573
    %v4575 = vsel %vm3752, %v4559, %v4574
    %4576 = vrot.lane.b32.xlu0 %v4575, 64
    %v4577 = vpop.permute.xlu0 %4576
    %4579 = vst.msk [vmem:[#allocation4 + $0x38] sm:$0x3] %vm3766, %v4577
    %v4580 = vcombine.high %v4552, %v4552
    %v4581 = vcombine.high %v4559, %v4559
    %v4582 = vsel %vm3741, %v4580, %v4580
    %v4583 = vsel %vm3743, %v4580, %v4582
    %v4584 = vrot.slane %v4581, 7
    %v4585 = vsel %vm3746, %v4584, %v4583
    %v4586 = vsel %vm3748, %v4584, %v4585
    %v4587 = vsel %vm3750, %v4584, %v4586
    %v4588 = vsel %vm3752, %v4584, %v4587
    %4590 = vst.msk [vmem:[#allocation4 + $0x3a] sm:$0x3] %vm46, %v4588
    %v4591 = vrot.slane %v4580, 1
    %v4592 = vsel %vm3741, %v4591, %v4591
    %v4593 = vsel %vm3743, %v4591, %v4592
    %v4594 = vsel %vm3746, %v4581, %v4593
    %v4595 = vsel %vm3748, %v4581, %v4594
    %v4596 = vsel %vm3750, %v4581, %v4595
    %v4597 = vsel %vm3752, %v4581, %v4596
    %4598 = vrot.lane.b32.xlu0 %v4597, 64
    %v4599 = vpop.permute.xlu0 %4598
    %4601 = vst.msk [vmem:[#allocation4 + $0x3a] sm:$0x3] %vm3766, %v4599
    %v4602 = vcombine.high %v3716, %v3716
    %v4604 = vunpack.c.l.s4 1983009808
    %v4605 = vunpack.c.0.s8 %v4604
    %v4606 = vlaneseq
    %v4607 = vshrl.u32 %v4606, 7
    %v4608 = vsub.s32 %v4605, %v4607
    %v4609 = vrot.slane %v4602, %v4608
    %v4610 = vcombine.high %v3724, %v3724
    %v4612 = vunpack.c.l.s4 1983009808
    %v4613 = vunpack.c.0.s8 %v4612
    %v4614 = vlaneseq
    %v4615 = vshrl.u32 %v4614, 7
    %v4616 = vsub.s32 %v4613, %v4615
    %v4617 = vrot.slane %v4610, %v4616
    %v4618 = vsel %vm3741, %v4609, %v4609
    %v4619 = vsel %vm3743, %v4609, %v4618
    %v4620 = vrot.slane %v4617, 7
    %v4621 = vsel %vm3746, %v4620, %v4619
    %v4622 = vsel %vm3748, %v4620, %v4621
    %v4623 = vsel %vm3750, %v4620, %v4622
    %v4624 = vsel %vm3752, %v4620, %v4623
    %4626 = vst.msk [vmem:[#allocation4 + $0x3c] sm:$0x3] %vm46, %v4624
    %v4627 = vrot.slane %v4609, 1
    %v4628 = vsel %vm3741, %v4627, %v4627
    %v4629 = vsel %vm3743, %v4627, %v4628
    %v4630 = vsel %vm3746, %v4617, %v4629
    %v4631 = vsel %vm3748, %v4617, %v4630
    %v4632 = vsel %vm3750, %v4617, %v4631
    %v4633 = vsel %vm3752, %v4617, %v4632
    %4634 = vrot.lane.b32.xlu0 %v4633, 64
    %v4635 = vpop.permute.xlu0 %4634
    %4637 = vst.msk [vmem:[#allocation4 + $0x3c] sm:$0x3] %vm3766, %v4635
    %v4638 = vcombine.high %v4609, %v4609
    %v4639 = vcombine.high %v4617, %v4617
    %v4640 = vsel %vm3741, %v4638, %v4638
    %v4641 = vsel %vm3743, %v4638, %v4640
    %v4642 = vrot.slane %v4639, 7
    %v4643 = vsel %vm3746, %v4642, %v4641
    %v4644 = vsel %vm3748, %v4642, %v4643
    %v4645 = vsel %vm3750, %v4642, %v4644
    %v4646 = vsel %vm3752, %v4642, %v4645
    %4648 = vst.msk [vmem:[#allocation4 + $0x3e] sm:$0x3] %vm46, %v4646
    %v4649 = vrot.slane %v4638, 1
    %v4650 = vsel %vm3741, %v4649, %v4649
    %v4651 = vsel %vm3743, %v4649, %v4650
    %v4652 = vsel %vm3746, %v4639, %v4651
    %v4653 = vsel %vm3748, %v4639, %v4652
    %v4654 = vsel %vm3750, %v4639, %v4653
    %v4655 = vsel %vm3752, %v4639, %v4654
    %4656 = vrot.lane.b32.xlu0 %v4655, 64
    %v4657 = vpop.permute.xlu0 %4656
    %4659 = vst.msk [vmem:[#allocation4 + $0x3e] sm:$0x3] %vm3766, %v4657
    %v4660 = vld [vmem:[#allocation4] sm:$0xff]
    %v4661 = vld [vmem:[#allocation4 + $0x8] sm:$0xff]
    %v4662 = vld [vmem:[#allocation4 + $0x10] sm:$0xff]
    %v4663 = vld [vmem:[#allocation4 + $0x18] sm:$0xff]
    %v4664 = vld [vmem:[#allocation4 + $0x20] sm:$0xff]
    %v4665 = vld [vmem:[#allocation4 + $0x28] sm:$0xff]
    %v4666 = vld [vmem:[#allocation4 + $0x30] sm:$0xff]
    %v4667 = vld [vmem:[#allocation4 + $0x38] sm:$0xff]
    %v4676 = vcombine.high %v4660, %v4660
    %v4678 = vunpack.c.l.s4 1983009808
    %v4679 = vunpack.c.0.s8 %v4678
    %v4680 = vlaneseq
    %v4681 = vshrl.u32 %v4680, 7
    %v4682 = vsub.s32 %v4679, %v4681
    %v4683 = vrot.slane %v4660, %v4682
    %v4685 = vunpack.c.l.s4 1983009808
    %v4686 = vunpack.c.0.s8 %v4685
    %v4687 = vlaneseq
    %v4688 = vshrl.u32 %v4687, 7
    %v4689 = vsub.s32 %v4686, %v4688
    %v4690 = vrot.slane %v4676, %v4689
    %v4691 = vcombine.high %v4683, %v4683
    %v4692 = vcombine.high %v4690, %v4690
    %v4693 = vcombine.high %v4661, %v4661
    %v4695 = vunpack.c.l.s4 1983009808
    %v4696 = vunpack.c.0.s8 %v4695
    %v4697 = vlaneseq
    %v4698 = vshrl.u32 %v4697, 7
    %v4699 = vsub.s32 %v4696, %v4698
    %v4700 = vrot.slane %v4661, %v4699
    %v4702 = vunpack.c.l.s4 1983009808
    %v4703 = vunpack.c.0.s8 %v4702
    %v4704 = vlaneseq
    %v4705 = vshrl.u32 %v4704, 7
    %v4706 = vsub.s32 %v4703, %v4705
    %v4707 = vrot.slane %v4693, %v4706
    %v4708 = vcombine.high %v4700, %v4700
    %v4709 = vcombine.high %v4707, %v4707
    %v4710 = vcombine.high %v4662, %v4662
    %v4712 = vunpack.c.l.s4 1983009808
    %v4713 = vunpack.c.0.s8 %v4712
    %v4714 = vlaneseq
    %v4715 = vshrl.u32 %v4714, 7
    %v4716 = vsub.s32 %v4713, %v4715
    %v4717 = vrot.slane %v4662, %v4716
    %v4719 = vunpack.c.l.s4 1983009808
    %v4720 = vunpack.c.0.s8 %v4719
    %v4721 = vlaneseq
    %v4722 = vshrl.u32 %v4721, 7
    %v4723 = vsub.s32 %v4720, %v4722
    %v4724 = vrot.slane %v4710, %v4723
    %v4725 = vcombine.high %v4717, %v4717
    %v4726 = vcombine.high %v4724, %v4724
    %v4727 = vcombine.high %v4663, %v4663
    %v4729 = vunpack.c.l.s4 1983009808
    %v4730 = vunpack.c.0.s8 %v4729
    %v4731 = vlaneseq
    %v4732 = vshrl.u32 %v4731, 7
    %v4733 = vsub.s32 %v4730, %v4732
    %v4734 = vrot.slane %v4663, %v4733
    %v4736 = vunpack.c.l.s4 1983009808
    %v4737 = vunpack.c.0.s8 %v4736
    %v4738 = vlaneseq
    %v4739 = vshrl.u32 %v4738, 7
    %v4740 = vsub.s32 %v4737, %v4739
    %v4741 = vrot.slane %v4727, %v4740
    %v4742 = vcombine.high %v4734, %v4734
    %v4743 = vcombine.high %v4741, %v4741
    %v4744 = vcombine.high %v4664, %v4664
    %v4746 = vunpack.c.l.s4 1983009808
    %v4747 = vunpack.c.0.s8 %v4746
    %v4748 = vlaneseq
    %v4749 = vshrl.u32 %v4748, 7
    %v4750 = vsub.s32 %v4747, %v4749
    %v4751 = vrot.slane %v4664, %v4750
    %v4753 = vunpack.c.l.s4 1983009808
    %v4754 = vunpack.c.0.s8 %v4753
    %v4755 = vlaneseq
    %v4756 = vshrl.u32 %v4755, 7
    %v4757 = vsub.s32 %v4754, %v4756
    %v4758 = vrot.slane %v4744, %v4757
    %v4759 = vcombine.high %v4751, %v4751
    %v4760 = vcombine.high %v4758, %v4758
    %v4761 = vcombine.high %v4665, %v4665
    %v4763 = vunpack.c.l.s4 1983009808
    %v4764 = vunpack.c.0.s8 %v4763
    %v4765 = vlaneseq
    %v4766 = vshrl.u32 %v4765, 7
    %v4767 = vsub.s32 %v4764, %v4766
    %v4768 = vrot.slane %v4665, %v4767
    %v4770 = vunpack.c.l.s4 1983009808
    %v4771 = vunpack.c.0.s8 %v4770
    %v4772 = vlaneseq
    %v4773 = vshrl.u32 %v4772, 7
    %v4774 = vsub.s32 %v4771, %v4773
    %v4775 = vrot.slane %v4761, %v4774
    %v4776 = vcombine.high %v4768, %v4768
    %v4777 = vcombine.high %v4775, %v4775
    %v4778 = vcombine.high %v4666, %v4666
    %v4780 = vunpack.c.l.s4 1983009808
    %v4781 = vunpack.c.0.s8 %v4780
    %v4782 = vlaneseq
    %v4783 = vshrl.u32 %v4782, 7
    %v4784 = vsub.s32 %v4781, %v4783
    %v4785 = vrot.slane %v4666, %v4784
    %v4787 = vunpack.c.l.s4 1983009808
    %v4788 = vunpack.c.0.s8 %v4787
    %v4789 = vlaneseq
    %v4790 = vshrl.u32 %v4789, 7
    %v4791 = vsub.s32 %v4788, %v4790
    %v4792 = vrot.slane %v4778, %v4791
    %v4793 = vcombine.high %v4785, %v4785
    %v4794 = vcombine.high %v4792, %v4792
    %v4795 = vcombine.high %v4667, %v4667
    %v4797 = vunpack.c.l.s4 1983009808
    %v4798 = vunpack.c.0.s8 %v4797
    %v4799 = vlaneseq
    %v4800 = vshrl.u32 %v4799, 7
    %v4801 = vsub.s32 %v4798, %v4800
    %v4802 = vrot.slane %v4667, %v4801
    %v4804 = vunpack.c.l.s4 1983009808
    %v4805 = vunpack.c.0.s8 %v4804
    %v4806 = vlaneseq
    %v4807 = vshrl.u32 %v4806, 7
    %v4808 = vsub.s32 %v4805, %v4807
    %v4809 = vrot.slane %v4795, %v4808
    %v4810 = vcombine.high %v4802, %v4802
    %v4811 = vcombine.high %v4809, %v4809
    %v4844 = vpack.c.bf16 %v4683, %v4683
    %v4845 = vpack.c.bf16 %v4691, %v4691
    %v4846 = vpack.c.bf16 %v4690, %v4690
    %v4847 = vpack.c.bf16 %v4692, %v4692
    %v4848 = vpack.c.bf16 %v4700, %v4700
    %v4849 = vpack.c.bf16 %v4708, %v4708
    %v4850 = vpack.c.bf16 %v4707, %v4707
    %v4851 = vpack.c.bf16 %v4709, %v4709
    %v4852 = vpack.c.bf16 %v4717, %v4717
    %v4853 = vpack.c.bf16 %v4725, %v4725
    %v4854 = vpack.c.bf16 %v4724, %v4724
    %v4855 = vpack.c.bf16 %v4726, %v4726
    %v4856 = vpack.c.bf16 %v4734, %v4734
    %v4857 = vpack.c.bf16 %v4742, %v4742
    %v4858 = vpack.c.bf16 %v4741, %v4741
    %v4859 = vpack.c.bf16 %v4743, %v4743
    %v4860 = vpack.c.bf16 %v4751, %v4751
    %v4861 = vpack.c.bf16 %v4759, %v4759
    %v4862 = vpack.c.bf16 %v4758, %v4758
    %v4863 = vpack.c.bf16 %v4760, %v4760
    %v4864 = vpack.c.bf16 %v4768, %v4768
    %v4865 = vpack.c.bf16 %v4776, %v4776
    %v4866 = vpack.c.bf16 %v4775, %v4775
    %v4867 = vpack.c.bf16 %v4777, %v4777
    %v4868 = vpack.c.bf16 %v4785, %v4785
    %v4869 = vpack.c.bf16 %v4793, %v4793
    %v4870 = vpack.c.bf16 %v4792, %v4792
    %v4871 = vpack.c.bf16 %v4794, %v4794
    %v4872 = vpack.c.bf16 %v4802, %v4802
    %v4873 = vpack.c.bf16 %v4810, %v4810
    %v4874 = vpack.c.bf16 %v4809, %v4809
    %v4875 = vpack.c.bf16 %v4811, %v4811
    %v4876 = vld [vmem:[%s7] sm:$0xff]
    %v4877 = vld [vmem:[%s7 + $0x8] sm:$0xff]
    %v4878 = vld [vmem:[%s7 + $0x10] sm:$0xff]
    %v4879 = vld [vmem:[%s7 + $0x18] sm:$0xff]
    %v4880 = vld [vmem:[%s7 + $0x20] sm:$0xff]
    %v4881 = vld [vmem:[%s7 + $0x28] sm:$0xff]
    %v4882 = vld [vmem:[%s7 + $0x30] sm:$0xff]
    %v4883 = vld [vmem:[%s7 + $0x38] sm:$0xff]
    %v4884 = vld [vmem:[%s7 + $0x40] sm:$0xff]
    %v4885 = vld [vmem:[%s7 + $0x48] sm:$0xff]
    %v4886 = vld [vmem:[%s7 + $0x50] sm:$0xff]
    %v4887 = vld [vmem:[%s7 + $0x58] sm:$0xff]
    %v4888 = vld [vmem:[%s7 + $0x60] sm:$0xff]
    %v4889 = vld [vmem:[%s7 + $0x68] sm:$0xff]
    %v4890 = vld [vmem:[%s7 + $0x70] sm:$0xff]
    %v4891 = vld [vmem:[%s7 + $0x78] sm:$0xff]
    %v4892 = vld [vmem:[%s7 + $0x80] sm:$0xff]
    %v4893 = vld [vmem:[%s7 + $0x88] sm:$0xff]
    %v4894 = vld [vmem:[%s7 + $0x90] sm:$0xff]
    %v4895 = vld [vmem:[%s7 + $0x98] sm:$0xff]
    %v4896 = vld [vmem:[%s7 + $0xa0] sm:$0xff]
    %v4897 = vld [vmem:[%s7 + $0xa8] sm:$0xff]
    %v4898 = vld [vmem:[%s7 + $0xb0] sm:$0xff]
    %v4899 = vld [vmem:[%s7 + $0xb8] sm:$0xff]
    %v4900 = vld [vmem:[%s7 + $0xc0] sm:$0xff]
    %v4901 = vld [vmem:[%s7 + $0xc8] sm:$0xff]
    %v4902 = vld [vmem:[%s7 + $0xd0] sm:$0xff]
    %v4903 = vld [vmem:[%s7 + $0xd8] sm:$0xff]
    %v4904 = vld [vmem:[%s7 + $0xe0] sm:$0xff]
    %v4905 = vld [vmem:[%s7 + $0xe8] sm:$0xff]
    %v4906 = vld [vmem:[%s7 + $0xf0] sm:$0xff]
    %v4907 = vld [vmem:[%s7 + $0xf8] sm:$0xff]
    %v4908 = vld [vmem:[%s7 + $0x100] sm:$0xff]
    %v4909 = vld [vmem:[%s7 + $0x108] sm:$0xff]
    %v4910 = vld [vmem:[%s7 + $0x110] sm:$0xff]
    %v4911 = vld [vmem:[%s7 + $0x118] sm:$0xff]
    %v4912 = vld [vmem:[%s7 + $0x120] sm:$0xff]
    %v4913 = vld [vmem:[%s7 + $0x128] sm:$0xff]
    %v4914 = vld [vmem:[%s7 + $0x130] sm:$0xff]
    %v4915 = vld [vmem:[%s7 + $0x138] sm:$0xff]
    %v4916 = vld [vmem:[%s7 + $0x140] sm:$0xff]
    %v4917 = vld [vmem:[%s7 + $0x148] sm:$0xff]
    %v4918 = vld [vmem:[%s7 + $0x150] sm:$0xff]
    %v4919 = vld [vmem:[%s7 + $0x158] sm:$0xff]
    %v4920 = vld [vmem:[%s7 + $0x160] sm:$0xff]
    %v4921 = vld [vmem:[%s7 + $0x168] sm:$0xff]
    %v4922 = vld [vmem:[%s7 + $0x170] sm:$0xff]
    %v4923 = vld [vmem:[%s7 + $0x178] sm:$0xff]
    %v4924 = vld [vmem:[%s7 + $0x180] sm:$0xff]
    %v4925 = vld [vmem:[%s7 + $0x188] sm:$0xff]
    %v4926 = vld [vmem:[%s7 + $0x190] sm:$0xff]
    %v4927 = vld [vmem:[%s7 + $0x198] sm:$0xff]
    %v4928 = vld [vmem:[%s7 + $0x1a0] sm:$0xff]
    %v4929 = vld [vmem:[%s7 + $0x1a8] sm:$0xff]
    %v4930 = vld [vmem:[%s7 + $0x1b0] sm:$0xff]
    %v4931 = vld [vmem:[%s7 + $0x1b8] sm:$0xff]
    %v4932 = vld [vmem:[%s7 + $0x1c0] sm:$0xff]
    %v4933 = vld [vmem:[%s7 + $0x1c8] sm:$0xff]
    %v4934 = vld [vmem:[%s7 + $0x1d0] sm:$0xff]
    %v4935 = vld [vmem:[%s7 + $0x1d8] sm:$0xff]
    %v4936 = vld [vmem:[%s7 + $0x1e0] sm:$0xff]
    %v4937 = vld [vmem:[%s7 + $0x1e8] sm:$0xff]
    %v4938 = vld [vmem:[%s7 + $0x1f0] sm:$0xff]
    %v4939 = vld [vmem:[%s7 + $0x1f8] sm:$0xff]
    %v4940 = vld [vmem:[%s7 + $0x200] sm:$0xff]
    %v4941 = vld [vmem:[%s7 + $0x208] sm:$0xff]
    %v4942 = vld [vmem:[%s7 + $0x210] sm:$0xff]
    %v4943 = vld [vmem:[%s7 + $0x218] sm:$0xff]
    %v4944 = vld [vmem:[%s7 + $0x220] sm:$0xff]
    %v4945 = vld [vmem:[%s7 + $0x228] sm:$0xff]
    %v4946 = vld [vmem:[%s7 + $0x230] sm:$0xff]
    %v4947 = vld [vmem:[%s7 + $0x238] sm:$0xff]
    %v4948 = vld [vmem:[%s7 + $0x240] sm:$0xff]
    %v4949 = vld [vmem:[%s7 + $0x248] sm:$0xff]
    %v4950 = vld [vmem:[%s7 + $0x250] sm:$0xff]
    %v4951 = vld [vmem:[%s7 + $0x258] sm:$0xff]
    %v4952 = vld [vmem:[%s7 + $0x260] sm:$0xff]
    %v4953 = vld [vmem:[%s7 + $0x268] sm:$0xff]
    %v4954 = vld [vmem:[%s7 + $0x270] sm:$0xff]
    %v4955 = vld [vmem:[%s7 + $0x278] sm:$0xff]
    %v4956 = vld [vmem:[%s7 + $0x280] sm:$0xff]
    %v4957 = vld [vmem:[%s7 + $0x288] sm:$0xff]
    %v4958 = vld [vmem:[%s7 + $0x290] sm:$0xff]
    %v4959 = vld [vmem:[%s7 + $0x298] sm:$0xff]
    %v4960 = vld [vmem:[%s7 + $0x2a0] sm:$0xff]
    %v4961 = vld [vmem:[%s7 + $0x2a8] sm:$0xff]
    %v4962 = vld [vmem:[%s7 + $0x2b0] sm:$0xff]
    %v4963 = vld [vmem:[%s7 + $0x2b8] sm:$0xff]
    %v4964 = vld [vmem:[%s7 + $0x2c0] sm:$0xff]
    %v4965 = vld [vmem:[%s7 + $0x2c8] sm:$0xff]
    %v4966 = vld [vmem:[%s7 + $0x2d0] sm:$0xff]
    %v4967 = vld [vmem:[%s7 + $0x2d8] sm:$0xff]
    %v4968 = vld [vmem:[%s7 + $0x2e0] sm:$0xff]
    %v4969 = vld [vmem:[%s7 + $0x2e8] sm:$0xff]
    %v4970 = vld [vmem:[%s7 + $0x2f0] sm:$0xff]
    %v4971 = vld [vmem:[%s7 + $0x2f8] sm:$0xff]
    %v4972 = vld [vmem:[%s7 + $0x300] sm:$0xff]
    %v4973 = vld [vmem:[%s7 + $0x308] sm:$0xff]
    %v4974 = vld [vmem:[%s7 + $0x310] sm:$0xff]
    %v4975 = vld [vmem:[%s7 + $0x318] sm:$0xff]
    %v4976 = vld [vmem:[%s7 + $0x320] sm:$0xff]
    %v4977 = vld [vmem:[%s7 + $0x328] sm:$0xff]
    %v4978 = vld [vmem:[%s7 + $0x330] sm:$0xff]
    %v4979 = vld [vmem:[%s7 + $0x338] sm:$0xff]
    %v4980 = vld [vmem:[%s7 + $0x340] sm:$0xff]
    %v4981 = vld [vmem:[%s7 + $0x348] sm:$0xff]
    %v4982 = vld [vmem:[%s7 + $0x350] sm:$0xff]
    %v4983 = vld [vmem:[%s7 + $0x358] sm:$0xff]
    %v4984 = vld [vmem:[%s7 + $0x360] sm:$0xff]
    %v4985 = vld [vmem:[%s7 + $0x368] sm:$0xff]
    %v4986 = vld [vmem:[%s7 + $0x370] sm:$0xff]
    %v4987 = vld [vmem:[%s7 + $0x378] sm:$0xff]
    %v4988 = vld [vmem:[%s7 + $0x380] sm:$0xff]
    %v4989 = vld [vmem:[%s7 + $0x388] sm:$0xff]
    %v4990 = vld [vmem:[%s7 + $0x390] sm:$0xff]
    %v4991 = vld [vmem:[%s7 + $0x398] sm:$0xff]
    %v4992 = vld [vmem:[%s7 + $0x3a0] sm:$0xff]
    %v4993 = vld [vmem:[%s7 + $0x3a8] sm:$0xff]
    %v4994 = vld [vmem:[%s7 + $0x3b0] sm:$0xff]
    %v4995 = vld [vmem:[%s7 + $0x3b8] sm:$0xff]
    %v4996 = vld [vmem:[%s7 + $0x3c0] sm:$0xff]
    %v4997 = vld [vmem:[%s7 + $0x3c8] sm:$0xff]
    %v4998 = vld [vmem:[%s7 + $0x3d0] sm:$0xff]
    %v4999 = vld [vmem:[%s7 + $0x3d8] sm:$0xff]
    %v5000 = vld [vmem:[%s7 + $0x3e0] sm:$0xff]
    %v5001 = vld [vmem:[%s7 + $0x3e8] sm:$0xff]
    %v5002 = vld [vmem:[%s7 + $0x3f0] sm:$0xff]
    %v5003 = vld [vmem:[%s7 + $0x3f8] sm:$0xff]
    %v5004 = vld [vmem:[%s7 + $0x400] sm:$0xff]
    %v5005 = vld [vmem:[%s7 + $0x408] sm:$0xff]
    %v5006 = vld [vmem:[%s7 + $0x410] sm:$0xff]
    %v5007 = vld [vmem:[%s7 + $0x418] sm:$0xff]
    %v5008 = vld [vmem:[%s7 + $0x420] sm:$0xff]
    %v5009 = vld [vmem:[%s7 + $0x428] sm:$0xff]
    %v5010 = vld [vmem:[%s7 + $0x430] sm:$0xff]
    %v5011 = vld [vmem:[%s7 + $0x438] sm:$0xff]
    %v5012 = vld [vmem:[%s7 + $0x440] sm:$0xff]
    %v5013 = vld [vmem:[%s7 + $0x448] sm:$0xff]
    %v5014 = vld [vmem:[%s7 + $0x450] sm:$0xff]
    %v5015 = vld [vmem:[%s7 + $0x458] sm:$0xff]
    %v5016 = vld [vmem:[%s7 + $0x460] sm:$0xff]
    %v5017 = vld [vmem:[%s7 + $0x468] sm:$0xff]
    %v5018 = vld [vmem:[%s7 + $0x470] sm:$0xff]
    %v5019 = vld [vmem:[%s7 + $0x478] sm:$0xff]
    %v5020 = vld [vmem:[%s7 + $0x480] sm:$0xff]
    %v5021 = vld [vmem:[%s7 + $0x488] sm:$0xff]
    %v5022 = vld [vmem:[%s7 + $0x490] sm:$0xff]
    %v5023 = vld [vmem:[%s7 + $0x498] sm:$0xff]
    %v5024 = vld [vmem:[%s7 + $0x4a0] sm:$0xff]
    %v5025 = vld [vmem:[%s7 + $0x4a8] sm:$0xff]
    %v5026 = vld [vmem:[%s7 + $0x4b0] sm:$0xff]
    %v5027 = vld [vmem:[%s7 + $0x4b8] sm:$0xff]
    %v5028 = vld [vmem:[%s7 + $0x4c0] sm:$0xff]
    %v5029 = vld [vmem:[%s7 + $0x4c8] sm:$0xff]
    %v5030 = vld [vmem:[%s7 + $0x4d0] sm:$0xff]
    %v5031 = vld [vmem:[%s7 + $0x4d8] sm:$0xff]
    %v5032 = vld [vmem:[%s7 + $0x4e0] sm:$0xff]
    %v5033 = vld [vmem:[%s7 + $0x4e8] sm:$0xff]
    %v5034 = vld [vmem:[%s7 + $0x4f0] sm:$0xff]
    %v5035 = vld [vmem:[%s7 + $0x4f8] sm:$0xff]
    %v5036 = vld [vmem:[%s7 + $0x500] sm:$0xff]
    %v5037 = vld [vmem:[%s7 + $0x508] sm:$0xff]
    %v5038 = vld [vmem:[%s7 + $0x510] sm:$0xff]
    %v5039 = vld [vmem:[%s7 + $0x518] sm:$0xff]
    %v5040 = vld [vmem:[%s7 + $0x520] sm:$0xff]
    %v5041 = vld [vmem:[%s7 + $0x528] sm:$0xff]
    %v5042 = vld [vmem:[%s7 + $0x530] sm:$0xff]
    %v5043 = vld [vmem:[%s7 + $0x538] sm:$0xff]
    %v5044 = vld [vmem:[%s7 + $0x540] sm:$0xff]
    %v5045 = vld [vmem:[%s7 + $0x548] sm:$0xff]
    %v5046 = vld [vmem:[%s7 + $0x550] sm:$0xff]
    %v5047 = vld [vmem:[%s7 + $0x558] sm:$0xff]
    %v5048 = vld [vmem:[%s7 + $0x560] sm:$0xff]
    %v5049 = vld [vmem:[%s7 + $0x568] sm:$0xff]
    %v5050 = vld [vmem:[%s7 + $0x570] sm:$0xff]
    %v5051 = vld [vmem:[%s7 + $0x578] sm:$0xff]
    %v5052 = vld [vmem:[%s7 + $0x580] sm:$0xff]
    %v5053 = vld [vmem:[%s7 + $0x588] sm:$0xff]
    %v5054 = vld [vmem:[%s7 + $0x590] sm:$0xff]
    %v5055 = vld [vmem:[%s7 + $0x598] sm:$0xff]
    %v5056 = vld [vmem:[%s7 + $0x5a0] sm:$0xff]
    %v5057 = vld [vmem:[%s7 + $0x5a8] sm:$0xff]
    %v5058 = vld [vmem:[%s7 + $0x5b0] sm:$0xff]
    %v5059 = vld [vmem:[%s7 + $0x5b8] sm:$0xff]
    %v5060 = vld [vmem:[%s7 + $0x5c0] sm:$0xff]
    %v5061 = vld [vmem:[%s7 + $0x5c8] sm:$0xff]
    %v5062 = vld [vmem:[%s7 + $0x5d0] sm:$0xff]
    %v5063 = vld [vmem:[%s7 + $0x5d8] sm:$0xff]
    %v5064 = vld [vmem:[%s7 + $0x5e0] sm:$0xff]
    %v5065 = vld [vmem:[%s7 + $0x5e8] sm:$0xff]
    %v5066 = vld [vmem:[%s7 + $0x5f0] sm:$0xff]
    %v5067 = vld [vmem:[%s7 + $0x5f8] sm:$0xff]
    %v5068 = vld [vmem:[%s7 + $0x600] sm:$0xff]
    %v5069 = vld [vmem:[%s7 + $0x608] sm:$0xff]
    %v5070 = vld [vmem:[%s7 + $0x610] sm:$0xff]
    %v5071 = vld [vmem:[%s7 + $0x618] sm:$0xff]
    %v5072 = vld [vmem:[%s7 + $0x620] sm:$0xff]
    %v5073 = vld [vmem:[%s7 + $0x628] sm:$0xff]
    %v5074 = vld [vmem:[%s7 + $0x630] sm:$0xff]
    %v5075 = vld [vmem:[%s7 + $0x638] sm:$0xff]
    %v5076 = vld [vmem:[%s7 + $0x640] sm:$0xff]
    %v5077 = vld [vmem:[%s7 + $0x648] sm:$0xff]
    %v5078 = vld [vmem:[%s7 + $0x650] sm:$0xff]
    %v5079 = vld [vmem:[%s7 + $0x658] sm:$0xff]
    %v5080 = vld [vmem:[%s7 + $0x660] sm:$0xff]
    %v5081 = vld [vmem:[%s7 + $0x668] sm:$0xff]
    %v5082 = vld [vmem:[%s7 + $0x670] sm:$0xff]
    %v5083 = vld [vmem:[%s7 + $0x678] sm:$0xff]
    %v5084 = vld [vmem:[%s7 + $0x680] sm:$0xff]
    %v5085 = vld [vmem:[%s7 + $0x688] sm:$0xff]
    %v5086 = vld [vmem:[%s7 + $0x690] sm:$0xff]
    %v5087 = vld [vmem:[%s7 + $0x698] sm:$0xff]
    %v5088 = vld [vmem:[%s7 + $0x6a0] sm:$0xff]
    %v5089 = vld [vmem:[%s7 + $0x6a8] sm:$0xff]
    %v5090 = vld [vmem:[%s7 + $0x6b0] sm:$0xff]
    %v5091 = vld [vmem:[%s7 + $0x6b8] sm:$0xff]
    %v5092 = vld [vmem:[%s7 + $0x6c0] sm:$0xff]
    %v5093 = vld [vmem:[%s7 + $0x6c8] sm:$0xff]
    %v5094 = vld [vmem:[%s7 + $0x6d0] sm:$0xff]
    %v5095 = vld [vmem:[%s7 + $0x6d8] sm:$0xff]
    %v5096 = vld [vmem:[%s7 + $0x6e0] sm:$0xff]
    %v5097 = vld [vmem:[%s7 + $0x6e8] sm:$0xff]
    %v5098 = vld [vmem:[%s7 + $0x6f0] sm:$0xff]
    %v5099 = vld [vmem:[%s7 + $0x6f8] sm:$0xff]
    %v5100 = vld [vmem:[%s7 + $0x700] sm:$0xff]
    %v5101 = vld [vmem:[%s7 + $0x708] sm:$0xff]
    %v5102 = vld [vmem:[%s7 + $0x710] sm:$0xff]
    %v5103 = vld [vmem:[%s7 + $0x718] sm:$0xff]
    %v5104 = vld [vmem:[%s7 + $0x720] sm:$0xff]
    %v5105 = vld [vmem:[%s7 + $0x728] sm:$0xff]
    %v5106 = vld [vmem:[%s7 + $0x730] sm:$0xff]
    %v5107 = vld [vmem:[%s7 + $0x738] sm:$0xff]
    %v5108 = vld [vmem:[%s7 + $0x740] sm:$0xff]
    %v5109 = vld [vmem:[%s7 + $0x748] sm:$0xff]
    %v5110 = vld [vmem:[%s7 + $0x750] sm:$0xff]
    %v5111 = vld [vmem:[%s7 + $0x758] sm:$0xff]
    %v5112 = vld [vmem:[%s7 + $0x760] sm:$0xff]
    %v5113 = vld [vmem:[%s7 + $0x768] sm:$0xff]
    %v5114 = vld [vmem:[%s7 + $0x770] sm:$0xff]
    %v5115 = vld [vmem:[%s7 + $0x778] sm:$0xff]
    %v5116 = vld [vmem:[%s7 + $0x780] sm:$0xff]
    %v5117 = vld [vmem:[%s7 + $0x788] sm:$0xff]
    %v5118 = vld [vmem:[%s7 + $0x790] sm:$0xff]
    %v5119 = vld [vmem:[%s7 + $0x798] sm:$0xff]
    %v5120 = vld [vmem:[%s7 + $0x7a0] sm:$0xff]
    %v5121 = vld [vmem:[%s7 + $0x7a8] sm:$0xff]
    %v5122 = vld [vmem:[%s7 + $0x7b0] sm:$0xff]
    %v5123 = vld [vmem:[%s7 + $0x7b8] sm:$0xff]
    %v5124 = vld [vmem:[%s7 + $0x7c0] sm:$0xff]
    %v5125 = vld [vmem:[%s7 + $0x7c8] sm:$0xff]
    %v5126 = vld [vmem:[%s7 + $0x7d0] sm:$0xff]
    %v5127 = vld [vmem:[%s7 + $0x7d8] sm:$0xff]
    %v5128 = vld [vmem:[%s7 + $0x7e0] sm:$0xff]
    %v5129 = vld [vmem:[%s7 + $0x7e8] sm:$0xff]
    %v5130 = vld [vmem:[%s7 + $0x7f0] sm:$0xff]
    %v5131 = vld [vmem:[%s7 + $0x7f8] sm:$0xff]
    %v5132 = vld [vmem:[%s7 + $0x800] sm:$0xff]
    %v5133 = vld [vmem:[%s7 + $0x808] sm:$0xff]
    %v5134 = vld [vmem:[%s7 + $0x810] sm:$0xff]
    %v5135 = vld [vmem:[%s7 + $0x818] sm:$0xff]
    %v5136 = vld [vmem:[%s7 + $0x820] sm:$0xff]
    %v5137 = vld [vmem:[%s7 + $0x828] sm:$0xff]
    %v5138 = vld [vmem:[%s7 + $0x830] sm:$0xff]
    %v5139 = vld [vmem:[%s7 + $0x838] sm:$0xff]
    %v5140 = vld [vmem:[%s7 + $0x840] sm:$0xff]
    %v5141 = vld [vmem:[%s7 + $0x848] sm:$0xff]
    %v5142 = vld [vmem:[%s7 + $0x850] sm:$0xff]
    %v5143 = vld [vmem:[%s7 + $0x858] sm:$0xff]
    %v5144 = vld [vmem:[%s7 + $0x860] sm:$0xff]
    %v5145 = vld [vmem:[%s7 + $0x868] sm:$0xff]
    %v5146 = vld [vmem:[%s7 + $0x870] sm:$0xff]
    %v5147 = vld [vmem:[%s7 + $0x878] sm:$0xff]
    %v5148 = vld [vmem:[%s7 + $0x880] sm:$0xff]
    %v5149 = vld [vmem:[%s7 + $0x888] sm:$0xff]
    %v5150 = vld [vmem:[%s7 + $0x890] sm:$0xff]
    %v5151 = vld [vmem:[%s7 + $0x898] sm:$0xff]
    %v5152 = vld [vmem:[%s7 + $0x8a0] sm:$0xff]
    %v5153 = vld [vmem:[%s7 + $0x8a8] sm:$0xff]
    %v5154 = vld [vmem:[%s7 + $0x8b0] sm:$0xff]
    %v5155 = vld [vmem:[%s7 + $0x8b8] sm:$0xff]
    %v5156 = vld [vmem:[%s7 + $0x8c0] sm:$0xff]
    %v5157 = vld [vmem:[%s7 + $0x8c8] sm:$0xff]
    %v5158 = vld [vmem:[%s7 + $0x8d0] sm:$0xff]
    %v5159 = vld [vmem:[%s7 + $0x8d8] sm:$0xff]
    %v5160 = vld [vmem:[%s7 + $0x8e0] sm:$0xff]
    %v5161 = vld [vmem:[%s7 + $0x8e8] sm:$0xff]
    %v5162 = vld [vmem:[%s7 + $0x8f0] sm:$0xff]
    %v5163 = vld [vmem:[%s7 + $0x8f8] sm:$0xff]
    %v5164 = vld [vmem:[%s7 + $0x900] sm:$0xff]
    %v5165 = vld [vmem:[%s7 + $0x908] sm:$0xff]
    %v5166 = vld [vmem:[%s7 + $0x910] sm:$0xff]
    %v5167 = vld [vmem:[%s7 + $0x918] sm:$0xff]
    %v5168 = vld [vmem:[%s7 + $0x920] sm:$0xff]
    %v5169 = vld [vmem:[%s7 + $0x928] sm:$0xff]
    %v5170 = vld [vmem:[%s7 + $0x930] sm:$0xff]
    %v5171 = vld [vmem:[%s7 + $0x938] sm:$0xff]
    %v5172 = vld [vmem:[%s7 + $0x940] sm:$0xff]
    %v5173 = vld [vmem:[%s7 + $0x948] sm:$0xff]
    %v5174 = vld [vmem:[%s7 + $0x950] sm:$0xff]
    %v5175 = vld [vmem:[%s7 + $0x958] sm:$0xff]
    %v5176 = vld [vmem:[%s7 + $0x960] sm:$0xff]
    %v5177 = vld [vmem:[%s7 + $0x968] sm:$0xff]
    %v5178 = vld [vmem:[%s7 + $0x970] sm:$0xff]
    %v5179 = vld [vmem:[%s7 + $0x978] sm:$0xff]
    %v5180 = vld [vmem:[%s7 + $0x980] sm:$0xff]
    %v5181 = vld [vmem:[%s7 + $0x988] sm:$0xff]
    %v5182 = vld [vmem:[%s7 + $0x990] sm:$0xff]
    %v5183 = vld [vmem:[%s7 + $0x998] sm:$0xff]
    %v5184 = vld [vmem:[%s7 + $0x9a0] sm:$0xff]
    %v5185 = vld [vmem:[%s7 + $0x9a8] sm:$0xff]
    %v5186 = vld [vmem:[%s7 + $0x9b0] sm:$0xff]
    %v5187 = vld [vmem:[%s7 + $0x9b8] sm:$0xff]
    %v5188 = vld [vmem:[%s7 + $0x9c0] sm:$0xff]
    %v5189 = vld [vmem:[%s7 + $0x9c8] sm:$0xff]
    %v5190 = vld [vmem:[%s7 + $0x9d0] sm:$0xff]
    %v5191 = vld [vmem:[%s7 + $0x9d8] sm:$0xff]
    %v5192 = vld [vmem:[%s7 + $0x9e0] sm:$0xff]
    %v5193 = vld [vmem:[%s7 + $0x9e8] sm:$0xff]
    %v5194 = vld [vmem:[%s7 + $0x9f0] sm:$0xff]
    %v5195 = vld [vmem:[%s7 + $0x9f8] sm:$0xff]
    %v5196 = vld [vmem:[%s7 + $0xa00] sm:$0xff]
    %v5197 = vld [vmem:[%s7 + $0xa08] sm:$0xff]
    %v5198 = vld [vmem:[%s7 + $0xa10] sm:$0xff]
    %v5199 = vld [vmem:[%s7 + $0xa18] sm:$0xff]
    %v5200 = vld [vmem:[%s7 + $0xa20] sm:$0xff]
    %v5201 = vld [vmem:[%s7 + $0xa28] sm:$0xff]
    %v5202 = vld [vmem:[%s7 + $0xa30] sm:$0xff]
    %v5203 = vld [vmem:[%s7 + $0xa38] sm:$0xff]
    %v5204 = vld [vmem:[%s7 + $0xa40] sm:$0xff]
    %v5205 = vld [vmem:[%s7 + $0xa48] sm:$0xff]
    %v5206 = vld [vmem:[%s7 + $0xa50] sm:$0xff]
    %v5207 = vld [vmem:[%s7 + $0xa58] sm:$0xff]
    %v5208 = vld [vmem:[%s7 + $0xa60] sm:$0xff]
    %v5209 = vld [vmem:[%s7 + $0xa68] sm:$0xff]
    %v5210 = vld [vmem:[%s7 + $0xa70] sm:$0xff]
    %v5211 = vld [vmem:[%s7 + $0xa78] sm:$0xff]
    %v5212 = vld [vmem:[%s7 + $0xa80] sm:$0xff]
    %v5213 = vld [vmem:[%s7 + $0xa88] sm:$0xff]
    %v5214 = vld [vmem:[%s7 + $0xa90] sm:$0xff]
    %v5215 = vld [vmem:[%s7 + $0xa98] sm:$0xff]
    %v5216 = vld [vmem:[%s7 + $0xaa0] sm:$0xff]
    %v5217 = vld [vmem:[%s7 + $0xaa8] sm:$0xff]
    %v5218 = vld [vmem:[%s7 + $0xab0] sm:$0xff]
    %v5219 = vld [vmem:[%s7 + $0xab8] sm:$0xff]
    %v5220 = vld [vmem:[%s7 + $0xac0] sm:$0xff]
    %v5221 = vld [vmem:[%s7 + $0xac8] sm:$0xff]
    %v5222 = vld [vmem:[%s7 + $0xad0] sm:$0xff]
    %v5223 = vld [vmem:[%s7 + $0xad8] sm:$0xff]
    %v5224 = vld [vmem:[%s7 + $0xae0] sm:$0xff]
    %v5225 = vld [vmem:[%s7 + $0xae8] sm:$0xff]
    %v5226 = vld [vmem:[%s7 + $0xaf0] sm:$0xff]
    %v5227 = vld [vmem:[%s7 + $0xaf8] sm:$0xff]
    %v5228 = vld [vmem:[%s7 + $0xb00] sm:$0xff]
    %v5229 = vld [vmem:[%s7 + $0xb08] sm:$0xff]
    %v5230 = vld [vmem:[%s7 + $0xb10] sm:$0xff]
    %v5231 = vld [vmem:[%s7 + $0xb18] sm:$0xff]
    %v5232 = vld [vmem:[%s7 + $0xb20] sm:$0xff]
    %v5233 = vld [vmem:[%s7 + $0xb28] sm:$0xff]
    %v5234 = vld [vmem:[%s7 + $0xb30] sm:$0xff]
    %v5235 = vld [vmem:[%s7 + $0xb38] sm:$0xff]
    %v5236 = vld [vmem:[%s7 + $0xb40] sm:$0xff]
    %v5237 = vld [vmem:[%s7 + $0xb48] sm:$0xff]
    %v5238 = vld [vmem:[%s7 + $0xb50] sm:$0xff]
    %v5239 = vld [vmem:[%s7 + $0xb58] sm:$0xff]
    %v5240 = vld [vmem:[%s7 + $0xb60] sm:$0xff]
    %v5241 = vld [vmem:[%s7 + $0xb68] sm:$0xff]
    %v5242 = vld [vmem:[%s7 + $0xb70] sm:$0xff]
    %v5243 = vld [vmem:[%s7 + $0xb78] sm:$0xff]
    %v5244 = vld [vmem:[%s7 + $0xb80] sm:$0xff]
    %v5245 = vld [vmem:[%s7 + $0xb88] sm:$0xff]
    %v5246 = vld [vmem:[%s7 + $0xb90] sm:$0xff]
    %v5247 = vld [vmem:[%s7 + $0xb98] sm:$0xff]
    %v5248 = vld [vmem:[%s7 + $0xba0] sm:$0xff]
    %v5249 = vld [vmem:[%s7 + $0xba8] sm:$0xff]
    %v5250 = vld [vmem:[%s7 + $0xbb0] sm:$0xff]
    %v5251 = vld [vmem:[%s7 + $0xbb8] sm:$0xff]
    %v5252 = vld [vmem:[%s7 + $0xbc0] sm:$0xff]
    %v5253 = vld [vmem:[%s7 + $0xbc8] sm:$0xff]
    %v5254 = vld [vmem:[%s7 + $0xbd0] sm:$0xff]
    %v5255 = vld [vmem:[%s7 + $0xbd8] sm:$0xff]
    %v5256 = vld [vmem:[%s7 + $0xbe0] sm:$0xff]
    %v5257 = vld [vmem:[%s7 + $0xbe8] sm:$0xff]
    %v5258 = vld [vmem:[%s7 + $0xbf0] sm:$0xff]
    %v5259 = vld [vmem:[%s7 + $0xbf8] sm:$0xff]
    %v5260 = vld [vmem:[%s7 + $0xc00] sm:$0xff]
    %v5261 = vld [vmem:[%s7 + $0xc08] sm:$0xff]
    %v5262 = vld [vmem:[%s7 + $0xc10] sm:$0xff]
    %v5263 = vld [vmem:[%s7 + $0xc18] sm:$0xff]
    %v5264 = vld [vmem:[%s7 + $0xc20] sm:$0xff]
    %v5265 = vld [vmem:[%s7 + $0xc28] sm:$0xff]
    %v5266 = vld [vmem:[%s7 + $0xc30] sm:$0xff]
    %v5267 = vld [vmem:[%s7 + $0xc38] sm:$0xff]
    %v5268 = vld [vmem:[%s7 + $0xc40] sm:$0xff]
    %v5269 = vld [vmem:[%s7 + $0xc48] sm:$0xff]
    %v5270 = vld [vmem:[%s7 + $0xc50] sm:$0xff]
    %v5271 = vld [vmem:[%s7 + $0xc58] sm:$0xff]
    %v5272 = vld [vmem:[%s7 + $0xc60] sm:$0xff]
    %v5273 = vld [vmem:[%s7 + $0xc68] sm:$0xff]
    %v5274 = vld [vmem:[%s7 + $0xc70] sm:$0xff]
    %v5275 = vld [vmem:[%s7 + $0xc78] sm:$0xff]
    %v5276 = vld [vmem:[%s7 + $0xc80] sm:$0xff]
    %v5277 = vld [vmem:[%s7 + $0xc88] sm:$0xff]
    %v5278 = vld [vmem:[%s7 + $0xc90] sm:$0xff]
    %v5279 = vld [vmem:[%s7 + $0xc98] sm:$0xff]
    %v5280 = vld [vmem:[%s7 + $0xca0] sm:$0xff]
    %v5281 = vld [vmem:[%s7 + $0xca8] sm:$0xff]
    %v5282 = vld [vmem:[%s7 + $0xcb0] sm:$0xff]
    %v5283 = vld [vmem:[%s7 + $0xcb8] sm:$0xff]
    %v5284 = vld [vmem:[%s7 + $0xcc0] sm:$0xff]
    %v5285 = vld [vmem:[%s7 + $0xcc8] sm:$0xff]
    %v5286 = vld [vmem:[%s7 + $0xcd0] sm:$0xff]
    %v5287 = vld [vmem:[%s7 + $0xcd8] sm:$0xff]
    %v5288 = vld [vmem:[%s7 + $0xce0] sm:$0xff]
    %v5289 = vld [vmem:[%s7 + $0xce8] sm:$0xff]
    %v5290 = vld [vmem:[%s7 + $0xcf0] sm:$0xff]
    %v5291 = vld [vmem:[%s7 + $0xcf8] sm:$0xff]
    %v5292 = vld [vmem:[%s7 + $0xd00] sm:$0xff]
    %v5293 = vld [vmem:[%s7 + $0xd08] sm:$0xff]
    %v5294 = vld [vmem:[%s7 + $0xd10] sm:$0xff]
    %v5295 = vld [vmem:[%s7 + $0xd18] sm:$0xff]
    %v5296 = vld [vmem:[%s7 + $0xd20] sm:$0xff]
    %v5297 = vld [vmem:[%s7 + $0xd28] sm:$0xff]
    %v5298 = vld [vmem:[%s7 + $0xd30] sm:$0xff]
    %v5299 = vld [vmem:[%s7 + $0xd38] sm:$0xff]
    %v5300 = vld [vmem:[%s7 + $0xd40] sm:$0xff]
    %v5301 = vld [vmem:[%s7 + $0xd48] sm:$0xff]
    %v5302 = vld [vmem:[%s7 + $0xd50] sm:$0xff]
    %v5303 = vld [vmem:[%s7 + $0xd58] sm:$0xff]
    %v5304 = vld [vmem:[%s7 + $0xd60] sm:$0xff]
    %v5305 = vld [vmem:[%s7 + $0xd68] sm:$0xff]
    %v5306 = vld [vmem:[%s7 + $0xd70] sm:$0xff]
    %v5307 = vld [vmem:[%s7 + $0xd78] sm:$0xff]
    %v5308 = vld [vmem:[%s7 + $0xd80] sm:$0xff]
    %v5309 = vld [vmem:[%s7 + $0xd88] sm:$0xff]
    %v5310 = vld [vmem:[%s7 + $0xd90] sm:$0xff]
    %v5311 = vld [vmem:[%s7 + $0xd98] sm:$0xff]
    %v5312 = vld [vmem:[%s7 + $0xda0] sm:$0xff]
    %v5313 = vld [vmem:[%s7 + $0xda8] sm:$0xff]
    %v5314 = vld [vmem:[%s7 + $0xdb0] sm:$0xff]
    %v5315 = vld [vmem:[%s7 + $0xdb8] sm:$0xff]
    %v5316 = vld [vmem:[%s7 + $0xdc0] sm:$0xff]
    %v5317 = vld [vmem:[%s7 + $0xdc8] sm:$0xff]
    %v5318 = vld [vmem:[%s7 + $0xdd0] sm:$0xff]
    %v5319 = vld [vmem:[%s7 + $0xdd8] sm:$0xff]
    %v5320 = vld [vmem:[%s7 + $0xde0] sm:$0xff]
    %v5321 = vld [vmem:[%s7 + $0xde8] sm:$0xff]
    %v5322 = vld [vmem:[%s7 + $0xdf0] sm:$0xff]
    %v5323 = vld [vmem:[%s7 + $0xdf8] sm:$0xff]
    %v5324 = vld [vmem:[%s7 + $0xe00] sm:$0xff]
    %v5325 = vld [vmem:[%s7 + $0xe08] sm:$0xff]
    %v5326 = vld [vmem:[%s7 + $0xe10] sm:$0xff]
    %v5327 = vld [vmem:[%s7 + $0xe18] sm:$0xff]
    %v5328 = vld [vmem:[%s7 + $0xe20] sm:$0xff]
    %v5329 = vld [vmem:[%s7 + $0xe28] sm:$0xff]
    %v5330 = vld [vmem:[%s7 + $0xe30] sm:$0xff]
    %v5331 = vld [vmem:[%s7 + $0xe38] sm:$0xff]
    %v5332 = vld [vmem:[%s7 + $0xe40] sm:$0xff]
    %v5333 = vld [vmem:[%s7 + $0xe48] sm:$0xff]
    %v5334 = vld [vmem:[%s7 + $0xe50] sm:$0xff]
    %v5335 = vld [vmem:[%s7 + $0xe58] sm:$0xff]
    %v5336 = vld [vmem:[%s7 + $0xe60] sm:$0xff]
    %v5337 = vld [vmem:[%s7 + $0xe68] sm:$0xff]
    %v5338 = vld [vmem:[%s7 + $0xe70] sm:$0xff]
    %v5339 = vld [vmem:[%s7 + $0xe78] sm:$0xff]
    %v5340 = vld [vmem:[%s7 + $0xe80] sm:$0xff]
    %v5341 = vld [vmem:[%s7 + $0xe88] sm:$0xff]
    %v5342 = vld [vmem:[%s7 + $0xe90] sm:$0xff]
    %v5343 = vld [vmem:[%s7 + $0xe98] sm:$0xff]
    %v5344 = vld [vmem:[%s7 + $0xea0] sm:$0xff]
    %v5345 = vld [vmem:[%s7 + $0xea8] sm:$0xff]
    %v5346 = vld [vmem:[%s7 + $0xeb0] sm:$0xff]
    %v5347 = vld [vmem:[%s7 + $0xeb8] sm:$0xff]
    %v5348 = vld [vmem:[%s7 + $0xec0] sm:$0xff]
    %v5349 = vld [vmem:[%s7 + $0xec8] sm:$0xff]
    %v5350 = vld [vmem:[%s7 + $0xed0] sm:$0xff]
    %v5351 = vld [vmem:[%s7 + $0xed8] sm:$0xff]
    %v5352 = vld [vmem:[%s7 + $0xee0] sm:$0xff]
    %v5353 = vld [vmem:[%s7 + $0xee8] sm:$0xff]
    %v5354 = vld [vmem:[%s7 + $0xef0] sm:$0xff]
    %v5355 = vld [vmem:[%s7 + $0xef8] sm:$0xff]
    %v5356 = vld [vmem:[%s7 + $0xf00] sm:$0xff]
    %v5357 = vld [vmem:[%s7 + $0xf08] sm:$0xff]
    %v5358 = vld [vmem:[%s7 + $0xf10] sm:$0xff]
    %v5359 = vld [vmem:[%s7 + $0xf18] sm:$0xff]
    %v5360 = vld [vmem:[%s7 + $0xf20] sm:$0xff]
    %v5361 = vld [vmem:[%s7 + $0xf28] sm:$0xff]
    %v5362 = vld [vmem:[%s7 + $0xf30] sm:$0xff]
    %v5363 = vld [vmem:[%s7 + $0xf38] sm:$0xff]
    %v5364 = vld [vmem:[%s7 + $0xf40] sm:$0xff]
    %v5365 = vld [vmem:[%s7 + $0xf48] sm:$0xff]
    %v5366 = vld [vmem:[%s7 + $0xf50] sm:$0xff]
    %v5367 = vld [vmem:[%s7 + $0xf58] sm:$0xff]
    %v5368 = vld [vmem:[%s7 + $0xf60] sm:$0xff]
    %v5369 = vld [vmem:[%s7 + $0xf68] sm:$0xff]
    %v5370 = vld [vmem:[%s7 + $0xf70] sm:$0xff]
    %v5371 = vld [vmem:[%s7 + $0xf78] sm:$0xff]
    %v5372 = vld [vmem:[%s7 + $0xf80] sm:$0xff]
    %v5373 = vld [vmem:[%s7 + $0xf88] sm:$0xff]
    %v5374 = vld [vmem:[%s7 + $0xf90] sm:$0xff]
    %v5375 = vld [vmem:[%s7 + $0xf98] sm:$0xff]
    %v5376 = vld [vmem:[%s7 + $0xfa0] sm:$0xff]
    %v5377 = vld [vmem:[%s7 + $0xfa8] sm:$0xff]
    %v5378 = vld [vmem:[%s7 + $0xfb0] sm:$0xff]
    %v5379 = vld [vmem:[%s7 + $0xfb8] sm:$0xff]
    %v5380 = vld [vmem:[%s7 + $0xfc0] sm:$0xff]
    %v5381 = vld [vmem:[%s7 + $0xfc8] sm:$0xff]
    %v5382 = vld [vmem:[%s7 + $0xfd0] sm:$0xff]
    %v5383 = vld [vmem:[%s7 + $0xfd8] sm:$0xff]
    %v5384 = vld [vmem:[%s7 + $0xfe0] sm:$0xff]
    %v5385 = vld [vmem:[%s7 + $0xfe8] sm:$0xff]
    %v5386 = vld [vmem:[%s7 + $0xff0] sm:$0xff]
    %v5387 = vld [vmem:[%s7 + $0xff8] sm:$0xff]
    %v5388 = vld [vmem:[%s8] sm:$0x3]
    %v5390 = vlaneseq
    %v5391 = vshrl.u32 %v5390, 7
    %v5392 = vsub.s32 0, %v5391
    %v5393 = vrot.slane %v5388, %v5392
    %v5394 = vlaneseq
    %v5395 = vshrl.u32 %v5394, 7
    %v5396 = vsub.s32 1, %v5395
    %v5397 = vrot.slane %v5388, %v5396
    %v5912 = vunpack.c.l.b16 %v4876
    %v5913 = vunpack.c.h.b16 %v4876
    %v5914 = vunpack.c.l.b16 %v4877
    %v5915 = vunpack.c.h.b16 %v4877
    %v5916 = vunpack.c.l.b16 %v4878
    %v5917 = vunpack.c.h.b16 %v4878
    %v5918 = vunpack.c.l.b16 %v4879
    %v5919 = vunpack.c.h.b16 %v4879
    %v5920 = vunpack.c.l.b16 %v4880
    %v5921 = vunpack.c.h.b16 %v4880
    %v5922 = vunpack.c.l.b16 %v4881
    %v5923 = vunpack.c.h.b16 %v4881
    %v5924 = vunpack.c.l.b16 %v4882
    %v5925 = vunpack.c.h.b16 %v4882
    %v5926 = vunpack.c.l.b16 %v4883
    %v5927 = vunpack.c.h.b16 %v4883
    %v5928 = vunpack.c.l.b16 %v4884
    %v5929 = vunpack.c.h.b16 %v4884
    %v5930 = vunpack.c.l.b16 %v4885
    %v5931 = vunpack.c.h.b16 %v4885
    %v5932 = vunpack.c.l.b16 %v4886
    %v5933 = vunpack.c.h.b16 %v4886
    %v5934 = vunpack.c.l.b16 %v4887
    %v5935 = vunpack.c.h.b16 %v4887
    %v5936 = vunpack.c.l.b16 %v4888
    %v5937 = vunpack.c.h.b16 %v4888
    %v5938 = vunpack.c.l.b16 %v4889
    %v5939 = vunpack.c.h.b16 %v4889
    %v5940 = vunpack.c.l.b16 %v4890
    %v5941 = vunpack.c.h.b16 %v4890
    %v5942 = vunpack.c.l.b16 %v4891
    %v5943 = vunpack.c.h.b16 %v4891
    %v5944 = vunpack.c.l.b16 %v4892
    %v5945 = vunpack.c.h.b16 %v4892
    %v5946 = vunpack.c.l.b16 %v4893
    %v5947 = vunpack.c.h.b16 %v4893
    %v5948 = vunpack.c.l.b16 %v4894
    %v5949 = vunpack.c.h.b16 %v4894
    %v5950 = vunpack.c.l.b16 %v4895
    %v5951 = vunpack.c.h.b16 %v4895
    %v5952 = vunpack.c.l.b16 %v4896
    %v5953 = vunpack.c.h.b16 %v4896
    %v5954 = vunpack.c.l.b16 %v4897
    %v5955 = vunpack.c.h.b16 %v4897
    %v5956 = vunpack.c.l.b16 %v4898
    %v5957 = vunpack.c.h.b16 %v4898
    %v5958 = vunpack.c.l.b16 %v4899
    %v5959 = vunpack.c.h.b16 %v4899
    %v5960 = vunpack.c.l.b16 %v4900
    %v5961 = vunpack.c.h.b16 %v4900
    %v5962 = vunpack.c.l.b16 %v4901
    %v5963 = vunpack.c.h.b16 %v4901
    %v5964 = vunpack.c.l.b16 %v4902
    %v5965 = vunpack.c.h.b16 %v4902
    %v5966 = vunpack.c.l.b16 %v4903
    %v5967 = vunpack.c.h.b16 %v4903
    %v5968 = vunpack.c.l.b16 %v4904
    %v5969 = vunpack.c.h.b16 %v4904
    %v5970 = vunpack.c.l.b16 %v4905
    %v5971 = vunpack.c.h.b16 %v4905
    %v5972 = vunpack.c.l.b16 %v4906
    %v5973 = vunpack.c.h.b16 %v4906
    %v5974 = vunpack.c.l.b16 %v4907
    %v5975 = vunpack.c.h.b16 %v4907
    %v5976 = vunpack.c.l.b16 %v4908
    %v5977 = vunpack.c.h.b16 %v4908
    %v5978 = vunpack.c.l.b16 %v4909
    %v5979 = vunpack.c.h.b16 %v4909
    %v5980 = vunpack.c.l.b16 %v4910
    %v5981 = vunpack.c.h.b16 %v4910
    %v5982 = vunpack.c.l.b16 %v4911
    %v5983 = vunpack.c.h.b16 %v4911
    %v5984 = vunpack.c.l.b16 %v4912
    %v5985 = vunpack.c.h.b16 %v4912
    %v5986 = vunpack.c.l.b16 %v4913
    %v5987 = vunpack.c.h.b16 %v4913
    %v5988 = vunpack.c.l.b16 %v4914
    %v5989 = vunpack.c.h.b16 %v4914
    %v5990 = vunpack.c.l.b16 %v4915
    %v5991 = vunpack.c.h.b16 %v4915
    %v5992 = vunpack.c.l.b16 %v4916
    %v5993 = vunpack.c.h.b16 %v4916
    %v5994 = vunpack.c.l.b16 %v4917
    %v5995 = vunpack.c.h.b16 %v4917
    %v5996 = vunpack.c.l.b16 %v4918
    %v5997 = vunpack.c.h.b16 %v4918
    %v5998 = vunpack.c.l.b16 %v4919
    %v5999 = vunpack.c.h.b16 %v4919
    %v6000 = vunpack.c.l.b16 %v4920
    %v6001 = vunpack.c.h.b16 %v4920
    %v6002 = vunpack.c.l.b16 %v4921
    %v6003 = vunpack.c.h.b16 %v4921
    %v6004 = vunpack.c.l.b16 %v4922
    %v6005 = vunpack.c.h.b16 %v4922
    %v6006 = vunpack.c.l.b16 %v4923
    %v6007 = vunpack.c.h.b16 %v4923
    %v6008 = vunpack.c.l.b16 %v4924
    %v6009 = vunpack.c.h.b16 %v4924
    %v6010 = vunpack.c.l.b16 %v4925
    %v6011 = vunpack.c.h.b16 %v4925
    %v6012 = vunpack.c.l.b16 %v4926
    %v6013 = vunpack.c.h.b16 %v4926
    %v6014 = vunpack.c.l.b16 %v4927
    %v6015 = vunpack.c.h.b16 %v4927
    %v6016 = vunpack.c.l.b16 %v4928
    %v6017 = vunpack.c.h.b16 %v4928
    %v6018 = vunpack.c.l.b16 %v4929
    %v6019 = vunpack.c.h.b16 %v4929
    %v6020 = vunpack.c.l.b16 %v4930
    %v6021 = vunpack.c.h.b16 %v4930
    %v6022 = vunpack.c.l.b16 %v4931
    %v6023 = vunpack.c.h.b16 %v4931
    %v6024 = vunpack.c.l.b16 %v4932
    %v6025 = vunpack.c.h.b16 %v4932
    %v6026 = vunpack.c.l.b16 %v4933
    %v6027 = vunpack.c.h.b16 %v4933
    %v6028 = vunpack.c.l.b16 %v4934
    %v6029 = vunpack.c.h.b16 %v4934
    %v6030 = vunpack.c.l.b16 %v4935
    %v6031 = vunpack.c.h.b16 %v4935
    %v6032 = vunpack.c.l.b16 %v4936
    %v6033 = vunpack.c.h.b16 %v4936
    %v6034 = vunpack.c.l.b16 %v4937
    %v6035 = vunpack.c.h.b16 %v4937
    %v6036 = vunpack.c.l.b16 %v4938
    %v6037 = vunpack.c.h.b16 %v4938
    %v6038 = vunpack.c.l.b16 %v4939
    %v6039 = vunpack.c.h.b16 %v4939
    %v6040 = vunpack.c.l.b16 %v4940
    %v6041 = vunpack.c.h.b16 %v4940
    %v6042 = vunpack.c.l.b16 %v4941
    %v6043 = vunpack.c.h.b16 %v4941
    %v6044 = vunpack.c.l.b16 %v4942
    %v6045 = vunpack.c.h.b16 %v4942
    %v6046 = vunpack.c.l.b16 %v4943
    %v6047 = vunpack.c.h.b16 %v4943
    %v6048 = vunpack.c.l.b16 %v4944
    %v6049 = vunpack.c.h.b16 %v4944
    %v6050 = vunpack.c.l.b16 %v4945
    %v6051 = vunpack.c.h.b16 %v4945
    %v6052 = vunpack.c.l.b16 %v4946
    %v6053 = vunpack.c.h.b16 %v4946
    %v6054 = vunpack.c.l.b16 %v4947
    %v6055 = vunpack.c.h.b16 %v4947
    %v6056 = vunpack.c.l.b16 %v4948
    %v6057 = vunpack.c.h.b16 %v4948
    %v6058 = vunpack.c.l.b16 %v4949
    %v6059 = vunpack.c.h.b16 %v4949
    %v6060 = vunpack.c.l.b16 %v4950
    %v6061 = vunpack.c.h.b16 %v4950
    %v6062 = vunpack.c.l.b16 %v4951
    %v6063 = vunpack.c.h.b16 %v4951
    %v6064 = vunpack.c.l.b16 %v4952
    %v6065 = vunpack.c.h.b16 %v4952
    %v6066 = vunpack.c.l.b16 %v4953
    %v6067 = vunpack.c.h.b16 %v4953
    %v6068 = vunpack.c.l.b16 %v4954
    %v6069 = vunpack.c.h.b16 %v4954
    %v6070 = vunpack.c.l.b16 %v4955
    %v6071 = vunpack.c.h.b16 %v4955
    %v6072 = vunpack.c.l.b16 %v4956
    %v6073 = vunpack.c.h.b16 %v4956
    %v6074 = vunpack.c.l.b16 %v4957
    %v6075 = vunpack.c.h.b16 %v4957
    %v6076 = vunpack.c.l.b16 %v4958
    %v6077 = vunpack.c.h.b16 %v4958
    %v6078 = vunpack.c.l.b16 %v4959
    %v6079 = vunpack.c.h.b16 %v4959
    %v6080 = vunpack.c.l.b16 %v4960
    %v6081 = vunpack.c.h.b16 %v4960
    %v6082 = vunpack.c.l.b16 %v4961
    %v6083 = vunpack.c.h.b16 %v4961
    %v6084 = vunpack.c.l.b16 %v4962
    %v6085 = vunpack.c.h.b16 %v4962
    %v6086 = vunpack.c.l.b16 %v4963
    %v6087 = vunpack.c.h.b16 %v4963
    %v6088 = vunpack.c.l.b16 %v4964
    %v6089 = vunpack.c.h.b16 %v4964
    %v6090 = vunpack.c.l.b16 %v4965
    %v6091 = vunpack.c.h.b16 %v4965
    %v6092 = vunpack.c.l.b16 %v4966
    %v6093 = vunpack.c.h.b16 %v4966
    %v6094 = vunpack.c.l.b16 %v4967
    %v6095 = vunpack.c.h.b16 %v4967
    %v6096 = vunpack.c.l.b16 %v4968
    %v6097 = vunpack.c.h.b16 %v4968
    %v6098 = vunpack.c.l.b16 %v4969
    %v6099 = vunpack.c.h.b16 %v4969
    %v6100 = vunpack.c.l.b16 %v4970
    %v6101 = vunpack.c.h.b16 %v4970
    %v6102 = vunpack.c.l.b16 %v4971
    %v6103 = vunpack.c.h.b16 %v4971
    %v6104 = vunpack.c.l.b16 %v4972
    %v6105 = vunpack.c.h.b16 %v4972
    %v6106 = vunpack.c.l.b16 %v4973
    %v6107 = vunpack.c.h.b16 %v4973
    %v6108 = vunpack.c.l.b16 %v4974
    %v6109 = vunpack.c.h.b16 %v4974
    %v6110 = vunpack.c.l.b16 %v4975
    %v6111 = vunpack.c.h.b16 %v4975
    %v6112 = vunpack.c.l.b16 %v4976
    %v6113 = vunpack.c.h.b16 %v4976
    %v6114 = vunpack.c.l.b16 %v4977
    %v6115 = vunpack.c.h.b16 %v4977
    %v6116 = vunpack.c.l.b16 %v4978
    %v6117 = vunpack.c.h.b16 %v4978
    %v6118 = vunpack.c.l.b16 %v4979
    %v6119 = vunpack.c.h.b16 %v4979
    %v6120 = vunpack.c.l.b16 %v4980
    %v6121 = vunpack.c.h.b16 %v4980
    %v6122 = vunpack.c.l.b16 %v4981
    %v6123 = vunpack.c.h.b16 %v4981
    %v6124 = vunpack.c.l.b16 %v4982
    %v6125 = vunpack.c.h.b16 %v4982
    %v6126 = vunpack.c.l.b16 %v4983
    %v6127 = vunpack.c.h.b16 %v4983
    %v6128 = vunpack.c.l.b16 %v4984
    %v6129 = vunpack.c.h.b16 %v4984
    %v6130 = vunpack.c.l.b16 %v4985
    %v6131 = vunpack.c.h.b16 %v4985
    %v6132 = vunpack.c.l.b16 %v4986
    %v6133 = vunpack.c.h.b16 %v4986
    %v6134 = vunpack.c.l.b16 %v4987
    %v6135 = vunpack.c.h.b16 %v4987
    %v6136 = vunpack.c.l.b16 %v4988
    %v6137 = vunpack.c.h.b16 %v4988
    %v6138 = vunpack.c.l.b16 %v4989
    %v6139 = vunpack.c.h.b16 %v4989
    %v6140 = vunpack.c.l.b16 %v4990
    %v6141 = vunpack.c.h.b16 %v4990
    %v6142 = vunpack.c.l.b16 %v4991
    %v6143 = vunpack.c.h.b16 %v4991
    %v6144 = vunpack.c.l.b16 %v4992
    %v6145 = vunpack.c.h.b16 %v4992
    %v6146 = vunpack.c.l.b16 %v4993
    %v6147 = vunpack.c.h.b16 %v4993
    %v6148 = vunpack.c.l.b16 %v4994
    %v6149 = vunpack.c.h.b16 %v4994
    %v6150 = vunpack.c.l.b16 %v4995
    %v6151 = vunpack.c.h.b16 %v4995
    %v6152 = vunpack.c.l.b16 %v4996
    %v6153 = vunpack.c.h.b16 %v4996
    %v6154 = vunpack.c.l.b16 %v4997
    %v6155 = vunpack.c.h.b16 %v4997
    %v6156 = vunpack.c.l.b16 %v4998
    %v6157 = vunpack.c.h.b16 %v4998
    %v6158 = vunpack.c.l.b16 %v4999
    %v6159 = vunpack.c.h.b16 %v4999
    %v6160 = vunpack.c.l.b16 %v5000
    %v6161 = vunpack.c.h.b16 %v5000
    %v6162 = vunpack.c.l.b16 %v5001
    %v6163 = vunpack.c.h.b16 %v5001
    %v6164 = vunpack.c.l.b16 %v5002
    %v6165 = vunpack.c.h.b16 %v5002
    %v6166 = vunpack.c.l.b16 %v5003
    %v6167 = vunpack.c.h.b16 %v5003
    %v6168 = vunpack.c.l.b16 %v5004
    %v6169 = vunpack.c.h.b16 %v5004
    %v6170 = vunpack.c.l.b16 %v5005
    %v6171 = vunpack.c.h.b16 %v5005
    %v6172 = vunpack.c.l.b16 %v5006
    %v6173 = vunpack.c.h.b16 %v5006
    %v6174 = vunpack.c.l.b16 %v5007
    %v6175 = vunpack.c.h.b16 %v5007
    %v6176 = vunpack.c.l.b16 %v5008
    %v6177 = vunpack.c.h.b16 %v5008
    %v6178 = vunpack.c.l.b16 %v5009
    %v6179 = vunpack.c.h.b16 %v5009
    %v6180 = vunpack.c.l.b16 %v5010
    %v6181 = vunpack.c.h.b16 %v5010
    %v6182 = vunpack.c.l.b16 %v5011
    %v6183 = vunpack.c.h.b16 %v5011
    %v6184 = vunpack.c.l.b16 %v5012
    %v6185 = vunpack.c.h.b16 %v5012
    %v6186 = vunpack.c.l.b16 %v5013
    %v6187 = vunpack.c.h.b16 %v5013
    %v6188 = vunpack.c.l.b16 %v5014
    %v6189 = vunpack.c.h.b16 %v5014
    %v6190 = vunpack.c.l.b16 %v5015
    %v6191 = vunpack.c.h.b16 %v5015
    %v6192 = vunpack.c.l.b16 %v5016
    %v6193 = vunpack.c.h.b16 %v5016
    %v6194 = vunpack.c.l.b16 %v5017
    %v6195 = vunpack.c.h.b16 %v5017
    %v6196 = vunpack.c.l.b16 %v5018
    %v6197 = vunpack.c.h.b16 %v5018
    %v6198 = vunpack.c.l.b16 %v5019
    %v6199 = vunpack.c.h.b16 %v5019
    %v6200 = vunpack.c.l.b16 %v5020
    %v6201 = vunpack.c.h.b16 %v5020
    %v6202 = vunpack.c.l.b16 %v5021
    %v6203 = vunpack.c.h.b16 %v5021
    %v6204 = vunpack.c.l.b16 %v5022
    %v6205 = vunpack.c.h.b16 %v5022
    %v6206 = vunpack.c.l.b16 %v5023
    %v6207 = vunpack.c.h.b16 %v5023
    %v6208 = vunpack.c.l.b16 %v5024
    %v6209 = vunpack.c.h.b16 %v5024
    %v6210 = vunpack.c.l.b16 %v5025
    %v6211 = vunpack.c.h.b16 %v5025
    %v6212 = vunpack.c.l.b16 %v5026
    %v6213 = vunpack.c.h.b16 %v5026
    %v6214 = vunpack.c.l.b16 %v5027
    %v6215 = vunpack.c.h.b16 %v5027
    %v6216 = vunpack.c.l.b16 %v5028
    %v6217 = vunpack.c.h.b16 %v5028
    %v6218 = vunpack.c.l.b16 %v5029
    %v6219 = vunpack.c.h.b16 %v5029
    %v6220 = vunpack.c.l.b16 %v5030
    %v6221 = vunpack.c.h.b16 %v5030
    %v6222 = vunpack.c.l.b16 %v5031
    %v6223 = vunpack.c.h.b16 %v5031
    %v6224 = vunpack.c.l.b16 %v5032
    %v6225 = vunpack.c.h.b16 %v5032
    %v6226 = vunpack.c.l.b16 %v5033
    %v6227 = vunpack.c.h.b16 %v5033
    %v6228 = vunpack.c.l.b16 %v5034
    %v6229 = vunpack.c.h.b16 %v5034
    %v6230 = vunpack.c.l.b16 %v5035
    %v6231 = vunpack.c.h.b16 %v5035
    %v6232 = vunpack.c.l.b16 %v5036
    %v6233 = vunpack.c.h.b16 %v5036
    %v6234 = vunpack.c.l.b16 %v5037
    %v6235 = vunpack.c.h.b16 %v5037
    %v6236 = vunpack.c.l.b16 %v5038
    %v6237 = vunpack.c.h.b16 %v5038
    %v6238 = vunpack.c.l.b16 %v5039
    %v6239 = vunpack.c.h.b16 %v5039
    %v6240 = vunpack.c.l.b16 %v5040
    %v6241 = vunpack.c.h.b16 %v5040
    %v6242 = vunpack.c.l.b16 %v5041
    %v6243 = vunpack.c.h.b16 %v5041
    %v6244 = vunpack.c.l.b16 %v5042
    %v6245 = vunpack.c.h.b16 %v5042
    %v6246 = vunpack.c.l.b16 %v5043
    %v6247 = vunpack.c.h.b16 %v5043
    %v6248 = vunpack.c.l.b16 %v5044
    %v6249 = vunpack.c.h.b16 %v5044
    %v6250 = vunpack.c.l.b16 %v5045
    %v6251 = vunpack.c.h.b16 %v5045
    %v6252 = vunpack.c.l.b16 %v5046
    %v6253 = vunpack.c.h.b16 %v5046
    %v6254 = vunpack.c.l.b16 %v5047
    %v6255 = vunpack.c.h.b16 %v5047
    %v6256 = vunpack.c.l.b16 %v5048
    %v6257 = vunpack.c.h.b16 %v5048
    %v6258 = vunpack.c.l.b16 %v5049
    %v6259 = vunpack.c.h.b16 %v5049
    %v6260 = vunpack.c.l.b16 %v5050
    %v6261 = vunpack.c.h.b16 %v5050
    %v6262 = vunpack.c.l.b16 %v5051
    %v6263 = vunpack.c.h.b16 %v5051
    %v6264 = vunpack.c.l.b16 %v5052
    %v6265 = vunpack.c.h.b16 %v5052
    %v6266 = vunpack.c.l.b16 %v5053
    %v6267 = vunpack.c.h.b16 %v5053
    %v6268 = vunpack.c.l.b16 %v5054
    %v6269 = vunpack.c.h.b16 %v5054
    %v6270 = vunpack.c.l.b16 %v5055
    %v6271 = vunpack.c.h.b16 %v5055
    %v6272 = vunpack.c.l.b16 %v5056
    %v6273 = vunpack.c.h.b16 %v5056
    %v6274 = vunpack.c.l.b16 %v5057
    %v6275 = vunpack.c.h.b16 %v5057
    %v6276 = vunpack.c.l.b16 %v5058
    %v6277 = vunpack.c.h.b16 %v5058
    %v6278 = vunpack.c.l.b16 %v5059
    %v6279 = vunpack.c.h.b16 %v5059
    %v6280 = vunpack.c.l.b16 %v5060
    %v6281 = vunpack.c.h.b16 %v5060
    %v6282 = vunpack.c.l.b16 %v5061
    %v6283 = vunpack.c.h.b16 %v5061
    %v6284 = vunpack.c.l.b16 %v5062
    %v6285 = vunpack.c.h.b16 %v5062
    %v6286 = vunpack.c.l.b16 %v5063
    %v6287 = vunpack.c.h.b16 %v5063
    %v6288 = vunpack.c.l.b16 %v5064
    %v6289 = vunpack.c.h.b16 %v5064
    %v6290 = vunpack.c.l.b16 %v5065
    %v6291 = vunpack.c.h.b16 %v5065
    %v6292 = vunpack.c.l.b16 %v5066
    %v6293 = vunpack.c.h.b16 %v5066
    %v6294 = vunpack.c.l.b16 %v5067
    %v6295 = vunpack.c.h.b16 %v5067
    %v6296 = vunpack.c.l.b16 %v5068
    %v6297 = vunpack.c.h.b16 %v5068
    %v6298 = vunpack.c.l.b16 %v5069
    %v6299 = vunpack.c.h.b16 %v5069
    %v6300 = vunpack.c.l.b16 %v5070
    %v6301 = vunpack.c.h.b16 %v5070
    %v6302 = vunpack.c.l.b16 %v5071
    %v6303 = vunpack.c.h.b16 %v5071
    %v6304 = vunpack.c.l.b16 %v5072
    %v6305 = vunpack.c.h.b16 %v5072
    %v6306 = vunpack.c.l.b16 %v5073
    %v6307 = vunpack.c.h.b16 %v5073
    %v6308 = vunpack.c.l.b16 %v5074
    %v6309 = vunpack.c.h.b16 %v5074
    %v6310 = vunpack.c.l.b16 %v5075
    %v6311 = vunpack.c.h.b16 %v5075
    %v6312 = vunpack.c.l.b16 %v5076
    %v6313 = vunpack.c.h.b16 %v5076
    %v6314 = vunpack.c.l.b16 %v5077
    %v6315 = vunpack.c.h.b16 %v5077
    %v6316 = vunpack.c.l.b16 %v5078
    %v6317 = vunpack.c.h.b16 %v5078
    %v6318 = vunpack.c.l.b16 %v5079
    %v6319 = vunpack.c.h.b16 %v5079
    %v6320 = vunpack.c.l.b16 %v5080
    %v6321 = vunpack.c.h.b16 %v5080
    %v6322 = vunpack.c.l.b16 %v5081
    %v6323 = vunpack.c.h.b16 %v5081
    %v6324 = vunpack.c.l.b16 %v5082
    %v6325 = vunpack.c.h.b16 %v5082
    %v6326 = vunpack.c.l.b16 %v5083
    %v6327 = vunpack.c.h.b16 %v5083
    %v6328 = vunpack.c.l.b16 %v5084
    %v6329 = vunpack.c.h.b16 %v5084
    %v6330 = vunpack.c.l.b16 %v5085
    %v6331 = vunpack.c.h.b16 %v5085
    %v6332 = vunpack.c.l.b16 %v5086
    %v6333 = vunpack.c.h.b16 %v5086
    %v6334 = vunpack.c.l.b16 %v5087
    %v6335 = vunpack.c.h.b16 %v5087
    %v6336 = vunpack.c.l.b16 %v5088
    %v6337 = vunpack.c.h.b16 %v5088
    %v6338 = vunpack.c.l.b16 %v5089
    %v6339 = vunpack.c.h.b16 %v5089
    %v6340 = vunpack.c.l.b16 %v5090
    %v6341 = vunpack.c.h.b16 %v5090
    %v6342 = vunpack.c.l.b16 %v5091
    %v6343 = vunpack.c.h.b16 %v5091
    %v6344 = vunpack.c.l.b16 %v5092
    %v6345 = vunpack.c.h.b16 %v5092
    %v6346 = vunpack.c.l.b16 %v5093
    %v6347 = vunpack.c.h.b16 %v5093
    %v6348 = vunpack.c.l.b16 %v5094
    %v6349 = vunpack.c.h.b16 %v5094
    %v6350 = vunpack.c.l.b16 %v5095
    %v6351 = vunpack.c.h.b16 %v5095
    %v6352 = vunpack.c.l.b16 %v5096
    %v6353 = vunpack.c.h.b16 %v5096
    %v6354 = vunpack.c.l.b16 %v5097
    %v6355 = vunpack.c.h.b16 %v5097
    %v6356 = vunpack.c.l.b16 %v5098
    %v6357 = vunpack.c.h.b16 %v5098
    %v6358 = vunpack.c.l.b16 %v5099
    %v6359 = vunpack.c.h.b16 %v5099
    %v6360 = vunpack.c.l.b16 %v5100
    %v6361 = vunpack.c.h.b16 %v5100
    %v6362 = vunpack.c.l.b16 %v5101
    %v6363 = vunpack.c.h.b16 %v5101
    %v6364 = vunpack.c.l.b16 %v5102
    %v6365 = vunpack.c.h.b16 %v5102
    %v6366 = vunpack.c.l.b16 %v5103
    %v6367 = vunpack.c.h.b16 %v5103
    %v6368 = vunpack.c.l.b16 %v5104
    %v6369 = vunpack.c.h.b16 %v5104
    %v6370 = vunpack.c.l.b16 %v5105
    %v6371 = vunpack.c.h.b16 %v5105
    %v6372 = vunpack.c.l.b16 %v5106
    %v6373 = vunpack.c.h.b16 %v5106
    %v6374 = vunpack.c.l.b16 %v5107
    %v6375 = vunpack.c.h.b16 %v5107
    %v6376 = vunpack.c.l.b16 %v5108
    %v6377 = vunpack.c.h.b16 %v5108
    %v6378 = vunpack.c.l.b16 %v5109
    %v6379 = vunpack.c.h.b16 %v5109
    %v6380 = vunpack.c.l.b16 %v5110
    %v6381 = vunpack.c.h.b16 %v5110
    %v6382 = vunpack.c.l.b16 %v5111
    %v6383 = vunpack.c.h.b16 %v5111
    %v6384 = vunpack.c.l.b16 %v5112
    %v6385 = vunpack.c.h.b16 %v5112
    %v6386 = vunpack.c.l.b16 %v5113
    %v6387 = vunpack.c.h.b16 %v5113
    %v6388 = vunpack.c.l.b16 %v5114
    %v6389 = vunpack.c.h.b16 %v5114
    %v6390 = vunpack.c.l.b16 %v5115
    %v6391 = vunpack.c.h.b16 %v5115
    %v6392 = vunpack.c.l.b16 %v5116
    %v6393 = vunpack.c.h.b16 %v5116
    %v6394 = vunpack.c.l.b16 %v5117
    %v6395 = vunpack.c.h.b16 %v5117
    %v6396 = vunpack.c.l.b16 %v5118
    %v6397 = vunpack.c.h.b16 %v5118
    %v6398 = vunpack.c.l.b16 %v5119
    %v6399 = vunpack.c.h.b16 %v5119
    %v6400 = vunpack.c.l.b16 %v5120
    %v6401 = vunpack.c.h.b16 %v5120
    %v6402 = vunpack.c.l.b16 %v5121
    %v6403 = vunpack.c.h.b16 %v5121
    %v6404 = vunpack.c.l.b16 %v5122
    %v6405 = vunpack.c.h.b16 %v5122
    %v6406 = vunpack.c.l.b16 %v5123
    %v6407 = vunpack.c.h.b16 %v5123
    %v6408 = vunpack.c.l.b16 %v5124
    %v6409 = vunpack.c.h.b16 %v5124
    %v6410 = vunpack.c.l.b16 %v5125
    %v6411 = vunpack.c.h.b16 %v5125
    %v6412 = vunpack.c.l.b16 %v5126
    %v6413 = vunpack.c.h.b16 %v5126
    %v6414 = vunpack.c.l.b16 %v5127
    %v6415 = vunpack.c.h.b16 %v5127
    %v6416 = vunpack.c.l.b16 %v5128
    %v6417 = vunpack.c.h.b16 %v5128
    %v6418 = vunpack.c.l.b16 %v5129
    %v6419 = vunpack.c.h.b16 %v5129
    %v6420 = vunpack.c.l.b16 %v5130
    %v6421 = vunpack.c.h.b16 %v5130
    %v6422 = vunpack.c.l.b16 %v5131
    %v6423 = vunpack.c.h.b16 %v5131
    %v6424 = vunpack.c.l.b16 %v5132
    %v6425 = vunpack.c.h.b16 %v5132
    %v6426 = vunpack.c.l.b16 %v5133
    %v6427 = vunpack.c.h.b16 %v5133
    %v6428 = vunpack.c.l.b16 %v5134
    %v6429 = vunpack.c.h.b16 %v5134
    %v6430 = vunpack.c.l.b16 %v5135
    %v6431 = vunpack.c.h.b16 %v5135
    %v6432 = vunpack.c.l.b16 %v5136
    %v6433 = vunpack.c.h.b16 %v5136
    %v6434 = vunpack.c.l.b16 %v5137
    %v6435 = vunpack.c.h.b16 %v5137
    %v6436 = vunpack.c.l.b16 %v5138
    %v6437 = vunpack.c.h.b16 %v5138
    %v6438 = vunpack.c.l.b16 %v5139
    %v6439 = vunpack.c.h.b16 %v5139
    %v6440 = vunpack.c.l.b16 %v5140
    %v6441 = vunpack.c.h.b16 %v5140
    %v6442 = vunpack.c.l.b16 %v5141
    %v6443 = vunpack.c.h.b16 %v5141
    %v6444 = vunpack.c.l.b16 %v5142
    %v6445 = vunpack.c.h.b16 %v5142
    %v6446 = vunpack.c.l.b16 %v5143
    %v6447 = vunpack.c.h.b16 %v5143
    %v6448 = vunpack.c.l.b16 %v5144
    %v6449 = vunpack.c.h.b16 %v5144
    %v6450 = vunpack.c.l.b16 %v5145
    %v6451 = vunpack.c.h.b16 %v5145
    %v6452 = vunpack.c.l.b16 %v5146
    %v6453 = vunpack.c.h.b16 %v5146
    %v6454 = vunpack.c.l.b16 %v5147
    %v6455 = vunpack.c.h.b16 %v5147
    %v6456 = vunpack.c.l.b16 %v5148
    %v6457 = vunpack.c.h.b16 %v5148
    %v6458 = vunpack.c.l.b16 %v5149
    %v6459 = vunpack.c.h.b16 %v5149
    %v6460 = vunpack.c.l.b16 %v5150
    %v6461 = vunpack.c.h.b16 %v5150
    %v6462 = vunpack.c.l.b16 %v5151
    %v6463 = vunpack.c.h.b16 %v5151
    %v6464 = vunpack.c.l.b16 %v5152
    %v6465 = vunpack.c.h.b16 %v5152
    %v6466 = vunpack.c.l.b16 %v5153
    %v6467 = vunpack.c.h.b16 %v5153
    %v6468 = vunpack.c.l.b16 %v5154
    %v6469 = vunpack.c.h.b16 %v5154
    %v6470 = vunpack.c.l.b16 %v5155
    %v6471 = vunpack.c.h.b16 %v5155
    %v6472 = vunpack.c.l.b16 %v5156
    %v6473 = vunpack.c.h.b16 %v5156
    %v6474 = vunpack.c.l.b16 %v5157
    %v6475 = vunpack.c.h.b16 %v5157
    %v6476 = vunpack.c.l.b16 %v5158
    %v6477 = vunpack.c.h.b16 %v5158
    %v6478 = vunpack.c.l.b16 %v5159
    %v6479 = vunpack.c.h.b16 %v5159
    %v6480 = vunpack.c.l.b16 %v5160
    %v6481 = vunpack.c.h.b16 %v5160
    %v6482 = vunpack.c.l.b16 %v5161
    %v6483 = vunpack.c.h.b16 %v5161
    %v6484 = vunpack.c.l.b16 %v5162
    %v6485 = vunpack.c.h.b16 %v5162
    %v6486 = vunpack.c.l.b16 %v5163
    %v6487 = vunpack.c.h.b16 %v5163
    %v6488 = vunpack.c.l.b16 %v5164
    %v6489 = vunpack.c.h.b16 %v5164
    %v6490 = vunpack.c.l.b16 %v5165
    %v6491 = vunpack.c.h.b16 %v5165
    %v6492 = vunpack.c.l.b16 %v5166
    %v6493 = vunpack.c.h.b16 %v5166
    %v6494 = vunpack.c.l.b16 %v5167
    %v6495 = vunpack.c.h.b16 %v5167
    %v6496 = vunpack.c.l.b16 %v5168
    %v6497 = vunpack.c.h.b16 %v5168
    %v6498 = vunpack.c.l.b16 %v5169
    %v6499 = vunpack.c.h.b16 %v5169
    %v6500 = vunpack.c.l.b16 %v5170
    %v6501 = vunpack.c.h.b16 %v5170
    %v6502 = vunpack.c.l.b16 %v5171
    %v6503 = vunpack.c.h.b16 %v5171
    %v6504 = vunpack.c.l.b16 %v5172
    %v6505 = vunpack.c.h.b16 %v5172
    %v6506 = vunpack.c.l.b16 %v5173
    %v6507 = vunpack.c.h.b16 %v5173
    %v6508 = vunpack.c.l.b16 %v5174
    %v6509 = vunpack.c.h.b16 %v5174
    %v6510 = vunpack.c.l.b16 %v5175
    %v6511 = vunpack.c.h.b16 %v5175
    %v6512 = vunpack.c.l.b16 %v5176
    %v6513 = vunpack.c.h.b16 %v5176
    %v6514 = vunpack.c.l.b16 %v5177
    %v6515 = vunpack.c.h.b16 %v5177
    %v6516 = vunpack.c.l.b16 %v5178
    %v6517 = vunpack.c.h.b16 %v5178
    %v6518 = vunpack.c.l.b16 %v5179
    %v6519 = vunpack.c.h.b16 %v5179
    %v6520 = vunpack.c.l.b16 %v5180
    %v6521 = vunpack.c.h.b16 %v5180
    %v6522 = vunpack.c.l.b16 %v5181
    %v6523 = vunpack.c.h.b16 %v5181
    %v6524 = vunpack.c.l.b16 %v5182
    %v6525 = vunpack.c.h.b16 %v5182
    %v6526 = vunpack.c.l.b16 %v5183
    %v6527 = vunpack.c.h.b16 %v5183
    %v6528 = vunpack.c.l.b16 %v5184
    %v6529 = vunpack.c.h.b16 %v5184
    %v6530 = vunpack.c.l.b16 %v5185
    %v6531 = vunpack.c.h.b16 %v5185
    %v6532 = vunpack.c.l.b16 %v5186
    %v6533 = vunpack.c.h.b16 %v5186
    %v6534 = vunpack.c.l.b16 %v5187
    %v6535 = vunpack.c.h.b16 %v5187
    %v6536 = vunpack.c.l.b16 %v5188
    %v6537 = vunpack.c.h.b16 %v5188
    %v6538 = vunpack.c.l.b16 %v5189
    %v6539 = vunpack.c.h.b16 %v5189
    %v6540 = vunpack.c.l.b16 %v5190
    %v6541 = vunpack.c.h.b16 %v5190
    %v6542 = vunpack.c.l.b16 %v5191
    %v6543 = vunpack.c.h.b16 %v5191
    %v6544 = vunpack.c.l.b16 %v5192
    %v6545 = vunpack.c.h.b16 %v5192
    %v6546 = vunpack.c.l.b16 %v5193
    %v6547 = vunpack.c.h.b16 %v5193
    %v6548 = vunpack.c.l.b16 %v5194
    %v6549 = vunpack.c.h.b16 %v5194
    %v6550 = vunpack.c.l.b16 %v5195
    %v6551 = vunpack.c.h.b16 %v5195
    %v6552 = vunpack.c.l.b16 %v5196
    %v6553 = vunpack.c.h.b16 %v5196
    %v6554 = vunpack.c.l.b16 %v5197
    %v6555 = vunpack.c.h.b16 %v5197
    %v6556 = vunpack.c.l.b16 %v5198
    %v6557 = vunpack.c.h.b16 %v5198
    %v6558 = vunpack.c.l.b16 %v5199
    %v6559 = vunpack.c.h.b16 %v5199
    %v6560 = vunpack.c.l.b16 %v5200
    %v6561 = vunpack.c.h.b16 %v5200
    %v6562 = vunpack.c.l.b16 %v5201
    %v6563 = vunpack.c.h.b16 %v5201
    %v6564 = vunpack.c.l.b16 %v5202
    %v6565 = vunpack.c.h.b16 %v5202
    %v6566 = vunpack.c.l.b16 %v5203
    %v6567 = vunpack.c.h.b16 %v5203
    %v6568 = vunpack.c.l.b16 %v5204
    %v6569 = vunpack.c.h.b16 %v5204
    %v6570 = vunpack.c.l.b16 %v5205
    %v6571 = vunpack.c.h.b16 %v5205
    %v6572 = vunpack.c.l.b16 %v5206
    %v6573 = vunpack.c.h.b16 %v5206
    %v6574 = vunpack.c.l.b16 %v5207
    %v6575 = vunpack.c.h.b16 %v5207
    %v6576 = vunpack.c.l.b16 %v5208
    %v6577 = vunpack.c.h.b16 %v5208
    %v6578 = vunpack.c.l.b16 %v5209
    %v6579 = vunpack.c.h.b16 %v5209
    %v6580 = vunpack.c.l.b16 %v5210
    %v6581 = vunpack.c.h.b16 %v5210
    %v6582 = vunpack.c.l.b16 %v5211
    %v6583 = vunpack.c.h.b16 %v5211
    %v6584 = vunpack.c.l.b16 %v5212
    %v6585 = vunpack.c.h.b16 %v5212
    %v6586 = vunpack.c.l.b16 %v5213
    %v6587 = vunpack.c.h.b16 %v5213
    %v6588 = vunpack.c.l.b16 %v5214
    %v6589 = vunpack.c.h.b16 %v5214
    %v6590 = vunpack.c.l.b16 %v5215
    %v6591 = vunpack.c.h.b16 %v5215
    %v6592 = vunpack.c.l.b16 %v5216
    %v6593 = vunpack.c.h.b16 %v5216
    %v6594 = vunpack.c.l.b16 %v5217
    %v6595 = vunpack.c.h.b16 %v5217
    %v6596 = vunpack.c.l.b16 %v5218
    %v6597 = vunpack.c.h.b16 %v5218
    %v6598 = vunpack.c.l.b16 %v5219
    %v6599 = vunpack.c.h.b16 %v5219
    %v6600 = vunpack.c.l.b16 %v5220
    %v6601 = vunpack.c.h.b16 %v5220
    %v6602 = vunpack.c.l.b16 %v5221
    %v6603 = vunpack.c.h.b16 %v5221
    %v6604 = vunpack.c.l.b16 %v5222
    %v6605 = vunpack.c.h.b16 %v5222
    %v6606 = vunpack.c.l.b16 %v5223
    %v6607 = vunpack.c.h.b16 %v5223
    %v6608 = vunpack.c.l.b16 %v5224
    %v6609 = vunpack.c.h.b16 %v5224
    %v6610 = vunpack.c.l.b16 %v5225
    %v6611 = vunpack.c.h.b16 %v5225
    %v6612 = vunpack.c.l.b16 %v5226
    %v6613 = vunpack.c.h.b16 %v5226
    %v6614 = vunpack.c.l.b16 %v5227
    %v6615 = vunpack.c.h.b16 %v5227
    %v6616 = vunpack.c.l.b16 %v5228
    %v6617 = vunpack.c.h.b16 %v5228
    %v6618 = vunpack.c.l.b16 %v5229
    %v6619 = vunpack.c.h.b16 %v5229
    %v6620 = vunpack.c.l.b16 %v5230
    %v6621 = vunpack.c.h.b16 %v5230
    %v6622 = vunpack.c.l.b16 %v5231
    %v6623 = vunpack.c.h.b16 %v5231
    %v6624 = vunpack.c.l.b16 %v5232
    %v6625 = vunpack.c.h.b16 %v5232
    %v6626 = vunpack.c.l.b16 %v5233
    %v6627 = vunpack.c.h.b16 %v5233
    %v6628 = vunpack.c.l.b16 %v5234
    %v6629 = vunpack.c.h.b16 %v5234
    %v6630 = vunpack.c.l.b16 %v5235
    %v6631 = vunpack.c.h.b16 %v5235
    %v6632 = vunpack.c.l.b16 %v5236
    %v6633 = vunpack.c.h.b16 %v5236
    %v6634 = vunpack.c.l.b16 %v5237
    %v6635 = vunpack.c.h.b16 %v5237
    %v6636 = vunpack.c.l.b16 %v5238
    %v6637 = vunpack.c.h.b16 %v5238
    %v6638 = vunpack.c.l.b16 %v5239
    %v6639 = vunpack.c.h.b16 %v5239
    %v6640 = vunpack.c.l.b16 %v5240
    %v6641 = vunpack.c.h.b16 %v5240
    %v6642 = vunpack.c.l.b16 %v5241
    %v6643 = vunpack.c.h.b16 %v5241
    %v6644 = vunpack.c.l.b16 %v5242
    %v6645 = vunpack.c.h.b16 %v5242
    %v6646 = vunpack.c.l.b16 %v5243
    %v6647 = vunpack.c.h.b16 %v5243
    %v6648 = vunpack.c.l.b16 %v5244
    %v6649 = vunpack.c.h.b16 %v5244
    %v6650 = vunpack.c.l.b16 %v5245
    %v6651 = vunpack.c.h.b16 %v5245
    %v6652 = vunpack.c.l.b16 %v5246
    %v6653 = vunpack.c.h.b16 %v5246
    %v6654 = vunpack.c.l.b16 %v5247
    %v6655 = vunpack.c.h.b16 %v5247
    %v6656 = vunpack.c.l.b16 %v5248
    %v6657 = vunpack.c.h.b16 %v5248
    %v6658 = vunpack.c.l.b16 %v5249
    %v6659 = vunpack.c.h.b16 %v5249
    %v6660 = vunpack.c.l.b16 %v5250
    %v6661 = vunpack.c.h.b16 %v5250
    %v6662 = vunpack.c.l.b16 %v5251
    %v6663 = vunpack.c.h.b16 %v5251
    %v6664 = vunpack.c.l.b16 %v5252
    %v6665 = vunpack.c.h.b16 %v5252
    %v6666 = vunpack.c.l.b16 %v5253
    %v6667 = vunpack.c.h.b16 %v5253
    %v6668 = vunpack.c.l.b16 %v5254
    %v6669 = vunpack.c.h.b16 %v5254
    %v6670 = vunpack.c.l.b16 %v5255
    %v6671 = vunpack.c.h.b16 %v5255
    %v6672 = vunpack.c.l.b16 %v5256
    %v6673 = vunpack.c.h.b16 %v5256
    %v6674 = vunpack.c.l.b16 %v5257
    %v6675 = vunpack.c.h.b16 %v5257
    %v6676 = vunpack.c.l.b16 %v5258
    %v6677 = vunpack.c.h.b16 %v5258
    %v6678 = vunpack.c.l.b16 %v5259
    %v6679 = vunpack.c.h.b16 %v5259
    %v6680 = vunpack.c.l.b16 %v5260
    %v6681 = vunpack.c.h.b16 %v5260
    %v6682 = vunpack.c.l.b16 %v5261
    %v6683 = vunpack.c.h.b16 %v5261
    %v6684 = vunpack.c.l.b16 %v5262
    %v6685 = vunpack.c.h.b16 %v5262
    %v6686 = vunpack.c.l.b16 %v5263
    %v6687 = vunpack.c.h.b16 %v5263
    %v6688 = vunpack.c.l.b16 %v5264
    %v6689 = vunpack.c.h.b16 %v5264
    %v6690 = vunpack.c.l.b16 %v5265
    %v6691 = vunpack.c.h.b16 %v5265
    %v6692 = vunpack.c.l.b16 %v5266
    %v6693 = vunpack.c.h.b16 %v5266
    %v6694 = vunpack.c.l.b16 %v5267
    %v6695 = vunpack.c.h.b16 %v5267
    %v6696 = vunpack.c.l.b16 %v5268
    %v6697 = vunpack.c.h.b16 %v5268
    %v6698 = vunpack.c.l.b16 %v5269
    %v6699 = vunpack.c.h.b16 %v5269
    %v6700 = vunpack.c.l.b16 %v5270
    %v6701 = vunpack.c.h.b16 %v5270
    %v6702 = vunpack.c.l.b16 %v5271
    %v6703 = vunpack.c.h.b16 %v5271
    %v6704 = vunpack.c.l.b16 %v5272
    %v6705 = vunpack.c.h.b16 %v5272
    %v6706 = vunpack.c.l.b16 %v5273
    %v6707 = vunpack.c.h.b16 %v5273
    %v6708 = vunpack.c.l.b16 %v5274
    %v6709 = vunpack.c.h.b16 %v5274
    %v6710 = vunpack.c.l.b16 %v5275
    %v6711 = vunpack.c.h.b16 %v5275
    %v6712 = vunpack.c.l.b16 %v5276
    %v6713 = vunpack.c.h.b16 %v5276
    %v6714 = vunpack.c.l.b16 %v5277
    %v6715 = vunpack.c.h.b16 %v5277
    %v6716 = vunpack.c.l.b16 %v5278
    %v6717 = vunpack.c.h.b16 %v5278
    %v6718 = vunpack.c.l.b16 %v5279
    %v6719 = vunpack.c.h.b16 %v5279
    %v6720 = vunpack.c.l.b16 %v5280
    %v6721 = vunpack.c.h.b16 %v5280
    %v6722 = vunpack.c.l.b16 %v5281
    %v6723 = vunpack.c.h.b16 %v5281
    %v6724 = vunpack.c.l.b16 %v5282
    %v6725 = vunpack.c.h.b16 %v5282
    %v6726 = vunpack.c.l.b16 %v5283
    %v6727 = vunpack.c.h.b16 %v5283
    %v6728 = vunpack.c.l.b16 %v5284
    %v6729 = vunpack.c.h.b16 %v5284
    %v6730 = vunpack.c.l.b16 %v5285
    %v6731 = vunpack.c.h.b16 %v5285
    %v6732 = vunpack.c.l.b16 %v5286
    %v6733 = vunpack.c.h.b16 %v5286
    %v6734 = vunpack.c.l.b16 %v5287
    %v6735 = vunpack.c.h.b16 %v5287
    %v6736 = vunpack.c.l.b16 %v5288
    %v6737 = vunpack.c.h.b16 %v5288
    %v6738 = vunpack.c.l.b16 %v5289
    %v6739 = vunpack.c.h.b16 %v5289
    %v6740 = vunpack.c.l.b16 %v5290
    %v6741 = vunpack.c.h.b16 %v5290
    %v6742 = vunpack.c.l.b16 %v5291
    %v6743 = vunpack.c.h.b16 %v5291
    %v6744 = vunpack.c.l.b16 %v5292
    %v6745 = vunpack.c.h.b16 %v5292
    %v6746 = vunpack.c.l.b16 %v5293
    %v6747 = vunpack.c.h.b16 %v5293
    %v6748 = vunpack.c.l.b16 %v5294
    %v6749 = vunpack.c.h.b16 %v5294
    %v6750 = vunpack.c.l.b16 %v5295
    %v6751 = vunpack.c.h.b16 %v5295
    %v6752 = vunpack.c.l.b16 %v5296
    %v6753 = vunpack.c.h.b16 %v5296
    %v6754 = vunpack.c.l.b16 %v5297
    %v6755 = vunpack.c.h.b16 %v5297
    %v6756 = vunpack.c.l.b16 %v5298
    %v6757 = vunpack.c.h.b16 %v5298
    %v6758 = vunpack.c.l.b16 %v5299
    %v6759 = vunpack.c.h.b16 %v5299
    %v6760 = vunpack.c.l.b16 %v5300
    %v6761 = vunpack.c.h.b16 %v5300
    %v6762 = vunpack.c.l.b16 %v5301
    %v6763 = vunpack.c.h.b16 %v5301
    %v6764 = vunpack.c.l.b16 %v5302
    %v6765 = vunpack.c.h.b16 %v5302
    %v6766 = vunpack.c.l.b16 %v5303
    %v6767 = vunpack.c.h.b16 %v5303
    %v6768 = vunpack.c.l.b16 %v5304
    %v6769 = vunpack.c.h.b16 %v5304
    %v6770 = vunpack.c.l.b16 %v5305
    %v6771 = vunpack.c.h.b16 %v5305
    %v6772 = vunpack.c.l.b16 %v5306
    %v6773 = vunpack.c.h.b16 %v5306
    %v6774 = vunpack.c.l.b16 %v5307
    %v6775 = vunpack.c.h.b16 %v5307
    %v6776 = vunpack.c.l.b16 %v5308
    %v6777 = vunpack.c.h.b16 %v5308
    %v6778 = vunpack.c.l.b16 %v5309
    %v6779 = vunpack.c.h.b16 %v5309
    %v6780 = vunpack.c.l.b16 %v5310
    %v6781 = vunpack.c.h.b16 %v5310
    %v6782 = vunpack.c.l.b16 %v5311
    %v6783 = vunpack.c.h.b16 %v5311
    %v6784 = vunpack.c.l.b16 %v5312
    %v6785 = vunpack.c.h.b16 %v5312
    %v6786 = vunpack.c.l.b16 %v5313
    %v6787 = vunpack.c.h.b16 %v5313
    %v6788 = vunpack.c.l.b16 %v5314
    %v6789 = vunpack.c.h.b16 %v5314
    %v6790 = vunpack.c.l.b16 %v5315
    %v6791 = vunpack.c.h.b16 %v5315
    %v6792 = vunpack.c.l.b16 %v5316
    %v6793 = vunpack.c.h.b16 %v5316
    %v6794 = vunpack.c.l.b16 %v5317
    %v6795 = vunpack.c.h.b16 %v5317
    %v6796 = vunpack.c.l.b16 %v5318
    %v6797 = vunpack.c.h.b16 %v5318
    %v6798 = vunpack.c.l.b16 %v5319
    %v6799 = vunpack.c.h.b16 %v5319
    %v6800 = vunpack.c.l.b16 %v5320
    %v6801 = vunpack.c.h.b16 %v5320
    %v6802 = vunpack.c.l.b16 %v5321
    %v6803 = vunpack.c.h.b16 %v5321
    %v6804 = vunpack.c.l.b16 %v5322
    %v6805 = vunpack.c.h.b16 %v5322
    %v6806 = vunpack.c.l.b16 %v5323
    %v6807 = vunpack.c.h.b16 %v5323
    %v6808 = vunpack.c.l.b16 %v5324
    %v6809 = vunpack.c.h.b16 %v5324
    %v6810 = vunpack.c.l.b16 %v5325
    %v6811 = vunpack.c.h.b16 %v5325
    %v6812 = vunpack.c.l.b16 %v5326
    %v6813 = vunpack.c.h.b16 %v5326
    %v6814 = vunpack.c.l.b16 %v5327
    %v6815 = vunpack.c.h.b16 %v5327
    %v6816 = vunpack.c.l.b16 %v5328
    %v6817 = vunpack.c.h.b16 %v5328
    %v6818 = vunpack.c.l.b16 %v5329
    %v6819 = vunpack.c.h.b16 %v5329
    %v6820 = vunpack.c.l.b16 %v5330
    %v6821 = vunpack.c.h.b16 %v5330
    %v6822 = vunpack.c.l.b16 %v5331
    %v6823 = vunpack.c.h.b16 %v5331
    %v6824 = vunpack.c.l.b16 %v5332
    %v6825 = vunpack.c.h.b16 %v5332
    %v6826 = vunpack.c.l.b16 %v5333
    %v6827 = vunpack.c.h.b16 %v5333
    %v6828 = vunpack.c.l.b16 %v5334
    %v6829 = vunpack.c.h.b16 %v5334
    %v6830 = vunpack.c.l.b16 %v5335
    %v6831 = vunpack.c.h.b16 %v5335
    %v6832 = vunpack.c.l.b16 %v5336
    %v6833 = vunpack.c.h.b16 %v5336
    %v6834 = vunpack.c.l.b16 %v5337
    %v6835 = vunpack.c.h.b16 %v5337
    %v6836 = vunpack.c.l.b16 %v5338
    %v6837 = vunpack.c.h.b16 %v5338
    %v6838 = vunpack.c.l.b16 %v5339
    %v6839 = vunpack.c.h.b16 %v5339
    %v6840 = vunpack.c.l.b16 %v5340
    %v6841 = vunpack.c.h.b16 %v5340
    %v6842 = vunpack.c.l.b16 %v5341
    %v6843 = vunpack.c.h.b16 %v5341
    %v6844 = vunpack.c.l.b16 %v5342
    %v6845 = vunpack.c.h.b16 %v5342
    %v6846 = vunpack.c.l.b16 %v5343
    %v6847 = vunpack.c.h.b16 %v5343
    %v6848 = vunpack.c.l.b16 %v5344
    %v6849 = vunpack.c.h.b16 %v5344
    %v6850 = vunpack.c.l.b16 %v5345
    %v6851 = vunpack.c.h.b16 %v5345
    %v6852 = vunpack.c.l.b16 %v5346
    %v6853 = vunpack.c.h.b16 %v5346
    %v6854 = vunpack.c.l.b16 %v5347
    %v6855 = vunpack.c.h.b16 %v5347
    %v6856 = vunpack.c.l.b16 %v5348
    %v6857 = vunpack.c.h.b16 %v5348
    %v6858 = vunpack.c.l.b16 %v5349
    %v6859 = vunpack.c.h.b16 %v5349
    %v6860 = vunpack.c.l.b16 %v5350
    %v6861 = vunpack.c.h.b16 %v5350
    %v6862 = vunpack.c.l.b16 %v5351
    %v6863 = vunpack.c.h.b16 %v5351
    %v6864 = vunpack.c.l.b16 %v5352
    %v6865 = vunpack.c.h.b16 %v5352
    %v6866 = vunpack.c.l.b16 %v5353
    %v6867 = vunpack.c.h.b16 %v5353
    %v6868 = vunpack.c.l.b16 %v5354
    %v6869 = vunpack.c.h.b16 %v5354
    %v6870 = vunpack.c.l.b16 %v5355
    %v6871 = vunpack.c.h.b16 %v5355
    %v6872 = vunpack.c.l.b16 %v5356
    %v6873 = vunpack.c.h.b16 %v5356
    %v6874 = vunpack.c.l.b16 %v5357
    %v6875 = vunpack.c.h.b16 %v5357
    %v6876 = vunpack.c.l.b16 %v5358
    %v6877 = vunpack.c.h.b16 %v5358
    %v6878 = vunpack.c.l.b16 %v5359
    %v6879 = vunpack.c.h.b16 %v5359
    %v6880 = vunpack.c.l.b16 %v5360
    %v6881 = vunpack.c.h.b16 %v5360
    %v6882 = vunpack.c.l.b16 %v5361
    %v6883 = vunpack.c.h.b16 %v5361
    %v6884 = vunpack.c.l.b16 %v5362
    %v6885 = vunpack.c.h.b16 %v5362
    %v6886 = vunpack.c.l.b16 %v5363
    %v6887 = vunpack.c.h.b16 %v5363
    %v6888 = vunpack.c.l.b16 %v5364
    %v6889 = vunpack.c.h.b16 %v5364
    %v6890 = vunpack.c.l.b16 %v5365
    %v6891 = vunpack.c.h.b16 %v5365
    %v6892 = vunpack.c.l.b16 %v5366
    %v6893 = vunpack.c.h.b16 %v5366
    %v6894 = vunpack.c.l.b16 %v5367
    %v6895 = vunpack.c.h.b16 %v5367
    %v6896 = vunpack.c.l.b16 %v5368
    %v6897 = vunpack.c.h.b16 %v5368
    %v6898 = vunpack.c.l.b16 %v5369
    %v6899 = vunpack.c.h.b16 %v5369
    %v6900 = vunpack.c.l.b16 %v5370
    %v6901 = vunpack.c.h.b16 %v5370
    %v6902 = vunpack.c.l.b16 %v5371
    %v6903 = vunpack.c.h.b16 %v5371
    %v6904 = vunpack.c.l.b16 %v5372
    %v6905 = vunpack.c.h.b16 %v5372
    %v6906 = vunpack.c.l.b16 %v5373
    %v6907 = vunpack.c.h.b16 %v5373
    %v6908 = vunpack.c.l.b16 %v5374
    %v6909 = vunpack.c.h.b16 %v5374
    %v6910 = vunpack.c.l.b16 %v5375
    %v6911 = vunpack.c.h.b16 %v5375
    %v6912 = vunpack.c.l.b16 %v5376
    %v6913 = vunpack.c.h.b16 %v5376
    %v6914 = vunpack.c.l.b16 %v5377
    %v6915 = vunpack.c.h.b16 %v5377
    %v6916 = vunpack.c.l.b16 %v5378
    %v6917 = vunpack.c.h.b16 %v5378
    %v6918 = vunpack.c.l.b16 %v5379
    %v6919 = vunpack.c.h.b16 %v5379
    %v6920 = vunpack.c.l.b16 %v5380
    %v6921 = vunpack.c.h.b16 %v5380
    %v6922 = vunpack.c.l.b16 %v5381
    %v6923 = vunpack.c.h.b16 %v5381
    %v6924 = vunpack.c.l.b16 %v5382
    %v6925 = vunpack.c.h.b16 %v5382
    %v6926 = vunpack.c.l.b16 %v5383
    %v6927 = vunpack.c.h.b16 %v5383
    %v6928 = vunpack.c.l.b16 %v5384
    %v6929 = vunpack.c.h.b16 %v5384
    %v6930 = vunpack.c.l.b16 %v5385
    %v6931 = vunpack.c.h.b16 %v5385
    %v6932 = vunpack.c.l.b16 %v5386
    %v6933 = vunpack.c.h.b16 %v5386
    %v6934 = vunpack.c.l.b16 %v5387
    %v6935 = vunpack.c.h.b16 %v5387
    %v6936 = vpack.c.b16 %v5914, %v5912
    %v6937 = vpack.c.b16 %v5915, %v5913
    %v6938 = vpack.c.b16 %v5918, %v5916
    %v6939 = vpack.c.b16 %v5919, %v5917
    %v6940 = vpack.c.b16 %v5922, %v5920
    %v6941 = vpack.c.b16 %v5923, %v5921
    %v6942 = vpack.c.b16 %v5926, %v5924
    %v6943 = vpack.c.b16 %v5927, %v5925
    %v6944 = vpack.c.b16 %v5930, %v5928
    %v6945 = vpack.c.b16 %v5931, %v5929
    %v6946 = vpack.c.b16 %v5934, %v5932
    %v6947 = vpack.c.b16 %v5935, %v5933
    %v6948 = vpack.c.b16 %v5938, %v5936
    %v6949 = vpack.c.b16 %v5939, %v5937
    %v6950 = vpack.c.b16 %v5942, %v5940
    %v6951 = vpack.c.b16 %v5943, %v5941
    %v6952 = vpack.c.b16 %v5946, %v5944
    %v6953 = vpack.c.b16 %v5947, %v5945
    %v6954 = vpack.c.b16 %v5950, %v5948
    %v6955 = vpack.c.b16 %v5951, %v5949
    %v6956 = vpack.c.b16 %v5954, %v5952
    %v6957 = vpack.c.b16 %v5955, %v5953
    %v6958 = vpack.c.b16 %v5958, %v5956
    %v6959 = vpack.c.b16 %v5959, %v5957
    %v6960 = vpack.c.b16 %v5962, %v5960
    %v6961 = vpack.c.b16 %v5963, %v5961
    %v6962 = vpack.c.b16 %v5966, %v5964
    %v6963 = vpack.c.b16 %v5967, %v5965
    %v6964 = vpack.c.b16 %v5970, %v5968
    %v6965 = vpack.c.b16 %v5971, %v5969
    %v6966 = vpack.c.b16 %v5974, %v5972
    %v6967 = vpack.c.b16 %v5975, %v5973
    %v6968 = vpack.c.b16 %v5978, %v5976
    %v6969 = vpack.c.b16 %v5979, %v5977
    %v6970 = vpack.c.b16 %v5982, %v5980
    %v6971 = vpack.c.b16 %v5983, %v5981
    %v6972 = vpack.c.b16 %v5986, %v5984
    %v6973 = vpack.c.b16 %v5987, %v5985
    %v6974 = vpack.c.b16 %v5990, %v5988
    %v6975 = vpack.c.b16 %v5991, %v5989
    %v6976 = vpack.c.b16 %v5994, %v5992
    %v6977 = vpack.c.b16 %v5995, %v5993
    %v6978 = vpack.c.b16 %v5998, %v5996
    %v6979 = vpack.c.b16 %v5999, %v5997
    %v6980 = vpack.c.b16 %v6002, %v6000
    %v6981 = vpack.c.b16 %v6003, %v6001
    %v6982 = vpack.c.b16 %v6006, %v6004
    %v6983 = vpack.c.b16 %v6007, %v6005
    %v6984 = vpack.c.b16 %v6010, %v6008
    %v6985 = vpack.c.b16 %v6011, %v6009
    %v6986 = vpack.c.b16 %v6014, %v6012
    %v6987 = vpack.c.b16 %v6015, %v6013
    %v6988 = vpack.c.b16 %v6018, %v6016
    %v6989 = vpack.c.b16 %v6019, %v6017
    %v6990 = vpack.c.b16 %v6022, %v6020
    %v6991 = vpack.c.b16 %v6023, %v6021
    %v6992 = vpack.c.b16 %v6026, %v6024
    %v6993 = vpack.c.b16 %v6027, %v6025
    %v6994 = vpack.c.b16 %v6030, %v6028
    %v6995 = vpack.c.b16 %v6031, %v6029
    %v6996 = vpack.c.b16 %v6034, %v6032
    %v6997 = vpack.c.b16 %v6035, %v6033
    %v6998 = vpack.c.b16 %v6038, %v6036
    %v6999 = vpack.c.b16 %v6039, %v6037
    %v7000 = vpack.c.b16 %v6042, %v6040
    %v7001 = vpack.c.b16 %v6043, %v6041
    %v7002 = vpack.c.b16 %v6046, %v6044
    %v7003 = vpack.c.b16 %v6047, %v6045
    %v7004 = vpack.c.b16 %v6050, %v6048
    %v7005 = vpack.c.b16 %v6051, %v6049
    %v7006 = vpack.c.b16 %v6054, %v6052
    %v7007 = vpack.c.b16 %v6055, %v6053
    %v7008 = vpack.c.b16 %v6058, %v6056
    %v7009 = vpack.c.b16 %v6059, %v6057
    %v7010 = vpack.c.b16 %v6062, %v6060
    %v7011 = vpack.c.b16 %v6063, %v6061
    %v7012 = vpack.c.b16 %v6066, %v6064
    %v7013 = vpack.c.b16 %v6067, %v6065
    %v7014 = vpack.c.b16 %v6070, %v6068
    %v7015 = vpack.c.b16 %v6071, %v6069
    %v7016 = vpack.c.b16 %v6074, %v6072
    %v7017 = vpack.c.b16 %v6075, %v6073
    %v7018 = vpack.c.b16 %v6078, %v6076
    %v7019 = vpack.c.b16 %v6079, %v6077
    %v7020 = vpack.c.b16 %v6082, %v6080
    %v7021 = vpack.c.b16 %v6083, %v6081
    %v7022 = vpack.c.b16 %v6086, %v6084
    %v7023 = vpack.c.b16 %v6087, %v6085
    %v7024 = vpack.c.b16 %v6090, %v6088
    %v7025 = vpack.c.b16 %v6091, %v6089
    %v7026 = vpack.c.b16 %v6094, %v6092
    %v7027 = vpack.c.b16 %v6095, %v6093
    %v7028 = vpack.c.b16 %v6098, %v6096
    %v7029 = vpack.c.b16 %v6099, %v6097
    %v7030 = vpack.c.b16 %v6102, %v6100
    %v7031 = vpack.c.b16 %v6103, %v6101
    %v7032 = vpack.c.b16 %v6106, %v6104
    %v7033 = vpack.c.b16 %v6107, %v6105
    %v7034 = vpack.c.b16 %v6110, %v6108
    %v7035 = vpack.c.b16 %v6111, %v6109
    %v7036 = vpack.c.b16 %v6114, %v6112
    %v7037 = vpack.c.b16 %v6115, %v6113
    %v7038 = vpack.c.b16 %v6118, %v6116
    %v7039 = vpack.c.b16 %v6119, %v6117
    %v7040 = vpack.c.b16 %v6122, %v6120
    %v7041 = vpack.c.b16 %v6123, %v6121
    %v7042 = vpack.c.b16 %v6126, %v6124
    %v7043 = vpack.c.b16 %v6127, %v6125
    %v7044 = vpack.c.b16 %v6130, %v6128
    %v7045 = vpack.c.b16 %v6131, %v6129
    %v7046 = vpack.c.b16 %v6134, %v6132
    %v7047 = vpack.c.b16 %v6135, %v6133
    %v7048 = vpack.c.b16 %v6138, %v6136
    %v7049 = vpack.c.b16 %v6139, %v6137
    %v7050 = vpack.c.b16 %v6142, %v6140
    %v7051 = vpack.c.b16 %v6143, %v6141
    %v7052 = vpack.c.b16 %v6146, %v6144
    %v7053 = vpack.c.b16 %v6147, %v6145
    %v7054 = vpack.c.b16 %v6150, %v6148
    %v7055 = vpack.c.b16 %v6151, %v6149
    %v7056 = vpack.c.b16 %v6154, %v6152
    %v7057 = vpack.c.b16 %v6155, %v6153
    %v7058 = vpack.c.b16 %v6158, %v6156
    %v7059 = vpack.c.b16 %v6159, %v6157
    %v7060 = vpack.c.b16 %v6162, %v6160
    %v7061 = vpack.c.b16 %v6163, %v6161
    %v7062 = vpack.c.b16 %v6166, %v6164
    %v7063 = vpack.c.b16 %v6167, %v6165
    %v7064 = vpack.c.b16 %v6170, %v6168
    %v7065 = vpack.c.b16 %v6171, %v6169
    %v7066 = vpack.c.b16 %v6174, %v6172
    %v7067 = vpack.c.b16 %v6175, %v6173
    %v7068 = vpack.c.b16 %v6178, %v6176
    %v7069 = vpack.c.b16 %v6179, %v6177
    %v7070 = vpack.c.b16 %v6182, %v6180
    %v7071 = vpack.c.b16 %v6183, %v6181
    %v7072 = vpack.c.b16 %v6186, %v6184
    %v7073 = vpack.c.b16 %v6187, %v6185
    %v7074 = vpack.c.b16 %v6190, %v6188
    %v7075 = vpack.c.b16 %v6191, %v6189
    %v7076 = vpack.c.b16 %v6194, %v6192
    %v7077 = vpack.c.b16 %v6195, %v6193
    %v7078 = vpack.c.b16 %v6198, %v6196
    %v7079 = vpack.c.b16 %v6199, %v6197
    %v7080 = vpack.c.b16 %v6202, %v6200
    %v7081 = vpack.c.b16 %v6203, %v6201
    %v7082 = vpack.c.b16 %v6206, %v6204
    %v7083 = vpack.c.b16 %v6207, %v6205
    %v7084 = vpack.c.b16 %v6210, %v6208
    %v7085 = vpack.c.b16 %v6211, %v6209
    %v7086 = vpack.c.b16 %v6214, %v6212
    %v7087 = vpack.c.b16 %v6215, %v6213
    %v7088 = vpack.c.b16 %v6218, %v6216
    %v7089 = vpack.c.b16 %v6219, %v6217
    %v7090 = vpack.c.b16 %v6222, %v6220
    %v7091 = vpack.c.b16 %v6223, %v6221
    %v7092 = vpack.c.b16 %v6226, %v6224
    %v7093 = vpack.c.b16 %v6227, %v6225
    %v7094 = vpack.c.b16 %v6230, %v6228
    %v7095 = vpack.c.b16 %v6231, %v6229
    %v7096 = vpack.c.b16 %v6234, %v6232
    %v7097 = vpack.c.b16 %v6235, %v6233
    %v7098 = vpack.c.b16 %v6238, %v6236
    %v7099 = vpack.c.b16 %v6239, %v6237
    %v7100 = vpack.c.b16 %v6242, %v6240
    %v7101 = vpack.c.b16 %v6243, %v6241
    %v7102 = vpack.c.b16 %v6246, %v6244
    %v7103 = vpack.c.b16 %v6247, %v6245
    %v7104 = vpack.c.b16 %v6250, %v6248
    %v7105 = vpack.c.b16 %v6251, %v6249
    %v7106 = vpack.c.b16 %v6254, %v6252
    %v7107 = vpack.c.b16 %v6255, %v6253
    %v7108 = vpack.c.b16 %v6258, %v6256
    %v7109 = vpack.c.b16 %v6259, %v6257
    %v7110 = vpack.c.b16 %v6262, %v6260
    %v7111 = vpack.c.b16 %v6263, %v6261
    %v7112 = vpack.c.b16 %v6266, %v6264
    %v7113 = vpack.c.b16 %v6267, %v6265
    %v7114 = vpack.c.b16 %v6270, %v6268
    %v7115 = vpack.c.b16 %v6271, %v6269
    %v7116 = vpack.c.b16 %v6274, %v6272
    %v7117 = vpack.c.b16 %v6275, %v6273
    %v7118 = vpack.c.b16 %v6278, %v6276
    %v7119 = vpack.c.b16 %v6279, %v6277
    %v7120 = vpack.c.b16 %v6282, %v6280
    %v7121 = vpack.c.b16 %v6283, %v6281
    %v7122 = vpack.c.b16 %v6286, %v6284
    %v7123 = vpack.c.b16 %v6287, %v6285
    %v7124 = vpack.c.b16 %v6290, %v6288
    %v7125 = vpack.c.b16 %v6291, %v6289
    %v7126 = vpack.c.b16 %v6294, %v6292
    %v7127 = vpack.c.b16 %v6295, %v6293
    %v7128 = vpack.c.b16 %v6298, %v6296
    %v7129 = vpack.c.b16 %v6299, %v6297
    %v7130 = vpack.c.b16 %v6302, %v6300
    %v7131 = vpack.c.b16 %v6303, %v6301
    %v7132 = vpack.c.b16 %v6306, %v6304
    %v7133 = vpack.c.b16 %v6307, %v6305
    %v7134 = vpack.c.b16 %v6310, %v6308
    %v7135 = vpack.c.b16 %v6311, %v6309
    %v7136 = vpack.c.b16 %v6314, %v6312
    %v7137 = vpack.c.b16 %v6315, %v6313
    %v7138 = vpack.c.b16 %v6318, %v6316
    %v7139 = vpack.c.b16 %v6319, %v6317
    %v7140 = vpack.c.b16 %v6322, %v6320
    %v7141 = vpack.c.b16 %v6323, %v6321
    %v7142 = vpack.c.b16 %v6326, %v6324
    %v7143 = vpack.c.b16 %v6327, %v6325
    %v7144 = vpack.c.b16 %v6330, %v6328
    %v7145 = vpack.c.b16 %v6331, %v6329
    %v7146 = vpack.c.b16 %v6334, %v6332
    %v7147 = vpack.c.b16 %v6335, %v6333
    %v7148 = vpack.c.b16 %v6338, %v6336
    %v7149 = vpack.c.b16 %v6339, %v6337
    %v7150 = vpack.c.b16 %v6342, %v6340
    %v7151 = vpack.c.b16 %v6343, %v6341
    %v7152 = vpack.c.b16 %v6346, %v6344
    %v7153 = vpack.c.b16 %v6347, %v6345
    %v7154 = vpack.c.b16 %v6350, %v6348
    %v7155 = vpack.c.b16 %v6351, %v6349
    %v7156 = vpack.c.b16 %v6354, %v6352
    %v7157 = vpack.c.b16 %v6355, %v6353
    %v7158 = vpack.c.b16 %v6358, %v6356
    %v7159 = vpack.c.b16 %v6359, %v6357
    %v7160 = vpack.c.b16 %v6362, %v6360
    %v7161 = vpack.c.b16 %v6363, %v6361
    %v7162 = vpack.c.b16 %v6366, %v6364
    %v7163 = vpack.c.b16 %v6367, %v6365
    %v7164 = vpack.c.b16 %v6370, %v6368
    %v7165 = vpack.c.b16 %v6371, %v6369
    %v7166 = vpack.c.b16 %v6374, %v6372
    %v7167 = vpack.c.b16 %v6375, %v6373
    %v7168 = vpack.c.b16 %v6378, %v6376
    %v7169 = vpack.c.b16 %v6379, %v6377
    %v7170 = vpack.c.b16 %v6382, %v6380
    %v7171 = vpack.c.b16 %v6383, %v6381
    %v7172 = vpack.c.b16 %v6386, %v6384
    %v7173 = vpack.c.b16 %v6387, %v6385
    %v7174 = vpack.c.b16 %v6390, %v6388
    %v7175 = vpack.c.b16 %v6391, %v6389
    %v7176 = vpack.c.b16 %v6394, %v6392
    %v7177 = vpack.c.b16 %v6395, %v6393
    %v7178 = vpack.c.b16 %v6398, %v6396
    %v7179 = vpack.c.b16 %v6399, %v6397
    %v7180 = vpack.c.b16 %v6402, %v6400
    %v7181 = vpack.c.b16 %v6403, %v6401
    %v7182 = vpack.c.b16 %v6406, %v6404
    %v7183 = vpack.c.b16 %v6407, %v6405
    %v7184 = vpack.c.b16 %v6410, %v6408
    %v7185 = vpack.c.b16 %v6411, %v6409
    %v7186 = vpack.c.b16 %v6414, %v6412
    %v7187 = vpack.c.b16 %v6415, %v6413
    %v7188 = vpack.c.b16 %v6418, %v6416
    %v7189 = vpack.c.b16 %v6419, %v6417
    %v7190 = vpack.c.b16 %v6422, %v6420
    %v7191 = vpack.c.b16 %v6423, %v6421
    %v7192 = vpack.c.b16 %v6426, %v6424
    %v7193 = vpack.c.b16 %v6427, %v6425
    %v7194 = vpack.c.b16 %v6430, %v6428
    %v7195 = vpack.c.b16 %v6431, %v6429
    %v7196 = vpack.c.b16 %v6434, %v6432
    %v7197 = vpack.c.b16 %v6435, %v6433
    %v7198 = vpack.c.b16 %v6438, %v6436
    %v7199 = vpack.c.b16 %v6439, %v6437
    %v7200 = vpack.c.b16 %v6442, %v6440
    %v7201 = vpack.c.b16 %v6443, %v6441
    %v7202 = vpack.c.b16 %v6446, %v6444
    %v7203 = vpack.c.b16 %v6447, %v6445
    %v7204 = vpack.c.b16 %v6450, %v6448
    %v7205 = vpack.c.b16 %v6451, %v6449
    %v7206 = vpack.c.b16 %v6454, %v6452
    %v7207 = vpack.c.b16 %v6455, %v6453
    %v7208 = vpack.c.b16 %v6458, %v6456
    %v7209 = vpack.c.b16 %v6459, %v6457
    %v7210 = vpack.c.b16 %v6462, %v6460
    %v7211 = vpack.c.b16 %v6463, %v6461
    %v7212 = vpack.c.b16 %v6466, %v6464
    %v7213 = vpack.c.b16 %v6467, %v6465
    %v7214 = vpack.c.b16 %v6470, %v6468
    %v7215 = vpack.c.b16 %v6471, %v6469
    %v7216 = vpack.c.b16 %v6474, %v6472
    %v7217 = vpack.c.b16 %v6475, %v6473
    %v7218 = vpack.c.b16 %v6478, %v6476
    %v7219 = vpack.c.b16 %v6479, %v6477
    %v7220 = vpack.c.b16 %v6482, %v6480
    %v7221 = vpack.c.b16 %v6483, %v6481
    %v7222 = vpack.c.b16 %v6486, %v6484
    %v7223 = vpack.c.b16 %v6487, %v6485
    %v7224 = vpack.c.b16 %v6490, %v6488
    %v7225 = vpack.c.b16 %v6491, %v6489
    %v7226 = vpack.c.b16 %v6494, %v6492
    %v7227 = vpack.c.b16 %v6495, %v6493
    %v7228 = vpack.c.b16 %v6498, %v6496
    %v7229 = vpack.c.b16 %v6499, %v6497
    %v7230 = vpack.c.b16 %v6502, %v6500
    %v7231 = vpack.c.b16 %v6503, %v6501
    %v7232 = vpack.c.b16 %v6506, %v6504
    %v7233 = vpack.c.b16 %v6507, %v6505
    %v7234 = vpack.c.b16 %v6510, %v6508
    %v7235 = vpack.c.b16 %v6511, %v6509
    %v7236 = vpack.c.b16 %v6514, %v6512
    %v7237 = vpack.c.b16 %v6515, %v6513
    %v7238 = vpack.c.b16 %v6518, %v6516
    %v7239 = vpack.c.b16 %v6519, %v6517
    %v7240 = vpack.c.b16 %v6522, %v6520
    %v7241 = vpack.c.b16 %v6523, %v6521
    %v7242 = vpack.c.b16 %v6526, %v6524
    %v7243 = vpack.c.b16 %v6527, %v6525
    %v7244 = vpack.c.b16 %v6530, %v6528
    %v7245 = vpack.c.b16 %v6531, %v6529
    %v7246 = vpack.c.b16 %v6534, %v6532
    %v7247 = vpack.c.b16 %v6535, %v6533
    %v7248 = vpack.c.b16 %v6538, %v6536
    %v7249 = vpack.c.b16 %v6539, %v6537
    %v7250 = vpack.c.b16 %v6542, %v6540
    %v7251 = vpack.c.b16 %v6543, %v6541
    %v7252 = vpack.c.b16 %v6546, %v6544
    %v7253 = vpack.c.b16 %v6547, %v6545
    %v7254 = vpack.c.b16 %v6550, %v6548
    %v7255 = vpack.c.b16 %v6551, %v6549
    %v7256 = vpack.c.b16 %v6554, %v6552
    %v7257 = vpack.c.b16 %v6555, %v6553
    %v7258 = vpack.c.b16 %v6558, %v6556
    %v7259 = vpack.c.b16 %v6559, %v6557
    %v7260 = vpack.c.b16 %v6562, %v6560
    %v7261 = vpack.c.b16 %v6563, %v6561
    %v7262 = vpack.c.b16 %v6566, %v6564
    %v7263 = vpack.c.b16 %v6567, %v6565
    %v7264 = vpack.c.b16 %v6570, %v6568
    %v7265 = vpack.c.b16 %v6571, %v6569
    %v7266 = vpack.c.b16 %v6574, %v6572
    %v7267 = vpack.c.b16 %v6575, %v6573
    %v7268 = vpack.c.b16 %v6578, %v6576
    %v7269 = vpack.c.b16 %v6579, %v6577
    %v7270 = vpack.c.b16 %v6582, %v6580
    %v7271 = vpack.c.b16 %v6583, %v6581
    %v7272 = vpack.c.b16 %v6586, %v6584
    %v7273 = vpack.c.b16 %v6587, %v6585
    %v7274 = vpack.c.b16 %v6590, %v6588
    %v7275 = vpack.c.b16 %v6591, %v6589
    %v7276 = vpack.c.b16 %v6594, %v6592
    %v7277 = vpack.c.b16 %v6595, %v6593
    %v7278 = vpack.c.b16 %v6598, %v6596
    %v7279 = vpack.c.b16 %v6599, %v6597
    %v7280 = vpack.c.b16 %v6602, %v6600
    %v7281 = vpack.c.b16 %v6603, %v6601
    %v7282 = vpack.c.b16 %v6606, %v6604
    %v7283 = vpack.c.b16 %v6607, %v6605
    %v7284 = vpack.c.b16 %v6610, %v6608
    %v7285 = vpack.c.b16 %v6611, %v6609
    %v7286 = vpack.c.b16 %v6614, %v6612
    %v7287 = vpack.c.b16 %v6615, %v6613
    %v7288 = vpack.c.b16 %v6618, %v6616
    %v7289 = vpack.c.b16 %v6619, %v6617
    %v7290 = vpack.c.b16 %v6622, %v6620
    %v7291 = vpack.c.b16 %v6623, %v6621
    %v7292 = vpack.c.b16 %v6626, %v6624
    %v7293 = vpack.c.b16 %v6627, %v6625
    %v7294 = vpack.c.b16 %v6630, %v6628
    %v7295 = vpack.c.b16 %v6631, %v6629
    %v7296 = vpack.c.b16 %v6634, %v6632
    %v7297 = vpack.c.b16 %v6635, %v6633
    %v7298 = vpack.c.b16 %v6638, %v6636
    %v7299 = vpack.c.b16 %v6639, %v6637
    %v7300 = vpack.c.b16 %v6642, %v6640
    %v7301 = vpack.c.b16 %v6643, %v6641
    %v7302 = vpack.c.b16 %v6646, %v6644
    %v7303 = vpack.c.b16 %v6647, %v6645
    %v7304 = vpack.c.b16 %v6650, %v6648
    %v7305 = vpack.c.b16 %v6651, %v6649
    %v7306 = vpack.c.b16 %v6654, %v6652
    %v7307 = vpack.c.b16 %v6655, %v6653
    %v7308 = vpack.c.b16 %v6658, %v6656
    %v7309 = vpack.c.b16 %v6659, %v6657
    %v7310 = vpack.c.b16 %v6662, %v6660
    %v7311 = vpack.c.b16 %v6663, %v6661
    %v7312 = vpack.c.b16 %v6666, %v6664
    %v7313 = vpack.c.b16 %v6667, %v6665
    %v7314 = vpack.c.b16 %v6670, %v6668
    %v7315 = vpack.c.b16 %v6671, %v6669
    %v7316 = vpack.c.b16 %v6674, %v6672
    %v7317 = vpack.c.b16 %v6675, %v6673
    %v7318 = vpack.c.b16 %v6678, %v6676
    %v7319 = vpack.c.b16 %v6679, %v6677
    %v7320 = vpack.c.b16 %v6682, %v6680
    %v7321 = vpack.c.b16 %v6683, %v6681
    %v7322 = vpack.c.b16 %v6686, %v6684
    %v7323 = vpack.c.b16 %v6687, %v6685
    %v7324 = vpack.c.b16 %v6690, %v6688
    %v7325 = vpack.c.b16 %v6691, %v6689
    %v7326 = vpack.c.b16 %v6694, %v6692
    %v7327 = vpack.c.b16 %v6695, %v6693
    %v7328 = vpack.c.b16 %v6698, %v6696
    %v7329 = vpack.c.b16 %v6699, %v6697
    %v7330 = vpack.c.b16 %v6702, %v6700
    %v7331 = vpack.c.b16 %v6703, %v6701
    %v7332 = vpack.c.b16 %v6706, %v6704
    %v7333 = vpack.c.b16 %v6707, %v6705
    %v7334 = vpack.c.b16 %v6710, %v6708
    %v7335 = vpack.c.b16 %v6711, %v6709
    %v7336 = vpack.c.b16 %v6714, %v6712
    %v7337 = vpack.c.b16 %v6715, %v6713
    %v7338 = vpack.c.b16 %v6718, %v6716
    %v7339 = vpack.c.b16 %v6719, %v6717
    %v7340 = vpack.c.b16 %v6722, %v6720
    %v7341 = vpack.c.b16 %v6723, %v6721
    %v7342 = vpack.c.b16 %v6726, %v6724
    %v7343 = vpack.c.b16 %v6727, %v6725
    %v7344 = vpack.c.b16 %v6730, %v6728
    %v7345 = vpack.c.b16 %v6731, %v6729
    %v7346 = vpack.c.b16 %v6734, %v6732
    %v7347 = vpack.c.b16 %v6735, %v6733
    %v7348 = vpack.c.b16 %v6738, %v6736
    %v7349 = vpack.c.b16 %v6739, %v6737
    %v7350 = vpack.c.b16 %v6742, %v6740
    %v7351 = vpack.c.b16 %v6743, %v6741
    %v7352 = vpack.c.b16 %v6746, %v6744
    %v7353 = vpack.c.b16 %v6747, %v6745
    %v7354 = vpack.c.b16 %v6750, %v6748
    %v7355 = vpack.c.b16 %v6751, %v6749
    %v7356 = vpack.c.b16 %v6754, %v6752
    %v7357 = vpack.c.b16 %v6755, %v6753
    %v7358 = vpack.c.b16 %v6758, %v6756
    %v7359 = vpack.c.b16 %v6759, %v6757
    %v7360 = vpack.c.b16 %v6762, %v6760
    %v7361 = vpack.c.b16 %v6763, %v6761
    %v7362 = vpack.c.b16 %v6766, %v6764
    %v7363 = vpack.c.b16 %v6767, %v6765
    %v7364 = vpack.c.b16 %v6770, %v6768
    %v7365 = vpack.c.b16 %v6771, %v6769
    %v7366 = vpack.c.b16 %v6774, %v6772
    %v7367 = vpack.c.b16 %v6775, %v6773
    %v7368 = vpack.c.b16 %v6778, %v6776
    %v7369 = vpack.c.b16 %v6779, %v6777
    %v7370 = vpack.c.b16 %v6782, %v6780
    %v7371 = vpack.c.b16 %v6783, %v6781
    %v7372 = vpack.c.b16 %v6786, %v6784
    %v7373 = vpack.c.b16 %v6787, %v6785
    %v7374 = vpack.c.b16 %v6790, %v6788
    %v7375 = vpack.c.b16 %v6791, %v6789
    %v7376 = vpack.c.b16 %v6794, %v6792
    %v7377 = vpack.c.b16 %v6795, %v6793
    %v7378 = vpack.c.b16 %v6798, %v6796
    %v7379 = vpack.c.b16 %v6799, %v6797
    %v7380 = vpack.c.b16 %v6802, %v6800
    %v7381 = vpack.c.b16 %v6803, %v6801
    %v7382 = vpack.c.b16 %v6806, %v6804
    %v7383 = vpack.c.b16 %v6807, %v6805
    %v7384 = vpack.c.b16 %v6810, %v6808
    %v7385 = vpack.c.b16 %v6811, %v6809
    %v7386 = vpack.c.b16 %v6814, %v6812
    %v7387 = vpack.c.b16 %v6815, %v6813
    %v7388 = vpack.c.b16 %v6818, %v6816
    %v7389 = vpack.c.b16 %v6819, %v6817
    %v7390 = vpack.c.b16 %v6822, %v6820
    %v7391 = vpack.c.b16 %v6823, %v6821
    %v7392 = vpack.c.b16 %v6826, %v6824
    %v7393 = vpack.c.b16 %v6827, %v6825
    %v7394 = vpack.c.b16 %v6830, %v6828
    %v7395 = vpack.c.b16 %v6831, %v6829
    %v7396 = vpack.c.b16 %v6834, %v6832
    %v7397 = vpack.c.b16 %v6835, %v6833
    %v7398 = vpack.c.b16 %v6838, %v6836
    %v7399 = vpack.c.b16 %v6839, %v6837
    %v7400 = vpack.c.b16 %v6842, %v6840
    %v7401 = vpack.c.b16 %v6843, %v6841
    %v7402 = vpack.c.b16 %v6846, %v6844
    %v7403 = vpack.c.b16 %v6847, %v6845
    %v7404 = vpack.c.b16 %v6850, %v6848
    %v7405 = vpack.c.b16 %v6851, %v6849
    %v7406 = vpack.c.b16 %v6854, %v6852
    %v7407 = vpack.c.b16 %v6855, %v6853
    %v7408 = vpack.c.b16 %v6858, %v6856
    %v7409 = vpack.c.b16 %v6859, %v6857
    %v7410 = vpack.c.b16 %v6862, %v6860
    %v7411 = vpack.c.b16 %v6863, %v6861
    %v7412 = vpack.c.b16 %v6866, %v6864
    %v7413 = vpack.c.b16 %v6867, %v6865
    %v7414 = vpack.c.b16 %v6870, %v6868
    %v7415 = vpack.c.b16 %v6871, %v6869
    %v7416 = vpack.c.b16 %v6874, %v6872
    %v7417 = vpack.c.b16 %v6875, %v6873
    %v7418 = vpack.c.b16 %v6878, %v6876
    %v7419 = vpack.c.b16 %v6879, %v6877
    %v7420 = vpack.c.b16 %v6882, %v6880
    %v7421 = vpack.c.b16 %v6883, %v6881
    %v7422 = vpack.c.b16 %v6886, %v6884
    %v7423 = vpack.c.b16 %v6887, %v6885
    %v7424 = vpack.c.b16 %v6890, %v6888
    %v7425 = vpack.c.b16 %v6891, %v6889
    %v7426 = vpack.c.b16 %v6894, %v6892
    %v7427 = vpack.c.b16 %v6895, %v6893
    %v7428 = vpack.c.b16 %v6898, %v6896
    %v7429 = vpack.c.b16 %v6899, %v6897
    %v7430 = vpack.c.b16 %v6902, %v6900
    %v7431 = vpack.c.b16 %v6903, %v6901
    %v7432 = vpack.c.b16 %v6906, %v6904
    %v7433 = vpack.c.b16 %v6907, %v6905
    %v7434 = vpack.c.b16 %v6910, %v6908
    %v7435 = vpack.c.b16 %v6911, %v6909
    %v7436 = vpack.c.b16 %v6914, %v6912
    %v7437 = vpack.c.b16 %v6915, %v6913
    %v7438 = vpack.c.b16 %v6918, %v6916
    %v7439 = vpack.c.b16 %v6919, %v6917
    %v7440 = vpack.c.b16 %v6922, %v6920
    %v7441 = vpack.c.b16 %v6923, %v6921
    %v7442 = vpack.c.b16 %v6926, %v6924
    %v7443 = vpack.c.b16 %v6927, %v6925
    %v7444 = vpack.c.b16 %v6930, %v6928
    %v7445 = vpack.c.b16 %v6931, %v6929
    %v7446 = vpack.c.b16 %v6934, %v6932
    %v7447 = vpack.c.b16 %v6935, %v6933
    %7960 = vmatprep.subr.bf16.mxu0 %v6937
    %7961 = vmatpush1.bf16.msra.mxu0 %v6936
    %7962 = vmatprep.subr.bf16.mxu0 %v6939
    %7963 = vmatpush1.bf16.msra.mxu0 %v6938
    %7964 = vmatprep.subr.bf16.mxu0 %v6941
    %7965 = vmatpush1.bf16.msra.mxu0 %v6940
    %7966 = vmatprep.subr.bf16.mxu0 %v6943
    %7967 = vmatpush1.bf16.msra.mxu0 %v6942
    %7968 = vmatprep.subr.bf16.mxu0 %v6945
    %7969 = vmatpush1.bf16.msra.mxu0 %v6944
    %7970 = vmatprep.subr.bf16.mxu0 %v6947
    %7971 = vmatpush1.bf16.msra.mxu0 %v6946
    %7972 = vmatprep.subr.bf16.mxu0 %v6949
    %7973 = vmatpush1.bf16.msra.mxu0 %v6948
    %7974 = vmatprep.subr.bf16.mxu0 %v6951
    %7975 = vmatpush1.bf16.msra.mxu0 %v6950
    %7976 = vmatprep.subr.bf16.mxu0 %v6953
    %7977 = vmatpush1.bf16.msra.mxu0 %v6952
    %7978 = vmatprep.subr.bf16.mxu0 %v6955
    %7979 = vmatpush1.bf16.msra.mxu0 %v6954
    %7980 = vmatprep.subr.bf16.mxu0 %v6957
    %7981 = vmatpush1.bf16.msra.mxu0 %v6956
    %7982 = vmatprep.subr.bf16.mxu0 %v6959
    %7983 = vmatpush1.bf16.msra.mxu0 %v6958
    %7984 = vmatprep.subr.bf16.mxu0 %v6961
    %7985 = vmatpush1.bf16.msra.mxu0 %v6960
    %7986 = vmatprep.subr.bf16.mxu0 %v6963
    %7987 = vmatpush1.bf16.msra.mxu0 %v6962
    %7988 = vmatprep.subr.bf16.mxu0 %v6965
    %7989 = vmatpush1.bf16.msra.mxu0 %v6964
    %7990 = vmatprep.subr.bf16.mxu0 %v6967
    %7991 = vmatpush1.bf16.msra.mxu0 %v6966
    %7992 = vmatprep.mubr.bf16.mxu0 %v4845
    %7993 = vmatmul.mubr.bf16.gmra.mrb[0].mxu0 %v4844
    %v7994 = vpop.f32.mrb[0].mxu0
    %v7995 = vadd.f32 %v5393, %v7994
    %v7996 = vpop.f32.mrb[0].mxu0
    %v7997 = vadd.f32 %v5397, %v7996
    %v7998 = vpop.f32.mrb[0].mxu0
    %v7999 = vpop.f32.mrb[0].mxu0
    %8000 = vdwg.mxu0
    %8001 = vmatprep.subr.bf16.mxu0 %v6969
    %8002 = vmatpush1.bf16.msra.mxu0 %v6968
    %8003 = vmatprep.subr.bf16.mxu0 %v6971
    %8004 = vmatpush1.bf16.msra.mxu0 %v6970
    %8005 = vmatprep.subr.bf16.mxu0 %v6973
    %8006 = vmatpush1.bf16.msra.mxu0 %v6972
    %8007 = vmatprep.subr.bf16.mxu0 %v6975
    %8008 = vmatpush1.bf16.msra.mxu0 %v6974
    %8009 = vmatprep.subr.bf16.mxu0 %v6977
    %8010 = vmatpush1.bf16.msra.mxu0 %v6976
    %8011 = vmatprep.subr.bf16.mxu0 %v6979
    %8012 = vmatpush1.bf16.msra.mxu0 %v6978
    %8013 = vmatprep.subr.bf16.mxu0 %v6981
    %8014 = vmatpush1.bf16.msra.mxu0 %v6980
    %8015 = vmatprep.subr.bf16.mxu0 %v6983
    %8016 = vmatpush1.bf16.msra.mxu0 %v6982
    %8017 = vmatprep.subr.bf16.mxu0 %v6985
    %8018 = vmatpush1.bf16.msra.mxu0 %v6984
    %8019 = vmatprep.subr.bf16.mxu0 %v6987
    %8020 = vmatpush1.bf16.msra.mxu0 %v6986
    %8021 = vmatprep.subr.bf16.mxu0 %v6989
    %8022 = vmatpush1.bf16.msra.mxu0 %v6988
    %8023 = vmatprep.subr.bf16.mxu0 %v6991
    %8024 = vmatpush1.bf16.msra.mxu0 %v6990
    %8025 = vmatprep.subr.bf16.mxu0 %v6993
    %8026 = vmatpush1.bf16.msra.mxu0 %v6992
    %8027 = vmatprep.subr.bf16.mxu0 %v6995
    %8028 = vmatpush1.bf16.msra.mxu0 %v6994
    %8029 = vmatprep.subr.bf16.mxu0 %v6997
    %8030 = vmatpush1.bf16.msra.mxu0 %v6996
    %8031 = vmatprep.subr.bf16.mxu0 %v6999
    %8032 = vmatpush1.bf16.msra.mxu0 %v6998
    %8033 = vmatprep.mubr.bf16.mxu0 %v4847
    %8034 = vmatmul.mubr.bf16.gmra.mrb[0].mxu0 %v4846
    %v8035 = vpop.f32.mrb[0].mxu0
    %v8036 = vadd.f32 %v7995, %v8035
    %v8037 = vpop.f32.mrb[0].mxu0
    %v8038 = vadd.f32 %v7997, %v8037
    %v8039 = vpop.f32.mrb[0].mxu0
    %v8040 = vpop.f32.mrb[0].mxu0
    %8041 = vdwg.mxu0
    %8042 = vmatprep.subr.bf16.mxu0 %v7001
    %8043 = vmatpush1.bf16.msra.mxu0 %v7000
    %8044 = vmatprep.subr.bf16.mxu0 %v7003
    %8045 = vmatpush1.bf16.msra.mxu0 %v7002
    %8046 = vmatprep.subr.bf16.mxu0 %v7005
    %8047 = vmatpush1.bf16.msra.mxu0 %v7004
    %8048 = vmatprep.subr.bf16.mxu0 %v7007
    %8049 = vmatpush1.bf16.msra.mxu0 %v7006
    %8050 = vmatprep.subr.bf16.mxu0 %v7009
    %8051 = vmatpush1.bf16.msra.mxu0 %v7008
    %8052 = vmatprep.subr.bf16.mxu0 %v7011
    %8053 = vmatpush1.bf16.msra.mxu0 %v7010
    %8054 = vmatprep.subr.bf16.mxu0 %v7013
    %8055 = vmatpush1.bf16.msra.mxu0 %v7012
    %8056 = vmatprep.subr.bf16.mxu0 %v7015
    %8057 = vmatpush1.bf16.msra.mxu0 %v7014
    %8058 = vmatprep.subr.bf16.mxu0 %v7017
    %8059 = vmatpush1.bf16.msra.mxu0 %v7016
    %8060 = vmatprep.subr.bf16.mxu0 %v7019
    %8061 = vmatpush1.bf16.msra.mxu0 %v7018
    %8062 = vmatprep.subr.bf16.mxu0 %v7021
    %8063 = vmatpush1.bf16.msra.mxu0 %v7020
    %8064 = vmatprep.subr.bf16.mxu0 %v7023
    %8065 = vmatpush1.bf16.msra.mxu0 %v7022
    %8066 = vmatprep.subr.bf16.mxu0 %v7025
    %8067 = vmatpush1.bf16.msra.mxu0 %v7024
    %8068 = vmatprep.subr.bf16.mxu0 %v7027
    %8069 = vmatpush1.bf16.msra.mxu0 %v7026
    %8070 = vmatprep.subr.bf16.mxu0 %v7029
    %8071 = vmatpush1.bf16.msra.mxu0 %v7028
    %8072 = vmatprep.subr.bf16.mxu0 %v7031
    %8073 = vmatpush1.bf16.msra.mxu0 %v7030
    %8074 = vmatprep.mubr.bf16.mxu0 %v4849
    %8075 = vmatmul.mubr.bf16.gmra.mrb[0].mxu0 %v4848
    %v8076 = vpop.f32.mrb[0].mxu0
    %v8077 = vadd.f32 %v8036, %v8076
    %v8078 = vpop.f32.mrb[0].mxu0
    %v8079 = vadd.f32 %v8038, %v8078
    %v8080 = vpop.f32.mrb[0].mxu0
    %v8081 = vpop.f32.mrb[0].mxu0
    %8082 = vdwg.mxu0
    %8083 = vmatprep.subr.bf16.mxu0 %v7033
    %8084 = vmatpush1.bf16.msra.mxu0 %v7032
    %8085 = vmatprep.subr.bf16.mxu0 %v7035
    %8086 = vmatpush1.bf16.msra.mxu0 %v7034
    %8087 = vmatprep.subr.bf16.mxu0 %v7037
    %8088 = vmatpush1.bf16.msra.mxu0 %v7036
    %8089 = vmatprep.subr.bf16.mxu0 %v7039
    %8090 = vmatpush1.bf16.msra.mxu0 %v7038
    %8091 = vmatprep.subr.bf16.mxu0 %v7041
    %8092 = vmatpush1.bf16.msra.mxu0 %v7040
    %8093 = vmatprep.subr.bf16.mxu0 %v7043
    %8094 = vmatpush1.bf16.msra.mxu0 %v7042
    %8095 = vmatprep.subr.bf16.mxu0 %v7045
    %8096 = vmatpush1.bf16.msra.mxu0 %v7044
    %8097 = vmatprep.subr.bf16.mxu0 %v7047
    %8098 = vmatpush1.bf16.msra.mxu0 %v7046
    %8099 = vmatprep.subr.bf16.mxu0 %v7049
    %8100 = vmatpush1.bf16.msra.mxu0 %v7048
    %8101 = vmatprep.subr.bf16.mxu0 %v7051
    %8102 = vmatpush1.bf16.msra.mxu0 %v7050
    %8103 = vmatprep.subr.bf16.mxu0 %v7053
    %8104 = vmatpush1.bf16.msra.mxu0 %v7052
    %8105 = vmatprep.subr.bf16.mxu0 %v7055
    %8106 = vmatpush1.bf16.msra.mxu0 %v7054
    %8107 = vmatprep.subr.bf16.mxu0 %v7057
    %8108 = vmatpush1.bf16.msra.mxu0 %v7056
    %8109 = vmatprep.subr.bf16.mxu0 %v7059
    %8110 = vmatpush1.bf16.msra.mxu0 %v7058
    %8111 = vmatprep.subr.bf16.mxu0 %v7061
    %8112 = vmatpush1.bf16.msra.mxu0 %v7060
    %8113 = vmatprep.subr.bf16.mxu0 %v7063
    %8114 = vmatpush1.bf16.msra.mxu0 %v7062
    %8115 = vmatprep.mubr.bf16.mxu0 %v4851
    %8116 = vmatmul.mubr.bf16.gmra.mrb[0].mxu0 %v4850
    %v8117 = vpop.f32.mrb[0].mxu0
    %v8118 = vadd.f32 %v8077, %v8117
    %v8119 = vpop.f32.mrb[0].mxu0
    %v8120 = vadd.f32 %v8079, %v8119
    %v8121 = vpop.f32.mrb[0].mxu0
    %v8122 = vpop.f32.mrb[0].mxu0
    %8123 = vdwg.mxu0
    %8124 = vmatprep.subr.bf16.mxu0 %v7065
    %8125 = vmatpush1.bf16.msra.mxu0 %v7064
    %8126 = vmatprep.subr.bf16.mxu0 %v7067
    %8127 = vmatpush1.bf16.msra.mxu0 %v7066
    %8128 = vmatprep.subr.bf16.mxu0 %v7069
    %8129 = vmatpush1.bf16.msra.mxu0 %v7068
    %8130 = vmatprep.subr.bf16.mxu0 %v7071
    %8131 = vmatpush1.bf16.msra.mxu0 %v7070
    %8132 = vmatprep.subr.bf16.mxu0 %v7073
    %8133 = vmatpush1.bf16.msra.mxu0 %v7072
    %8134 = vmatprep.subr.bf16.mxu0 %v7075
    %8135 = vmatpush1.bf16.msra.mxu0 %v7074
    %8136 = vmatprep.subr.bf16.mxu0 %v7077
    %8137 = vmatpush1.bf16.msra.mxu0 %v7076
    %8138 = vmatprep.subr.bf16.mxu0 %v7079
    %8139 = vmatpush1.bf16.msra.mxu0 %v7078
    %8140 = vmatprep.subr.bf16.mxu0 %v7081
    %8141 = vmatpush1.bf16.msra.mxu0 %v7080
    %8142 = vmatprep.subr.bf16.mxu0 %v7083
    %8143 = vmatpush1.bf16.msra.mxu0 %v7082
    %8144 = vmatprep.subr.bf16.mxu0 %v7085
    %8145 = vmatpush1.bf16.msra.mxu0 %v7084
    %8146 = vmatprep.subr.bf16.mxu0 %v7087
    %8147 = vmatpush1.bf16.msra.mxu0 %v7086
    %8148 = vmatprep.subr.bf16.mxu0 %v7089
    %8149 = vmatpush1.bf16.msra.mxu0 %v7088
    %8150 = vmatprep.subr.bf16.mxu0 %v7091
    %8151 = vmatpush1.bf16.msra.mxu0 %v7090
    %8152 = vmatprep.subr.bf16.mxu0 %v7093
    %8153 = vmatpush1.bf16.msra.mxu0 %v7092
    %8154 = vmatprep.subr.bf16.mxu0 %v7095
    %8155 = vmatpush1.bf16.msra.mxu0 %v7094
    %8156 = vmatprep.mubr.bf16.mxu0 %v4853
    %8157 = vmatmul.mubr.bf16.gmra.mrb[0].mxu0 %v4852
    %v8158 = vpop.f32.mrb[0].mxu0
    %v8159 = vadd.f32 %v8118, %v8158
    %v8160 = vpop.f32.mrb[0].mxu0
    %v8161 = vadd.f32 %v8120, %v8160
    %v8162 = vpop.f32.mrb[0].mxu0
    %v8163 = vpop.f32.mrb[0].mxu0
    %8164 = vdwg.mxu0
    %8165 = vmatprep.subr.bf16.mxu0 %v7097
    %8166 = vmatpush1.bf16.msra.mxu0 %v7096
    %8167 = vmatprep.subr.bf16.mxu0 %v7099
    %8168 = vmatpush1.bf16.msra.mxu0 %v7098
    %8169 = vmatprep.subr.bf16.mxu0 %v7101
    %8170 = vmatpush1.bf16.msra.mxu0 %v7100
    %8171 = vmatprep.subr.bf16.mxu0 %v7103
    %8172 = vmatpush1.bf16.msra.mxu0 %v7102
    %8173 = vmatprep.subr.bf16.mxu0 %v7105
    %8174 = vmatpush1.bf16.msra.mxu0 %v7104
    %8175 = vmatprep.subr.bf16.mxu0 %v7107
    %8176 = vmatpush1.bf16.msra.mxu0 %v7106
    %8177 = vmatprep.subr.bf16.mxu0 %v7109
    %8178 = vmatpush1.bf16.msra.mxu0 %v7108
    %8179 = vmatprep.subr.bf16.mxu0 %v7111
    %8180 = vmatpush1.bf16.msra.mxu0 %v7110
    %8181 = vmatprep.subr.bf16.mxu0 %v7113
    %8182 = vmatpush1.bf16.msra.mxu0 %v7112
    %8183 = vmatprep.subr.bf16.mxu0 %v7115
    %8184 = vmatpush1.bf16.msra.mxu0 %v7114
    %8185 = vmatprep.subr.bf16.mxu0 %v7117
    %8186 = vmatpush1.bf16.msra.mxu0 %v7116
    %8187 = vmatprep.subr.bf16.mxu0 %v7119
    %8188 = vmatpush1.bf16.msra.mxu0 %v7118
    %8189 = vmatprep.subr.bf16.mxu0 %v7121
    %8190 = vmatpush1.bf16.msra.mxu0 %v7120
    %8191 = vmatprep.subr.bf16.mxu0 %v7123
    %8192 = vmatpush1.bf16.msra.mxu0 %v7122
    %8193 = vmatprep.subr.bf16.mxu0 %v7125
    %8194 = vmatpush1.bf16.msra.mxu0 %v7124
    %8195 = vmatprep.subr.bf16.mxu0 %v7127
    %8196 = vmatpush1.bf16.msra.mxu0 %v7126
    %8197 = vmatprep.mubr.bf16.mxu0 %v4855
    %8198 = vmatmul.mubr.bf16.gmra.mrb[0].mxu0 %v4854
    %v8199 = vpop.f32.mrb[0].mxu0
    %v8200 = vadd.f32 %v8159, %v8199
    %v8201 = vpop.f32.mrb[0].mxu0
    %v8202 = vadd.f32 %v8161, %v8201
    %v8203 = vpop.f32.mrb[0].mxu0
    %v8204 = vpop.f32.mrb[0].mxu0
    %8205 = vdwg.mxu0
    %8206 = vmatprep.subr.bf16.mxu0 %v7129
    %8207 = vmatpush1.bf16.msra.mxu0 %v7128
    %8208 = vmatprep.subr.bf16.mxu0 %v7131
    %8209 = vmatpush1.bf16.msra.mxu0 %v7130
    %8210 = vmatprep.subr.bf16.mxu0 %v7133
    %8211 = vmatpush1.bf16.msra.mxu0 %v7132
    %8212 = vmatprep.subr.bf16.mxu0 %v7135
    %8213 = vmatpush1.bf16.msra.mxu0 %v7134
    %8214 = vmatprep.subr.bf16.mxu0 %v7137
    %8215 = vmatpush1.bf16.msra.mxu0 %v7136
    %8216 = vmatprep.subr.bf16.mxu0 %v7139
    %8217 = vmatpush1.bf16.msra.mxu0 %v7138
    %8218 = vmatprep.subr.bf16.mxu0 %v7141
    %8219 = vmatpush1.bf16.msra.mxu0 %v7140
    %8220 = vmatprep.subr.bf16.mxu0 %v7143
    %8221 = vmatpush1.bf16.msra.mxu0 %v7142
    %8222 = vmatprep.subr.bf16.mxu0 %v7145
    %8223 = vmatpush1.bf16.msra.mxu0 %v7144
    %8224 = vmatprep.subr.bf16.mxu0 %v7147
    %8225 = vmatpush1.bf16.msra.mxu0 %v7146
    %8226 = vmatprep.subr.bf16.mxu0 %v7149
    %8227 = vmatpush1.bf16.msra.mxu0 %v7148
    %8228 = vmatprep.subr.bf16.mxu0 %v7151
    %8229 = vmatpush1.bf16.msra.mxu0 %v7150
    %8230 = vmatprep.subr.bf16.mxu0 %v7153
    %8231 = vmatpush1.bf16.msra.mxu0 %v7152
    %8232 = vmatprep.subr.bf16.mxu0 %v7155
    %8233 = vmatpush1.bf16.msra.mxu0 %v7154
    %8234 = vmatprep.subr.bf16.mxu0 %v7157
    %8235 = vmatpush1.bf16.msra.mxu0 %v7156
    %8236 = vmatprep.subr.bf16.mxu0 %v7159
    %8237 = vmatpush1.bf16.msra.mxu0 %v7158
    %8238 = vmatprep.mubr.bf16.mxu0 %v4857
    %8239 = vmatmul.mubr.bf16.gmra.mrb[0].mxu0 %v4856
    %v8240 = vpop.f32.mrb[0].mxu0
    %v8241 = vadd.f32 %v8200, %v8240
    %v8242 = vpop.f32.mrb[0].mxu0
    %v8243 = vadd.f32 %v8202, %v8242
    %v8244 = vpop.f32.mrb[0].mxu0
    %v8245 = vpop.f32.mrb[0].mxu0
    %8246 = vdwg.mxu0
    %8247 = vmatprep.subr.bf16.mxu0 %v7161
    %8248 = vmatpush1.bf16.msra.mxu0 %v7160
    %8249 = vmatprep.subr.bf16.mxu0 %v7163
    %8250 = vmatpush1.bf16.msra.mxu0 %v7162
    %8251 = vmatprep.subr.bf16.mxu0 %v7165
    %8252 = vmatpush1.bf16.msra.mxu0 %v7164
    %8253 = vmatprep.subr.bf16.mxu0 %v7167
    %8254 = vmatpush1.bf16.msra.mxu0 %v7166
    %8255 = vmatprep.subr.bf16.mxu0 %v7169
    %8256 = vmatpush1.bf16.msra.mxu0 %v7168
    %8257 = vmatprep.subr.bf16.mxu0 %v7171
    %8258 = vmatpush1.bf16.msra.mxu0 %v7170
    %8259 = vmatprep.subr.bf16.mxu0 %v7173
    %8260 = vmatpush1.bf16.msra.mxu0 %v7172
    %8261 = vmatprep.subr.bf16.mxu0 %v7175
    %8262 = vmatpush1.bf16.msra.mxu0 %v7174
    %8263 = vmatprep.subr.bf16.mxu0 %v7177
    %8264 = vmatpush1.bf16.msra.mxu0 %v7176
    %8265 = vmatprep.subr.bf16.mxu0 %v7179
    %8266 = vmatpush1.bf16.msra.mxu0 %v7178
    %8267 = vmatprep.subr.bf16.mxu0 %v7181
    %8268 = vmatpush1.bf16.msra.mxu0 %v7180
    %8269 = vmatprep.subr.bf16.mxu0 %v7183
    %8270 = vmatpush1.bf16.msra.mxu0 %v7182
    %8271 = vmatprep.subr.bf16.mxu0 %v7185
    %8272 = vmatpush1.bf16.msra.mxu0 %v7184
    %8273 = vmatprep.subr.bf16.mxu0 %v7187
    %8274 = vmatpush1.bf16.msra.mxu0 %v7186
    %8275 = vmatprep.subr.bf16.mxu0 %v7189
    %8276 = vmatpush1.bf16.msra.mxu0 %v7188
    %8277 = vmatprep.subr.bf16.mxu0 %v7191
    %8278 = vmatpush1.bf16.msra.mxu0 %v7190
    %8279 = vmatprep.mubr.bf16.mxu0 %v4859
    %8280 = vmatmul.mubr.bf16.gmra.mrb[0].mxu0 %v4858
    %v8281 = vpop.f32.mrb[0].mxu0
    %v8282 = vadd.f32 %v8241, %v8281
    %v8283 = vpop.f32.mrb[0].mxu0
    %v8284 = vadd.f32 %v8243, %v8283
    %v8285 = vpop.f32.mrb[0].mxu0
    %v8286 = vpop.f32.mrb[0].mxu0
    %8287 = vdwg.mxu0
    %8288 = vmatprep.subr.bf16.mxu0 %v7193
    %8289 = vmatpush1.bf16.msra.mxu0 %v7192
    %8290 = vmatprep.subr.bf16.mxu0 %v7195
    %8291 = vmatpush1.bf16.msra.mxu0 %v7194
    %8292 = vmatprep.subr.bf16.mxu0 %v7197
    %8293 = vmatpush1.bf16.msra.mxu0 %v7196
    %8294 = vmatprep.subr.bf16.mxu0 %v7199
    %8295 = vmatpush1.bf16.msra.mxu0 %v7198
    %8296 = vmatprep.subr.bf16.mxu0 %v7201
    %8297 = vmatpush1.bf16.msra.mxu0 %v7200
    %8298 = vmatprep.subr.bf16.mxu0 %v7203
    %8299 = vmatpush1.bf16.msra.mxu0 %v7202
    %8300 = vmatprep.subr.bf16.mxu0 %v7205
    %8301 = vmatpush1.bf16.msra.mxu0 %v7204
    %8302 = vmatprep.subr.bf16.mxu0 %v7207
    %8303 = vmatpush1.bf16.msra.mxu0 %v7206
    %8304 = vmatprep.subr.bf16.mxu0 %v7209
    %8305 = vmatpush1.bf16.msra.mxu0 %v7208
    %8306 = vmatprep.subr.bf16.mxu0 %v7211
    %8307 = vmatpush1.bf16.msra.mxu0 %v7210
    %8308 = vmatprep.subr.bf16.mxu0 %v7213
    %8309 = vmatpush1.bf16.msra.mxu0 %v7212
    %8310 = vmatprep.subr.bf16.mxu0 %v7215
    %8311 = vmatpush1.bf16.msra.mxu0 %v7214
    %8312 = vmatprep.subr.bf16.mxu0 %v7217
    %8313 = vmatpush1.bf16.msra.mxu0 %v7216
    %8314 = vmatprep.subr.bf16.mxu0 %v7219
    %8315 = vmatpush1.bf16.msra.mxu0 %v7218
    %8316 = vmatprep.subr.bf16.mxu0 %v7221
    %8317 = vmatpush1.bf16.msra.mxu0 %v7220
    %8318 = vmatprep.subr.bf16.mxu0 %v7223
    %8319 = vmatpush1.bf16.msra.mxu0 %v7222
    %8320 = vmatprep.mubr.bf16.mxu0 %v4861
    %8321 = vmatmul.mubr.bf16.gmra.mrb[0].mxu0 %v4860
    %v8322 = vpop.f32.mrb[0].mxu0
    %v8323 = vadd.f32 %v8282, %v8322
    %v8324 = vpop.f32.mrb[0].mxu0
    %v8325 = vadd.f32 %v8284, %v8324
    %v8326 = vpop.f32.mrb[0].mxu0
    %v8327 = vpop.f32.mrb[0].mxu0
    %8328 = vdwg.mxu0
    %8329 = vmatprep.subr.bf16.mxu0 %v7225
    %8330 = vmatpush1.bf16.msra.mxu0 %v7224
    %8331 = vmatprep.subr.bf16.mxu0 %v7227
    %8332 = vmatpush1.bf16.msra.mxu0 %v7226
    %8333 = vmatprep.subr.bf16.mxu0 %v7229
    %8334 = vmatpush1.bf16.msra.mxu0 %v7228
    %8335 = vmatprep.subr.bf16.mxu0 %v7231
    %8336 = vmatpush1.bf16.msra.mxu0 %v7230
    %8337 = vmatprep.subr.bf16.mxu0 %v7233
    %8338 = vmatpush1.bf16.msra.mxu0 %v7232
    %8339 = vmatprep.subr.bf16.mxu0 %v7235
    %8340 = vmatpush1.bf16.msra.mxu0 %v7234
    %8341 = vmatprep.subr.bf16.mxu0 %v7237
    %8342 = vmatpush1.bf16.msra.mxu0 %v7236
    %8343 = vmatprep.subr.bf16.mxu0 %v7239
    %8344 = vmatpush1.bf16.msra.mxu0 %v7238
    %8345 = vmatprep.subr.bf16.mxu0 %v7241
    %8346 = vmatpush1.bf16.msra.mxu0 %v7240
    %8347 = vmatprep.subr.bf16.mxu0 %v7243
    %8348 = vmatpush1.bf16.msra.mxu0 %v7242
    %8349 = vmatprep.subr.bf16.mxu0 %v7245
    %8350 = vmatpush1.bf16.msra.mxu0 %v7244
    %8351 = vmatprep.subr.bf16.mxu0 %v7247
    %8352 = vmatpush1.bf16.msra.mxu0 %v7246
    %8353 = vmatprep.subr.bf16.mxu0 %v7249
    %8354 = vmatpush1.bf16.msra.mxu0 %v7248
    %8355 = vmatprep.subr.bf16.mxu0 %v7251
    %8356 = vmatpush1.bf16.msra.mxu0 %v7250
    %8357 = vmatprep.subr.bf16.mxu0 %v7253
    %8358 = vmatpush1.bf16.msra.mxu0 %v7252
    %8359 = vmatprep.subr.bf16.mxu0 %v7255
    %8360 = vmatpush1.bf16.msra.mxu0 %v7254
    %8361 = vmatprep.mubr.bf16.mxu0 %v4863
    %8362 = vmatmul.mubr.bf16.gmra.mrb[0].mxu0 %v4862
    %v8363 = vpop.f32.mrb[0].mxu0
    %v8364 = vadd.f32 %v8323, %v8363
    %v8365 = vpop.f32.mrb[0].mxu0
    %v8366 = vadd.f32 %v8325, %v8365
    %v8367 = vpop.f32.mrb[0].mxu0
    %v8368 = vpop.f32.mrb[0].mxu0
    %8369 = vdwg.mxu0
    %8370 = vmatprep.subr.bf16.mxu0 %v7257
    %8371 = vmatpush1.bf16.msra.mxu0 %v7256
    %8372 = vmatprep.subr.bf16.mxu0 %v7259
    %8373 = vmatpush1.bf16.msra.mxu0 %v7258
    %8374 = vmatprep.subr.bf16.mxu0 %v7261
    %8375 = vmatpush1.bf16.msra.mxu0 %v7260
    %8376 = vmatprep.subr.bf16.mxu0 %v7263
    %8377 = vmatpush1.bf16.msra.mxu0 %v7262
    %8378 = vmatprep.subr.bf16.mxu0 %v7265
    %8379 = vmatpush1.bf16.msra.mxu0 %v7264
    %8380 = vmatprep.subr.bf16.mxu0 %v7267
    %8381 = vmatpush1.bf16.msra.mxu0 %v7266
    %8382 = vmatprep.subr.bf16.mxu0 %v7269
    %8383 = vmatpush1.bf16.msra.mxu0 %v7268
    %8384 = vmatprep.subr.bf16.mxu0 %v7271
    %8385 = vmatpush1.bf16.msra.mxu0 %v7270
    %8386 = vmatprep.subr.bf16.mxu0 %v7273
    %8387 = vmatpush1.bf16.msra.mxu0 %v7272
    %8388 = vmatprep.subr.bf16.mxu0 %v7275
    %8389 = vmatpush1.bf16.msra.mxu0 %v7274
    %8390 = vmatprep.subr.bf16.mxu0 %v7277
    %8391 = vmatpush1.bf16.msra.mxu0 %v7276
    %8392 = vmatprep.subr.bf16.mxu0 %v7279
    %8393 = vmatpush1.bf16.msra.mxu0 %v7278
    %8394 = vmatprep.subr.bf16.mxu0 %v7281
    %8395 = vmatpush1.bf16.msra.mxu0 %v7280
    %8396 = vmatprep.subr.bf16.mxu0 %v7283
    %8397 = vmatpush1.bf16.msra.mxu0 %v7282
    %8398 = vmatprep.subr.bf16.mxu0 %v7285
    %8399 = vmatpush1.bf16.msra.mxu0 %v7284
    %8400 = vmatprep.subr.bf16.mxu0 %v7287
    %8401 = vmatpush1.bf16.msra.mxu0 %v7286
    %8402 = vmatprep.mubr.bf16.mxu0 %v4865
    %8403 = vmatmul.mubr.bf16.gmra.mrb[0].mxu0 %v4864
    %v8404 = vpop.f32.mrb[0].mxu0
    %v8405 = vadd.f32 %v8364, %v8404
    %v8406 = vpop.f32.mrb[0].mxu0
    %v8407 = vadd.f32 %v8366, %v8406
    %v8408 = vpop.f32.mrb[0].mxu0
    %v8409 = vpop.f32.mrb[0].mxu0
    %8410 = vdwg.mxu0
    %8411 = vmatprep.subr.bf16.mxu0 %v7289
    %8412 = vmatpush1.bf16.msra.mxu0 %v7288
    %8413 = vmatprep.subr.bf16.mxu0 %v7291
    %8414 = vmatpush1.bf16.msra.mxu0 %v7290
    %8415 = vmatprep.subr.bf16.mxu0 %v7293
    %8416 = vmatpush1.bf16.msra.mxu0 %v7292
    %8417 = vmatprep.subr.bf16.mxu0 %v7295
    %8418 = vmatpush1.bf16.msra.mxu0 %v7294
    %8419 = vmatprep.subr.bf16.mxu0 %v7297
    %8420 = vmatpush1.bf16.msra.mxu0 %v7296
    %8421 = vmatprep.subr.bf16.mxu0 %v7299
    %8422 = vmatpush1.bf16.msra.mxu0 %v7298
    %8423 = vmatprep.subr.bf16.mxu0 %v7301
    %8424 = vmatpush1.bf16.msra.mxu0 %v7300
    %8425 = vmatprep.subr.bf16.mxu0 %v7303
    %8426 = vmatpush1.bf16.msra.mxu0 %v7302
    %8427 = vmatprep.subr.bf16.mxu0 %v7305
    %8428 = vmatpush1.bf16.msra.mxu0 %v7304
    %8429 = vmatprep.subr.bf16.mxu0 %v7307
    %8430 = vmatpush1.bf16.msra.mxu0 %v7306
    %8431 = vmatprep.subr.bf16.mxu0 %v7309
    %8432 = vmatpush1.bf16.msra.mxu0 %v7308
    %8433 = vmatprep.subr.bf16.mxu0 %v7311
    %8434 = vmatpush1.bf16.msra.mxu0 %v7310
    %8435 = vmatprep.subr.bf16.mxu0 %v7313
    %8436 = vmatpush1.bf16.msra.mxu0 %v7312
    %8437 = vmatprep.subr.bf16.mxu0 %v7315
    %8438 = vmatpush1.bf16.msra.mxu0 %v7314
    %8439 = vmatprep.subr.bf16.mxu0 %v7317
    %8440 = vmatpush1.bf16.msra.mxu0 %v7316
    %8441 = vmatprep.subr.bf16.mxu0 %v7319
    %8442 = vmatpush1.bf16.msra.mxu0 %v7318
    %8443 = vmatprep.mubr.bf16.mxu0 %v4867
    %8444 = vmatmul.mubr.bf16.gmra.mrb[0].mxu0 %v4866
    %v8445 = vpop.f32.mrb[0].mxu0
    %v8446 = vadd.f32 %v8405, %v8445
    %v8447 = vpop.f32.mrb[0].mxu0
    %v8448 = vadd.f32 %v8407, %v8447
    %v8449 = vpop.f32.mrb[0].mxu0
    %v8450 = vpop.f32.mrb[0].mxu0
    %8451 = vdwg.mxu0
    %8452 = vmatprep.subr.bf16.mxu0 %v7321
    %8453 = vmatpush1.bf16.msra.mxu0 %v7320
    %8454 = vmatprep.subr.bf16.mxu0 %v7323
    %8455 = vmatpush1.bf16.msra.mxu0 %v7322
    %8456 = vmatprep.subr.bf16.mxu0 %v7325
    %8457 = vmatpush1.bf16.msra.mxu0 %v7324
    %8458 = vmatprep.subr.bf16.mxu0 %v7327
    %8459 = vmatpush1.bf16.msra.mxu0 %v7326
    %8460 = vmatprep.subr.bf16.mxu0 %v7329
    %8461 = vmatpush1.bf16.msra.mxu0 %v7328
    %8462 = vmatprep.subr.bf16.mxu0 %v7331
    %8463 = vmatpush1.bf16.msra.mxu0 %v7330
    %8464 = vmatprep.subr.bf16.mxu0 %v7333
    %8465 = vmatpush1.bf16.msra.mxu0 %v7332
    %8466 = vmatprep.subr.bf16.mxu0 %v7335
    %8467 = vmatpush1.bf16.msra.mxu0 %v7334
    %8468 = vmatprep.subr.bf16.mxu0 %v7337
    %8469 = vmatpush1.bf16.msra.mxu0 %v7336
    %8470 = vmatprep.subr.bf16.mxu0 %v7339
    %8471 = vmatpush1.bf16.msra.mxu0 %v7338
    %8472 = vmatprep.subr.bf16.mxu0 %v7341
    %8473 = vmatpush1.bf16.msra.mxu0 %v7340
    %8474 = vmatprep.subr.bf16.mxu0 %v7343
    %8475 = vmatpush1.bf16.msra.mxu0 %v7342
    %8476 = vmatprep.subr.bf16.mxu0 %v7345
    %8477 = vmatpush1.bf16.msra.mxu0 %v7344
    %8478 = vmatprep.subr.bf16.mxu0 %v7347
    %8479 = vmatpush1.bf16.msra.mxu0 %v7346
    %8480 = vmatprep.subr.bf16.mxu0 %v7349
    %8481 = vmatpush1.bf16.msra.mxu0 %v7348
    %8482 = vmatprep.subr.bf16.mxu0 %v7351
    %8483 = vmatpush1.bf16.msra.mxu0 %v7350
    %8484 = vmatprep.mubr.bf16.mxu0 %v4869
    %8485 = vmatmul.mubr.bf16.gmra.mrb[0].mxu0 %v4868
    %v8486 = vpop.f32.mrb[0].mxu0
    %v8487 = vadd.f32 %v8446, %v8486
    %v8488 = vpop.f32.mrb[0].mxu0
    %v8489 = vadd.f32 %v8448, %v8488
    %v8490 = vpop.f32.mrb[0].mxu0
    %v8491 = vpop.f32.mrb[0].mxu0
    %8492 = vdwg.mxu0
    %8493 = vmatprep.subr.bf16.mxu0 %v7353
    %8494 = vmatpush1.bf16.msra.mxu0 %v7352
    %8495 = vmatprep.subr.bf16.mxu0 %v7355
    %8496 = vmatpush1.bf16.msra.mxu0 %v7354
    %8497 = vmatprep.subr.bf16.mxu0 %v7357
    %8498 = vmatpush1.bf16.msra.mxu0 %v7356
    %8499 = vmatprep.subr.bf16.mxu0 %v7359
    %8500 = vmatpush1.bf16.msra.mxu0 %v7358
    %8501 = vmatprep.subr.bf16.mxu0 %v7361
    %8502 = vmatpush1.bf16.msra.mxu0 %v7360
    %8503 = vmatprep.subr.bf16.mxu0 %v7363
    %8504 = vmatpush1.bf16.msra.mxu0 %v7362
    %8505 = vmatprep.subr.bf16.mxu0 %v7365
    %8506 = vmatpush1.bf16.msra.mxu0 %v7364
    %8507 = vmatprep.subr.bf16.mxu0 %v7367
    %8508 = vmatpush1.bf16.msra.mxu0 %v7366
    %8509 = vmatprep.subr.bf16.mxu0 %v7369
    %8510 = vmatpush1.bf16.msra.mxu0 %v7368
    %8511 = vmatprep.subr.bf16.mxu0 %v7371
    %8512 = vmatpush1.bf16.msra.mxu0 %v7370
    %8513 = vmatprep.subr.bf16.mxu0 %v7373
    %8514 = vmatpush1.bf16.msra.mxu0 %v7372
    %8515 = vmatprep.subr.bf16.mxu0 %v7375
    %8516 = vmatpush1.bf16.msra.mxu0 %v7374
    %8517 = vmatprep.subr.bf16.mxu0 %v7377
    %8518 = vmatpush1.bf16.msra.mxu0 %v7376
    %8519 = vmatprep.subr.bf16.mxu0 %v7379
    %8520 = vmatpush1.bf16.msra.mxu0 %v7378
    %8521 = vmatprep.subr.bf16.mxu0 %v7381
    %8522 = vmatpush1.bf16.msra.mxu0 %v7380
    %8523 = vmatprep.subr.bf16.mxu0 %v7383
    %8524 = vmatpush1.bf16.msra.mxu0 %v7382
    %8525 = vmatprep.mubr.bf16.mxu0 %v4871
    %8526 = vmatmul.mubr.bf16.gmra.mrb[0].mxu0 %v4870
    %v8527 = vpop.f32.mrb[0].mxu0
    %v8528 = vadd.f32 %v8487, %v8527
    %v8529 = vpop.f32.mrb[0].mxu0
    %v8530 = vadd.f32 %v8489, %v8529
    %v8531 = vpop.f32.mrb[0].mxu0
    %v8532 = vpop.f32.mrb[0].mxu0
    %8533 = vdwg.mxu0
    %8534 = vmatprep.subr.bf16.mxu0 %v7385
    %8535 = vmatpush1.bf16.msra.mxu0 %v7384
    %8536 = vmatprep.subr.bf16.mxu0 %v7387
    %8537 = vmatpush1.bf16.msra.mxu0 %v7386
    %8538 = vmatprep.subr.bf16.mxu0 %v7389
    %8539 = vmatpush1.bf16.msra.mxu0 %v7388
    %8540 = vmatprep.subr.bf16.mxu0 %v7391
    %8541 = vmatpush1.bf16.msra.mxu0 %v7390
    %8542 = vmatprep.subr.bf16.mxu0 %v7393
    %8543 = vmatpush1.bf16.msra.mxu0 %v7392
    %8544 = vmatprep.subr.bf16.mxu0 %v7395
    %8545 = vmatpush1.bf16.msra.mxu0 %v7394
    %8546 = vmatprep.subr.bf16.mxu0 %v7397
    %8547 = vmatpush1.bf16.msra.mxu0 %v7396
    %8548 = vmatprep.subr.bf16.mxu0 %v7399
    %8549 = vmatpush1.bf16.msra.mxu0 %v7398
    %8550 = vmatprep.subr.bf16.mxu0 %v7401
    %8551 = vmatpush1.bf16.msra.mxu0 %v7400
    %8552 = vmatprep.subr.bf16.mxu0 %v7403
    %8553 = vmatpush1.bf16.msra.mxu0 %v7402
    %8554 = vmatprep.subr.bf16.mxu0 %v7405
    %8555 = vmatpush1.bf16.msra.mxu0 %v7404
    %8556 = vmatprep.subr.bf16.mxu0 %v7407
    %8557 = vmatpush1.bf16.msra.mxu0 %v7406
    %8558 = vmatprep.subr.bf16.mxu0 %v7409
    %8559 = vmatpush1.bf16.msra.mxu0 %v7408
    %8560 = vmatprep.subr.bf16.mxu0 %v7411
    %8561 = vmatpush1.bf16.msra.mxu0 %v7410
    %8562 = vmatprep.subr.bf16.mxu0 %v7413
    %8563 = vmatpush1.bf16.msra.mxu0 %v7412
    %8564 = vmatprep.subr.bf16.mxu0 %v7415
    %8565 = vmatpush1.bf16.msra.mxu0 %v7414
    %8566 = vmatprep.mubr.bf16.mxu0 %v4873
    %8567 = vmatmul.mubr.bf16.gmra.mrb[0].mxu0 %v4872
    %v8568 = vpop.f32.mrb[0].mxu0
    %v8569 = vadd.f32 %v8528, %v8568
    %v8570 = vpop.f32.mrb[0].mxu0
    %v8571 = vadd.f32 %v8530, %v8570
    %v8572 = vpop.f32.mrb[0].mxu0
    %v8573 = vpop.f32.mrb[0].mxu0
    %8574 = vdwg.mxu0
    %8575 = vmatprep.subr.bf16.mxu0 %v7417
    %8576 = vmatpush1.bf16.msra.mxu0 %v7416
    %8577 = vmatprep.subr.bf16.mxu0 %v7419
    %8578 = vmatpush1.bf16.msra.mxu0 %v7418
    %8579 = vmatprep.subr.bf16.mxu0 %v7421
    %8580 = vmatpush1.bf16.msra.mxu0 %v7420
    %8581 = vmatprep.subr.bf16.mxu0 %v7423
    %8582 = vmatpush1.bf16.msra.mxu0 %v7422
    %8583 = vmatprep.subr.bf16.mxu0 %v7425
    %8584 = vmatpush1.bf16.msra.mxu0 %v7424
    %8585 = vmatprep.subr.bf16.mxu0 %v7427
    %8586 = vmatpush1.bf16.msra.mxu0 %v7426
    %8587 = vmatprep.subr.bf16.mxu0 %v7429
    %8588 = vmatpush1.bf16.msra.mxu0 %v7428
    %8589 = vmatprep.subr.bf16.mxu0 %v7431
    %8590 = vmatpush1.bf16.msra.mxu0 %v7430
    %8591 = vmatprep.subr.bf16.mxu0 %v7433
    %8592 = vmatpush1.bf16.msra.mxu0 %v7432
    %8593 = vmatprep.subr.bf16.mxu0 %v7435
    %8594 = vmatpush1.bf16.msra.mxu0 %v7434
    %8595 = vmatprep.subr.bf16.mxu0 %v7437
    %8596 = vmatpush1.bf16.msra.mxu0 %v7436
    %8597 = vmatprep.subr.bf16.mxu0 %v7439
    %8598 = vmatpush1.bf16.msra.mxu0 %v7438
    %8599 = vmatprep.subr.bf16.mxu0 %v7441
    %8600 = vmatpush1.bf16.msra.mxu0 %v7440
    %8601 = vmatprep.subr.bf16.mxu0 %v7443
    %8602 = vmatpush1.bf16.msra.mxu0 %v7442
    %8603 = vmatprep.subr.bf16.mxu0 %v7445
    %8604 = vmatpush1.bf16.msra.mxu0 %v7444
    %8605 = vmatprep.subr.bf16.mxu0 %v7447
    %8606 = vmatpush1.bf16.msra.mxu0 %v7446
    %8607 = vmatprep.mubr.bf16.mxu0 %v4875
    %8608 = vmatmul.mubr.bf16.gmra.mrb[0].mxu0 %v4874
    %v8609 = vpop.f32.mrb[0].mxu0
    %v8610 = vadd.f32 %v8569, %v8609
    %v8611 = vpop.f32.mrb[0].mxu0
    %v8612 = vadd.f32 %v8571, %v8611
    %v8613 = vpop.f32.mrb[0].mxu0
    %v8614 = vpop.f32.mrb[0].mxu0
    %8615 = vdwg.mxu0
    %8616 = vst [vmem:[#allocation6] sm:$0x3] %v8610
    %v8617 = vmax.f32 %v8612, 0.0
    %v8618 = vld [vmem:[%s9] sm:$0x1]
    %v8620 = vlaneseq
    %v8621 = vshrl.u32 %v8620, 7
    %v8622 = vsub.s32 0, %v8621
    %v8623 = vrot.slane %v8618, %v8622
    %v8625 = vmul.f32 %v8617, %v8623
    %v8626 = vsel %vm46, %v8625, 0.0
    %8627 = vadd.xlane.f32.xlu0 %v8626
    %v8628 = vpop.xlane.xlu0 %8627
    %v8629 = vld [vmem:[#allocation5] sm:$0x1]
    %v8631 = vlaneseq
    %v8632 = vshrl.u32 %v8631, 7
    %v8633 = vsub.s32 0, %v8632
    %v8634 = vrot.slane %v8629, %v8633
    %v8636 = vadd.f32 %v8628, %v8634
    %v8637 = vtanh.pop %v8636
    %vm8638 = vcmask 1024
    %8639 = vst.msk [vmem:[%s12] sm:$0x3] %vm8638, %v8637
    // Predicated region
    $region46: #{othello_net_forward.1} parent=1 // pred_check
      _
    $region47: #{othello_net_forward.1} parent=1 // pred_check_branch
      %8641 = sbr.rel (0) target = $region49
    $region48: #{othello_net_forward.1} parent=1 // pred_region
      %s8643 = ssub.s32 32, 32
      %8644 = vsyncadd [#allocation7], %s8643
      %s8646 = sshll.u32 [#allocation6], 4
      %s8647 = int_to_ptr.vmem [resolvable:$true] %s8646
      %8649 = dma.vmem_to_hbm [thread:$0]  %s8647, 32, %s11, [#allocation7]
    $region49: #{othello_net_forward.1} parent=1 // pred_fallthru
      _
    // Predicated region
    $region50: #{othello_net_forward.1} parent=1 // pred_check
      _
    $region51: #{othello_net_forward.1} parent=1 // pred_check_branch
      %8651 = sbr.rel (0) target = $region53
    $region52: #{othello_net_forward.1} parent=1 // pred_region
      _
    $region53: #{othello_net_forward.1} parent=1 // pred_fallthru
      _
    // Predicated region
    $region54: #{othello_net_forward.1} parent=1 // pred_check
      _
    $region55: #{othello_net_forward.1} parent=1 // pred_check_branch
      %8653 = sbr.rel (0) target = $region57
    $region56: #{othello_net_forward.1} parent=1 // pred_region
      %8654 = dma.done [#allocation7], 32
    $region57: #{othello_net_forward.1} parent=1 // pred_fallthru
      _
    // Predicated region
    $region58: #{othello_net_forward.1} parent=1 // pred_check
      _
    $region59: #{othello_net_forward.1} parent=1 // pred_check_branch
      %8656 = sbr.rel (0) target = $region61
    $region60: #{othello_net_forward.1} parent=1 // pred_region
      _
    $region61: #{othello_net_forward.1} parent=1 // pred_fallthru
      _
    %8657 = vsyncpa [#allocation7], 1

</llo_original>
